<compile_context>
chip_gen: v6e
topology: v6e:2x2x1
jax: 0.10.0
libtpu: 0.0.40
codegen_flags: <defaults>
</compile_context>

<pallas_src>
import functools

import numpy as np
import jax
import jax.numpy as jnp
from jax import lax
from jax.experimental import pallas as pl
from jax.experimental.pallas import tpu as pltpu


# ----------------------------------------------------------------------------
# Border masks for the 9 conv taps: mask[t, 0, q] = 1 iff the tap's source pixel
# is inside the image (handles zero "same" padding, row wrap and batch wrap in
# the flattened (C, B*H*W) layout).  Pure compile-time constant (18 KiB), its
# DMA overlaps the weight DMAs.
# ----------------------------------------------------------------------------
def _tap_masks(B, H, W):
    HW = H * W
    p = np.arange(B * HW) % HW
    hh = p // W
    ww = p % W
    m = []
    for kh in range(3):
        for kw in range(3):
            dh, dw = kh - 1, kw - 1
            ok = (hh + dh >= 0) & (hh + dh < H) & (ww + dw >= 0) & (ww + dw < W)
            m.append(ok.astype(np.float32))
    return jnp.asarray(np.stack(m).reshape(9, 1, B * HW))


# ----------------------------------------------------------------------------
# The single fused kernel.
# ----------------------------------------------------------------------------
def fused_kernel(obs_ref, tap_ref,
                 cw1, g1, be1,
                 wf2, g2, be2,
                 wf3, g3, be3,
                 wf4, cb4,
                 w1, b1, w2, b2, lng, lnb, w3, b3,
                 out_ref,
                 pad_ref, col_ref,
                 *, B, H, W, Cin, Chid, S, PAD, eps):
    HW = H * W
    N = B * HW
    bf16 = jnp.bfloat16

    # Zero ONLY the two margin slabs; the interior [PAD, PAD+N) is overwritten
    # by every layer before it is read.
    zpad = jnp.zeros((pad_ref.shape[0], PAD), jnp.float32)
    pad_ref[:, 0:PAD] = zpad
    pad_ref[:, PAD + N:PAD + N + PAD] = zpad

    def bn_relu(x, g_ref, b_ref):
        # BatchNorm2d training-mode batch stats (biased variance) + ReLU.
        # var = E[x^2] - mu^2 so the two cross-lane reductions are independent;
        # affine folded into a single x*s + t full-width pass.
        mu = jnp.sum(x, axis=1, keepdims=True) * (1.0 / N)
        ex2 = jnp.sum(x * x, axis=1, keepdims=True) * (1.0 / N)
        var = jnp.maximum(ex2 - mu * mu, 0.0)
        sc = g_ref[...] * lax.rsqrt(var + eps)          # (C,1)
        sh = b_ref[...] - mu * sc                       # (C,1)
        return jnp.maximum(x * sc + sh, 0.0)

    def stash_cols(x):
        # x: (Chid, N) f32.  Write it into the padded scratch, then write the
        # 9 masked lane-shifted copies as bf16 rows of the im2col scratch
        # (32-row blocks -> fully tile-aligned stores).
        pad_ref[0:Chid, PAD:PAD + N] = x
        for kh in range(3):
            for kw in range(3):
                t = kh * 3 + kw
                s = (kh - 1) * W + (kw - 1)
                src = pad_ref[0:Chid, PAD + s:PAD + s + N]
                if (kh, kw) != (1, 1):
                    src = src * tap_ref[t]               # (1, N) 0/1 mask
                col_ref[t * Chid:(t + 1) * Chid, :] = src.astype(bf16)

    def conv_from_cols(w_ref):
        # Single K = 9*Chid bf16 matmul on the MXU, f32 accumulation.
        return jnp.dot(w_ref[...], col_ref[...],
                       preferred_element_type=jnp.float32)

    # ---- conv1 (Cin=3): per-tap dots (kept deliberately; see header) --------
    # Conv biases for conv1-3 are omitted: BN's batch-mean subtraction cancels
    # any per-channel constant, so the result is bit-identical without them.
    for b in range(B):
        pad_ref[0:Cin, PAD + b * HW:PAD + (b + 1) * HW] = obs_ref[b]
    acc = jnp.zeros((Chid, N), jnp.float32)
    for kh in range(3):
        for kw in range(3):
            t = kh * 3 + kw
            s = (kh - 1) * W + (kw - 1)
            src = pad_ref[0:Cin, PAD + s:PAD + s + N]
            if (kh, kw) != (1, 1):
                src = src * tap_ref[t]
            acc = acc + jnp.dot(cw1[kh, kw], src.astype(bf16),
                                preferred_element_type=jnp.float32)
    h = bn_relu(acc, g1, be1)

    # ---- conv2..conv4: im2col, one MXU dot each ------------------------------
    stash_cols(h)
    h = bn_relu(conv_from_cols(wf2), g2, be2)
    stash_cols(h)
    h = bn_relu(conv_from_cols(wf3), g3, be3)
    stash_cols(h)
    h = jax.nn.sigmoid(conv_from_cols(wf4) + cb4[...])   # (S, B*HW)

    # ---- EncoderMLP, per batch element on register-resident slices ----------
    # h[:, b*HW:(b+1)*HW] is a lane-aligned slice == PyTorch's
    # (B, S, H, W).view(-1, S, H*W) rows for batch b.
    Dh = w2.shape[0]                                      # hidden dim
    for b in range(B):
        hb = h[:, b * HW:(b + 1) * HW].astype(bf16)       # (S, HW)
        z = jnp.dot(hb, w1[...], preferred_element_type=jnp.float32) + b1[...]
        z = jnp.maximum(z, 0.0)
        z = jnp.dot(z.astype(bf16), w2[...],
                    preferred_element_type=jnp.float32) + b2[...]
        # LayerNorm (eps=1e-5), same fused-affine / E[x^2] form as BN.
        mu = jnp.sum(z, axis=-1, keepdims=True) * (1.0 / Dh)
        ex2 = jnp.sum(z * z, axis=-1, keepdims=True) * (1.0 / Dh)
        var = jnp.maximum(ex2 - mu * mu, 0.0)
        sc = lng[...] * lax.rsqrt(var + eps)
        sh = lnb[...] - mu * sc
        z = jnp.maximum(z * sc + sh, 0.0)
        out_ref[b * S:(b + 1) * S, :] = (
            jnp.dot(z.astype(bf16), w3[...],
                    preferred_element_type=jnp.float32) + b3[...])


# ----------------------------------------------------------------------------
# Wrapper: one pallas_call for the full forward.
# ----------------------------------------------------------------------------
def encoder_cnn_large_forward(obs_nchw, params, *, num_slots):
    B, Cin, H, W = obs_nchw.shape
    HW = H * W
    N = B * HW
    S = num_slots
    Chid = params["cw1"].shape[2]            # conv weights stored (3,3,Cout,Cin)
    slot_dim = params["mlp"]["w3"].shape[1]
    hidden = params["mlp"]["w1"].shape[1]
    PAD = 128                                # margin (>= W + 1)
    Cmax = max(Cin, Chid)
    bf16 = jnp.bfloat16

    obs3 = obs_nchw.reshape(B, Cin, HW)      # free view of NCHW
    tapmask = _tap_masks(B, H, W)            # (9, 1, N) compile-time constant

    def flat_w(w):
        # (3,3,Cout,Cin) -> (Cout, 9*Cin) bf16; column t*Cin+ci matches row
        # t*Chid+ci of the im2col scratch (t = kh*3+kw).
        co = w.shape[2]
        return jnp.transpose(w, (2, 0, 1, 3)).reshape(co, -1).astype(bf16)

    mlp = params["mlp"]
    kern = functools.partial(fused_kernel, B=B, H=H, W=W, Cin=Cin, Chid=Chid,
                             S=S, PAD=PAD, eps=1e-5)

    # cb1..cb3 are intentionally NOT passed: BN batch-mean cancels them exactly.
    out = pl.pallas_call(
        kern,
        out_shape=jax.ShapeDtypeStruct((B * S, slot_dim), jnp.float32),
        scratch_shapes=[
            pltpu.VMEM((Cmax, N + 2 * PAD), jnp.float32),   # padded activation
            pltpu.VMEM((9 * Chid, N), jnp.bfloat16),        # im2col columns
        ],
    )(
        obs3, tapmask,
        params["cw1"].astype(bf16),
        params["bn1_g"].reshape(Chid, 1), params["bn1_b"].reshape(Chid, 1),
        flat_w(params["cw2"]),
        params["bn2_g"].reshape(Chid, 1), params["bn2_b"].reshape(Chid, 1),
        flat_w(params["cw3"]),
        params["bn3_g"].reshape(Chid, 1), params["bn3_b"].reshape(Chid, 1),
        flat_w(params["cw4"]), params["cb4"].reshape(S, 1),
        mlp["w1"].astype(bf16), mlp["b1"].reshape(1, hidden),
        mlp["w2"].astype(bf16), mlp["b2"].reshape(1, hidden),
        mlp["ln_g"].reshape(1, hidden), mlp["ln_b"].reshape(1, hidden),
        mlp["w3"].astype(bf16), mlp["b3"].reshape(1, slot_dim),
    )
    return out.reshape(B, S, slot_dim)


# ----------------------------------------------------------------------------
# Deterministic synthetic parameters (conv weights stored as (kh, kw, Cout, Cin),
# linear weights as (in, out) — layouts chosen for the kernel; math unchanged).
# cb1..cb3 exist for structural parity with the PyTorch module but are no-ops
# under training-mode BatchNorm, so the kernel does not consume them.
# ----------------------------------------------------------------------------
def make_params(key, *, input_dim, hidden_dim, num_slots, slot_dim, width_height):
    ks = jax.random.split(key, 16)
    D = width_height[0] * width_height[1]

    def w(k, shape, scale=0.1):
        return (scale * jax.random.normal(k, shape)).astype(jnp.float32)

    return {
        "cw1": w(ks[0], (3, 3, hidden_dim, input_dim)),
        "cb1": w(ks[1], (hidden_dim,)),
        "cw2": w(ks[2], (3, 3, hidden_dim, hidden_dim)),
        "cb2": w(ks[3], (hidden_dim,)),
        "cw3": w(ks[4], (3, 3, hidden_dim, hidden_dim)),
        "cb3": w(ks[5], (hidden_dim,)),
        "cw4": w(ks[6], (3, 3, num_slots, hidden_dim)),
        "cb4": w(ks[7], (num_slots,)),
        "bn1_g": jnp.ones((hidden_dim,), jnp.float32),
        "bn1_b": jnp.zeros((hidden_dim,), jnp.float32),
        "bn2_g": jnp.ones((hidden_dim,), jnp.float32),
        "bn2_b": jnp.zeros((hidden_dim,), jnp.float32),
        "bn3_g": jnp.ones((hidden_dim,), jnp.float32),
        "bn3_b": jnp.zeros((hidden_dim,), jnp.float32),
        "mlp": {
            "w1": w(ks[8], (D, hidden_dim)),
            "b1": w(ks[9], (hidden_dim,)),
            "w2": w(ks[10], (hidden_dim, hidden_dim)),
            "b2": w(ks[11], (hidden_dim,)),
            "ln_g": jnp.ones((hidden_dim,), jnp.float32),
            "ln_b": jnp.zeros((hidden_dim,), jnp.float32),
            "w3": w(ks[12], (hidden_dim, slot_dim)),
            "b3": w(ks[13], (slot_dim,)),
        },
    }


if __name__ == "__main__":
    B, C_IN, H, W = 2, 3, 16, 16
    HIDDEN, NUM_SLOTS, SLOT_DIM = 32, 5, 4

    key = jax.random.PRNGKey(0)
    k_obs, k_par = jax.random.split(key)

    obs = jax.random.normal(k_obs, (B, C_IN, H, W), dtype=jnp.float32)  # NCHW
    params = make_params(
        k_par,
        input_dim=C_IN,
        hidden_dim=HIDDEN,
        num_slots=NUM_SLOTS,
        slot_dim=SLOT_DIM,
        width_height=(H, W),
    )

    fwd = jax.jit(functools.partial(encoder_cnn_large_forward, num_slots=NUM_SLOTS))
    out = jax.block_until_ready(fwd(obs, params))
    assert out.shape == (B, NUM_SLOTS, SLOT_DIM), out.shape
    assert bool(jnp.all(jnp.isfinite(out)))
    print("KERNEL_OK")
</pallas_src>

<mosaic_0001>
module attributes {stable_mosaic.version = 11 : i64} {
  func.func @fused_kernel(%arg0: memref<2x3x256xf32, #tpu.memory_space<vmem>>, %arg1: memref<9x1x512xf32, #tpu.memory_space<vmem>>, %arg2: memref<3x3x32x3xbf16, #tpu.memory_space<vmem>>, %arg3: memref<32x1xf32, #tpu.memory_space<vmem>>, %arg4: memref<32x1xf32, #tpu.memory_space<vmem>>, %arg5: memref<32x288xbf16, #tpu.memory_space<vmem>>, %arg6: memref<32x1xf32, #tpu.memory_space<vmem>>, %arg7: memref<32x1xf32, #tpu.memory_space<vmem>>, %arg8: memref<32x288xbf16, #tpu.memory_space<vmem>>, %arg9: memref<32x1xf32, #tpu.memory_space<vmem>>, %arg10: memref<32x1xf32, #tpu.memory_space<vmem>>, %arg11: memref<5x288xbf16, #tpu.memory_space<vmem>>, %arg12: memref<5x1xf32, #tpu.memory_space<vmem>>, %arg13: memref<256x32xbf16, #tpu.memory_space<vmem>>, %arg14: memref<1x32xf32, #tpu.memory_space<vmem>>, %arg15: memref<32x32xbf16, #tpu.memory_space<vmem>>, %arg16: memref<1x32xf32, #tpu.memory_space<vmem>>, %arg17: memref<1x32xf32, #tpu.memory_space<vmem>>, %arg18: memref<1x32xf32, #tpu.memory_space<vmem>>, %arg19: memref<32x4xbf16, #tpu.memory_space<vmem>>, %arg20: memref<1x4xf32, #tpu.memory_space<vmem>>, %arg21: memref<10x4xf32, #tpu.memory_space<vmem>>, %arg22: memref<32x768xf32, #tpu.memory_space<vmem>>, %arg23: memref<288x512xbf16, #tpu.memory_space<vmem>>) attributes {dimension_semantics = [], scalar_prefetch = 0 : i64, scratch_operands = 2 : i64, tpu.core_type = #tpu.core_type<tc>} {
    %cst = arith.constant 0.000000e+00 : f32
    %0 = vector.broadcast %cst : f32 to vector<32x128xf32>
    %c0 = arith.constant 0 : index
    %c0_0 = arith.constant 0 : index
    %1 = vector.load %arg22[%c0, %c0_0] : memref<32x768xf32, #tpu.memory_space<vmem>>, vector<32x128xf32>
    tpu.vector_store %arg22[%c0, %c0_0], %0 {strides = array<i32>} : memref<32x768xf32, #tpu.memory_space<vmem>>, vector<32x128xf32>,
    %c0_1 = arith.constant 0 : index
    %c640 = arith.constant 640 : index
    %2 = vector.load %arg22[%c0_1, %c640] : memref<32x768xf32, #tpu.memory_space<vmem>>, vector<32x128xf32>
    tpu.vector_store %arg22[%c0_1, %c640], %0 {strides = array<i32>} : memref<32x768xf32, #tpu.memory_space<vmem>>, vector<32x128xf32>,
    %c0_2 = arith.constant 0 : index
    %c0_3 = arith.constant 0 : index
    %c0_4 = arith.constant 0 : index
    %3 = vector.load %arg0[%c0_2, %c0_3, %c0_4] : memref<2x3x256xf32, #tpu.memory_space<vmem>>, vector<1x3x256xf32>
    %4 = vector.shape_cast %3 : vector<1x3x256xf32> to vector<3x256xf32>
    %c0_5 = arith.constant 0 : index
    %c128 = arith.constant 128 : index
    %5 = vector.load %arg22[%c0_5, %c128] : memref<32x768xf32, #tpu.memory_space<vmem>>, vector<3x256xf32>
    tpu.vector_store %arg22[%c0_5, %c128], %4 {strides = array<i32>} : memref<32x768xf32, #tpu.memory_space<vmem>>, vector<3x256xf32>,
    %c1 = arith.constant 1 : index
    %c0_6 = arith.constant 0 : index
    %c0_7 = arith.constant 0 : index
    %6 = vector.load %arg0[%c1, %c0_6, %c0_7] : memref<2x3x256xf32, #tpu.memory_space<vmem>>, vector<1x3x256xf32>
    %7 = vector.shape_cast %6 : vector<1x3x256xf32> to vector<3x256xf32>
    %c0_8 = arith.constant 0 : index
    %c384 = arith.constant 384 : index
    %8 = vector.load %arg22[%c0_8, %c384] : memref<32x768xf32, #tpu.memory_space<vmem>>, vector<3x256xf32>
    tpu.vector_store %arg22[%c0_8, %c384], %7 {strides = array<i32>} : memref<32x768xf32, #tpu.memory_space<vmem>>, vector<3x256xf32>,
    %cst_9 = arith.constant 0.000000e+00 : f32
    %9 = vector.broadcast %cst_9 : f32 to vector<32x512xf32>
    %c0_10 = arith.constant 0 : index
    %c111 = arith.constant 111 : index
    %10 = vector.load %arg22[%c0_10, %c111] : memref<32x768xf32, #tpu.memory_space<vmem>>, vector<3x512xf32>
    %c0_11 = arith.constant 0 : index
    %c0_12 = arith.constant 0 : index
    %c0_13 = arith.constant 0 : index
    %11 = vector.load %arg1[%c0_11, %c0_12, %c0_13] : memref<9x1x512xf32, #tpu.memory_space<vmem>>, vector<1x1x512xf32>
    %12 = vector.shape_cast %11 : vector<1x1x512xf32> to vector<1x512xf32>
    %13 = vector.broadcast %12 : vector<1x512xf32> to vector<3x512xf32>
    %14 = arith.mulf %10, %13 : vector<3x512xf32>
    %c0_14 = arith.constant 0 : index
    %c0_15 = arith.constant 0 : index
    %c0_16 = arith.constant 0 : index
    %c0_17 = arith.constant 0 : index
    %15 = vector.load %arg2[%c0_14, %c0_15, %c0_16, %c0_17] : memref<3x3x32x3xbf16, #tpu.memory_space<vmem>>, vector<1x1x32x3xbf16>
    %16 = vector.shape_cast %15 : vector<1x1x32x3xbf16> to vector<32x3xbf16>
    %17 = arith.truncf %14 : vector<3x512xf32> to vector<3x512xbf16>
    %cst_18 = arith.constant dense<0.000000e+00> : vector<32x512xf32>
    %18 = tpu.matmul %16, %17, %cst_18 {dimension_numbers = #tpu.dot_dimension_numbers<[1], [0], [0], [1], [0, 0, 1, 1], [], []>} : vector<32x3xbf16>, vector<3x512xbf16>, vector<32x512xf32> -> vector<32x512xf32>
    %19 = arith.addf %9, %18 : vector<32x512xf32>
    %c0_19 = arith.constant 0 : index
    %c112 = arith.constant 112 : index
    %20 = vector.load %arg22[%c0_19, %c112] : memref<32x768xf32, #tpu.memory_space<vmem>>, vector<3x512xf32>
    %c1_20 = arith.constant 1 : index
    %c0_21 = arith.constant 0 : index
    %c0_22 = arith.constant 0 : index
    %21 = vector.load %arg1[%c1_20, %c0_21, %c0_22] : memref<9x1x512xf32, #tpu.memory_space<vmem>>, vector<1x1x512xf32>
    %22 = vector.shape_cast %21 : vector<1x1x512xf32> to vector<1x512xf32>
    %23 = vector.broadcast %22 : vector<1x512xf32> to vector<3x512xf32>
    %24 = arith.mulf %20, %23 : vector<3x512xf32>
    %c0_23 = arith.constant 0 : index
    %c1_24 = arith.constant 1 : index
    %c0_25 = arith.constant 0 : index
    %c0_26 = arith.constant 0 : index
    %25 = vector.load %arg2[%c0_23, %c1_24, %c0_25, %c0_26] : memref<3x3x32x3xbf16, #tpu.memory_space<vmem>>, vector<1x1x32x3xbf16>
    %26 = vector.shape_cast %25 : vector<1x1x32x3xbf16> to vector<32x3xbf16>
    %27 = arith.truncf %24 : vector<3x512xf32> to vector<3x512xbf16>
    %cst_27 = arith.constant dense<0.000000e+00> : vector<32x512xf32>
    %28 = tpu.matmul %26, %27, %cst_27 {dimension_numbers = #tpu.dot_dimension_numbers<[1], [0], [0], [1], [0, 0, 1, 1], [], []>} : vector<32x3xbf16>, vector<3x512xbf16>, vector<32x512xf32> -> vector<32x512xf32>
    %29 = arith.addf %19, %28 : vector<32x512xf32>
    %c0_28 = arith.constant 0 : index
    %c113 = arith.constant 113 : index
    %30 = vector.load %arg22[%c0_28, %c113] : memref<32x768xf32, #tpu.memory_space<vmem>>, vector<3x512xf32>
    %c2 = arith.constant 2 : index
    %c0_29 = arith.constant 0 : index
    %c0_30 = arith.constant 0 : index
    %31 = vector.load %arg1[%c2, %c0_29, %c0_30] : memref<9x1x512xf32, #tpu.memory_space<vmem>>, vector<1x1x512xf32>
    %32 = vector.shape_cast %31 : vector<1x1x512xf32> to vector<1x512xf32>
    %33 = vector.broadcast %32 : vector<1x512xf32> to vector<3x512xf32>
    %34 = arith.mulf %30, %33 : vector<3x512xf32>
    %c0_31 = arith.constant 0 : index
    %c2_32 = arith.constant 2 : index
    %c0_33 = arith.constant 0 : index
    %c0_34 = arith.constant 0 : index
    %35 = vector.load %arg2[%c0_31, %c2_32, %c0_33, %c0_34] : memref<3x3x32x3xbf16, #tpu.memory_space<vmem>>, vector<1x1x32x3xbf16>
    %36 = vector.shape_cast %35 : vector<1x1x32x3xbf16> to vector<32x3xbf16>
    %37 = arith.truncf %34 : vector<3x512xf32> to vector<3x512xbf16>
    %cst_35 = arith.constant dense<0.000000e+00> : vector<32x512xf32>
    %38 = tpu.matmul %36, %37, %cst_35 {dimension_numbers = #tpu.dot_dimension_numbers<[1], [0], [0], [1], [0, 0, 1, 1], [], []>} : vector<32x3xbf16>, vector<3x512xbf16>, vector<32x512xf32> -> vector<32x512xf32>
    %39 = arith.addf %29, %38 : vector<32x512xf32>
    %c0_36 = arith.constant 0 : index
    %c127 = arith.constant 127 : index
    %40 = vector.load %arg22[%c0_36, %c127] : memref<32x768xf32, #tpu.memory_space<vmem>>, vector<3x512xf32>
    %c3 = arith.constant 3 : index
    %c0_37 = arith.constant 0 : index
    %c0_38 = arith.constant 0 : index
    %41 = vector.load %arg1[%c3, %c0_37, %c0_38] : memref<9x1x512xf32, #tpu.memory_space<vmem>>, vector<1x1x512xf32>
    %42 = vector.shape_cast %41 : vector<1x1x512xf32> to vector<1x512xf32>
    %43 = vector.broadcast %42 : vector<1x512xf32> to vector<3x512xf32>
    %44 = arith.mulf %40, %43 : vector<3x512xf32>
    %c1_39 = arith.constant 1 : index
    %c0_40 = arith.constant 0 : index
    %c0_41 = arith.constant 0 : index
    %c0_42 = arith.constant 0 : index
    %45 = vector.load %arg2[%c1_39, %c0_40, %c0_41, %c0_42] : memref<3x3x32x3xbf16, #tpu.memory_space<vmem>>, vector<1x1x32x3xbf16>
    %46 = vector.shape_cast %45 : vector<1x1x32x3xbf16> to vector<32x3xbf16>
    %47 = arith.truncf %44 : vector<3x512xf32> to vector<3x512xbf16>
    %cst_43 = arith.constant dense<0.000000e+00> : vector<32x512xf32>
    %48 = tpu.matmul %46, %47, %cst_43 {dimension_numbers = #tpu.dot_dimension_numbers<[1], [0], [0], [1], [0, 0, 1, 1], [], []>} : vector<32x3xbf16>, vector<3x512xbf16>, vector<32x512xf32> -> vector<32x512xf32>
    %49 = arith.addf %39, %48 : vector<32x512xf32>
    %c0_44 = arith.constant 0 : index
    %c128_45 = arith.constant 128 : index
    %50 = vector.load %arg22[%c0_44, %c128_45] : memref<32x768xf32, #tpu.memory_space<vmem>>, vector<3x512xf32>
    %c1_46 = arith.constant 1 : index
    %c1_47 = arith.constant 1 : index
    %c0_48 = arith.constant 0 : index
    %c0_49 = arith.constant 0 : index
    %51 = vector.load %arg2[%c1_46, %c1_47, %c0_48, %c0_49] : memref<3x3x32x3xbf16, #tpu.memory_space<vmem>>, vector<1x1x32x3xbf16>
    %52 = vector.shape_cast %51 : vector<1x1x32x3xbf16> to vector<32x3xbf16>
    %53 = arith.truncf %50 : vector<3x512xf32> to vector<3x512xbf16>
    %cst_50 = arith.constant dense<0.000000e+00> : vector<32x512xf32>
    %54 = tpu.matmul %52, %53, %cst_50 {dimension_numbers = #tpu.dot_dimension_numbers<[1], [0], [0], [1], [0, 0, 1, 1], [], []>} : vector<32x3xbf16>, vector<3x512xbf16>, vector<32x512xf32> -> vector<32x512xf32>
    %55 = arith.addf %49, %54 : vector<32x512xf32>
    %c0_51 = arith.constant 0 : index
    %c129 = arith.constant 129 : index
    %56 = vector.load %arg22[%c0_51, %c129] : memref<32x768xf32, #tpu.memory_space<vmem>>, vector<3x512xf32>
    %c5 = arith.constant 5 : index
    %c0_52 = arith.constant 0 : index
    %c0_53 = arith.constant 0 : index
    %57 = vector.load %arg1[%c5, %c0_52, %c0_53] : memref<9x1x512xf32, #tpu.memory_space<vmem>>, vector<1x1x512xf32>
    %58 = vector.shape_cast %57 : vector<1x1x512xf32> to vector<1x512xf32>
    %59 = vector.broadcast %58 : vector<1x512xf32> to vector<3x512xf32>
    %60 = arith.mulf %56, %59 : vector<3x512xf32>
    %c1_54 = arith.constant 1 : index
    %c2_55 = arith.constant 2 : index
    %c0_56 = arith.constant 0 : index
    %c0_57 = arith.constant 0 : index
    %61 = vector.load %arg2[%c1_54, %c2_55, %c0_56, %c0_57] : memref<3x3x32x3xbf16, #tpu.memory_space<vmem>>, vector<1x1x32x3xbf16>
    %62 = vector.shape_cast %61 : vector<1x1x32x3xbf16> to vector<32x3xbf16>
    %63 = arith.truncf %60 : vector<3x512xf32> to vector<3x512xbf16>
    %cst_58 = arith.constant dense<0.000000e+00> : vector<32x512xf32>
    %64 = tpu.matmul %62, %63, %cst_58 {dimension_numbers = #tpu.dot_dimension_numbers<[1], [0], [0], [1], [0, 0, 1, 1], [], []>} : vector<32x3xbf16>, vector<3x512xbf16>, vector<32x512xf32> -> vector<32x512xf32>
    %65 = arith.addf %55, %64 : vector<32x512xf32>
    %c0_59 = arith.constant 0 : index
    %c143 = arith.constant 143 : index
    %66 = vector.load %arg22[%c0_59, %c143] : memref<32x768xf32, #tpu.memory_space<vmem>>, vector<3x512xf32>
    %c6 = arith.constant 6 : index
    %c0_60 = arith.constant 0 : index
    %c0_61 = arith.constant 0 : index
    %67 = vector.load %arg1[%c6, %c0_60, %c0_61] : memref<9x1x512xf32, #tpu.memory_space<vmem>>, vector<1x1x512xf32>
    %68 = vector.shape_cast %67 : vector<1x1x512xf32> to vector<1x512xf32>
    %69 = vector.broadcast %68 : vector<1x512xf32> to vector<3x512xf32>
    %70 = arith.mulf %66, %69 : vector<3x512xf32>
    %c2_62 = arith.constant 2 : index
    %c0_63 = arith.constant 0 : index
    %c0_64 = arith.constant 0 : index
    %c0_65 = arith.constant 0 : index
    %71 = vector.load %arg2[%c2_62, %c0_63, %c0_64, %c0_65] : memref<3x3x32x3xbf16, #tpu.memory_space<vmem>>, vector<1x1x32x3xbf16>
    %72 = vector.shape_cast %71 : vector<1x1x32x3xbf16> to vector<32x3xbf16>
    %73 = arith.truncf %70 : vector<3x512xf32> to vector<3x512xbf16>
    %cst_66 = arith.constant dense<0.000000e+00> : vector<32x512xf32>
    %74 = tpu.matmul %72, %73, %cst_66 {dimension_numbers = #tpu.dot_dimension_numbers<[1], [0], [0], [1], [0, 0, 1, 1], [], []>} : vector<32x3xbf16>, vector<3x512xbf16>, vector<32x512xf32> -> vector<32x512xf32>
    %75 = arith.addf %65, %74 : vector<32x512xf32>
    %c0_67 = arith.constant 0 : index
    %c144 = arith.constant 144 : index
    %76 = vector.load %arg22[%c0_67, %c144] : memref<32x768xf32, #tpu.memory_space<vmem>>, vector<3x512xf32>
    %c7 = arith.constant 7 : index
    %c0_68 = arith.constant 0 : index
    %c0_69 = arith.constant 0 : index
    %77 = vector.load %arg1[%c7, %c0_68, %c0_69] : memref<9x1x512xf32, #tpu.memory_space<vmem>>, vector<1x1x512xf32>
    %78 = vector.shape_cast %77 : vector<1x1x512xf32> to vector<1x512xf32>
    %79 = vector.broadcast %78 : vector<1x512xf32> to vector<3x512xf32>
    %80 = arith.mulf %76, %79 : vector<3x512xf32>
    %c2_70 = arith.constant 2 : index
    %c1_71 = arith.constant 1 : index
    %c0_72 = arith.constant 0 : index
    %c0_73 = arith.constant 0 : index
    %81 = vector.load %arg2[%c2_70, %c1_71, %c0_72, %c0_73] : memref<3x3x32x3xbf16, #tpu.memory_space<vmem>>, vector<1x1x32x3xbf16>
    %82 = vector.shape_cast %81 : vector<1x1x32x3xbf16> to vector<32x3xbf16>
    %83 = arith.truncf %80 : vector<3x512xf32> to vector<3x512xbf16>
    %cst_74 = arith.constant dense<0.000000e+00> : vector<32x512xf32>
    %84 = tpu.matmul %82, %83, %cst_74 {dimension_numbers = #tpu.dot_dimension_numbers<[1], [0], [0], [1], [0, 0, 1, 1], [], []>} : vector<32x3xbf16>, vector<3x512xbf16>, vector<32x512xf32> -> vector<32x512xf32>
    %85 = arith.addf %75, %84 : vector<32x512xf32>
    %c0_75 = arith.constant 0 : index
    %c145 = arith.constant 145 : index
    %86 = vector.load %arg22[%c0_75, %c145] : memref<32x768xf32, #tpu.memory_space<vmem>>, vector<3x512xf32>
    %c8 = arith.constant 8 : index
    %c0_76 = arith.constant 0 : index
    %c0_77 = arith.constant 0 : index
    %87 = vector.load %arg1[%c8, %c0_76, %c0_77] : memref<9x1x512xf32, #tpu.memory_space<vmem>>, vector<1x1x512xf32>
    %88 = vector.shape_cast %87 : vector<1x1x512xf32> to vector<1x512xf32>
    %89 = vector.broadcast %88 : vector<1x512xf32> to vector<3x512xf32>
    %90 = arith.mulf %86, %89 : vector<3x512xf32>
    %c2_78 = arith.constant 2 : index
    %c2_79 = arith.constant 2 : index
    %c0_80 = arith.constant 0 : index
    %c0_81 = arith.constant 0 : index
    %91 = vector.load %arg2[%c2_78, %c2_79, %c0_80, %c0_81] : memref<3x3x32x3xbf16, #tpu.memory_space<vmem>>, vector<1x1x32x3xbf16>
    %92 = vector.shape_cast %91 : vector<1x1x32x3xbf16> to vector<32x3xbf16>
    %93 = arith.truncf %90 : vector<3x512xf32> to vector<3x512xbf16>
    %cst_82 = arith.constant dense<0.000000e+00> : vector<32x512xf32>
    %94 = tpu.matmul %92, %93, %cst_82 {dimension_numbers = #tpu.dot_dimension_numbers<[1], [0], [0], [1], [0, 0, 1, 1], [], []>} : vector<32x3xbf16>, vector<3x512xbf16>, vector<32x512xf32> -> vector<32x512xf32>
    %95 = arith.addf %85, %94 : vector<32x512xf32>
    %cst_83 = arith.constant dense<0.000000e+00> : vector<32xf32>
    %96 = vector.multi_reduction <add>, %95, %cst_83 [1] : vector<32x512xf32> to vector<32xf32>
    %97 = vector.shape_cast %96 : vector<32xf32> to vector<32x1xf32>
    %cst_84 = arith.constant 0.001953125 : f32
    %98 = vector.broadcast %cst_84 : f32 to vector<32x1xf32>
    %99 = arith.mulf %97, %98 : vector<32x1xf32>
    %100 = arith.mulf %95, %95 : vector<32x512xf32>
    %cst_85 = arith.constant dense<0.000000e+00> : vector<32xf32>
    %101 = vector.multi_reduction <add>, %100, %cst_85 [1] : vector<32x512xf32> to vector<32xf32>
    %102 = vector.shape_cast %101 : vector<32xf32> to vector<32x1xf32>
    %cst_86 = arith.constant 0.001953125 : f32
    %103 = vector.broadcast %cst_86 : f32 to vector<32x1xf32>
    %104 = arith.mulf %102, %103 : vector<32x1xf32>
    %105 = arith.mulf %99, %99 : vector<32x1xf32>
    %106 = arith.subf %104, %105 : vector<32x1xf32>
    %cst_87 = arith.constant 0.000000e+00 : f32
    %107 = vector.broadcast %cst_87 : f32 to vector<32x1xf32>
    %108 = arith.maximumf %106, %107 : vector<32x1xf32>
    %c0_88 = arith.constant 0 : index
    %c0_89 = arith.constant 0 : index
    %109 = vector.load %arg3[%c0_88, %c0_89] : memref<32x1xf32, #tpu.memory_space<vmem>>, vector<32x1xf32>
    %cst_90 = arith.constant 9.99999974E-6 : f32
    %110 = vector.broadcast %cst_90 : f32 to vector<32x1xf32>
    %111 = arith.addf %108, %110 : vector<32x1xf32>
    %112 = math.rsqrt %111 : vector<32x1xf32>
    %113 = arith.mulf %109, %112 : vector<32x1xf32>
    %c0_91 = arith.constant 0 : index
    %c0_92 = arith.constant 0 : index
    %114 = vector.load %arg4[%c0_91, %c0_92] : memref<32x1xf32, #tpu.memory_space<vmem>>, vector<32x1xf32>
    %115 = arith.mulf %99, %113 : vector<32x1xf32>
    %116 = arith.subf %114, %115 : vector<32x1xf32>
    %117 = vector.broadcast %113 : vector<32x1xf32> to vector<32x512xf32>
    %118 = arith.mulf %95, %117 : vector<32x512xf32>
    %119 = vector.broadcast %116 : vector<32x1xf32> to vector<32x512xf32>
    %120 = arith.addf %118, %119 : vector<32x512xf32>
    %cst_93 = arith.constant 0.000000e+00 : f32
    %121 = vector.broadcast %cst_93 : f32 to vector<32x512xf32>
    %122 = arith.maximumf %120, %121 : vector<32x512xf32>
    %c0_94 = arith.constant 0 : index
    %c128_95 = arith.constant 128 : index
    %123 = vector.load %arg22[%c0_94, %c128_95] : memref<32x768xf32, #tpu.memory_space<vmem>>, vector<32x512xf32>
    tpu.vector_store %arg22[%c0_94, %c128_95], %122 {strides = array<i32>} : memref<32x768xf32, #tpu.memory_space<vmem>>, vector<32x512xf32>,
    %c0_96 = arith.constant 0 : index
    %c111_97 = arith.constant 111 : index
    %124 = vector.load %arg22[%c0_96, %c111_97] : memref<32x768xf32, #tpu.memory_space<vmem>>, vector<32x512xf32>
    %c0_98 = arith.constant 0 : index
    %c0_99 = arith.constant 0 : index
    %c0_100 = arith.constant 0 : index
    %125 = vector.load %arg1[%c0_98, %c0_99, %c0_100] : memref<9x1x512xf32, #tpu.memory_space<vmem>>, vector<1x1x512xf32>
    %126 = vector.shape_cast %125 : vector<1x1x512xf32> to vector<1x512xf32>
    %127 = vector.broadcast %126 : vector<1x512xf32> to vector<32x512xf32>
    %128 = arith.mulf %124, %127 : vector<32x512xf32>
    %129 = arith.truncf %128 : vector<32x512xf32> to vector<32x512xbf16>
    %c0_101 = arith.constant 0 : index
    %c0_102 = arith.constant 0 : index
    %130 = vector.load %arg23[%c0_101, %c0_102] : memref<288x512xbf16, #tpu.memory_space<vmem>>, vector<32x512xbf16>
    tpu.vector_store %arg23[%c0_101, %c0_102], %129 {strides = array<i32>} : memref<288x512xbf16, #tpu.memory_space<vmem>>, vector<32x512xbf16>,
    %c0_103 = arith.constant 0 : index
    %c112_104 = arith.constant 112 : index
    %131 = vector.load %arg22[%c0_103, %c112_104] : memref<32x768xf32, #tpu.memory_space<vmem>>, vector<32x512xf32>
    %c1_105 = arith.constant 1 : index
    %c0_106 = arith.constant 0 : index
    %c0_107 = arith.constant 0 : index
    %132 = vector.load %arg1[%c1_105, %c0_106, %c0_107] : memref<9x1x512xf32, #tpu.memory_space<vmem>>, vector<1x1x512xf32>
    %133 = vector.shape_cast %132 : vector<1x1x512xf32> to vector<1x512xf32>
    %134 = vector.broadcast %133 : vector<1x512xf32> to vector<32x512xf32>
    %135 = arith.mulf %131, %134 : vector<32x512xf32>
    %136 = arith.truncf %135 : vector<32x512xf32> to vector<32x512xbf16>
    %c32 = arith.constant 32 : index
    %c0_108 = arith.constant 0 : index
    %137 = vector.load %arg23[%c32, %c0_108] : memref<288x512xbf16, #tpu.memory_space<vmem>>, vector<32x512xbf16>
    tpu.vector_store %arg23[%c32, %c0_108], %136 {strides = array<i32>} : memref<288x512xbf16, #tpu.memory_space<vmem>>, vector<32x512xbf16>,
    %c0_109 = arith.constant 0 : index
    %c113_110 = arith.constant 113 : index
    %138 = vector.load %arg22[%c0_109, %c113_110] : memref<32x768xf32, #tpu.memory_space<vmem>>, vector<32x512xf32>
    %c2_111 = arith.constant 2 : index
    %c0_112 = arith.constant 0 : index
    %c0_113 = arith.constant 0 : index
    %139 = vector.load %arg1[%c2_111, %c0_112, %c0_113] : memref<9x1x512xf32, #tpu.memory_space<vmem>>, vector<1x1x512xf32>
    %140 = vector.shape_cast %139 : vector<1x1x512xf32> to vector<1x512xf32>
    %141 = vector.broadcast %140 : vector<1x512xf32> to vector<32x512xf32>
    %142 = arith.mulf %138, %141 : vector<32x512xf32>
    %143 = arith.truncf %142 : vector<32x512xf32> to vector<32x512xbf16>
    %c64 = arith.constant 64 : index
    %c0_114 = arith.constant 0 : index
    %144 = vector.load %arg23[%c64, %c0_114] : memref<288x512xbf16, #tpu.memory_space<vmem>>, vector<32x512xbf16>
    tpu.vector_store %arg23[%c64, %c0_114], %143 {strides = array<i32>} : memref<288x512xbf16, #tpu.memory_space<vmem>>, vector<32x512xbf16>,
    %c0_115 = arith.constant 0 : index
    %c127_116 = arith.constant 127 : index
    %145 = vector.load %arg22[%c0_115, %c127_116] : memref<32x768xf32, #tpu.memory_space<vmem>>, vector<32x512xf32>
    %c3_117 = arith.constant 3 : index
    %c0_118 = arith.constant 0 : index
    %c0_119 = arith.constant 0 : index
    %146 = vector.load %arg1[%c3_117, %c0_118, %c0_119] : memref<9x1x512xf32, #tpu.memory_space<vmem>>, vector<1x1x512xf32>
    %147 = vector.shape_cast %146 : vector<1x1x512xf32> to vector<1x512xf32>
    %148 = vector.broadcast %147 : vector<1x512xf32> to vector<32x512xf32>
    %149 = arith.mulf %145, %148 : vector<32x512xf32>
    %150 = arith.truncf %149 : vector<32x512xf32> to vector<32x512xbf16>
    %c96 = arith.constant 96 : index
    %c0_120 = arith.constant 0 : index
    %151 = vector.load %arg23[%c96, %c0_120] : memref<288x512xbf16, #tpu.memory_space<vmem>>, vector<32x512xbf16>
    tpu.vector_store %arg23[%c96, %c0_120], %150 {strides = array<i32>} : memref<288x512xbf16, #tpu.memory_space<vmem>>, vector<32x512xbf16>,
    %c0_121 = arith.constant 0 : index
    %c128_122 = arith.constant 128 : index
    %152 = vector.load %arg22[%c0_121, %c128_122] : memref<32x768xf32, #tpu.memory_space<vmem>>, vector<32x512xf32>
    %153 = arith.truncf %152 : vector<32x512xf32> to vector<32x512xbf16>
    %c128_123 = arith.constant 128 : index
    %c0_124 = arith.constant 0 : index
    %154 = vector.load %arg23[%c128_123, %c0_124] : memref<288x512xbf16, #tpu.memory_space<vmem>>, vector<32x512xbf16>
    tpu.vector_store %arg23[%c128_123, %c0_124], %153 {strides = array<i32>} : memref<288x512xbf16, #tpu.memory_space<vmem>>, vector<32x512xbf16>,
    %c0_125 = arith.constant 0 : index
    %c129_126 = arith.constant 129 : index
    %155 = vector.load %arg22[%c0_125, %c129_126] : memref<32x768xf32, #tpu.memory_space<vmem>>, vector<32x512xf32>
    %c5_127 = arith.constant 5 : index
    %c0_128 = arith.constant 0 : index
    %c0_129 = arith.constant 0 : index
    %156 = vector.load %arg1[%c5_127, %c0_128, %c0_129] : memref<9x1x512xf32, #tpu.memory_space<vmem>>, vector<1x1x512xf32>
    %157 = vector.shape_cast %156 : vector<1x1x512xf32> to vector<1x512xf32>
    %158 = vector.broadcast %157 : vector<1x512xf32> to vector<32x512xf32>
    %159 = arith.mulf %155, %158 : vector<32x512xf32>
    %160 = arith.truncf %159 : vector<32x512xf32> to vector<32x512xbf16>
    %c160 = arith.constant 160 : index
    %c0_130 = arith.constant 0 : index
    %161 = vector.load %arg23[%c160, %c0_130] : memref<288x512xbf16, #tpu.memory_space<vmem>>, vector<32x512xbf16>
    tpu.vector_store %arg23[%c160, %c0_130], %160 {strides = array<i32>} : memref<288x512xbf16, #tpu.memory_space<vmem>>, vector<32x512xbf16>,
    %c0_131 = arith.constant 0 : index
    %c143_132 = arith.constant 143 : index
    %162 = vector.load %arg22[%c0_131, %c143_132] : memref<32x768xf32, #tpu.memory_space<vmem>>, vector<32x512xf32>
    %c6_133 = arith.constant 6 : index
    %c0_134 = arith.constant 0 : index
    %c0_135 = arith.constant 0 : index
    %163 = vector.load %arg1[%c6_133, %c0_134, %c0_135] : memref<9x1x512xf32, #tpu.memory_space<vmem>>, vector<1x1x512xf32>
    %164 = vector.shape_cast %163 : vector<1x1x512xf32> to vector<1x512xf32>
    %165 = vector.broadcast %164 : vector<1x512xf32> to vector<32x512xf32>
    %166 = arith.mulf %162, %165 : vector<32x512xf32>
    %167 = arith.truncf %166 : vector<32x512xf32> to vector<32x512xbf16>
    %c192 = arith.constant 192 : index
    %c0_136 = arith.constant 0 : index
    %168 = vector.load %arg23[%c192, %c0_136] : memref<288x512xbf16, #tpu.memory_space<vmem>>, vector<32x512xbf16>
    tpu.vector_store %arg23[%c192, %c0_136], %167 {strides = array<i32>} : memref<288x512xbf16, #tpu.memory_space<vmem>>, vector<32x512xbf16>,
    %c0_137 = arith.constant 0 : index
    %c144_138 = arith.constant 144 : index
    %169 = vector.load %arg22[%c0_137, %c144_138] : memref<32x768xf32, #tpu.memory_space<vmem>>, vector<32x512xf32>
    %c7_139 = arith.constant 7 : index
    %c0_140 = arith.constant 0 : index
    %c0_141 = arith.constant 0 : index
    %170 = vector.load %arg1[%c7_139, %c0_140, %c0_141] : memref<9x1x512xf32, #tpu.memory_space<vmem>>, vector<1x1x512xf32>
    %171 = vector.shape_cast %170 : vector<1x1x512xf32> to vector<1x512xf32>
    %172 = vector.broadcast %171 : vector<1x512xf32> to vector<32x512xf32>
    %173 = arith.mulf %169, %172 : vector<32x512xf32>
    %174 = arith.truncf %173 : vector<32x512xf32> to vector<32x512xbf16>
    %c224 = arith.constant 224 : index
    %c0_142 = arith.constant 0 : index
    %175 = vector.load %arg23[%c224, %c0_142] : memref<288x512xbf16, #tpu.memory_space<vmem>>, vector<32x512xbf16>
    tpu.vector_store %arg23[%c224, %c0_142], %174 {strides = array<i32>} : memref<288x512xbf16, #tpu.memory_space<vmem>>, vector<32x512xbf16>,
    %c0_143 = arith.constant 0 : index
    %c145_144 = arith.constant 145 : index
    %176 = vector.load %arg22[%c0_143, %c145_144] : memref<32x768xf32, #tpu.memory_space<vmem>>, vector<32x512xf32>
    %c8_145 = arith.constant 8 : index
    %c0_146 = arith.constant 0 : index
    %c0_147 = arith.constant 0 : index
    %177 = vector.load %arg1[%c8_145, %c0_146, %c0_147] : memref<9x1x512xf32, #tpu.memory_space<vmem>>, vector<1x1x512xf32>
    %178 = vector.shape_cast %177 : vector<1x1x512xf32> to vector<1x512xf32>
    %179 = vector.broadcast %178 : vector<1x512xf32> to vector<32x512xf32>
    %180 = arith.mulf %176, %179 : vector<32x512xf32>
    %181 = arith.truncf %180 : vector<32x512xf32> to vector<32x512xbf16>
    %c256 = arith.constant 256 : index
    %c0_148 = arith.constant 0 : index
    %182 = vector.load %arg23[%c256, %c0_148] : memref<288x512xbf16, #tpu.memory_space<vmem>>, vector<32x512xbf16>
    tpu.vector_store %arg23[%c256, %c0_148], %181 {strides = array<i32>} : memref<288x512xbf16, #tpu.memory_space<vmem>>, vector<32x512xbf16>,
    %c0_149 = arith.constant 0 : index
    %c0_150 = arith.constant 0 : index
    %183 = vector.load %arg5[%c0_149, %c0_150] : memref<32x288xbf16, #tpu.memory_space<vmem>>, vector<32x288xbf16>
    %c0_151 = arith.constant 0 : index
    %c0_152 = arith.constant 0 : index
    %184 = vector.load %arg23[%c0_151, %c0_152] : memref<288x512xbf16, #tpu.memory_space<vmem>>, vector<288x512xbf16>
    %cst_153 = arith.constant dense<0.000000e+00> : vector<32x512xf32>
    %185 = tpu.matmul %183, %184, %cst_153 {dimension_numbers = #tpu.dot_dimension_numbers<[1], [0], [0], [1], [0, 0, 1, 1], [], []>} : vector<32x288xbf16>, vector<288x512xbf16>, vector<32x512xf32> -> vector<32x512xf32>
    %cst_154 = arith.constant dense<0.000000e+00> : vector<32xf32>
    %186 = vector.multi_reduction <add>, %185, %cst_154 [1] : vector<32x512xf32> to vector<32xf32>
    %187 = vector.shape_cast %186 : vector<32xf32> to vector<32x1xf32>
    %cst_155 = arith.constant 0.001953125 : f32
    %188 = vector.broadcast %cst_155 : f32 to vector<32x1xf32>
    %189 = arith.mulf %187, %188 : vector<32x1xf32>
    %190 = arith.mulf %185, %185 : vector<32x512xf32>
    %cst_156 = arith.constant dense<0.000000e+00> : vector<32xf32>
    %191 = vector.multi_reduction <add>, %190, %cst_156 [1] : vector<32x512xf32> to vector<32xf32>
    %192 = vector.shape_cast %191 : vector<32xf32> to vector<32x1xf32>
    %cst_157 = arith.constant 0.001953125 : f32
    %193 = vector.broadcast %cst_157 : f32 to vector<32x1xf32>
    %194 = arith.mulf %192, %193 : vector<32x1xf32>
    %195 = arith.mulf %189, %189 : vector<32x1xf32>
    %196 = arith.subf %194, %195 : vector<32x1xf32>
    %cst_158 = arith.constant 0.000000e+00 : f32
    %197 = vector.broadcast %cst_158 : f32 to vector<32x1xf32>
    %198 = arith.maximumf %196, %197 : vector<32x1xf32>
    %c0_159 = arith.constant 0 : index
    %c0_160 = arith.constant 0 : index
    %199 = vector.load %arg6[%c0_159, %c0_160] : memref<32x1xf32, #tpu.memory_space<vmem>>, vector<32x1xf32>
    %cst_161 = arith.constant 9.99999974E-6 : f32
    %200 = vector.broadcast %cst_161 : f32 to vector<32x1xf32>
    %201 = arith.addf %198, %200 : vector<32x1xf32>
    %202 = math.rsqrt %201 : vector<32x1xf32>
    %203 = arith.mulf %199, %202 : vector<32x1xf32>
    %c0_162 = arith.constant 0 : index
    %c0_163 = arith.constant 0 : index
    %204 = vector.load %arg7[%c0_162, %c0_163] : memref<32x1xf32, #tpu.memory_space<vmem>>, vector<32x1xf32>
    %205 = arith.mulf %189, %203 : vector<32x1xf32>
    %206 = arith.subf %204, %205 : vector<32x1xf32>
    %207 = vector.broadcast %203 : vector<32x1xf32> to vector<32x512xf32>
    %208 = arith.mulf %185, %207 : vector<32x512xf32>
    %209 = vector.broadcast %206 : vector<32x1xf32> to vector<32x512xf32>
    %210 = arith.addf %208, %209 : vector<32x512xf32>
    %cst_164 = arith.constant 0.000000e+00 : f32
    %211 = vector.broadcast %cst_164 : f32 to vector<32x512xf32>
    %212 = arith.maximumf %210, %211 : vector<32x512xf32>
    %c0_165 = arith.constant 0 : index
    %c128_166 = arith.constant 128 : index
    %213 = vector.load %arg22[%c0_165, %c128_166] : memref<32x768xf32, #tpu.memory_space<vmem>>, vector<32x512xf32>
    tpu.vector_store %arg22[%c0_165, %c128_166], %212 {strides = array<i32>} : memref<32x768xf32, #tpu.memory_space<vmem>>, vector<32x512xf32>,
    %c0_167 = arith.constant 0 : index
    %c111_168 = arith.constant 111 : index
    %214 = vector.load %arg22[%c0_167, %c111_168] : memref<32x768xf32, #tpu.memory_space<vmem>>, vector<32x512xf32>
    %c0_169 = arith.constant 0 : index
    %c0_170 = arith.constant 0 : index
    %c0_171 = arith.constant 0 : index
    %215 = vector.load %arg1[%c0_169, %c0_170, %c0_171] : memref<9x1x512xf32, #tpu.memory_space<vmem>>, vector<1x1x512xf32>
    %216 = vector.shape_cast %215 : vector<1x1x512xf32> to vector<1x512xf32>
    %217 = vector.broadcast %216 : vector<1x512xf32> to vector<32x512xf32>
    %218 = arith.mulf %214, %217 : vector<32x512xf32>
    %219 = arith.truncf %218 : vector<32x512xf32> to vector<32x512xbf16>
    %c0_172 = arith.constant 0 : index
    %c0_173 = arith.constant 0 : index
    %220 = vector.load %arg23[%c0_172, %c0_173] : memref<288x512xbf16, #tpu.memory_space<vmem>>, vector<32x512xbf16>
    tpu.vector_store %arg23[%c0_172, %c0_173], %219 {strides = array<i32>} : memref<288x512xbf16, #tpu.memory_space<vmem>>, vector<32x512xbf16>,
    %c0_174 = arith.constant 0 : index
    %c112_175 = arith.constant 112 : index
    %221 = vector.load %arg22[%c0_174, %c112_175] : memref<32x768xf32, #tpu.memory_space<vmem>>, vector<32x512xf32>
    %c1_176 = arith.constant 1 : index
    %c0_177 = arith.constant 0 : index
    %c0_178 = arith.constant 0 : index
    %222 = vector.load %arg1[%c1_176, %c0_177, %c0_178] : memref<9x1x512xf32, #tpu.memory_space<vmem>>, vector<1x1x512xf32>
    %223 = vector.shape_cast %222 : vector<1x1x512xf32> to vector<1x512xf32>
    %224 = vector.broadcast %223 : vector<1x512xf32> to vector<32x512xf32>
    %225 = arith.mulf %221, %224 : vector<32x512xf32>
    %226 = arith.truncf %225 : vector<32x512xf32> to vector<32x512xbf16>
    %c32_179 = arith.constant 32 : index
    %c0_180 = arith.constant 0 : index
    %227 = vector.load %arg23[%c32_179, %c0_180] : memref<288x512xbf16, #tpu.memory_space<vmem>>, vector<32x512xbf16>
    tpu.vector_store %arg23[%c32_179, %c0_180], %226 {strides = array<i32>} : memref<288x512xbf16, #tpu.memory_space<vmem>>, vector<32x512xbf16>,
    %c0_181 = arith.constant 0 : index
    %c113_182 = arith.constant 113 : index
    %228 = vector.load %arg22[%c0_181, %c113_182] : memref<32x768xf32, #tpu.memory_space<vmem>>, vector<32x512xf32>
    %c2_183 = arith.constant 2 : index
    %c0_184 = arith.constant 0 : index
    %c0_185 = arith.constant 0 : index
    %229 = vector.load %arg1[%c2_183, %c0_184, %c0_185] : memref<9x1x512xf32, #tpu.memory_space<vmem>>, vector<1x1x512xf32>
    %230 = vector.shape_cast %229 : vector<1x1x512xf32> to vector<1x512xf32>
    %231 = vector.broadcast %230 : vector<1x512xf32> to vector<32x512xf32>
    %232 = arith.mulf %228, %231 : vector<32x512xf32>
    %233 = arith.truncf %232 : vector<32x512xf32> to vector<32x512xbf16>
    %c64_186 = arith.constant 64 : index
    %c0_187 = arith.constant 0 : index
    %234 = vector.load %arg23[%c64_186, %c0_187] : memref<288x512xbf16, #tpu.memory_space<vmem>>, vector<32x512xbf16>
    tpu.vector_store %arg23[%c64_186, %c0_187], %233 {strides = array<i32>} : memref<288x512xbf16, #tpu.memory_space<vmem>>, vector<32x512xbf16>,
    %c0_188 = arith.constant 0 : index
    %c127_189 = arith.constant 127 : index
    %235 = vector.load %arg22[%c0_188, %c127_189] : memref<32x768xf32, #tpu.memory_space<vmem>>, vector<32x512xf32>
    %c3_190 = arith.constant 3 : index
    %c0_191 = arith.constant 0 : index
    %c0_192 = arith.constant 0 : index
    %236 = vector.load %arg1[%c3_190, %c0_191, %c0_192] : memref<9x1x512xf32, #tpu.memory_space<vmem>>, vector<1x1x512xf32>
    %237 = vector.shape_cast %236 : vector<1x1x512xf32> to vector<1x512xf32>
    %238 = vector.broadcast %237 : vector<1x512xf32> to vector<32x512xf32>
    %239 = arith.mulf %235, %238 : vector<32x512xf32>
    %240 = arith.truncf %239 : vector<32x512xf32> to vector<32x512xbf16>
    %c96_193 = arith.constant 96 : index
    %c0_194 = arith.constant 0 : index
    %241 = vector.load %arg23[%c96_193, %c0_194] : memref<288x512xbf16, #tpu.memory_space<vmem>>, vector<32x512xbf16>
    tpu.vector_store %arg23[%c96_193, %c0_194], %240 {strides = array<i32>} : memref<288x512xbf16, #tpu.memory_space<vmem>>, vector<32x512xbf16>,
    %c0_195 = arith.constant 0 : index
    %c128_196 = arith.constant 128 : index
    %242 = vector.load %arg22[%c0_195, %c128_196] : memref<32x768xf32, #tpu.memory_space<vmem>>, vector<32x512xf32>
    %243 = arith.truncf %242 : vector<32x512xf32> to vector<32x512xbf16>
    %c128_197 = arith.constant 128 : index
    %c0_198 = arith.constant 0 : index
    %244 = vector.load %arg23[%c128_197, %c0_198] : memref<288x512xbf16, #tpu.memory_space<vmem>>, vector<32x512xbf16>
    tpu.vector_store %arg23[%c128_197, %c0_198], %243 {strides = array<i32>} : memref<288x512xbf16, #tpu.memory_space<vmem>>, vector<32x512xbf16>,
    %c0_199 = arith.constant 0 : index
    %c129_200 = arith.constant 129 : index
    %245 = vector.load %arg22[%c0_199, %c129_200] : memref<32x768xf32, #tpu.memory_space<vmem>>, vector<32x512xf32>
    %c5_201 = arith.constant 5 : index
    %c0_202 = arith.constant 0 : index
    %c0_203 = arith.constant 0 : index
    %246 = vector.load %arg1[%c5_201, %c0_202, %c0_203] : memref<9x1x512xf32, #tpu.memory_space<vmem>>, vector<1x1x512xf32>
    %247 = vector.shape_cast %246 : vector<1x1x512xf32> to vector<1x512xf32>
    %248 = vector.broadcast %247 : vector<1x512xf32> to vector<32x512xf32>
    %249 = arith.mulf %245, %248 : vector<32x512xf32>
    %250 = arith.truncf %249 : vector<32x512xf32> to vector<32x512xbf16>
    %c160_204 = arith.constant 160 : index
    %c0_205 = arith.constant 0 : index
    %251 = vector.load %arg23[%c160_204, %c0_205] : memref<288x512xbf16, #tpu.memory_space<vmem>>, vector<32x512xbf16>
    tpu.vector_store %arg23[%c160_204, %c0_205], %250 {strides = array<i32>} : memref<288x512xbf16, #tpu.memory_space<vmem>>, vector<32x512xbf16>,
    %c0_206 = arith.constant 0 : index
    %c143_207 = arith.constant 143 : index
    %252 = vector.load %arg22[%c0_206, %c143_207] : memref<32x768xf32, #tpu.memory_space<vmem>>, vector<32x512xf32>
    %c6_208 = arith.constant 6 : index
    %c0_209 = arith.constant 0 : index
    %c0_210 = arith.constant 0 : index
    %253 = vector.load %arg1[%c6_208, %c0_209, %c0_210] : memref<9x1x512xf32, #tpu.memory_space<vmem>>, vector<1x1x512xf32>
    %254 = vector.shape_cast %253 : vector<1x1x512xf32> to vector<1x512xf32>
    %255 = vector.broadcast %254 : vector<1x512xf32> to vector<32x512xf32>
    %256 = arith.mulf %252, %255 : vector<32x512xf32>
    %257 = arith.truncf %256 : vector<32x512xf32> to vector<32x512xbf16>
    %c192_211 = arith.constant 192 : index
    %c0_212 = arith.constant 0 : index
    %258 = vector.load %arg23[%c192_211, %c0_212] : memref<288x512xbf16, #tpu.memory_space<vmem>>, vector<32x512xbf16>
    tpu.vector_store %arg23[%c192_211, %c0_212], %257 {strides = array<i32>} : memref<288x512xbf16, #tpu.memory_space<vmem>>, vector<32x512xbf16>,
    %c0_213 = arith.constant 0 : index
    %c144_214 = arith.constant 144 : index
    %259 = vector.load %arg22[%c0_213, %c144_214] : memref<32x768xf32, #tpu.memory_space<vmem>>, vector<32x512xf32>
    %c7_215 = arith.constant 7 : index
    %c0_216 = arith.constant 0 : index
    %c0_217 = arith.constant 0 : index
    %260 = vector.load %arg1[%c7_215, %c0_216, %c0_217] : memref<9x1x512xf32, #tpu.memory_space<vmem>>, vector<1x1x512xf32>
    %261 = vector.shape_cast %260 : vector<1x1x512xf32> to vector<1x512xf32>
    %262 = vector.broadcast %261 : vector<1x512xf32> to vector<32x512xf32>
    %263 = arith.mulf %259, %262 : vector<32x512xf32>
    %264 = arith.truncf %263 : vector<32x512xf32> to vector<32x512xbf16>
    %c224_218 = arith.constant 224 : index
    %c0_219 = arith.constant 0 : index
    %265 = vector.load %arg23[%c224_218, %c0_219] : memref<288x512xbf16, #tpu.memory_space<vmem>>, vector<32x512xbf16>
    tpu.vector_store %arg23[%c224_218, %c0_219], %264 {strides = array<i32>} : memref<288x512xbf16, #tpu.memory_space<vmem>>, vector<32x512xbf16>,
    %c0_220 = arith.constant 0 : index
    %c145_221 = arith.constant 145 : index
    %266 = vector.load %arg22[%c0_220, %c145_221] : memref<32x768xf32, #tpu.memory_space<vmem>>, vector<32x512xf32>
    %c8_222 = arith.constant 8 : index
    %c0_223 = arith.constant 0 : index
    %c0_224 = arith.constant 0 : index
    %267 = vector.load %arg1[%c8_222, %c0_223, %c0_224] : memref<9x1x512xf32, #tpu.memory_space<vmem>>, vector<1x1x512xf32>
    %268 = vector.shape_cast %267 : vector<1x1x512xf32> to vector<1x512xf32>
    %269 = vector.broadcast %268 : vector<1x512xf32> to vector<32x512xf32>
    %270 = arith.mulf %266, %269 : vector<32x512xf32>
    %271 = arith.truncf %270 : vector<32x512xf32> to vector<32x512xbf16>
    %c256_225 = arith.constant 256 : index
    %c0_226 = arith.constant 0 : index
    %272 = vector.load %arg23[%c256_225, %c0_226] : memref<288x512xbf16, #tpu.memory_space<vmem>>, vector<32x512xbf16>
    tpu.vector_store %arg23[%c256_225, %c0_226], %271 {strides = array<i32>} : memref<288x512xbf16, #tpu.memory_space<vmem>>, vector<32x512xbf16>,
    %c0_227 = arith.constant 0 : index
    %c0_228 = arith.constant 0 : index
    %273 = vector.load %arg8[%c0_227, %c0_228] : memref<32x288xbf16, #tpu.memory_space<vmem>>, vector<32x288xbf16>
    %c0_229 = arith.constant 0 : index
    %c0_230 = arith.constant 0 : index
    %274 = vector.load %arg23[%c0_229, %c0_230] : memref<288x512xbf16, #tpu.memory_space<vmem>>, vector<288x512xbf16>
    %cst_231 = arith.constant dense<0.000000e+00> : vector<32x512xf32>
    %275 = tpu.matmul %273, %274, %cst_231 {dimension_numbers = #tpu.dot_dimension_numbers<[1], [0], [0], [1], [0, 0, 1, 1], [], []>} : vector<32x288xbf16>, vector<288x512xbf16>, vector<32x512xf32> -> vector<32x512xf32>
    %cst_232 = arith.constant dense<0.000000e+00> : vector<32xf32>
    %276 = vector.multi_reduction <add>, %275, %cst_232 [1] : vector<32x512xf32> to vector<32xf32>
    %277 = vector.shape_cast %276 : vector<32xf32> to vector<32x1xf32>
    %cst_233 = arith.constant 0.001953125 : f32
    %278 = vector.broadcast %cst_233 : f32 to vector<32x1xf32>
    %279 = arith.mulf %277, %278 : vector<32x1xf32>
    %280 = arith.mulf %275, %275 : vector<32x512xf32>
    %cst_234 = arith.constant dense<0.000000e+00> : vector<32xf32>
    %281 = vector.multi_reduction <add>, %280, %cst_234 [1] : vector<32x512xf32> to vector<32xf32>
    %282 = vector.shape_cast %281 : vector<32xf32> to vector<32x1xf32>
    %cst_235 = arith.constant 0.001953125 : f32
    %283 = vector.broadcast %cst_235 : f32 to vector<32x1xf32>
    %284 = arith.mulf %282, %283 : vector<32x1xf32>
    %285 = arith.mulf %279, %279 : vector<32x1xf32>
    %286 = arith.subf %284, %285 : vector<32x1xf32>
    %cst_236 = arith.constant 0.000000e+00 : f32
    %287 = vector.broadcast %cst_236 : f32 to vector<32x1xf32>
    %288 = arith.maximumf %286, %287 : vector<32x1xf32>
    %c0_237 = arith.constant 0 : index
    %c0_238 = arith.constant 0 : index
    %289 = vector.load %arg9[%c0_237, %c0_238] : memref<32x1xf32, #tpu.memory_space<vmem>>, vector<32x1xf32>
    %cst_239 = arith.constant 9.99999974E-6 : f32
    %290 = vector.broadcast %cst_239 : f32 to vector<32x1xf32>
    %291 = arith.addf %288, %290 : vector<32x1xf32>
    %292 = math.rsqrt %291 : vector<32x1xf32>
    %293 = arith.mulf %289, %292 : vector<32x1xf32>
    %c0_240 = arith.constant 0 : index
    %c0_241 = arith.constant 0 : index
    %294 = vector.load %arg10[%c0_240, %c0_241] : memref<32x1xf32, #tpu.memory_space<vmem>>, vector<32x1xf32>
    %295 = arith.mulf %279, %293 : vector<32x1xf32>
    %296 = arith.subf %294, %295 : vector<32x1xf32>
    %297 = vector.broadcast %293 : vector<32x1xf32> to vector<32x512xf32>
    %298 = arith.mulf %275, %297 : vector<32x512xf32>
    %299 = vector.broadcast %296 : vector<32x1xf32> to vector<32x512xf32>
    %300 = arith.addf %298, %299 : vector<32x512xf32>
    %cst_242 = arith.constant 0.000000e+00 : f32
    %301 = vector.broadcast %cst_242 : f32 to vector<32x512xf32>
    %302 = arith.maximumf %300, %301 : vector<32x512xf32>
    %c0_243 = arith.constant 0 : index
    %c128_244 = arith.constant 128 : index
    %303 = vector.load %arg22[%c0_243, %c128_244] : memref<32x768xf32, #tpu.memory_space<vmem>>, vector<32x512xf32>
    tpu.vector_store %arg22[%c0_243, %c128_244], %302 {strides = array<i32>} : memref<32x768xf32, #tpu.memory_space<vmem>>, vector<32x512xf32>,
    %c0_245 = arith.constant 0 : index
    %c111_246 = arith.constant 111 : index
    %304 = vector.load %arg22[%c0_245, %c111_246] : memref<32x768xf32, #tpu.memory_space<vmem>>, vector<32x512xf32>
    %c0_247 = arith.constant 0 : index
    %c0_248 = arith.constant 0 : index
    %c0_249 = arith.constant 0 : index
    %305 = vector.load %arg1[%c0_247, %c0_248, %c0_249] : memref<9x1x512xf32, #tpu.memory_space<vmem>>, vector<1x1x512xf32>
    %306 = vector.shape_cast %305 : vector<1x1x512xf32> to vector<1x512xf32>
    %307 = vector.broadcast %306 : vector<1x512xf32> to vector<32x512xf32>
    %308 = arith.mulf %304, %307 : vector<32x512xf32>
    %309 = arith.truncf %308 : vector<32x512xf32> to vector<32x512xbf16>
    %c0_250 = arith.constant 0 : index
    %c0_251 = arith.constant 0 : index
    %310 = vector.load %arg23[%c0_250, %c0_251] : memref<288x512xbf16, #tpu.memory_space<vmem>>, vector<32x512xbf16>
    tpu.vector_store %arg23[%c0_250, %c0_251], %309 {strides = array<i32>} : memref<288x512xbf16, #tpu.memory_space<vmem>>, vector<32x512xbf16>,
    %c0_252 = arith.constant 0 : index
    %c112_253 = arith.constant 112 : index
    %311 = vector.load %arg22[%c0_252, %c112_253] : memref<32x768xf32, #tpu.memory_space<vmem>>, vector<32x512xf32>
    %c1_254 = arith.constant 1 : index
    %c0_255 = arith.constant 0 : index
    %c0_256 = arith.constant 0 : index
    %312 = vector.load %arg1[%c1_254, %c0_255, %c0_256] : memref<9x1x512xf32, #tpu.memory_space<vmem>>, vector<1x1x512xf32>
    %313 = vector.shape_cast %312 : vector<1x1x512xf32> to vector<1x512xf32>
    %314 = vector.broadcast %313 : vector<1x512xf32> to vector<32x512xf32>
    %315 = arith.mulf %311, %314 : vector<32x512xf32>
    %316 = arith.truncf %315 : vector<32x512xf32> to vector<32x512xbf16>
    %c32_257 = arith.constant 32 : index
    %c0_258 = arith.constant 0 : index
    %317 = vector.load %arg23[%c32_257, %c0_258] : memref<288x512xbf16, #tpu.memory_space<vmem>>, vector<32x512xbf16>
    tpu.vector_store %arg23[%c32_257, %c0_258], %316 {strides = array<i32>} : memref<288x512xbf16, #tpu.memory_space<vmem>>, vector<32x512xbf16>,
    %c0_259 = arith.constant 0 : index
    %c113_260 = arith.constant 113 : index
    %318 = vector.load %arg22[%c0_259, %c113_260] : memref<32x768xf32, #tpu.memory_space<vmem>>, vector<32x512xf32>
    %c2_261 = arith.constant 2 : index
    %c0_262 = arith.constant 0 : index
    %c0_263 = arith.constant 0 : index
    %319 = vector.load %arg1[%c2_261, %c0_262, %c0_263] : memref<9x1x512xf32, #tpu.memory_space<vmem>>, vector<1x1x512xf32>
    %320 = vector.shape_cast %319 : vector<1x1x512xf32> to vector<1x512xf32>
    %321 = vector.broadcast %320 : vector<1x512xf32> to vector<32x512xf32>
    %322 = arith.mulf %318, %321 : vector<32x512xf32>
    %323 = arith.truncf %322 : vector<32x512xf32> to vector<32x512xbf16>
    %c64_264 = arith.constant 64 : index
    %c0_265 = arith.constant 0 : index
    %324 = vector.load %arg23[%c64_264, %c0_265] : memref<288x512xbf16, #tpu.memory_space<vmem>>, vector<32x512xbf16>
    tpu.vector_store %arg23[%c64_264, %c0_265], %323 {strides = array<i32>} : memref<288x512xbf16, #tpu.memory_space<vmem>>, vector<32x512xbf16>,
    %c0_266 = arith.constant 0 : index
    %c127_267 = arith.constant 127 : index
    %325 = vector.load %arg22[%c0_266, %c127_267] : memref<32x768xf32, #tpu.memory_space<vmem>>, vector<32x512xf32>
    %c3_268 = arith.constant 3 : index
    %c0_269 = arith.constant 0 : index
    %c0_270 = arith.constant 0 : index
    %326 = vector.load %arg1[%c3_268, %c0_269, %c0_270] : memref<9x1x512xf32, #tpu.memory_space<vmem>>, vector<1x1x512xf32>
    %327 = vector.shape_cast %326 : vector<1x1x512xf32> to vector<1x512xf32>
    %328 = vector.broadcast %327 : vector<1x512xf32> to vector<32x512xf32>
    %329 = arith.mulf %325, %328 : vector<32x512xf32>
    %330 = arith.truncf %329 : vector<32x512xf32> to vector<32x512xbf16>
    %c96_271 = arith.constant 96 : index
    %c0_272 = arith.constant 0 : index
    %331 = vector.load %arg23[%c96_271, %c0_272] : memref<288x512xbf16, #tpu.memory_space<vmem>>, vector<32x512xbf16>
    tpu.vector_store %arg23[%c96_271, %c0_272], %330 {strides = array<i32>} : memref<288x512xbf16, #tpu.memory_space<vmem>>, vector<32x512xbf16>,
    %c0_273 = arith.constant 0 : index
    %c128_274 = arith.constant 128 : index
    %332 = vector.load %arg22[%c0_273, %c128_274] : memref<32x768xf32, #tpu.memory_space<vmem>>, vector<32x512xf32>
    %333 = arith.truncf %332 : vector<32x512xf32> to vector<32x512xbf16>
    %c128_275 = arith.constant 128 : index
    %c0_276 = arith.constant 0 : index
    %334 = vector.load %arg23[%c128_275, %c0_276] : memref<288x512xbf16, #tpu.memory_space<vmem>>, vector<32x512xbf16>
    tpu.vector_store %arg23[%c128_275, %c0_276], %333 {strides = array<i32>} : memref<288x512xbf16, #tpu.memory_space<vmem>>, vector<32x512xbf16>,
    %c0_277 = arith.constant 0 : index
    %c129_278 = arith.constant 129 : index
    %335 = vector.load %arg22[%c0_277, %c129_278] : memref<32x768xf32, #tpu.memory_space<vmem>>, vector<32x512xf32>
    %c5_279 = arith.constant 5 : index
    %c0_280 = arith.constant 0 : index
    %c0_281 = arith.constant 0 : index
    %336 = vector.load %arg1[%c5_279, %c0_280, %c0_281] : memref<9x1x512xf32, #tpu.memory_space<vmem>>, vector<1x1x512xf32>
    %337 = vector.shape_cast %336 : vector<1x1x512xf32> to vector<1x512xf32>
    %338 = vector.broadcast %337 : vector<1x512xf32> to vector<32x512xf32>
    %339 = arith.mulf %335, %338 : vector<32x512xf32>
    %340 = arith.truncf %339 : vector<32x512xf32> to vector<32x512xbf16>
    %c160_282 = arith.constant 160 : index
    %c0_283 = arith.constant 0 : index
    %341 = vector.load %arg23[%c160_282, %c0_283] : memref<288x512xbf16, #tpu.memory_space<vmem>>, vector<32x512xbf16>
    tpu.vector_store %arg23[%c160_282, %c0_283], %340 {strides = array<i32>} : memref<288x512xbf16, #tpu.memory_space<vmem>>, vector<32x512xbf16>,
    %c0_284 = arith.constant 0 : index
    %c143_285 = arith.constant 143 : index
    %342 = vector.load %arg22[%c0_284, %c143_285] : memref<32x768xf32, #tpu.memory_space<vmem>>, vector<32x512xf32>
    %c6_286 = arith.constant 6 : index
    %c0_287 = arith.constant 0 : index
    %c0_288 = arith.constant 0 : index
    %343 = vector.load %arg1[%c6_286, %c0_287, %c0_288] : memref<9x1x512xf32, #tpu.memory_space<vmem>>, vector<1x1x512xf32>
    %344 = vector.shape_cast %343 : vector<1x1x512xf32> to vector<1x512xf32>
    %345 = vector.broadcast %344 : vector<1x512xf32> to vector<32x512xf32>
    %346 = arith.mulf %342, %345 : vector<32x512xf32>
    %347 = arith.truncf %346 : vector<32x512xf32> to vector<32x512xbf16>
    %c192_289 = arith.constant 192 : index
    %c0_290 = arith.constant 0 : index
    %348 = vector.load %arg23[%c192_289, %c0_290] : memref<288x512xbf16, #tpu.memory_space<vmem>>, vector<32x512xbf16>
    tpu.vector_store %arg23[%c192_289, %c0_290], %347 {strides = array<i32>} : memref<288x512xbf16, #tpu.memory_space<vmem>>, vector<32x512xbf16>,
    %c0_291 = arith.constant 0 : index
    %c144_292 = arith.constant 144 : index
    %349 = vector.load %arg22[%c0_291, %c144_292] : memref<32x768xf32, #tpu.memory_space<vmem>>, vector<32x512xf32>
    %c7_293 = arith.constant 7 : index
    %c0_294 = arith.constant 0 : index
    %c0_295 = arith.constant 0 : index
    %350 = vector.load %arg1[%c7_293, %c0_294, %c0_295] : memref<9x1x512xf32, #tpu.memory_space<vmem>>, vector<1x1x512xf32>
    %351 = vector.shape_cast %350 : vector<1x1x512xf32> to vector<1x512xf32>
    %352 = vector.broadcast %351 : vector<1x512xf32> to vector<32x512xf32>
    %353 = arith.mulf %349, %352 : vector<32x512xf32>
    %354 = arith.truncf %353 : vector<32x512xf32> to vector<32x512xbf16>
    %c224_296 = arith.constant 224 : index
    %c0_297 = arith.constant 0 : index
    %355 = vector.load %arg23[%c224_296, %c0_297] : memref<288x512xbf16, #tpu.memory_space<vmem>>, vector<32x512xbf16>
    tpu.vector_store %arg23[%c224_296, %c0_297], %354 {strides = array<i32>} : memref<288x512xbf16, #tpu.memory_space<vmem>>, vector<32x512xbf16>,
    %c0_298 = arith.constant 0 : index
    %c145_299 = arith.constant 145 : index
    %356 = vector.load %arg22[%c0_298, %c145_299] : memref<32x768xf32, #tpu.memory_space<vmem>>, vector<32x512xf32>
    %c8_300 = arith.constant 8 : index
    %c0_301 = arith.constant 0 : index
    %c0_302 = arith.constant 0 : index
    %357 = vector.load %arg1[%c8_300, %c0_301, %c0_302] : memref<9x1x512xf32, #tpu.memory_space<vmem>>, vector<1x1x512xf32>
    %358 = vector.shape_cast %357 : vector<1x1x512xf32> to vector<1x512xf32>
    %359 = vector.broadcast %358 : vector<1x512xf32> to vector<32x512xf32>
    %360 = arith.mulf %356, %359 : vector<32x512xf32>
    %361 = arith.truncf %360 : vector<32x512xf32> to vector<32x512xbf16>
    %c256_303 = arith.constant 256 : index
    %c0_304 = arith.constant 0 : index
    %362 = vector.load %arg23[%c256_303, %c0_304] : memref<288x512xbf16, #tpu.memory_space<vmem>>, vector<32x512xbf16>
    tpu.vector_store %arg23[%c256_303, %c0_304], %361 {strides = array<i32>} : memref<288x512xbf16, #tpu.memory_space<vmem>>, vector<32x512xbf16>,
    %c0_305 = arith.constant 0 : index
    %c0_306 = arith.constant 0 : index
    %363 = vector.load %arg11[%c0_305, %c0_306] : memref<5x288xbf16, #tpu.memory_space<vmem>>, vector<5x288xbf16>
    %c0_307 = arith.constant 0 : index
    %c0_308 = arith.constant 0 : index
    %364 = vector.load %arg23[%c0_307, %c0_308] : memref<288x512xbf16, #tpu.memory_space<vmem>>, vector<288x512xbf16>
    %cst_309 = arith.constant dense<0.000000e+00> : vector<5x512xf32>
    %365 = tpu.matmul %363, %364, %cst_309 {dimension_numbers = #tpu.dot_dimension_numbers<[1], [0], [0], [1], [0, 0, 1, 1], [], []>} : vector<5x288xbf16>, vector<288x512xbf16>, vector<5x512xf32> -> vector<5x512xf32>
    %c0_310 = arith.constant 0 : index
    %c0_311 = arith.constant 0 : index
    %366 = vector.load %arg12[%c0_310, %c0_311] : memref<5x1xf32, #tpu.memory_space<vmem>>, vector<5x1xf32>
    %367 = vector.broadcast %366 : vector<5x1xf32> to vector<5x512xf32>
    %368 = arith.addf %365, %367 : vector<5x512xf32>
    %369 = arith.negf %368 : vector<5x512xf32>
    %370 = math.exp %369 : vector<5x512xf32>
    %cst_312 = arith.constant 1.000000e+00 : f32
    %371 = vector.broadcast %cst_312 : f32 to vector<5x512xf32>
    %372 = arith.addf %371, %370 : vector<5x512xf32>
    %373 = arith.divf %371, %372 : vector<5x512xf32>
    %374 = vector.extract_strided_slice %373 {offsets = [0, 0], sizes = [5, 256], strides = [1, 1]} : vector<5x512xf32> to vector<5x256xf32>
    %375 = arith.truncf %374 : vector<5x256xf32> to vector<5x256xbf16>
    %c0_313 = arith.constant 0 : index
    %c0_314 = arith.constant 0 : index
    %376 = vector.load %arg13[%c0_313, %c0_314] : memref<256x32xbf16, #tpu.memory_space<vmem>>, vector<256x32xbf16>
    %cst_315 = arith.constant dense<0.000000e+00> : vector<5x32xf32>
    %377 = tpu.matmul %375, %376, %cst_315 {dimension_numbers = #tpu.dot_dimension_numbers<[1], [0], [0], [1], [0, 0, 1, 1], [], []>} : vector<5x256xbf16>, vector<256x32xbf16>, vector<5x32xf32> -> vector<5x32xf32>
    %c0_316 = arith.constant 0 : index
    %c0_317 = arith.constant 0 : index
    %378 = vector.load %arg14[%c0_316, %c0_317] : memref<1x32xf32, #tpu.memory_space<vmem>>, vector<1x32xf32>
    %379 = vector.broadcast %378 : vector<1x32xf32> to vector<5x32xf32>
    %380 = arith.addf %377, %379 : vector<5x32xf32>
    %cst_318 = arith.constant 0.000000e+00 : f32
    %381 = vector.broadcast %cst_318 : f32 to vector<5x32xf32>
    %382 = arith.maximumf %380, %381 : vector<5x32xf32>
    %383 = arith.truncf %382 : vector<5x32xf32> to vector<5x32xbf16>
    %c0_319 = arith.constant 0 : index
    %c0_320 = arith.constant 0 : index
    %384 = vector.load %arg15[%c0_319, %c0_320] : memref<32x32xbf16, #tpu.memory_space<vmem>>, vector<32x32xbf16>
    %cst_321 = arith.constant dense<0.000000e+00> : vector<5x32xf32>
    %385 = tpu.matmul %383, %384, %cst_321 {dimension_numbers = #tpu.dot_dimension_numbers<[1], [0], [0], [1], [0, 0, 1, 1], [], []>} : vector<5x32xbf16>, vector<32x32xbf16>, vector<5x32xf32> -> vector<5x32xf32>
    %c0_322 = arith.constant 0 : index
    %c0_323 = arith.constant 0 : index
    %386 = vector.load %arg16[%c0_322, %c0_323] : memref<1x32xf32, #tpu.memory_space<vmem>>, vector<1x32xf32>
    %387 = vector.broadcast %386 : vector<1x32xf32> to vector<5x32xf32>
    %388 = arith.addf %385, %387 : vector<5x32xf32>
    %cst_324 = arith.constant dense<0.000000e+00> : vector<5xf32>
    %389 = vector.multi_reduction <add>, %388, %cst_324 [1] : vector<5x32xf32> to vector<5xf32>
    %390 = vector.shape_cast %389 : vector<5xf32> to vector<5x1xf32>
    %cst_325 = arith.constant 3.125000e-02 : f32
    %391 = vector.broadcast %cst_325 : f32 to vector<5x1xf32>
    %392 = arith.mulf %390, %391 : vector<5x1xf32>
    %393 = arith.mulf %388, %388 : vector<5x32xf32>
    %cst_326 = arith.constant dense<0.000000e+00> : vector<5xf32>
    %394 = vector.multi_reduction <add>, %393, %cst_326 [1] : vector<5x32xf32> to vector<5xf32>
    %395 = vector.shape_cast %394 : vector<5xf32> to vector<5x1xf32>
    %cst_327 = arith.constant 3.125000e-02 : f32
    %396 = vector.broadcast %cst_327 : f32 to vector<5x1xf32>
    %397 = arith.mulf %395, %396 : vector<5x1xf32>
    %398 = arith.mulf %392, %392 : vector<5x1xf32>
    %399 = arith.subf %397, %398 : vector<5x1xf32>
    %cst_328 = arith.constant 0.000000e+00 : f32
    %400 = vector.broadcast %cst_328 : f32 to vector<5x1xf32>
    %401 = arith.maximumf %399, %400 : vector<5x1xf32>
    %c0_329 = arith.constant 0 : index
    %c0_330 = arith.constant 0 : index
    %402 = vector.load %arg17[%c0_329, %c0_330] : memref<1x32xf32, #tpu.memory_space<vmem>>, vector<1x32xf32>
    %cst_331 = arith.constant 9.99999974E-6 : f32
    %403 = vector.broadcast %cst_331 : f32 to vector<5x1xf32>
    %404 = arith.addf %401, %403 : vector<5x1xf32>
    %405 = math.rsqrt %404 : vector<5x1xf32>
    %406 = vector.broadcast %402 : vector<1x32xf32> to vector<5x32xf32>
    %407 = vector.broadcast %405 : vector<5x1xf32> to vector<5x32xf32>
    %408 = arith.mulf %406, %407 : vector<5x32xf32>
    %c0_332 = arith.constant 0 : index
    %c0_333 = arith.constant 0 : index
    %409 = vector.load %arg18[%c0_332, %c0_333] : memref<1x32xf32, #tpu.memory_space<vmem>>, vector<1x32xf32>
    %410 = vector.broadcast %392 : vector<5x1xf32> to vector<5x32xf32>
    %411 = arith.mulf %410, %408 : vector<5x32xf32>
    %412 = vector.broadcast %409 : vector<1x32xf32> to vector<5x32xf32>
    %413 = arith.subf %412, %411 : vector<5x32xf32>
    %414 = arith.mulf %388, %408 : vector<5x32xf32>
    %415 = arith.addf %414, %413 : vector<5x32xf32>
    %cst_334 = arith.constant 0.000000e+00 : f32
    %416 = vector.broadcast %cst_334 : f32 to vector<5x32xf32>
    %417 = arith.maximumf %415, %416 : vector<5x32xf32>
    %418 = arith.truncf %417 : vector<5x32xf32> to vector<5x32xbf16>
    %c0_335 = arith.constant 0 : index
    %c0_336 = arith.constant 0 : index
    %419 = vector.load %arg19[%c0_335, %c0_336] : memref<32x4xbf16, #tpu.memory_space<vmem>>, vector<32x4xbf16>
    %cst_337 = arith.constant dense<0.000000e+00> : vector<5x4xf32>
    %420 = tpu.matmul %418, %419, %cst_337 {dimension_numbers = #tpu.dot_dimension_numbers<[1], [0], [0], [1], [0, 0, 1, 1], [], []>} : vector<5x32xbf16>, vector<32x4xbf16>, vector<5x4xf32> -> vector<5x4xf32>
    %c0_338 = arith.constant 0 : index
    %c0_339 = arith.constant 0 : index
    %421 = vector.load %arg20[%c0_338, %c0_339] : memref<1x4xf32, #tpu.memory_space<vmem>>, vector<1x4xf32>
    %422 = vector.broadcast %421 : vector<1x4xf32> to vector<5x4xf32>
    %423 = arith.addf %420, %422 : vector<5x4xf32>
    %c0_340 = arith.constant 0 : index
    %c0_341 = arith.constant 0 : index
    %424 = vector.load %arg21[%c0_340, %c0_341] : memref<10x4xf32, #tpu.memory_space<vmem>>, vector<5x4xf32>
    tpu.vector_store %arg21[%c0_340, %c0_341], %423 {strides = array<i32>} : memref<10x4xf32, #tpu.memory_space<vmem>>, vector<5x4xf32>,
    %425 = vector.extract_strided_slice %373 {offsets = [0, 256], sizes = [5, 256], strides = [1, 1]} : vector<5x512xf32> to vector<5x256xf32>
    %426 = arith.truncf %425 : vector<5x256xf32> to vector<5x256xbf16>
    %c0_342 = arith.constant 0 : index
    %c0_343 = arith.constant 0 : index
    %427 = vector.load %arg13[%c0_342, %c0_343] : memref<256x32xbf16, #tpu.memory_space<vmem>>, vector<256x32xbf16>
    %cst_344 = arith.constant dense<0.000000e+00> : vector<5x32xf32>
    %428 = tpu.matmul %426, %427, %cst_344 {dimension_numbers = #tpu.dot_dimension_numbers<[1], [0], [0], [1], [0, 0, 1, 1], [], []>} : vector<5x256xbf16>, vector<256x32xbf16>, vector<5x32xf32> -> vector<5x32xf32>
    %c0_345 = arith.constant 0 : index
    %c0_346 = arith.constant 0 : index
    %429 = vector.load %arg14[%c0_345, %c0_346] : memref<1x32xf32, #tpu.memory_space<vmem>>, vector<1x32xf32>
    %430 = vector.broadcast %429 : vector<1x32xf32> to vector<5x32xf32>
    %431 = arith.addf %428, %430 : vector<5x32xf32>
    %cst_347 = arith.constant 0.000000e+00 : f32
    %432 = vector.broadcast %cst_347 : f32 to vector<5x32xf32>
    %433 = arith.maximumf %431, %432 : vector<5x32xf32>
    %434 = arith.truncf %433 : vector<5x32xf32> to vector<5x32xbf16>
    %c0_348 = arith.constant 0 : index
    %c0_349 = arith.constant 0 : index
    %435 = vector.load %arg15[%c0_348, %c0_349] : memref<32x32xbf16, #tpu.memory_space<vmem>>, vector<32x32xbf16>
    %cst_350 = arith.constant dense<0.000000e+00> : vector<5x32xf32>
    %436 = tpu.matmul %434, %435, %cst_350 {dimension_numbers = #tpu.dot_dimension_numbers<[1], [0], [0], [1], [0, 0, 1, 1], [], []>} : vector<5x32xbf16>, vector<32x32xbf16>, vector<5x32xf32> -> vector<5x32xf32>
    %c0_351 = arith.constant 0 : index
    %c0_352 = arith.constant 0 : index
    %437 = vector.load %arg16[%c0_351, %c0_352] : memref<1x32xf32, #tpu.memory_space<vmem>>, vector<1x32xf32>
    %438 = vector.broadcast %437 : vector<1x32xf32> to vector<5x32xf32>
    %439 = arith.addf %436, %438 : vector<5x32xf32>
    %cst_353 = arith.constant dense<0.000000e+00> : vector<5xf32>
    %440 = vector.multi_reduction <add>, %439, %cst_353 [1] : vector<5x32xf32> to vector<5xf32>
    %441 = vector.shape_cast %440 : vector<5xf32> to vector<5x1xf32>
    %cst_354 = arith.constant 3.125000e-02 : f32
    %442 = vector.broadcast %cst_354 : f32 to vector<5x1xf32>
    %443 = arith.mulf %441, %442 : vector<5x1xf32>
    %444 = arith.mulf %439, %439 : vector<5x32xf32>
    %cst_355 = arith.constant dense<0.000000e+00> : vector<5xf32>
    %445 = vector.multi_reduction <add>, %444, %cst_355 [1] : vector<5x32xf32> to vector<5xf32>
    %446 = vector.shape_cast %445 : vector<5xf32> to vector<5x1xf32>
    %cst_356 = arith.constant 3.125000e-02 : f32
    %447 = vector.broadcast %cst_356 : f32 to vector<5x1xf32>
    %448 = arith.mulf %446, %447 : vector<5x1xf32>
    %449 = arith.mulf %443, %443 : vector<5x1xf32>
    %450 = arith.subf %448, %449 : vector<5x1xf32>
    %cst_357 = arith.constant 0.000000e+00 : f32
    %451 = vector.broadcast %cst_357 : f32 to vector<5x1xf32>
    %452 = arith.maximumf %450, %451 : vector<5x1xf32>
    %c0_358 = arith.constant 0 : index
    %c0_359 = arith.constant 0 : index
    %453 = vector.load %arg17[%c0_358, %c0_359] : memref<1x32xf32, #tpu.memory_space<vmem>>, vector<1x32xf32>
    %cst_360 = arith.constant 9.99999974E-6 : f32
    %454 = vector.broadcast %cst_360 : f32 to vector<5x1xf32>
    %455 = arith.addf %452, %454 : vector<5x1xf32>
    %456 = math.rsqrt %455 : vector<5x1xf32>
    %457 = vector.broadcast %453 : vector<1x32xf32> to vector<5x32xf32>
    %458 = vector.broadcast %456 : vector<5x1xf32> to vector<5x32xf32>
    %459 = arith.mulf %457, %458 : vector<5x32xf32>
    %c0_361 = arith.constant 0 : index
    %c0_362 = arith.constant 0 : index
    %460 = vector.load %arg18[%c0_361, %c0_362] : memref<1x32xf32, #tpu.memory_space<vmem>>, vector<1x32xf32>
    %461 = vector.broadcast %443 : vector<5x1xf32> to vector<5x32xf32>
    %462 = arith.mulf %461, %459 : vector<5x32xf32>
    %463 = vector.broadcast %460 : vector<1x32xf32> to vector<5x32xf32>
    %464 = arith.subf %463, %462 : vector<5x32xf32>
    %465 = arith.mulf %439, %459 : vector<5x32xf32>
    %466 = arith.addf %465, %464 : vector<5x32xf32>
    %cst_363 = arith.constant 0.000000e+00 : f32
    %467 = vector.broadcast %cst_363 : f32 to vector<5x32xf32>
    %468 = arith.maximumf %466, %467 : vector<5x32xf32>
    %469 = arith.truncf %468 : vector<5x32xf32> to vector<5x32xbf16>
    %c0_364 = arith.constant 0 : index
    %c0_365 = arith.constant 0 : index
    %470 = vector.load %arg19[%c0_364, %c0_365] : memref<32x4xbf16, #tpu.memory_space<vmem>>, vector<32x4xbf16>
    %cst_366 = arith.constant dense<0.000000e+00> : vector<5x4xf32>
    %471 = tpu.matmul %469, %470, %cst_366 {dimension_numbers = #tpu.dot_dimension_numbers<[1], [0], [0], [1], [0, 0, 1, 1], [], []>} : vector<5x32xbf16>, vector<32x4xbf16>, vector<5x4xf32> -> vector<5x4xf32>
    %c0_367 = arith.constant 0 : index
    %c0_368 = arith.constant 0 : index
    %472 = vector.load %arg20[%c0_367, %c0_368] : memref<1x4xf32, #tpu.memory_space<vmem>>, vector<1x4xf32>
    %473 = vector.broadcast %472 : vector<1x4xf32> to vector<5x4xf32>
    %474 = arith.addf %471, %473 : vector<5x4xf32>
    %c5_369 = arith.constant 5 : index
    %c0_370 = arith.constant 0 : index
    %475 = vector.load %arg21[%c5_369, %c0_370] : memref<10x4xf32, #tpu.memory_space<vmem>>, vector<5x4xf32>
    tpu.vector_store %arg21[%c5_369, %c0_370], %474 {strides = array<i32>} : memref<10x4xf32, #tpu.memory_space<vmem>>, vector<5x4xf32>,
    return
  }
}

</mosaic_0001>

<llo_original>
// kernel: encoder_cnn_large_forward.1
$region0: #{encoder_cnn_large_forward.1}
  #allocation0 [shape = 'u32[]', space=smem, size = 0x4, offset = 0x4, fixed_abs, tag = 'smem constant byte address 0x4 - core index']
  #allocation1 [shape = 'u32[144,128]{1,0:T(1,128)}', space=vmem, size = 0x12000, scoped, tag = 'internal scratch']
  #allocation2 [shape = 'f32[32,768]{1,0:T(8,128)}', space=vmem, size = 0x18000, scoped, tag = 'scratch operand']
  #allocation3 [shape = 'bf16[288,512]{1,0:T(8,128)(2,1)}', space=vmem, size = 0x48000, scoped, tag = 'scratch operand']
  %s0 = inlined_call_operand.vmem [shape: f32[2,3,256], index: 0, kind: input, shape index: {}]
  %s1 = inlined_call_operand.vmem [shape: f32[9,1,512], index: 1, kind: input, shape index: {}]
  %s2 = inlined_call_operand.vmem [shape: bf16[3,3,32,3], index: 2, kind: input, shape index: {}]
  %s3 = inlined_call_operand.vmem [shape: f32[32,1], index: 3, kind: input, shape index: {}]
  %s4 = inlined_call_operand.vmem [shape: f32[32,1], index: 4, kind: input, shape index: {}]
  %s5 = inlined_call_operand.vmem [shape: bf16[32,288], index: 5, kind: input, shape index: {}]
  %s6 = inlined_call_operand.vmem [shape: f32[32,1], index: 6, kind: input, shape index: {}]
  %s7 = inlined_call_operand.vmem [shape: f32[32,1], index: 7, kind: input, shape index: {}]
  %s8 = inlined_call_operand.vmem [shape: bf16[32,288], index: 8, kind: input, shape index: {}]
  %s9 = inlined_call_operand.vmem [shape: f32[32,1], index: 9, kind: input, shape index: {}]
  %s10 = inlined_call_operand.vmem [shape: f32[32,1], index: 10, kind: input, shape index: {}]
  %s11 = inlined_call_operand.vmem [shape: bf16[5,288], index: 11, kind: input, shape index: {}]
  %s12 = inlined_call_operand.vmem [shape: f32[5,1], index: 12, kind: input, shape index: {}]
  %s13 = inlined_call_operand.vmem [shape: bf16[256,32], index: 13, kind: input, shape index: {}]
  %s14 = inlined_call_operand.vmem [shape: f32[1,32], index: 14, kind: input, shape index: {}]
  %s15 = inlined_call_operand.vmem [shape: bf16[32,32], index: 15, kind: input, shape index: {}]
  %s16 = inlined_call_operand.vmem [shape: f32[1,32], index: 16, kind: input, shape index: {}]
  %s17 = inlined_call_operand.vmem [shape: f32[1,32], index: 17, kind: input, shape index: {}]
  %s18 = inlined_call_operand.vmem [shape: f32[1,32], index: 18, kind: input, shape index: {}]
  %s19 = inlined_call_operand.vmem [shape: bf16[32,4], index: 19, kind: input, shape index: {}]
  %s20 = inlined_call_operand.vmem [shape: f32[1,4], index: 20, kind: input, shape index: {}]
  %s21 = inlined_call_operand.vmem [shape: f32[10,4], index: 21, kind: output, shape index: {}]
  %s22 = sld [smem:[#allocation0]]
  $region94: #{encoder_cnn_large_forward.1} parent=0
    _
  %s24 = ssub.s32 1, %s22
  %s25 = scalar_select 0, %s24, %s22
  // Predicated region
  $region2: #{encoder_cnn_large_forward.1} parent=0 // pred_check
    _
  $region3: #{encoder_cnn_large_forward.1} parent=0 // pred_check_branch
    %27 = sbr.rel (0) target = $region5
  $region4: #{encoder_cnn_large_forward.1} parent=0 // pred_region
    _
  $region5: #{encoder_cnn_large_forward.1} parent=0 // pred_fallthru
    _
  // Predicated region
  $region6: #{encoder_cnn_large_forward.1} parent=0 // pred_check
    _
  $region7: #{encoder_cnn_large_forward.1} parent=0 // pred_check_branch
    %29 = sbr.rel (0) target = $region9
  $region8: #{encoder_cnn_large_forward.1} parent=0 // pred_region
    _
  $region9: #{encoder_cnn_large_forward.1} parent=0 // pred_fallthru
    _
  // Predicated region
  $region10: #{encoder_cnn_large_forward.1} parent=0 // pred_check
    _
  $region11: #{encoder_cnn_large_forward.1} parent=0 // pred_check_branch
    %31 = sbr.rel (0) target = $region13
  $region12: #{encoder_cnn_large_forward.1} parent=0 // pred_region
    _
  $region13: #{encoder_cnn_large_forward.1} parent=0 // pred_fallthru
    _
  // Predicated region
  $region14: #{encoder_cnn_large_forward.1} parent=0 // pred_check
    _
  $region15: #{encoder_cnn_large_forward.1} parent=0 // pred_check_branch
    %33 = sbr.rel (0) target = $region17
  $region16: #{encoder_cnn_large_forward.1} parent=0 // pred_region
    _
  $region17: #{encoder_cnn_large_forward.1} parent=0 // pred_fallthru
    _
  // Predicated region
  $region18: #{encoder_cnn_large_forward.1} parent=0 // pred_check
    _
  $region19: #{encoder_cnn_large_forward.1} parent=0 // pred_check_branch
    %35 = sbr.rel (0) target = $region21
  $region20: #{encoder_cnn_large_forward.1} parent=0 // pred_region
    _
  $region21: #{encoder_cnn_large_forward.1} parent=0 // pred_fallthru
    _
  // Predicated region
  $region22: #{encoder_cnn_large_forward.1} parent=0 // pred_check
    _
  $region23: #{encoder_cnn_large_forward.1} parent=0 // pred_check_branch
    %37 = sbr.rel (0) target = $region25
  $region24: #{encoder_cnn_large_forward.1} parent=0 // pred_region
    _
  $region25: #{encoder_cnn_large_forward.1} parent=0 // pred_fallthru
    _
  // Predicated region
  $region26: #{encoder_cnn_large_forward.1} parent=0 // pred_check
    _
  $region27: #{encoder_cnn_large_forward.1} parent=0 // pred_check_branch
    %39 = sbr.rel (0) target = $region29
  $region28: #{encoder_cnn_large_forward.1} parent=0 // pred_region
    _
  $region29: #{encoder_cnn_large_forward.1} parent=0 // pred_fallthru
    _
  // Predicated region
  $region30: #{encoder_cnn_large_forward.1} parent=0 // pred_check
    _
  $region31: #{encoder_cnn_large_forward.1} parent=0 // pred_check_branch
    %41 = sbr.rel (0) target = $region33
  $region32: #{encoder_cnn_large_forward.1} parent=0 // pred_region
    _
  $region33: #{encoder_cnn_large_forward.1} parent=0 // pred_fallthru
    _
  // Predicated region
  $region34: #{encoder_cnn_large_forward.1} parent=0 // pred_check
    _
  $region35: #{encoder_cnn_large_forward.1} parent=0 // pred_check_branch
    %43 = sbr.rel (0) target = $region37
  $region36: #{encoder_cnn_large_forward.1} parent=0 // pred_region
    _
  $region37: #{encoder_cnn_large_forward.1} parent=0 // pred_fallthru
    _
  // Predicated region
  $region38: #{encoder_cnn_large_forward.1} parent=0 // pred_check
    _
  $region39: #{encoder_cnn_large_forward.1} parent=0 // pred_check_branch
    %45 = sbr.rel (0) target = $region41
  $region40: #{encoder_cnn_large_forward.1} parent=0 // pred_region
    _
  $region41: #{encoder_cnn_large_forward.1} parent=0 // pred_fallthru
    _
  // Predicated region
  $region42: #{encoder_cnn_large_forward.1} parent=0 // pred_check
    _
  $region43: #{encoder_cnn_large_forward.1} parent=0 // pred_check_branch
    %47 = sbr.rel (0) target = $region45
  $region44: #{encoder_cnn_large_forward.1} parent=0 // pred_region
    _
  $region45: #{encoder_cnn_large_forward.1} parent=0 // pred_fallthru
    _
  // Predicated region
  $region46: #{encoder_cnn_large_forward.1} parent=0 // pred_check
    _
  $region47: #{encoder_cnn_large_forward.1} parent=0 // pred_check_branch
    %49 = sbr.rel (0) target = $region49
  $region48: #{encoder_cnn_large_forward.1} parent=0 // pred_region
    _
  $region49: #{encoder_cnn_large_forward.1} parent=0 // pred_fallthru
    _
  // Predicated region
  $region50: #{encoder_cnn_large_forward.1} parent=0 // pred_check
    _
  $region51: #{encoder_cnn_large_forward.1} parent=0 // pred_check_branch
    %51 = sbr.rel (0) target = $region53
  $region52: #{encoder_cnn_large_forward.1} parent=0 // pred_region
    _
  $region53: #{encoder_cnn_large_forward.1} parent=0 // pred_fallthru
    _
  // Predicated region
  $region54: #{encoder_cnn_large_forward.1} parent=0 // pred_check
    _
  $region55: #{encoder_cnn_large_forward.1} parent=0 // pred_check_branch
    %53 = sbr.rel (0) target = $region57
  $region56: #{encoder_cnn_large_forward.1} parent=0 // pred_region
    _
  $region57: #{encoder_cnn_large_forward.1} parent=0 // pred_fallthru
    _
  // Predicated region
  $region58: #{encoder_cnn_large_forward.1} parent=0 // pred_check
    _
  $region59: #{encoder_cnn_large_forward.1} parent=0 // pred_check_branch
    %55 = sbr.rel (0) target = $region61
  $region60: #{encoder_cnn_large_forward.1} parent=0 // pred_region
    _
  $region61: #{encoder_cnn_large_forward.1} parent=0 // pred_fallthru
    _
  // Predicated region
  $region62: #{encoder_cnn_large_forward.1} parent=0 // pred_check
    _
  $region63: #{encoder_cnn_large_forward.1} parent=0 // pred_check_branch
    %57 = sbr.rel (0) target = $region65
  $region64: #{encoder_cnn_large_forward.1} parent=0 // pred_region
    _
  $region65: #{encoder_cnn_large_forward.1} parent=0 // pred_fallthru
    _
  // Predicated region
  $region66: #{encoder_cnn_large_forward.1} parent=0 // pred_check
    _
  $region67: #{encoder_cnn_large_forward.1} parent=0 // pred_check_branch
    %59 = sbr.rel (0) target = $region69
  $region68: #{encoder_cnn_large_forward.1} parent=0 // pred_region
    _
  $region69: #{encoder_cnn_large_forward.1} parent=0 // pred_fallthru
    _
  // Predicated region
  $region70: #{encoder_cnn_large_forward.1} parent=0 // pred_check
    _
  $region71: #{encoder_cnn_large_forward.1} parent=0 // pred_check_branch
    %61 = sbr.rel (0) target = $region73
  $region72: #{encoder_cnn_large_forward.1} parent=0 // pred_region
    _
  $region73: #{encoder_cnn_large_forward.1} parent=0 // pred_fallthru
    _
  // Predicated region
  $region74: #{encoder_cnn_large_forward.1} parent=0 // pred_check
    _
  $region75: #{encoder_cnn_large_forward.1} parent=0 // pred_check_branch
    %63 = sbr.rel (0) target = $region77
  $region76: #{encoder_cnn_large_forward.1} parent=0 // pred_region
    _
  $region77: #{encoder_cnn_large_forward.1} parent=0 // pred_fallthru
    _
  // Predicated region
  $region78: #{encoder_cnn_large_forward.1} parent=0 // pred_check
    _
  $region79: #{encoder_cnn_large_forward.1} parent=0 // pred_check_branch
    %65 = sbr.rel (0) target = $region81
  $region80: #{encoder_cnn_large_forward.1} parent=0 // pred_region
    _
  $region81: #{encoder_cnn_large_forward.1} parent=0 // pred_fallthru
    _
  // Predicated region
  $region82: #{encoder_cnn_large_forward.1} parent=0 // pred_check
    _
  $region83: #{encoder_cnn_large_forward.1} parent=0 // pred_check_branch
    %67 = sbr.rel (0) target = $region85
  $region84: #{encoder_cnn_large_forward.1} parent=0 // pred_region
    _
  $region85: #{encoder_cnn_large_forward.1} parent=0 // pred_fallthru
    _
  %69 = vst [vmem:[#allocation2] sm:$0xff] 0.0
  %70 = vst [vmem:[#allocation2 + $0x30] sm:$0xff] 0.0
  %71 = vst [vmem:[#allocation2 + $0x60] sm:$0xff] 0.0
  %72 = vst [vmem:[#allocation2 + $0x90] sm:$0xff] 0.0
  %73 = vst [vmem:[#allocation2 + $0x28] sm:$0xff] 0.0
  %74 = vst [vmem:[#allocation2 + $0x58] sm:$0xff] 0.0
  %75 = vst [vmem:[#allocation2 + $0x88] sm:$0xff] 0.0
  %76 = vst [vmem:[#allocation2 + $0xb8] sm:$0xff] 0.0
  %v77 = vld [vmem:[%s0] sm:$0x77]
  %v79 = vcombine.high %v77, %v77
  %81 = vst [vmem:[#allocation2 + $0x8] sm:$0x7] %v77
  %82 = vst [vmem:[#allocation2 + $0x10] sm:$0x7] %v79
  %s83 = scalar_lea.vmem %s0, 8
  %v84 = vld [vmem:[%s83] sm:$0x77]
  %v86 = vcombine.high %v84, %v84
  %88 = vst [vmem:[#allocation2 + $0x18] sm:$0x7] %v84
  %89 = vst [vmem:[#allocation2 + $0x20] sm:$0x7] %v86
  %v90 = vld [vmem:[#allocation2] sm:$0x7]
  %v91 = vld [vmem:[#allocation2 + $0x8] sm:$0x7]
  %v92 = vld [vmem:[#allocation2 + $0x10] sm:$0x7]
  %v93 = vld [vmem:[#allocation2 + $0x18] sm:$0x7]
  %v94 = vld [vmem:[#allocation2 + $0x20] sm:$0x7]
  %v95 = vld [vmem:[%s1] sm:$0xf]
  %v97 = vlaneseq
  %v98 = vshrl.u32 %v97, 7
  %v99 = vsub.s32 0, %v98
  %v100 = vrot.slane %v95, %v99
  %v101 = vlaneseq
  %v102 = vshrl.u32 %v101, 7
  %v103 = vsub.s32 1, %v102
  %v104 = vrot.slane %v95, %v103
  %v105 = vlaneseq
  %v106 = vshrl.u32 %v105, 7
  %v107 = vsub.s32 2, %v106
  %v108 = vrot.slane %v95, %v107
  %v109 = vlaneseq
  %v110 = vshrl.u32 %v109, 7
  %v111 = vsub.s32 3, %v110
  %v112 = vrot.slane %v95, %v111
  %113 = vrot.lane.b32.xlu0 %v100, 111
  %v114 = vpop.permute.xlu0 %113
  %115 = vrot.lane.b32.xlu0 %v104, 111
  %v116 = vpop.permute.xlu0 %115
  %117 = vrot.lane.b32.xlu0 %v108, 111
  %v118 = vpop.permute.xlu0 %117
  %119 = vrot.lane.b32.xlu0 %v112, 111
  %v120 = vpop.permute.xlu0 %119
  %vm121 = vcmask 908288
  %v122 = vsel %vm121, %v114, %v116
  %v123 = vsel %vm121, %v116, %v118
  %v124 = vsel %vm121, %v118, %v120
  %v130 = vmul.f32 %v90, %v114
  %v131 = vmul.f32 %v91, %v122
  %v132 = vmul.f32 %v92, %v123
  %v133 = vmul.f32 %v93, %v124
  %v134 = vmul.f32 %v94, %v120
  %v135 = vld [vmem:[%s2] sm:$0xf]
  %v136 = vld [vmem:[%s2 + $0x4] sm:$0xf]
  %v137 = vld [vmem:[%s2 + $0x8] sm:$0xf]
  %v138 = vld [vmem:[%s2 + $0xc] sm:$0xf]
  %v139 = vpack.c.bf16 %v130, %v130
  %v140 = vpack.c.bf16 %v131, %v131
  %v141 = vpack.c.bf16 %v132, %v132
  %v142 = vpack.c.bf16 %v133, %v133
  %v143 = vpack.c.bf16 %v134, %v134
  %s144 = scalar_lea.vmem %s1, 4
  %v145 = vld [vmem:[%s144] sm:$0xf]
  %v147 = vlaneseq
  %v148 = vshrl.u32 %v147, 7
  %v149 = vsub.s32 0, %v148
  %v150 = vrot.slane %v145, %v149
  %v151 = vlaneseq
  %v152 = vshrl.u32 %v151, 7
  %v153 = vsub.s32 1, %v152
  %v154 = vrot.slane %v145, %v153
  %v155 = vlaneseq
  %v156 = vshrl.u32 %v155, 7
  %v157 = vsub.s32 2, %v156
  %v158 = vrot.slane %v145, %v157
  %v159 = vlaneseq
  %v160 = vshrl.u32 %v159, 7
  %v161 = vsub.s32 3, %v160
  %v162 = vrot.slane %v145, %v161
  %163 = vrot.lane.b32.xlu0 %v150, 112
  %v164 = vpop.permute.xlu0 %163
  %165 = vrot.lane.b32.xlu0 %v154, 112
  %v166 = vpop.permute.xlu0 %165
  %167 = vrot.lane.b32.xlu0 %v158, 112
  %v168 = vpop.permute.xlu0 %167
  %169 = vrot.lane.b32.xlu0 %v162, 112
  %v170 = vpop.permute.xlu0 %169
  %vm171 = vcmask 916480
  %v172 = vsel %vm171, %v164, %v166
  %v173 = vsel %vm171, %v166, %v168
  %v174 = vsel %vm171, %v168, %v170
  %v180 = vmul.f32 %v90, %v164
  %v181 = vmul.f32 %v91, %v172
  %v182 = vmul.f32 %v92, %v173
  %v183 = vmul.f32 %v93, %v174
  %v184 = vmul.f32 %v94, %v170
  %s185 = scalar_lea.vmem %s2, 16
  %v186 = vld [vmem:[%s185] sm:$0xf]
  %v187 = vld [vmem:[%s185 + $0x4] sm:$0xf]
  %v188 = vld [vmem:[%s185 + $0x8] sm:$0xf]
  %v189 = vld [vmem:[%s185 + $0xc] sm:$0xf]
  %v190 = vpack.c.bf16 %v180, %v180
  %v191 = vpack.c.bf16 %v181, %v181
  %v192 = vpack.c.bf16 %v182, %v182
  %v193 = vpack.c.bf16 %v183, %v183
  %v194 = vpack.c.bf16 %v184, %v184
  %v199 = vunpack.c.l.b16 %v186
  %v200 = vunpack.c.l.b16 %v187
  %v201 = vunpack.c.l.b16 %v188
  %v202 = vunpack.c.l.b16 %v189
  %v203 = vpack.c.b16 %v200, %v199
  %v204 = vpack.c.b16 %v202, %v201
  %210 = vrot.lane.b32.xlu0 %v190, 16
  %v211 = vpop.permute.xlu0 %210
  %212 = vrot.lane.b32.xlu0 %v191, 16
  %v213 = vpop.permute.xlu0 %212
  %214 = vrot.lane.b32.xlu0 %v192, 16
  %v215 = vpop.permute.xlu0 %214
  %216 = vrot.lane.b32.xlu0 %v193, 16
  %v217 = vpop.permute.xlu0 %216
  %218 = vrot.lane.b32.xlu0 %v194, 16
  %v219 = vpop.permute.xlu0 %218
  %vm220 = vcmask 130048
  %v221 = vsel %vm220, %v211, %v213
  %v222 = vsel %vm220, %v213, %v215
  %v223 = vsel %vm220, %v215, %v217
  %v224 = vsel %vm220, %v217, %v219
  %vm225 = vcmask 23552
  %v227 = vsel %vm225, %v203, 0
  %v230 = vsel %vm225, %v204, 0
  %vm232 = vcmask 1040384
  %vm233 = vcmask 1041408
  %v234 = vsel %vm232, 4294967295, 65535
  %v235 = vsel %vm233, %v234, 0
  %v237 = vand.u32 %v221, %v235
  %v240 = vand.u32 %v222, %v235
  %v243 = vand.u32 %v223, %v235
  %v246 = vand.u32 %v224, %v235
  %248 = vmatprep.subr.bf16.mxu0 0
  %249 = vmatpush1.bf16.msra.mxu0 0
  %250 = vmatprep.subr.bf16.mxu0 0
  %251 = vmatpush1.bf16.msra.mxu0 0
  %252 = vmatprep.subr.bf16.mxu0 0
  %253 = vmatpush1.bf16.msra.mxu0 0
  %254 = vmatprep.subr.bf16.mxu0 0
  %255 = vmatpush1.bf16.msra.mxu0 0
  %256 = vmatprep.subr.bf16.mxu0 0
  %257 = vmatpush1.bf16.msra.mxu0 0
  %258 = vmatprep.subr.bf16.mxu0 0
  %259 = vmatpush1.bf16.msra.mxu0 0
  %260 = vmatprep.subr.bf16.mxu0 0
  %261 = vmatpush1.bf16.msra.mxu0 0
  %262 = vmatprep.subr.bf16.mxu0 %v240
  %263 = vmatpush1.bf16.msra.mxu0 %v237
  %264 = vmatprep.subr.bf16.mxu0 0
  %265 = vmatpush2.bf16.msra.mxu0 0
  %266 = vmatprep.subr.bf16.mxu0 0
  %267 = vmatpush2.bf16.msra.mxu0 0
  %268 = vmatprep.subr.bf16.mxu0 0
  %269 = vmatpush2.bf16.msra.mxu0 0
  %270 = vmatprep.subr.bf16.mxu0 0
  %271 = vmatpush2.bf16.msra.mxu0 0
  %272 = vmatprep.subr.bf16.mxu0 0
  %273 = vmatpush2.bf16.msra.mxu0 0
  %274 = vmatprep.subr.bf16.mxu0 0
  %275 = vmatpush2.bf16.msra.mxu0 0
  %276 = vmatprep.subr.bf16.mxu0 0
  %277 = vmatpush2.bf16.msra.mxu0 0
  %278 = vmatprep.subr.bf16.mxu0 0
  %279 = vmatpush2.bf16.msra.mxu0 0
  %280 = vmatprep.mubr.bf16.mxu0 0
  %281 = vmatmul.mubr.bf16.gmra.mxu0 %v227
  %v282 = vpop.f32.mrf.mxu0
  %v283 = vadd.f32 0.0, %v282
  %v284 = vpop.f32.mrf.mxu0
  %v285 = vadd.f32 0.0, %v284
  %v286 = vpop.f32.mrf.mxu0
  %v287 = vadd.f32 0.0, %v286
  %v288 = vpop.f32.mrf.mxu0
  %v289 = vadd.f32 0.0, %v288
  %290 = vmatprep.mubr.bf16.mxu0 0
  %291 = vmatmul.mubr.bf16.gmra.mxu0 %v230
  %v292 = vpop.f32.mrf.mxu0
  %v293 = vadd.f32 0.0, %v292
  %v294 = vpop.f32.mrf.mxu0
  %v295 = vadd.f32 0.0, %v294
  %v296 = vpop.f32.mrf.mxu0
  %v297 = vadd.f32 0.0, %v296
  %v298 = vpop.f32.mrf.mxu0
  %v299 = vadd.f32 0.0, %v298
  %300 = vdwg.mxu0
  %301 = vmatprep.subr.bf16.mxu0 0
  %302 = vmatpush1.bf16.msra.mxu0 0
  %303 = vmatprep.subr.bf16.mxu0 0
  %304 = vmatpush1.bf16.msra.mxu0 0
  %305 = vmatprep.subr.bf16.mxu0 0
  %306 = vmatpush1.bf16.msra.mxu0 0
  %307 = vmatprep.subr.bf16.mxu0 0
  %308 = vmatpush1.bf16.msra.mxu0 0
  %309 = vmatprep.subr.bf16.mxu0 0
  %310 = vmatpush1.bf16.msra.mxu0 0
  %311 = vmatprep.subr.bf16.mxu0 0
  %312 = vmatpush1.bf16.msra.mxu0 0
  %313 = vmatprep.subr.bf16.mxu0 0
  %314 = vmatpush1.bf16.msra.mxu0 0
  %315 = vmatprep.subr.bf16.mxu0 %v246
  %316 = vmatpush1.bf16.msra.mxu0 %v243
  %317 = vmatprep.subr.bf16.mxu0 0
  %318 = vmatpush2.bf16.msra.mxu0 0
  %319 = vmatprep.subr.bf16.mxu0 0
  %320 = vmatpush2.bf16.msra.mxu0 0
  %321 = vmatprep.subr.bf16.mxu0 0
  %322 = vmatpush2.bf16.msra.mxu0 0
  %323 = vmatprep.subr.bf16.mxu0 0
  %324 = vmatpush2.bf16.msra.mxu0 0
  %325 = vmatprep.subr.bf16.mxu0 0
  %326 = vmatpush2.bf16.msra.mxu0 0
  %327 = vmatprep.subr.bf16.mxu0 0
  %328 = vmatpush2.bf16.msra.mxu0 0
  %329 = vmatprep.subr.bf16.mxu0 0
  %330 = vmatpush2.bf16.msra.mxu0 0
  %331 = vmatprep.subr.bf16.mxu0 0
  %332 = vmatpush2.bf16.msra.mxu0 0
  %333 = vmatprep.mubr.bf16.mxu0 0
  %334 = vmatmul.mubr.bf16.gmra.mxu0 %v227
  %v335 = vpop.f32.mrf.mxu0
  %v336 = vadd.f32 0.0, %v335
  %v337 = vpop.f32.mrf.mxu0
  %v338 = vadd.f32 0.0, %v337
  %v339 = vpop.f32.mrf.mxu0
  %v340 = vadd.f32 0.0, %v339
  %v341 = vpop.f32.mrf.mxu0
  %v342 = vadd.f32 0.0, %v341
  %343 = vmatprep.mubr.bf16.mxu0 0
  %344 = vmatmul.mubr.bf16.gmra.mxu0 %v230
  %v345 = vpop.f32.mrf.mxu0
  %v346 = vadd.f32 0.0, %v345
  %v347 = vpop.f32.mrf.mxu0
  %v348 = vadd.f32 0.0, %v347
  %v349 = vpop.f32.mrf.mxu0
  %v350 = vadd.f32 0.0, %v349
  %v351 = vpop.f32.mrf.mxu0
  %v352 = vadd.f32 0.0, %v351
  %353 = vdwg.mxu0
  %v358 = vunpack.c.l.b16 %v135
  %v359 = vunpack.c.l.b16 %v136
  %v360 = vunpack.c.l.b16 %v137
  %v361 = vunpack.c.l.b16 %v138
  %v362 = vpack.c.b16 %v359, %v358
  %v363 = vpack.c.b16 %v361, %v360
  %369 = vrot.lane.b32.xlu0 %v139, 17
  %v370 = vpop.permute.xlu0 %369
  %371 = vrot.lane.b32.xlu0 %v140, 17
  %v372 = vpop.permute.xlu0 %371
  %373 = vrot.lane.b32.xlu0 %v141, 17
  %v374 = vpop.permute.xlu0 %373
  %375 = vrot.lane.b32.xlu0 %v142, 17
  %v376 = vpop.permute.xlu0 %375
  %377 = vrot.lane.b32.xlu0 %v143, 17
  %v378 = vpop.permute.xlu0 %377
  %vm379 = vcmask 138240
  %v380 = vsel %vm379, %v370, %v372
  %v381 = vsel %vm379, %v372, %v374
  %v382 = vsel %vm379, %v374, %v376
  %v383 = vsel %vm379, %v376, %v378
  %v385 = vsel %vm225, %v362, 0
  %v388 = vsel %vm225, %v363, 0
  %v391 = vand.u32 %v380, %v235
  %v394 = vand.u32 %v381, %v235
  %v397 = vand.u32 %v382, %v235
  %v400 = vand.u32 %v383, %v235
  %402 = vmatprep.subr.bf16.mxu0 0
  %403 = vmatpush1.bf16.msra.mxu0 0
  %404 = vmatprep.subr.bf16.mxu0 0
  %405 = vmatpush1.bf16.msra.mxu0 0
  %406 = vmatprep.subr.bf16.mxu0 0
  %407 = vmatpush1.bf16.msra.mxu0 0
  %408 = vmatprep.subr.bf16.mxu0 0
  %409 = vmatpush1.bf16.msra.mxu0 0
  %410 = vmatprep.subr.bf16.mxu0 0
  %411 = vmatpush1.bf16.msra.mxu0 0
  %412 = vmatprep.subr.bf16.mxu0 0
  %413 = vmatpush1.bf16.msra.mxu0 0
  %414 = vmatprep.subr.bf16.mxu0 0
  %415 = vmatpush1.bf16.msra.mxu0 0
  %416 = vmatprep.subr.bf16.mxu0 %v394
  %417 = vmatpush1.bf16.msra.mxu0 %v391
  %418 = vmatprep.subr.bf16.mxu0 0
  %419 = vmatpush2.bf16.msra.mxu0 0
  %420 = vmatprep.subr.bf16.mxu0 0
  %421 = vmatpush2.bf16.msra.mxu0 0
  %422 = vmatprep.subr.bf16.mxu0 0
  %423 = vmatpush2.bf16.msra.mxu0 0
  %424 = vmatprep.subr.bf16.mxu0 0
  %425 = vmatpush2.bf16.msra.mxu0 0
  %426 = vmatprep.subr.bf16.mxu0 0
  %427 = vmatpush2.bf16.msra.mxu0 0
  %428 = vmatprep.subr.bf16.mxu0 0
  %429 = vmatpush2.bf16.msra.mxu0 0
  %430 = vmatprep.subr.bf16.mxu0 0
  %431 = vmatpush2.bf16.msra.mxu0 0
  %432 = vmatprep.subr.bf16.mxu0 0
  %433 = vmatpush2.bf16.msra.mxu0 0
  %434 = vmatprep.mubr.bf16.mxu0 0
  %435 = vmatmul.mubr.bf16.gmra.mxu0 %v385
  %v436 = vpop.f32.mrf.mxu0
  %v437 = vadd.f32 %v283, %v436
  %v438 = vpop.f32.mrf.mxu0
  %v439 = vadd.f32 %v285, %v438
  %v440 = vpop.f32.mrf.mxu0
  %v441 = vadd.f32 %v287, %v440
  %v442 = vpop.f32.mrf.mxu0
  %v443 = vadd.f32 %v289, %v442
  %444 = vmatprep.mubr.bf16.mxu0 0
  %445 = vmatmul.mubr.bf16.gmra.mxu0 %v388
  %v446 = vpop.f32.mrf.mxu0
  %v447 = vadd.f32 %v293, %v446
  %v448 = vpop.f32.mrf.mxu0
  %v449 = vadd.f32 %v295, %v448
  %v450 = vpop.f32.mrf.mxu0
  %v451 = vadd.f32 %v297, %v450
  %v452 = vpop.f32.mrf.mxu0
  %v453 = vadd.f32 %v299, %v452
  %454 = vdwg.mxu0
  %455 = vmatprep.subr.bf16.mxu0 0
  %456 = vmatpush1.bf16.msra.mxu0 0
  %457 = vmatprep.subr.bf16.mxu0 0
  %458 = vmatpush1.bf16.msra.mxu0 0
  %459 = vmatprep.subr.bf16.mxu0 0
  %460 = vmatpush1.bf16.msra.mxu0 0
  %461 = vmatprep.subr.bf16.mxu0 0
  %462 = vmatpush1.bf16.msra.mxu0 0
  %463 = vmatprep.subr.bf16.mxu0 0
  %464 = vmatpush1.bf16.msra.mxu0 0
  %465 = vmatprep.subr.bf16.mxu0 0
  %466 = vmatpush1.bf16.msra.mxu0 0
  %467 = vmatprep.subr.bf16.mxu0 0
  %468 = vmatpush1.bf16.msra.mxu0 0
  %469 = vmatprep.subr.bf16.mxu0 %v400
  %470 = vmatpush1.bf16.msra.mxu0 %v397
  %471 = vmatprep.subr.bf16.mxu0 0
  %472 = vmatpush2.bf16.msra.mxu0 0
  %473 = vmatprep.subr.bf16.mxu0 0
  %474 = vmatpush2.bf16.msra.mxu0 0
  %475 = vmatprep.subr.bf16.mxu0 0
  %476 = vmatpush2.bf16.msra.mxu0 0
  %477 = vmatprep.subr.bf16.mxu0 0
  %478 = vmatpush2.bf16.msra.mxu0 0
  %479 = vmatprep.subr.bf16.mxu0 0
  %480 = vmatpush2.bf16.msra.mxu0 0
  %481 = vmatprep.subr.bf16.mxu0 0
  %482 = vmatpush2.bf16.msra.mxu0 0
  %483 = vmatprep.subr.bf16.mxu0 0
  %484 = vmatpush2.bf16.msra.mxu0 0
  %485 = vmatprep.subr.bf16.mxu0 0
  %486 = vmatpush2.bf16.msra.mxu0 0
  %487 = vmatprep.mubr.bf16.mxu0 0
  %488 = vmatmul.mubr.bf16.gmra.mxu0 %v385
  %v489 = vpop.f32.mrf.mxu0
  %v490 = vadd.f32 %v336, %v489
  %v491 = vpop.f32.mrf.mxu0
  %v492 = vadd.f32 %v338, %v491
  %v493 = vpop.f32.mrf.mxu0
  %v494 = vadd.f32 %v340, %v493
  %v495 = vpop.f32.mrf.mxu0
  %v496 = vadd.f32 %v342, %v495
  %497 = vmatprep.mubr.bf16.mxu0 0
  %498 = vmatmul.mubr.bf16.gmra.mxu0 %v388
  %v499 = vpop.f32.mrf.mxu0
  %v500 = vadd.f32 %v346, %v499
  %v501 = vpop.f32.mrf.mxu0
  %v502 = vadd.f32 %v348, %v501
  %v503 = vpop.f32.mrf.mxu0
  %v504 = vadd.f32 %v350, %v503
  %v505 = vpop.f32.mrf.mxu0
  %v506 = vadd.f32 %v352, %v505
  %507 = vdwg.mxu0
  %s508 = scalar_lea.vmem %s1, 8
  %v509 = vld [vmem:[%s508] sm:$0xf]
  %v511 = vlaneseq
  %v512 = vshrl.u32 %v511, 7
  %v513 = vsub.s32 0, %v512
  %v514 = vrot.slane %v509, %v513
  %v515 = vlaneseq
  %v516 = vshrl.u32 %v515, 7
  %v517 = vsub.s32 1, %v516
  %v518 = vrot.slane %v509, %v517
  %v519 = vlaneseq
  %v520 = vshrl.u32 %v519, 7
  %v521 = vsub.s32 2, %v520
  %v522 = vrot.slane %v509, %v521
  %v523 = vlaneseq
  %v524 = vshrl.u32 %v523, 7
  %v525 = vsub.s32 3, %v524
  %v526 = vrot.slane %v509, %v525
  %527 = vrot.lane.b32.xlu0 %v514, 113
  %v528 = vpop.permute.xlu0 %527
  %529 = vrot.lane.b32.xlu0 %v518, 113
  %v530 = vpop.permute.xlu0 %529
  %531 = vrot.lane.b32.xlu0 %v522, 113
  %v532 = vpop.permute.xlu0 %531
  %533 = vrot.lane.b32.xlu0 %v526, 113
  %v534 = vpop.permute.xlu0 %533
  %vm535 = vcmask 924672
  %v536 = vsel %vm535, %v528, %v530
  %v537 = vsel %vm535, %v530, %v532
  %v538 = vsel %vm535, %v532, %v534
  %v544 = vmul.f32 %v90, %v528
  %v545 = vmul.f32 %v91, %v536
  %v546 = vmul.f32 %v92, %v537
  %v547 = vmul.f32 %v93, %v538
  %v548 = vmul.f32 %v94, %v534
  %s549 = scalar_lea.vmem %s2, 32
  %v550 = vld [vmem:[%s549] sm:$0xf]
  %v551 = vld [vmem:[%s549 + $0x4] sm:$0xf]
  %v552 = vld [vmem:[%s549 + $0x8] sm:$0xf]
  %v553 = vld [vmem:[%s549 + $0xc] sm:$0xf]
  %v554 = vpack.c.bf16 %v544, %v544
  %v555 = vpack.c.bf16 %v545, %v545
  %v556 = vpack.c.bf16 %v546, %v546
  %v557 = vpack.c.bf16 %v547, %v547
  %v558 = vpack.c.bf16 %v548, %v548
  %v563 = vunpack.c.l.b16 %v550
  %v564 = vunpack.c.l.b16 %v551
  %v565 = vunpack.c.l.b16 %v552
  %v566 = vunpack.c.l.b16 %v553
  %v567 = vpack.c.b16 %v564, %v563
  %v568 = vpack.c.b16 %v566, %v565
  %574 = vrot.lane.b32.xlu0 %v554, 15
  %v575 = vpop.permute.xlu0 %574
  %576 = vrot.lane.b32.xlu0 %v555, 15
  %v577 = vpop.permute.xlu0 %576
  %578 = vrot.lane.b32.xlu0 %v556, 15
  %v579 = vpop.permute.xlu0 %578
  %580 = vrot.lane.b32.xlu0 %v557, 15
  %v581 = vpop.permute.xlu0 %580
  %582 = vrot.lane.b32.xlu0 %v558, 15
  %v583 = vpop.permute.xlu0 %582
  %vm584 = vcmask 121856
  %v585 = vsel %vm584, %v575, %v577
  %v586 = vsel %vm584, %v577, %v579
  %v587 = vsel %vm584, %v579, %v581
  %v588 = vsel %vm584, %v581, %v583
  %v590 = vsel %vm225, %v567, 0
  %v593 = vsel %vm225, %v568, 0
  %v596 = vand.u32 %v585, %v235
  %v599 = vand.u32 %v586, %v235
  %v602 = vand.u32 %v587, %v235
  %v605 = vand.u32 %v588, %v235
  %607 = vmatprep.subr.bf16.mxu0 0
  %608 = vmatpush1.bf16.msra.mxu0 0
  %609 = vmatprep.subr.bf16.mxu0 0
  %610 = vmatpush1.bf16.msra.mxu0 0
  %611 = vmatprep.subr.bf16.mxu0 0
  %612 = vmatpush1.bf16.msra.mxu0 0
  %613 = vmatprep.subr.bf16.mxu0 0
  %614 = vmatpush1.bf16.msra.mxu0 0
  %615 = vmatprep.subr.bf16.mxu0 0
  %616 = vmatpush1.bf16.msra.mxu0 0
  %617 = vmatprep.subr.bf16.mxu0 0
  %618 = vmatpush1.bf16.msra.mxu0 0
  %619 = vmatprep.subr.bf16.mxu0 0
  %620 = vmatpush1.bf16.msra.mxu0 0
  %621 = vmatprep.subr.bf16.mxu0 %v599
  %622 = vmatpush1.bf16.msra.mxu0 %v596
  %623 = vmatprep.subr.bf16.mxu0 0
  %624 = vmatpush2.bf16.msra.mxu0 0
  %625 = vmatprep.subr.bf16.mxu0 0
  %626 = vmatpush2.bf16.msra.mxu0 0
  %627 = vmatprep.subr.bf16.mxu0 0
  %628 = vmatpush2.bf16.msra.mxu0 0
  %629 = vmatprep.subr.bf16.mxu0 0
  %630 = vmatpush2.bf16.msra.mxu0 0
  %631 = vmatprep.subr.bf16.mxu0 0
  %632 = vmatpush2.bf16.msra.mxu0 0
  %633 = vmatprep.subr.bf16.mxu0 0
  %634 = vmatpush2.bf16.msra.mxu0 0
  %635 = vmatprep.subr.bf16.mxu0 0
  %636 = vmatpush2.bf16.msra.mxu0 0
  %637 = vmatprep.subr.bf16.mxu0 0
  %638 = vmatpush2.bf16.msra.mxu0 0
  %639 = vmatprep.mubr.bf16.mxu0 0
  %640 = vmatmul.mubr.bf16.gmra.mxu0 %v590
  %v641 = vpop.f32.mrf.mxu0
  %v642 = vadd.f32 0.0, %v641
  %v643 = vpop.f32.mrf.mxu0
  %v644 = vadd.f32 0.0, %v643
  %v645 = vpop.f32.mrf.mxu0
  %v646 = vadd.f32 0.0, %v645
  %v647 = vpop.f32.mrf.mxu0
  %v648 = vadd.f32 0.0, %v647
  %649 = vmatprep.mubr.bf16.mxu0 0
  %650 = vmatmul.mubr.bf16.gmra.mxu0 %v593
  %v651 = vpop.f32.mrf.mxu0
  %v652 = vadd.f32 0.0, %v651
  %v653 = vpop.f32.mrf.mxu0
  %v654 = vadd.f32 0.0, %v653
  %v655 = vpop.f32.mrf.mxu0
  %v656 = vadd.f32 0.0, %v655
  %v657 = vpop.f32.mrf.mxu0
  %v658 = vadd.f32 0.0, %v657
  %659 = vdwg.mxu0
  %660 = vmatprep.subr.bf16.mxu0 0
  %661 = vmatpush1.bf16.msra.mxu0 0
  %662 = vmatprep.subr.bf16.mxu0 0
  %663 = vmatpush1.bf16.msra.mxu0 0
  %664 = vmatprep.subr.bf16.mxu0 0
  %665 = vmatpush1.bf16.msra.mxu0 0
  %666 = vmatprep.subr.bf16.mxu0 0
  %667 = vmatpush1.bf16.msra.mxu0 0
  %668 = vmatprep.subr.bf16.mxu0 0
  %669 = vmatpush1.bf16.msra.mxu0 0
  %670 = vmatprep.subr.bf16.mxu0 0
  %671 = vmatpush1.bf16.msra.mxu0 0
  %672 = vmatprep.subr.bf16.mxu0 0
  %673 = vmatpush1.bf16.msra.mxu0 0
  %674 = vmatprep.subr.bf16.mxu0 %v605
  %675 = vmatpush1.bf16.msra.mxu0 %v602
  %676 = vmatprep.subr.bf16.mxu0 0
  %677 = vmatpush2.bf16.msra.mxu0 0
  %678 = vmatprep.subr.bf16.mxu0 0
  %679 = vmatpush2.bf16.msra.mxu0 0
  %680 = vmatprep.subr.bf16.mxu0 0
  %681 = vmatpush2.bf16.msra.mxu0 0
  %682 = vmatprep.subr.bf16.mxu0 0
  %683 = vmatpush2.bf16.msra.mxu0 0
  %684 = vmatprep.subr.bf16.mxu0 0
  %685 = vmatpush2.bf16.msra.mxu0 0
  %686 = vmatprep.subr.bf16.mxu0 0
  %687 = vmatpush2.bf16.msra.mxu0 0
  %688 = vmatprep.subr.bf16.mxu0 0
  %689 = vmatpush2.bf16.msra.mxu0 0
  %690 = vmatprep.subr.bf16.mxu0 0
  %691 = vmatpush2.bf16.msra.mxu0 0
  %692 = vmatprep.mubr.bf16.mxu0 0
  %693 = vmatmul.mubr.bf16.gmra.mxu0 %v590
  %v694 = vpop.f32.mrf.mxu0
  %v695 = vadd.f32 0.0, %v694
  %v696 = vpop.f32.mrf.mxu0
  %v697 = vadd.f32 0.0, %v696
  %v698 = vpop.f32.mrf.mxu0
  %v699 = vadd.f32 0.0, %v698
  %v700 = vpop.f32.mrf.mxu0
  %v701 = vadd.f32 0.0, %v700
  %702 = vmatprep.mubr.bf16.mxu0 0
  %703 = vmatmul.mubr.bf16.gmra.mxu0 %v593
  %v704 = vpop.f32.mrf.mxu0
  %v705 = vadd.f32 0.0, %v704
  %v706 = vpop.f32.mrf.mxu0
  %v707 = vadd.f32 0.0, %v706
  %v708 = vpop.f32.mrf.mxu0
  %v709 = vadd.f32 0.0, %v708
  %v710 = vpop.f32.mrf.mxu0
  %v711 = vadd.f32 0.0, %v710
  %712 = vdwg.mxu0
  %v713 = vadd.f32 %v437, %v642
  %v714 = vadd.f32 %v439, %v644
  %v715 = vadd.f32 %v490, %v695
  %v716 = vadd.f32 %v492, %v697
  %v717 = vadd.f32 %v441, %v646
  %v718 = vadd.f32 %v443, %v648
  %v719 = vadd.f32 %v494, %v699
  %v720 = vadd.f32 %v496, %v701
  %v721 = vadd.f32 %v447, %v652
  %v722 = vadd.f32 %v449, %v654
  %v723 = vadd.f32 %v500, %v705
  %v724 = vadd.f32 %v502, %v707
  %v725 = vadd.f32 %v451, %v656
  %v726 = vadd.f32 %v453, %v658
  %v727 = vadd.f32 %v504, %v709
  %v728 = vadd.f32 %v506, %v711
  %s729 = scalar_lea.vmem %s1, 12
  %v730 = vld [vmem:[%s729] sm:$0xf]
  %v732 = vlaneseq
  %v733 = vshrl.u32 %v732, 7
  %v734 = vsub.s32 0, %v733
  %v735 = vrot.slane %v730, %v734
  %v736 = vlaneseq
  %v737 = vshrl.u32 %v736, 7
  %v738 = vsub.s32 1, %v737
  %v739 = vrot.slane %v730, %v738
  %v740 = vlaneseq
  %v741 = vshrl.u32 %v740, 7
  %v742 = vsub.s32 2, %v741
  %v743 = vrot.slane %v730, %v742
  %v744 = vlaneseq
  %v745 = vshrl.u32 %v744, 7
  %v746 = vsub.s32 3, %v745
  %v747 = vrot.slane %v730, %v746
  %748 = vrot.lane.b32.xlu0 %v735, 127
  %v749 = vpop.permute.xlu0 %748
  %750 = vrot.lane.b32.xlu0 %v739, 127
  %v751 = vpop.permute.xlu0 %750
  %752 = vrot.lane.b32.xlu0 %v743, 127
  %v753 = vpop.permute.xlu0 %752
  %754 = vrot.lane.b32.xlu0 %v747, 127
  %v755 = vpop.permute.xlu0 %754
  %vm756 = vcmask 1039360
  %v757 = vsel %vm756, %v749, %v751
  %v758 = vsel %vm756, %v751, %v753
  %v759 = vsel %vm756, %v753, %v755
  %v765 = vmul.f32 %v90, %v749
  %v766 = vmul.f32 %v91, %v757
  %v767 = vmul.f32 %v92, %v758
  %v768 = vmul.f32 %v93, %v759
  %v769 = vmul.f32 %v94, %v755
  %s770 = scalar_lea.vmem %s2, 48
  %v771 = vld [vmem:[%s770] sm:$0xf]
  %v772 = vld [vmem:[%s770 + $0x4] sm:$0xf]
  %v773 = vld [vmem:[%s770 + $0x8] sm:$0xf]
  %v774 = vld [vmem:[%s770 + $0xc] sm:$0xf]
  %v775 = vpack.c.bf16 %v765, %v765
  %v776 = vpack.c.bf16 %v766, %v766
  %v777 = vpack.c.bf16 %v767, %v767
  %v778 = vpack.c.bf16 %v768, %v768
  %v779 = vpack.c.bf16 %v769, %v769
  %v784 = vunpack.c.l.b16 %v771
  %v785 = vunpack.c.l.b16 %v772
  %v786 = vunpack.c.l.b16 %v773
  %v787 = vunpack.c.l.b16 %v774
  %v788 = vpack.c.b16 %v785, %v784
  %v789 = vpack.c.b16 %v787, %v786
  %795 = vrot.lane.b32.xlu0 %v775, 1
  %v796 = vpop.permute.xlu0 %795
  %797 = vrot.lane.b32.xlu0 %v776, 1
  %v798 = vpop.permute.xlu0 %797
  %799 = vrot.lane.b32.xlu0 %v777, 1
  %v800 = vpop.permute.xlu0 %799
  %801 = vrot.lane.b32.xlu0 %v778, 1
  %v802 = vpop.permute.xlu0 %801
  %803 = vrot.lane.b32.xlu0 %v779, 1
  %v804 = vpop.permute.xlu0 %803
  %vm805 = vcmask 7168
  %v806 = vsel %vm805, %v796, %v798
  %v807 = vsel %vm805, %v798, %v800
  %v808 = vsel %vm805, %v800, %v802
  %v809 = vsel %vm805, %v802, %v804
  %v811 = vsel %vm225, %v788, 0
  %v814 = vsel %vm225, %v789, 0
  %v817 = vand.u32 %v806, %v235
  %v820 = vand.u32 %v807, %v235
  %v823 = vand.u32 %v808, %v235
  %v826 = vand.u32 %v809, %v235
  %828 = vmatprep.subr.bf16.mxu0 0
  %829 = vmatpush1.bf16.msra.mxu0 0
  %830 = vmatprep.subr.bf16.mxu0 0
  %831 = vmatpush1.bf16.msra.mxu0 0
  %832 = vmatprep.subr.bf16.mxu0 0
  %833 = vmatpush1.bf16.msra.mxu0 0
  %834 = vmatprep.subr.bf16.mxu0 0
  %835 = vmatpush1.bf16.msra.mxu0 0
  %836 = vmatprep.subr.bf16.mxu0 0
  %837 = vmatpush1.bf16.msra.mxu0 0
  %838 = vmatprep.subr.bf16.mxu0 0
  %839 = vmatpush1.bf16.msra.mxu0 0
  %840 = vmatprep.subr.bf16.mxu0 0
  %841 = vmatpush1.bf16.msra.mxu0 0
  %842 = vmatprep.subr.bf16.mxu0 %v820
  %843 = vmatpush1.bf16.msra.mxu0 %v817
  %844 = vmatprep.subr.bf16.mxu0 0
  %845 = vmatpush2.bf16.msra.mxu0 0
  %846 = vmatprep.subr.bf16.mxu0 0
  %847 = vmatpush2.bf16.msra.mxu0 0
  %848 = vmatprep.subr.bf16.mxu0 0
  %849 = vmatpush2.bf16.msra.mxu0 0
  %850 = vmatprep.subr.bf16.mxu0 0
  %851 = vmatpush2.bf16.msra.mxu0 0
  %852 = vmatprep.subr.bf16.mxu0 0
  %853 = vmatpush2.bf16.msra.mxu0 0
  %854 = vmatprep.subr.bf16.mxu0 0
  %855 = vmatpush2.bf16.msra.mxu0 0
  %856 = vmatprep.subr.bf16.mxu0 0
  %857 = vmatpush2.bf16.msra.mxu0 0
  %858 = vmatprep.subr.bf16.mxu0 0
  %859 = vmatpush2.bf16.msra.mxu0 0
  %860 = vmatprep.mubr.bf16.mxu0 0
  %861 = vmatmul.mubr.bf16.gmra.mxu0 %v811
  %v862 = vpop.f32.mrf.mxu0
  %v863 = vadd.f32 0.0, %v862
  %v864 = vpop.f32.mrf.mxu0
  %v865 = vadd.f32 0.0, %v864
  %v866 = vpop.f32.mrf.mxu0
  %v867 = vadd.f32 0.0, %v866
  %v868 = vpop.f32.mrf.mxu0
  %v869 = vadd.f32 0.0, %v868
  %870 = vmatprep.mubr.bf16.mxu0 0
  %871 = vmatmul.mubr.bf16.gmra.mxu0 %v814
  %v872 = vpop.f32.mrf.mxu0
  %v873 = vadd.f32 0.0, %v872
  %v874 = vpop.f32.mrf.mxu0
  %v875 = vadd.f32 0.0, %v874
  %v876 = vpop.f32.mrf.mxu0
  %v877 = vadd.f32 0.0, %v876
  %v878 = vpop.f32.mrf.mxu0
  %v879 = vadd.f32 0.0, %v878
  %880 = vdwg.mxu0
  %881 = vmatprep.subr.bf16.mxu0 0
  %882 = vmatpush1.bf16.msra.mxu0 0
  %883 = vmatprep.subr.bf16.mxu0 0
  %884 = vmatpush1.bf16.msra.mxu0 0
  %885 = vmatprep.subr.bf16.mxu0 0
  %886 = vmatpush1.bf16.msra.mxu0 0
  %887 = vmatprep.subr.bf16.mxu0 0
  %888 = vmatpush1.bf16.msra.mxu0 0
  %889 = vmatprep.subr.bf16.mxu0 0
  %890 = vmatpush1.bf16.msra.mxu0 0
  %891 = vmatprep.subr.bf16.mxu0 0
  %892 = vmatpush1.bf16.msra.mxu0 0
  %893 = vmatprep.subr.bf16.mxu0 0
  %894 = vmatpush1.bf16.msra.mxu0 0
  %895 = vmatprep.subr.bf16.mxu0 %v826
  %896 = vmatpush1.bf16.msra.mxu0 %v823
  %897 = vmatprep.subr.bf16.mxu0 0
  %898 = vmatpush2.bf16.msra.mxu0 0
  %899 = vmatprep.subr.bf16.mxu0 0
  %900 = vmatpush2.bf16.msra.mxu0 0
  %901 = vmatprep.subr.bf16.mxu0 0
  %902 = vmatpush2.bf16.msra.mxu0 0
  %903 = vmatprep.subr.bf16.mxu0 0
  %904 = vmatpush2.bf16.msra.mxu0 0
  %905 = vmatprep.subr.bf16.mxu0 0
  %906 = vmatpush2.bf16.msra.mxu0 0
  %907 = vmatprep.subr.bf16.mxu0 0
  %908 = vmatpush2.bf16.msra.mxu0 0
  %909 = vmatprep.subr.bf16.mxu0 0
  %910 = vmatpush2.bf16.msra.mxu0 0
  %911 = vmatprep.subr.bf16.mxu0 0
  %912 = vmatpush2.bf16.msra.mxu0 0
  %913 = vmatprep.mubr.bf16.mxu0 0
  %914 = vmatmul.mubr.bf16.gmra.mxu0 %v811
  %v915 = vpop.f32.mrf.mxu0
  %v916 = vadd.f32 0.0, %v915
  %v917 = vpop.f32.mrf.mxu0
  %v918 = vadd.f32 0.0, %v917
  %v919 = vpop.f32.mrf.mxu0
  %v920 = vadd.f32 0.0, %v919
  %v921 = vpop.f32.mrf.mxu0
  %v922 = vadd.f32 0.0, %v921
  %923 = vmatprep.mubr.bf16.mxu0 0
  %924 = vmatmul.mubr.bf16.gmra.mxu0 %v814
  %v925 = vpop.f32.mrf.mxu0
  %v926 = vadd.f32 0.0, %v925
  %v927 = vpop.f32.mrf.mxu0
  %v928 = vadd.f32 0.0, %v927
  %v929 = vpop.f32.mrf.mxu0
  %v930 = vadd.f32 0.0, %v929
  %v931 = vpop.f32.mrf.mxu0
  %v932 = vadd.f32 0.0, %v931
  %933 = vdwg.mxu0
  %v934 = vadd.f32 %v713, %v863
  %v935 = vadd.f32 %v714, %v865
  %v936 = vadd.f32 %v715, %v916
  %v937 = vadd.f32 %v716, %v918
  %v938 = vadd.f32 %v717, %v867
  %v939 = vadd.f32 %v718, %v869
  %v940 = vadd.f32 %v719, %v920
  %v941 = vadd.f32 %v720, %v922
  %v942 = vadd.f32 %v721, %v873
  %v943 = vadd.f32 %v722, %v875
  %v944 = vadd.f32 %v723, %v926
  %v945 = vadd.f32 %v724, %v928
  %v946 = vadd.f32 %v725, %v877
  %v947 = vadd.f32 %v726, %v879
  %v948 = vadd.f32 %v727, %v930
  %v949 = vadd.f32 %v728, %v932
  %s950 = scalar_lea.vmem %s2, 64
  %v951 = vld [vmem:[%s950] sm:$0xf]
  %v952 = vld [vmem:[%s950 + $0x4] sm:$0xf]
  %v953 = vld [vmem:[%s950 + $0x8] sm:$0xf]
  %v954 = vld [vmem:[%s950 + $0xc] sm:$0xf]
  %v955 = vpack.c.bf16 %v91, %v91
  %v956 = vpack.c.bf16 %v92, %v92
  %v957 = vpack.c.bf16 %v93, %v93
  %v958 = vpack.c.bf16 %v94, %v94
  %v963 = vunpack.c.l.b16 %v951
  %v964 = vunpack.c.l.b16 %v952
  %v965 = vunpack.c.l.b16 %v953
  %v966 = vunpack.c.l.b16 %v954
  %v967 = vpack.c.b16 %v964, %v963
  %v968 = vpack.c.b16 %v966, %v965
  %v970 = vsel %vm225, %v967, 0
  %v973 = vsel %vm225, %v968, 0
  %v976 = vand.u32 %v955, %v235
  %v979 = vand.u32 %v956, %v235
  %v982 = vand.u32 %v957, %v235
  %v985 = vand.u32 %v958, %v235
  %987 = vmatprep.subr.bf16.mxu0 0
  %988 = vmatpush1.bf16.msra.mxu0 0
  %989 = vmatprep.subr.bf16.mxu0 0
  %990 = vmatpush1.bf16.msra.mxu0 0
  %991 = vmatprep.subr.bf16.mxu0 0
  %992 = vmatpush1.bf16.msra.mxu0 0
  %993 = vmatprep.subr.bf16.mxu0 0
  %994 = vmatpush1.bf16.msra.mxu0 0
  %995 = vmatprep.subr.bf16.mxu0 0
  %996 = vmatpush1.bf16.msra.mxu0 0
  %997 = vmatprep.subr.bf16.mxu0 0
  %998 = vmatpush1.bf16.msra.mxu0 0
  %999 = vmatprep.subr.bf16.mxu0 0
  %1000 = vmatpush1.bf16.msra.mxu0 0
  %1001 = vmatprep.subr.bf16.mxu0 %v979
  %1002 = vmatpush1.bf16.msra.mxu0 %v976
  %1003 = vmatprep.subr.bf16.mxu0 0
  %1004 = vmatpush2.bf16.msra.mxu0 0
  %1005 = vmatprep.subr.bf16.mxu0 0
  %1006 = vmatpush2.bf16.msra.mxu0 0
  %1007 = vmatprep.subr.bf16.mxu0 0
  %1008 = vmatpush2.bf16.msra.mxu0 0
  %1009 = vmatprep.subr.bf16.mxu0 0
  %1010 = vmatpush2.bf16.msra.mxu0 0
  %1011 = vmatprep.subr.bf16.mxu0 0
  %1012 = vmatpush2.bf16.msra.mxu0 0
  %1013 = vmatprep.subr.bf16.mxu0 0
  %1014 = vmatpush2.bf16.msra.mxu0 0
  %1015 = vmatprep.subr.bf16.mxu0 0
  %1016 = vmatpush2.bf16.msra.mxu0 0
  %1017 = vmatprep.subr.bf16.mxu0 0
  %1018 = vmatpush2.bf16.msra.mxu0 0
  %1019 = vmatprep.mubr.bf16.mxu0 0
  %1020 = vmatmul.mubr.bf16.gmra.mxu0 %v970
  %v1021 = vpop.f32.mrf.mxu0
  %v1022 = vadd.f32 0.0, %v1021
  %v1023 = vpop.f32.mrf.mxu0
  %v1024 = vadd.f32 0.0, %v1023
  %v1025 = vpop.f32.mrf.mxu0
  %v1026 = vadd.f32 0.0, %v1025
  %v1027 = vpop.f32.mrf.mxu0
  %v1028 = vadd.f32 0.0, %v1027
  %1029 = vmatprep.mubr.bf16.mxu0 0
  %1030 = vmatmul.mubr.bf16.gmra.mxu0 %v973
  %v1031 = vpop.f32.mrf.mxu0
  %v1032 = vadd.f32 0.0, %v1031
  %v1033 = vpop.f32.mrf.mxu0
  %v1034 = vadd.f32 0.0, %v1033
  %v1035 = vpop.f32.mrf.mxu0
  %v1036 = vadd.f32 0.0, %v1035
  %v1037 = vpop.f32.mrf.mxu0
  %v1038 = vadd.f32 0.0, %v1037
  %1039 = vdwg.mxu0
  %1040 = vmatprep.subr.bf16.mxu0 0
  %1041 = vmatpush1.bf16.msra.mxu0 0
  %1042 = vmatprep.subr.bf16.mxu0 0
  %1043 = vmatpush1.bf16.msra.mxu0 0
  %1044 = vmatprep.subr.bf16.mxu0 0
  %1045 = vmatpush1.bf16.msra.mxu0 0
  %1046 = vmatprep.subr.bf16.mxu0 0
  %1047 = vmatpush1.bf16.msra.mxu0 0
  %1048 = vmatprep.subr.bf16.mxu0 0
  %1049 = vmatpush1.bf16.msra.mxu0 0
  %1050 = vmatprep.subr.bf16.mxu0 0
  %1051 = vmatpush1.bf16.msra.mxu0 0
  %1052 = vmatprep.subr.bf16.mxu0 0
  %1053 = vmatpush1.bf16.msra.mxu0 0
  %1054 = vmatprep.subr.bf16.mxu0 %v985
  %1055 = vmatpush1.bf16.msra.mxu0 %v982
  %1056 = vmatprep.subr.bf16.mxu0 0
  %1057 = vmatpush2.bf16.msra.mxu0 0
  %1058 = vmatprep.subr.bf16.mxu0 0
  %1059 = vmatpush2.bf16.msra.mxu0 0
  %1060 = vmatprep.subr.bf16.mxu0 0
  %1061 = vmatpush2.bf16.msra.mxu0 0
  %1062 = vmatprep.subr.bf16.mxu0 0
  %1063 = vmatpush2.bf16.msra.mxu0 0
  %1064 = vmatprep.subr.bf16.mxu0 0
  %1065 = vmatpush2.bf16.msra.mxu0 0
  %1066 = vmatprep.subr.bf16.mxu0 0
  %1067 = vmatpush2.bf16.msra.mxu0 0
  %1068 = vmatprep.subr.bf16.mxu0 0
  %1069 = vmatpush2.bf16.msra.mxu0 0
  %1070 = vmatprep.subr.bf16.mxu0 0
  %1071 = vmatpush2.bf16.msra.mxu0 0
  %1072 = vmatprep.mubr.bf16.mxu0 0
  %1073 = vmatmul.mubr.bf16.gmra.mxu0 %v970
  %v1074 = vpop.f32.mrf.mxu0
  %v1075 = vadd.f32 0.0, %v1074
  %v1076 = vpop.f32.mrf.mxu0
  %v1077 = vadd.f32 0.0, %v1076
  %v1078 = vpop.f32.mrf.mxu0
  %v1079 = vadd.f32 0.0, %v1078
  %v1080 = vpop.f32.mrf.mxu0
  %v1081 = vadd.f32 0.0, %v1080
  %1082 = vmatprep.mubr.bf16.mxu0 0
  %1083 = vmatmul.mubr.bf16.gmra.mxu0 %v973
  %v1084 = vpop.f32.mrf.mxu0
  %v1085 = vadd.f32 0.0, %v1084
  %v1086 = vpop.f32.mrf.mxu0
  %v1087 = vadd.f32 0.0, %v1086
  %v1088 = vpop.f32.mrf.mxu0
  %v1089 = vadd.f32 0.0, %v1088
  %v1090 = vpop.f32.mrf.mxu0
  %v1091 = vadd.f32 0.0, %v1090
  %1092 = vdwg.mxu0
  %v1093 = vadd.f32 %v934, %v1022
  %v1094 = vadd.f32 %v935, %v1024
  %v1095 = vadd.f32 %v936, %v1075
  %v1096 = vadd.f32 %v937, %v1077
  %v1097 = vadd.f32 %v938, %v1026
  %v1098 = vadd.f32 %v939, %v1028
  %v1099 = vadd.f32 %v940, %v1079
  %v1100 = vadd.f32 %v941, %v1081
  %v1101 = vadd.f32 %v942, %v1032
  %v1102 = vadd.f32 %v943, %v1034
  %v1103 = vadd.f32 %v944, %v1085
  %v1104 = vadd.f32 %v945, %v1087
  %v1105 = vadd.f32 %v946, %v1036
  %v1106 = vadd.f32 %v947, %v1038
  %v1107 = vadd.f32 %v948, %v1089
  %v1108 = vadd.f32 %v949, %v1091
  %v1109 = vld [vmem:[#allocation2 + $0x8] sm:$0x7]
  %v1110 = vld [vmem:[#allocation2 + $0x10] sm:$0x7]
  %v1111 = vld [vmem:[#allocation2 + $0x18] sm:$0x7]
  %v1112 = vld [vmem:[#allocation2 + $0x20] sm:$0x7]
  %v1113 = vld [vmem:[#allocation2 + $0x28] sm:$0x7]
  %s1114 = scalar_lea.vmem %s1, 20
  %v1115 = vld [vmem:[%s1114] sm:$0xf]
  %v1117 = vlaneseq
  %v1118 = vshrl.u32 %v1117, 7
  %v1119 = vsub.s32 0, %v1118
  %v1120 = vrot.slane %v1115, %v1119
  %v1121 = vlaneseq
  %v1122 = vshrl.u32 %v1121, 7
  %v1123 = vsub.s32 1, %v1122
  %v1124 = vrot.slane %v1115, %v1123
  %v1125 = vlaneseq
  %v1126 = vshrl.u32 %v1125, 7
  %v1127 = vsub.s32 2, %v1126
  %v1128 = vrot.slane %v1115, %v1127
  %v1129 = vlaneseq
  %v1130 = vshrl.u32 %v1129, 7
  %v1131 = vsub.s32 3, %v1130
  %v1132 = vrot.slane %v1115, %v1131
  %1133 = vrot.lane.b32.xlu0 %v1120, 1
  %v1134 = vpop.permute.xlu0 %1133
  %1135 = vrot.lane.b32.xlu0 %v1124, 1
  %v1136 = vpop.permute.xlu0 %1135
  %1137 = vrot.lane.b32.xlu0 %v1128, 1
  %v1138 = vpop.permute.xlu0 %1137
  %1139 = vrot.lane.b32.xlu0 %v1132, 1
  %v1140 = vpop.permute.xlu0 %1139
  %vm1141 = vcmask 7168
  %v1142 = vsel %vm1141, %v1134, %v1136
  %v1143 = vsel %vm1141, %v1136, %v1138
  %v1144 = vsel %vm1141, %v1138, %v1140
  %v1150 = vmul.f32 %v1109, %v1134
  %v1151 = vmul.f32 %v1110, %v1142
  %v1152 = vmul.f32 %v1111, %v1143
  %v1153 = vmul.f32 %v1112, %v1144
  %v1154 = vmul.f32 %v1113, %v1140
  %s1155 = scalar_lea.vmem %s2, 80
  %v1156 = vld [vmem:[%s1155] sm:$0xf]
  %v1157 = vld [vmem:[%s1155 + $0x4] sm:$0xf]
  %v1158 = vld [vmem:[%s1155 + $0x8] sm:$0xf]
  %v1159 = vld [vmem:[%s1155 + $0xc] sm:$0xf]
  %v1160 = vpack.c.bf16 %v1150, %v1150
  %v1161 = vpack.c.bf16 %v1151, %v1151
  %v1162 = vpack.c.bf16 %v1152, %v1152
  %v1163 = vpack.c.bf16 %v1153, %v1153
  %v1164 = vpack.c.bf16 %v1154, %v1154
  %v1169 = vunpack.c.l.b16 %v1156
  %v1170 = vunpack.c.l.b16 %v1157
  %v1171 = vunpack.c.l.b16 %v1158
  %v1172 = vunpack.c.l.b16 %v1159
  %v1173 = vpack.c.b16 %v1170, %v1169
  %v1174 = vpack.c.b16 %v1172, %v1171
  %1180 = vrot.lane.b32.xlu0 %v1160, 127
  %v1181 = vpop.permute.xlu0 %1180
  %1182 = vrot.lane.b32.xlu0 %v1161, 127
  %v1183 = vpop.permute.xlu0 %1182
  %1184 = vrot.lane.b32.xlu0 %v1162, 127
  %v1185 = vpop.permute.xlu0 %1184
  %1186 = vrot.lane.b32.xlu0 %v1163, 127
  %v1187 = vpop.permute.xlu0 %1186
  %1188 = vrot.lane.b32.xlu0 %v1164, 127
  %v1189 = vpop.permute.xlu0 %1188
  %vm1190 = vcmask 1039360
  %v1191 = vsel %vm1190, %v1181, %v1183
  %v1192 = vsel %vm1190, %v1183, %v1185
  %v1193 = vsel %vm1190, %v1185, %v1187
  %v1194 = vsel %vm1190, %v1187, %v1189
  %v1196 = vsel %vm225, %v1173, 0
  %v1199 = vsel %vm225, %v1174, 0
  %v1202 = vand.u32 %v1191, %v235
  %v1205 = vand.u32 %v1192, %v235
  %v1208 = vand.u32 %v1193, %v235
  %v1211 = vand.u32 %v1194, %v235
  %1213 = vmatprep.subr.bf16.mxu0 0
  %1214 = vmatpush1.bf16.msra.mxu0 0
  %1215 = vmatprep.subr.bf16.mxu0 0
  %1216 = vmatpush1.bf16.msra.mxu0 0
  %1217 = vmatprep.subr.bf16.mxu0 0
  %1218 = vmatpush1.bf16.msra.mxu0 0
  %1219 = vmatprep.subr.bf16.mxu0 0
  %1220 = vmatpush1.bf16.msra.mxu0 0
  %1221 = vmatprep.subr.bf16.mxu0 0
  %1222 = vmatpush1.bf16.msra.mxu0 0
  %1223 = vmatprep.subr.bf16.mxu0 0
  %1224 = vmatpush1.bf16.msra.mxu0 0
  %1225 = vmatprep.subr.bf16.mxu0 0
  %1226 = vmatpush1.bf16.msra.mxu0 0
  %1227 = vmatprep.subr.bf16.mxu0 %v1205
  %1228 = vmatpush1.bf16.msra.mxu0 %v1202
  %1229 = vmatprep.subr.bf16.mxu0 0
  %1230 = vmatpush2.bf16.msra.mxu0 0
  %1231 = vmatprep.subr.bf16.mxu0 0
  %1232 = vmatpush2.bf16.msra.mxu0 0
  %1233 = vmatprep.subr.bf16.mxu0 0
  %1234 = vmatpush2.bf16.msra.mxu0 0
  %1235 = vmatprep.subr.bf16.mxu0 0
  %1236 = vmatpush2.bf16.msra.mxu0 0
  %1237 = vmatprep.subr.bf16.mxu0 0
  %1238 = vmatpush2.bf16.msra.mxu0 0
  %1239 = vmatprep.subr.bf16.mxu0 0
  %1240 = vmatpush2.bf16.msra.mxu0 0
  %1241 = vmatprep.subr.bf16.mxu0 0
  %1242 = vmatpush2.bf16.msra.mxu0 0
  %1243 = vmatprep.subr.bf16.mxu0 0
  %1244 = vmatpush2.bf16.msra.mxu0 0
  %1245 = vmatprep.mubr.bf16.mxu0 0
  %1246 = vmatmul.mubr.bf16.gmra.mxu0 %v1196
  %v1247 = vpop.f32.mrf.mxu0
  %v1248 = vadd.f32 0.0, %v1247
  %v1249 = vpop.f32.mrf.mxu0
  %v1250 = vadd.f32 0.0, %v1249
  %v1251 = vpop.f32.mrf.mxu0
  %v1252 = vadd.f32 0.0, %v1251
  %v1253 = vpop.f32.mrf.mxu0
  %v1254 = vadd.f32 0.0, %v1253
  %1255 = vmatprep.mubr.bf16.mxu0 0
  %1256 = vmatmul.mubr.bf16.gmra.mxu0 %v1199
  %v1257 = vpop.f32.mrf.mxu0
  %v1258 = vadd.f32 0.0, %v1257
  %v1259 = vpop.f32.mrf.mxu0
  %v1260 = vadd.f32 0.0, %v1259
  %v1261 = vpop.f32.mrf.mxu0
  %v1262 = vadd.f32 0.0, %v1261
  %v1263 = vpop.f32.mrf.mxu0
  %v1264 = vadd.f32 0.0, %v1263
  %1265 = vdwg.mxu0
  %1266 = vmatprep.subr.bf16.mxu0 0
  %1267 = vmatpush1.bf16.msra.mxu0 0
  %1268 = vmatprep.subr.bf16.mxu0 0
  %1269 = vmatpush1.bf16.msra.mxu0 0
  %1270 = vmatprep.subr.bf16.mxu0 0
  %1271 = vmatpush1.bf16.msra.mxu0 0
  %1272 = vmatprep.subr.bf16.mxu0 0
  %1273 = vmatpush1.bf16.msra.mxu0 0
  %1274 = vmatprep.subr.bf16.mxu0 0
  %1275 = vmatpush1.bf16.msra.mxu0 0
  %1276 = vmatprep.subr.bf16.mxu0 0
  %1277 = vmatpush1.bf16.msra.mxu0 0
  %1278 = vmatprep.subr.bf16.mxu0 0
  %1279 = vmatpush1.bf16.msra.mxu0 0
  %1280 = vmatprep.subr.bf16.mxu0 %v1211
  %1281 = vmatpush1.bf16.msra.mxu0 %v1208
  %1282 = vmatprep.subr.bf16.mxu0 0
  %1283 = vmatpush2.bf16.msra.mxu0 0
  %1284 = vmatprep.subr.bf16.mxu0 0
  %1285 = vmatpush2.bf16.msra.mxu0 0
  %1286 = vmatprep.subr.bf16.mxu0 0
  %1287 = vmatpush2.bf16.msra.mxu0 0
  %1288 = vmatprep.subr.bf16.mxu0 0
  %1289 = vmatpush2.bf16.msra.mxu0 0
  %1290 = vmatprep.subr.bf16.mxu0 0
  %1291 = vmatpush2.bf16.msra.mxu0 0
  %1292 = vmatprep.subr.bf16.mxu0 0
  %1293 = vmatpush2.bf16.msra.mxu0 0
  %1294 = vmatprep.subr.bf16.mxu0 0
  %1295 = vmatpush2.bf16.msra.mxu0 0
  %1296 = vmatprep.subr.bf16.mxu0 0
  %1297 = vmatpush2.bf16.msra.mxu0 0
  %1298 = vmatprep.mubr.bf16.mxu0 0
  %1299 = vmatmul.mubr.bf16.gmra.mxu0 %v1196
  %v1300 = vpop.f32.mrf.mxu0
  %v1301 = vadd.f32 0.0, %v1300
  %v1302 = vpop.f32.mrf.mxu0
  %v1303 = vadd.f32 0.0, %v1302
  %v1304 = vpop.f32.mrf.mxu0
  %v1305 = vadd.f32 0.0, %v1304
  %v1306 = vpop.f32.mrf.mxu0
  %v1307 = vadd.f32 0.0, %v1306
  %1308 = vmatprep.mubr.bf16.mxu0 0
  %1309 = vmatmul.mubr.bf16.gmra.mxu0 %v1199
  %v1310 = vpop.f32.mrf.mxu0
  %v1311 = vadd.f32 0.0, %v1310
  %v1312 = vpop.f32.mrf.mxu0
  %v1313 = vadd.f32 0.0, %v1312
  %v1314 = vpop.f32.mrf.mxu0
  %v1315 = vadd.f32 0.0, %v1314
  %v1316 = vpop.f32.mrf.mxu0
  %v1317 = vadd.f32 0.0, %v1316
  %1318 = vdwg.mxu0
  %v1319 = vadd.f32 %v1093, %v1248
  %v1320 = vadd.f32 %v1094, %v1250
  %v1321 = vadd.f32 %v1095, %v1301
  %v1322 = vadd.f32 %v1096, %v1303
  %v1323 = vadd.f32 %v1097, %v1252
  %v1324 = vadd.f32 %v1098, %v1254
  %v1325 = vadd.f32 %v1099, %v1305
  %v1326 = vadd.f32 %v1100, %v1307
  %v1327 = vadd.f32 %v1101, %v1258
  %v1328 = vadd.f32 %v1102, %v1260
  %v1329 = vadd.f32 %v1103, %v1311
  %v1330 = vadd.f32 %v1104, %v1313
  %v1331 = vadd.f32 %v1105, %v1262
  %v1332 = vadd.f32 %v1106, %v1264
  %v1333 = vadd.f32 %v1107, %v1315
  %v1334 = vadd.f32 %v1108, %v1317
  %s1335 = scalar_lea.vmem %s1, 24
  %v1336 = vld [vmem:[%s1335] sm:$0xf]
  %v1338 = vlaneseq
  %v1339 = vshrl.u32 %v1338, 7
  %v1340 = vsub.s32 0, %v1339
  %v1341 = vrot.slane %v1336, %v1340
  %v1342 = vlaneseq
  %v1343 = vshrl.u32 %v1342, 7
  %v1344 = vsub.s32 1, %v1343
  %v1345 = vrot.slane %v1336, %v1344
  %v1346 = vlaneseq
  %v1347 = vshrl.u32 %v1346, 7
  %v1348 = vsub.s32 2, %v1347
  %v1349 = vrot.slane %v1336, %v1348
  %v1350 = vlaneseq
  %v1351 = vshrl.u32 %v1350, 7
  %v1352 = vsub.s32 3, %v1351
  %v1353 = vrot.slane %v1336, %v1352
  %1354 = vrot.lane.b32.xlu0 %v1341, 15
  %v1355 = vpop.permute.xlu0 %1354
  %1356 = vrot.lane.b32.xlu0 %v1345, 15
  %v1357 = vpop.permute.xlu0 %1356
  %1358 = vrot.lane.b32.xlu0 %v1349, 15
  %v1359 = vpop.permute.xlu0 %1358
  %1360 = vrot.lane.b32.xlu0 %v1353, 15
  %v1361 = vpop.permute.xlu0 %1360
  %vm1362 = vcmask 121856
  %v1363 = vsel %vm1362, %v1355, %v1357
  %v1364 = vsel %vm1362, %v1357, %v1359
  %v1365 = vsel %vm1362, %v1359, %v1361
  %v1371 = vmul.f32 %v1109, %v1355
  %v1372 = vmul.f32 %v1110, %v1363
  %v1373 = vmul.f32 %v1111, %v1364
  %v1374 = vmul.f32 %v1112, %v1365
  %v1375 = vmul.f32 %v1113, %v1361
  %s1376 = scalar_lea.vmem %s2, 96
  %v1377 = vld [vmem:[%s1376] sm:$0xf]
  %v1378 = vld [vmem:[%s1376 + $0x4] sm:$0xf]
  %v1379 = vld [vmem:[%s1376 + $0x8] sm:$0xf]
  %v1380 = vld [vmem:[%s1376 + $0xc] sm:$0xf]
  %v1381 = vpack.c.bf16 %v1371, %v1371
  %v1382 = vpack.c.bf16 %v1372, %v1372
  %v1383 = vpack.c.bf16 %v1373, %v1373
  %v1384 = vpack.c.bf16 %v1374, %v1374
  %v1385 = vpack.c.bf16 %v1375, %v1375
  %v1390 = vunpack.c.l.b16 %v1377
  %v1391 = vunpack.c.l.b16 %v1378
  %v1392 = vunpack.c.l.b16 %v1379
  %v1393 = vunpack.c.l.b16 %v1380
  %v1394 = vpack.c.b16 %v1391, %v1390
  %v1395 = vpack.c.b16 %v1393, %v1392
  %1401 = vrot.lane.b32.xlu0 %v1381, 113
  %v1402 = vpop.permute.xlu0 %1401
  %1403 = vrot.lane.b32.xlu0 %v1382, 113
  %v1404 = vpop.permute.xlu0 %1403
  %1405 = vrot.lane.b32.xlu0 %v1383, 113
  %v1406 = vpop.permute.xlu0 %1405
  %1407 = vrot.lane.b32.xlu0 %v1384, 113
  %v1408 = vpop.permute.xlu0 %1407
  %1409 = vrot.lane.b32.xlu0 %v1385, 113
  %v1410 = vpop.permute.xlu0 %1409
  %vm1411 = vcmask 924672
  %v1412 = vsel %vm1411, %v1402, %v1404
  %v1413 = vsel %vm1411, %v1404, %v1406
  %v1414 = vsel %vm1411, %v1406, %v1408
  %v1415 = vsel %vm1411, %v1408, %v1410
  %v1417 = vsel %vm225, %v1394, 0
  %v1420 = vsel %vm225, %v1395, 0
  %v1423 = vand.u32 %v1412, %v235
  %v1426 = vand.u32 %v1413, %v235
  %v1429 = vand.u32 %v1414, %v235
  %v1432 = vand.u32 %v1415, %v235
  %1434 = vmatprep.subr.bf16.mxu0 0
  %1435 = vmatpush1.bf16.msra.mxu0 0
  %1436 = vmatprep.subr.bf16.mxu0 0
  %1437 = vmatpush1.bf16.msra.mxu0 0
  %1438 = vmatprep.subr.bf16.mxu0 0
  %1439 = vmatpush1.bf16.msra.mxu0 0
  %1440 = vmatprep.subr.bf16.mxu0 0
  %1441 = vmatpush1.bf16.msra.mxu0 0
  %1442 = vmatprep.subr.bf16.mxu0 0
  %1443 = vmatpush1.bf16.msra.mxu0 0
  %1444 = vmatprep.subr.bf16.mxu0 0
  %1445 = vmatpush1.bf16.msra.mxu0 0
  %1446 = vmatprep.subr.bf16.mxu0 0
  %1447 = vmatpush1.bf16.msra.mxu0 0
  %1448 = vmatprep.subr.bf16.mxu0 %v1426
  %1449 = vmatpush1.bf16.msra.mxu0 %v1423
  %1450 = vmatprep.subr.bf16.mxu0 0
  %1451 = vmatpush2.bf16.msra.mxu0 0
  %1452 = vmatprep.subr.bf16.mxu0 0
  %1453 = vmatpush2.bf16.msra.mxu0 0
  %1454 = vmatprep.subr.bf16.mxu0 0
  %1455 = vmatpush2.bf16.msra.mxu0 0
  %1456 = vmatprep.subr.bf16.mxu0 0
  %1457 = vmatpush2.bf16.msra.mxu0 0
  %1458 = vmatprep.subr.bf16.mxu0 0
  %1459 = vmatpush2.bf16.msra.mxu0 0
  %1460 = vmatprep.subr.bf16.mxu0 0
  %1461 = vmatpush2.bf16.msra.mxu0 0
  %1462 = vmatprep.subr.bf16.mxu0 0
  %1463 = vmatpush2.bf16.msra.mxu0 0
  %1464 = vmatprep.subr.bf16.mxu0 0
  %1465 = vmatpush2.bf16.msra.mxu0 0
  %1466 = vmatprep.mubr.bf16.mxu0 0
  %1467 = vmatmul.mubr.bf16.gmra.mxu0 %v1417
  %v1468 = vpop.f32.mrf.mxu0
  %v1469 = vadd.f32 0.0, %v1468
  %v1470 = vpop.f32.mrf.mxu0
  %v1471 = vadd.f32 0.0, %v1470
  %v1472 = vpop.f32.mrf.mxu0
  %v1473 = vadd.f32 0.0, %v1472
  %v1474 = vpop.f32.mrf.mxu0
  %v1475 = vadd.f32 0.0, %v1474
  %1476 = vmatprep.mubr.bf16.mxu0 0
  %1477 = vmatmul.mubr.bf16.gmra.mxu0 %v1420
  %v1478 = vpop.f32.mrf.mxu0
  %v1479 = vadd.f32 0.0, %v1478
  %v1480 = vpop.f32.mrf.mxu0
  %v1481 = vadd.f32 0.0, %v1480
  %v1482 = vpop.f32.mrf.mxu0
  %v1483 = vadd.f32 0.0, %v1482
  %v1484 = vpop.f32.mrf.mxu0
  %v1485 = vadd.f32 0.0, %v1484
  %1486 = vdwg.mxu0
  %1487 = vmatprep.subr.bf16.mxu0 0
  %1488 = vmatpush1.bf16.msra.mxu0 0
  %1489 = vmatprep.subr.bf16.mxu0 0
  %1490 = vmatpush1.bf16.msra.mxu0 0
  %1491 = vmatprep.subr.bf16.mxu0 0
  %1492 = vmatpush1.bf16.msra.mxu0 0
  %1493 = vmatprep.subr.bf16.mxu0 0
  %1494 = vmatpush1.bf16.msra.mxu0 0
  %1495 = vmatprep.subr.bf16.mxu0 0
  %1496 = vmatpush1.bf16.msra.mxu0 0
  %1497 = vmatprep.subr.bf16.mxu0 0
  %1498 = vmatpush1.bf16.msra.mxu0 0
  %1499 = vmatprep.subr.bf16.mxu0 0
  %1500 = vmatpush1.bf16.msra.mxu0 0
  %1501 = vmatprep.subr.bf16.mxu0 %v1432
  %1502 = vmatpush1.bf16.msra.mxu0 %v1429
  %1503 = vmatprep.subr.bf16.mxu0 0
  %1504 = vmatpush2.bf16.msra.mxu0 0
  %1505 = vmatprep.subr.bf16.mxu0 0
  %1506 = vmatpush2.bf16.msra.mxu0 0
  %1507 = vmatprep.subr.bf16.mxu0 0
  %1508 = vmatpush2.bf16.msra.mxu0 0
  %1509 = vmatprep.subr.bf16.mxu0 0
  %1510 = vmatpush2.bf16.msra.mxu0 0
  %1511 = vmatprep.subr.bf16.mxu0 0
  %1512 = vmatpush2.bf16.msra.mxu0 0
  %1513 = vmatprep.subr.bf16.mxu0 0
  %1514 = vmatpush2.bf16.msra.mxu0 0
  %1515 = vmatprep.subr.bf16.mxu0 0
  %1516 = vmatpush2.bf16.msra.mxu0 0
  %1517 = vmatprep.subr.bf16.mxu0 0
  %1518 = vmatpush2.bf16.msra.mxu0 0
  %1519 = vmatprep.mubr.bf16.mxu0 0
  %1520 = vmatmul.mubr.bf16.gmra.mxu0 %v1417
  %v1521 = vpop.f32.mrf.mxu0
  %v1522 = vadd.f32 0.0, %v1521
  %v1523 = vpop.f32.mrf.mxu0
  %v1524 = vadd.f32 0.0, %v1523
  %v1525 = vpop.f32.mrf.mxu0
  %v1526 = vadd.f32 0.0, %v1525
  %v1527 = vpop.f32.mrf.mxu0
  %v1528 = vadd.f32 0.0, %v1527
  %1529 = vmatprep.mubr.bf16.mxu0 0
  %1530 = vmatmul.mubr.bf16.gmra.mxu0 %v1420
  %v1531 = vpop.f32.mrf.mxu0
  %v1532 = vadd.f32 0.0, %v1531
  %v1533 = vpop.f32.mrf.mxu0
  %v1534 = vadd.f32 0.0, %v1533
  %v1535 = vpop.f32.mrf.mxu0
  %v1536 = vadd.f32 0.0, %v1535
  %v1537 = vpop.f32.mrf.mxu0
  %v1538 = vadd.f32 0.0, %v1537
  %1539 = vdwg.mxu0
  %v1540 = vadd.f32 %v1319, %v1469
  %v1541 = vadd.f32 %v1320, %v1471
  %v1542 = vadd.f32 %v1321, %v1522
  %v1543 = vadd.f32 %v1322, %v1524
  %v1544 = vadd.f32 %v1323, %v1473
  %v1545 = vadd.f32 %v1324, %v1475
  %v1546 = vadd.f32 %v1325, %v1526
  %v1547 = vadd.f32 %v1326, %v1528
  %v1548 = vadd.f32 %v1327, %v1479
  %v1549 = vadd.f32 %v1328, %v1481
  %v1550 = vadd.f32 %v1329, %v1532
  %v1551 = vadd.f32 %v1330, %v1534
  %v1552 = vadd.f32 %v1331, %v1483
  %v1553 = vadd.f32 %v1332, %v1485
  %v1554 = vadd.f32 %v1333, %v1536
  %v1555 = vadd.f32 %v1334, %v1538
  %s1556 = scalar_lea.vmem %s1, 28
  %v1557 = vld [vmem:[%s1556] sm:$0xf]
  %v1559 = vlaneseq
  %v1560 = vshrl.u32 %v1559, 7
  %v1561 = vsub.s32 0, %v1560
  %v1562 = vrot.slane %v1557, %v1561
  %v1563 = vlaneseq
  %v1564 = vshrl.u32 %v1563, 7
  %v1565 = vsub.s32 1, %v1564
  %v1566 = vrot.slane %v1557, %v1565
  %v1567 = vlaneseq
  %v1568 = vshrl.u32 %v1567, 7
  %v1569 = vsub.s32 2, %v1568
  %v1570 = vrot.slane %v1557, %v1569
  %v1571 = vlaneseq
  %v1572 = vshrl.u32 %v1571, 7
  %v1573 = vsub.s32 3, %v1572
  %v1574 = vrot.slane %v1557, %v1573
  %1575 = vrot.lane.b32.xlu0 %v1562, 16
  %v1576 = vpop.permute.xlu0 %1575
  %1577 = vrot.lane.b32.xlu0 %v1566, 16
  %v1578 = vpop.permute.xlu0 %1577
  %1579 = vrot.lane.b32.xlu0 %v1570, 16
  %v1580 = vpop.permute.xlu0 %1579
  %1581 = vrot.lane.b32.xlu0 %v1574, 16
  %v1582 = vpop.permute.xlu0 %1581
  %vm1583 = vcmask 130048
  %v1584 = vsel %vm1583, %v1576, %v1578
  %v1585 = vsel %vm1583, %v1578, %v1580
  %v1586 = vsel %vm1583, %v1580, %v1582
  %v1592 = vmul.f32 %v1109, %v1576
  %v1593 = vmul.f32 %v1110, %v1584
  %v1594 = vmul.f32 %v1111, %v1585
  %v1595 = vmul.f32 %v1112, %v1586
  %v1596 = vmul.f32 %v1113, %v1582
  %s1597 = scalar_lea.vmem %s2, 112
  %v1598 = vld [vmem:[%s1597] sm:$0xf]
  %v1599 = vld [vmem:[%s1597 + $0x4] sm:$0xf]
  %v1600 = vld [vmem:[%s1597 + $0x8] sm:$0xf]
  %v1601 = vld [vmem:[%s1597 + $0xc] sm:$0xf]
  %v1602 = vpack.c.bf16 %v1592, %v1592
  %v1603 = vpack.c.bf16 %v1593, %v1593
  %v1604 = vpack.c.bf16 %v1594, %v1594
  %v1605 = vpack.c.bf16 %v1595, %v1595
  %v1606 = vpack.c.bf16 %v1596, %v1596
  %v1611 = vunpack.c.l.b16 %v1598
  %v1612 = vunpack.c.l.b16 %v1599
  %v1613 = vunpack.c.l.b16 %v1600
  %v1614 = vunpack.c.l.b16 %v1601
  %v1615 = vpack.c.b16 %v1612, %v1611
  %v1616 = vpack.c.b16 %v1614, %v1613
  %1622 = vrot.lane.b32.xlu0 %v1602, 112
  %v1623 = vpop.permute.xlu0 %1622
  %1624 = vrot.lane.b32.xlu0 %v1603, 112
  %v1625 = vpop.permute.xlu0 %1624
  %1626 = vrot.lane.b32.xlu0 %v1604, 112
  %v1627 = vpop.permute.xlu0 %1626
  %1628 = vrot.lane.b32.xlu0 %v1605, 112
  %v1629 = vpop.permute.xlu0 %1628
  %1630 = vrot.lane.b32.xlu0 %v1606, 112
  %v1631 = vpop.permute.xlu0 %1630
  %vm1632 = vcmask 916480
  %v1633 = vsel %vm1632, %v1623, %v1625
  %v1634 = vsel %vm1632, %v1625, %v1627
  %v1635 = vsel %vm1632, %v1627, %v1629
  %v1636 = vsel %vm1632, %v1629, %v1631
  %v1638 = vsel %vm225, %v1615, 0
  %v1641 = vsel %vm225, %v1616, 0
  %v1644 = vand.u32 %v1633, %v235
  %v1647 = vand.u32 %v1634, %v235
  %v1650 = vand.u32 %v1635, %v235
  %v1653 = vand.u32 %v1636, %v235
  %1655 = vmatprep.subr.bf16.mxu0 0
  %1656 = vmatpush1.bf16.msra.mxu0 0
  %1657 = vmatprep.subr.bf16.mxu0 0
  %1658 = vmatpush1.bf16.msra.mxu0 0
  %1659 = vmatprep.subr.bf16.mxu0 0
  %1660 = vmatpush1.bf16.msra.mxu0 0
  %1661 = vmatprep.subr.bf16.mxu0 0
  %1662 = vmatpush1.bf16.msra.mxu0 0
  %1663 = vmatprep.subr.bf16.mxu0 0
  %1664 = vmatpush1.bf16.msra.mxu0 0
  %1665 = vmatprep.subr.bf16.mxu0 0
  %1666 = vmatpush1.bf16.msra.mxu0 0
  %1667 = vmatprep.subr.bf16.mxu0 0
  %1668 = vmatpush1.bf16.msra.mxu0 0
  %1669 = vmatprep.subr.bf16.mxu0 %v1647
  %1670 = vmatpush1.bf16.msra.mxu0 %v1644
  %1671 = vmatprep.subr.bf16.mxu0 0
  %1672 = vmatpush2.bf16.msra.mxu0 0
  %1673 = vmatprep.subr.bf16.mxu0 0
  %1674 = vmatpush2.bf16.msra.mxu0 0
  %1675 = vmatprep.subr.bf16.mxu0 0
  %1676 = vmatpush2.bf16.msra.mxu0 0
  %1677 = vmatprep.subr.bf16.mxu0 0
  %1678 = vmatpush2.bf16.msra.mxu0 0
  %1679 = vmatprep.subr.bf16.mxu0 0
  %1680 = vmatpush2.bf16.msra.mxu0 0
  %1681 = vmatprep.subr.bf16.mxu0 0
  %1682 = vmatpush2.bf16.msra.mxu0 0
  %1683 = vmatprep.subr.bf16.mxu0 0
  %1684 = vmatpush2.bf16.msra.mxu0 0
  %1685 = vmatprep.subr.bf16.mxu0 0
  %1686 = vmatpush2.bf16.msra.mxu0 0
  %1687 = vmatprep.mubr.bf16.mxu0 0
  %1688 = vmatmul.mubr.bf16.gmra.mxu0 %v1638
  %v1689 = vpop.f32.mrf.mxu0
  %v1690 = vadd.f32 0.0, %v1689
  %v1691 = vpop.f32.mrf.mxu0
  %v1692 = vadd.f32 0.0, %v1691
  %v1693 = vpop.f32.mrf.mxu0
  %v1694 = vadd.f32 0.0, %v1693
  %v1695 = vpop.f32.mrf.mxu0
  %v1696 = vadd.f32 0.0, %v1695
  %1697 = vmatprep.mubr.bf16.mxu0 0
  %1698 = vmatmul.mubr.bf16.gmra.mxu0 %v1641
  %v1699 = vpop.f32.mrf.mxu0
  %v1700 = vadd.f32 0.0, %v1699
  %v1701 = vpop.f32.mrf.mxu0
  %v1702 = vadd.f32 0.0, %v1701
  %v1703 = vpop.f32.mrf.mxu0
  %v1704 = vadd.f32 0.0, %v1703
  %v1705 = vpop.f32.mrf.mxu0
  %v1706 = vadd.f32 0.0, %v1705
  %1707 = vdwg.mxu0
  %1708 = vmatprep.subr.bf16.mxu0 0
  %1709 = vmatpush1.bf16.msra.mxu0 0
  %1710 = vmatprep.subr.bf16.mxu0 0
  %1711 = vmatpush1.bf16.msra.mxu0 0
  %1712 = vmatprep.subr.bf16.mxu0 0
  %1713 = vmatpush1.bf16.msra.mxu0 0
  %1714 = vmatprep.subr.bf16.mxu0 0
  %1715 = vmatpush1.bf16.msra.mxu0 0
  %1716 = vmatprep.subr.bf16.mxu0 0
  %1717 = vmatpush1.bf16.msra.mxu0 0
  %1718 = vmatprep.subr.bf16.mxu0 0
  %1719 = vmatpush1.bf16.msra.mxu0 0
  %1720 = vmatprep.subr.bf16.mxu0 0
  %1721 = vmatpush1.bf16.msra.mxu0 0
  %1722 = vmatprep.subr.bf16.mxu0 %v1653
  %1723 = vmatpush1.bf16.msra.mxu0 %v1650
  %1724 = vmatprep.subr.bf16.mxu0 0
  %1725 = vmatpush2.bf16.msra.mxu0 0
  %1726 = vmatprep.subr.bf16.mxu0 0
  %1727 = vmatpush2.bf16.msra.mxu0 0
  %1728 = vmatprep.subr.bf16.mxu0 0
  %1729 = vmatpush2.bf16.msra.mxu0 0
  %1730 = vmatprep.subr.bf16.mxu0 0
  %1731 = vmatpush2.bf16.msra.mxu0 0
  %1732 = vmatprep.subr.bf16.mxu0 0
  %1733 = vmatpush2.bf16.msra.mxu0 0
  %1734 = vmatprep.subr.bf16.mxu0 0
  %1735 = vmatpush2.bf16.msra.mxu0 0
  %1736 = vmatprep.subr.bf16.mxu0 0
  %1737 = vmatpush2.bf16.msra.mxu0 0
  %1738 = vmatprep.subr.bf16.mxu0 0
  %1739 = vmatpush2.bf16.msra.mxu0 0
  %1740 = vmatprep.mubr.bf16.mxu0 0
  %1741 = vmatmul.mubr.bf16.gmra.mxu0 %v1638
  %v1742 = vpop.f32.mrf.mxu0
  %v1743 = vadd.f32 0.0, %v1742
  %v1744 = vpop.f32.mrf.mxu0
  %v1745 = vadd.f32 0.0, %v1744
  %v1746 = vpop.f32.mrf.mxu0
  %v1747 = vadd.f32 0.0, %v1746
  %v1748 = vpop.f32.mrf.mxu0
  %v1749 = vadd.f32 0.0, %v1748
  %1750 = vmatprep.mubr.bf16.mxu0 0
  %1751 = vmatmul.mubr.bf16.gmra.mxu0 %v1641
  %v1752 = vpop.f32.mrf.mxu0
  %v1753 = vadd.f32 0.0, %v1752
  %v1754 = vpop.f32.mrf.mxu0
  %v1755 = vadd.f32 0.0, %v1754
  %v1756 = vpop.f32.mrf.mxu0
  %v1757 = vadd.f32 0.0, %v1756
  %v1758 = vpop.f32.mrf.mxu0
  %v1759 = vadd.f32 0.0, %v1758
  %1760 = vdwg.mxu0
  %v1761 = vadd.f32 %v1540, %v1690
  %v1762 = vadd.f32 %v1541, %v1692
  %v1763 = vadd.f32 %v1542, %v1743
  %v1764 = vadd.f32 %v1543, %v1745
  %v1765 = vadd.f32 %v1544, %v1694
  %v1766 = vadd.f32 %v1545, %v1696
  %v1767 = vadd.f32 %v1546, %v1747
  %v1768 = vadd.f32 %v1547, %v1749
  %v1769 = vadd.f32 %v1548, %v1700
  %v1770 = vadd.f32 %v1549, %v1702
  %v1771 = vadd.f32 %v1550, %v1753
  %v1772 = vadd.f32 %v1551, %v1755
  %v1773 = vadd.f32 %v1552, %v1704
  %v1774 = vadd.f32 %v1553, %v1706
  %v1775 = vadd.f32 %v1554, %v1757
  %v1776 = vadd.f32 %v1555, %v1759
  %s1777 = scalar_lea.vmem %s1, 32
  %v1778 = vld [vmem:[%s1777] sm:$0xf]
  %v1780 = vlaneseq
  %v1781 = vshrl.u32 %v1780, 7
  %v1782 = vsub.s32 0, %v1781
  %v1783 = vrot.slane %v1778, %v1782
  %v1784 = vlaneseq
  %v1785 = vshrl.u32 %v1784, 7
  %v1786 = vsub.s32 1, %v1785
  %v1787 = vrot.slane %v1778, %v1786
  %v1788 = vlaneseq
  %v1789 = vshrl.u32 %v1788, 7
  %v1790 = vsub.s32 2, %v1789
  %v1791 = vrot.slane %v1778, %v1790
  %v1792 = vlaneseq
  %v1793 = vshrl.u32 %v1792, 7
  %v1794 = vsub.s32 3, %v1793
  %v1795 = vrot.slane %v1778, %v1794
  %1796 = vrot.lane.b32.xlu0 %v1783, 17
  %v1797 = vpop.permute.xlu0 %1796
  %1798 = vrot.lane.b32.xlu0 %v1787, 17
  %v1799 = vpop.permute.xlu0 %1798
  %1800 = vrot.lane.b32.xlu0 %v1791, 17
  %v1801 = vpop.permute.xlu0 %1800
  %1802 = vrot.lane.b32.xlu0 %v1795, 17
  %v1803 = vpop.permute.xlu0 %1802
  %vm1804 = vcmask 138240
  %v1805 = vsel %vm1804, %v1797, %v1799
  %v1806 = vsel %vm1804, %v1799, %v1801
  %v1807 = vsel %vm1804, %v1801, %v1803
  %v1813 = vmul.f32 %v1109, %v1797
  %v1814 = vmul.f32 %v1110, %v1805
  %v1815 = vmul.f32 %v1111, %v1806
  %v1816 = vmul.f32 %v1112, %v1807
  %v1817 = vmul.f32 %v1113, %v1803
  %s1818 = scalar_lea.vmem %s2, 128
  %v1819 = vld [vmem:[%s1818] sm:$0xf]
  %v1820 = vld [vmem:[%s1818 + $0x4] sm:$0xf]
  %v1821 = vld [vmem:[%s1818 + $0x8] sm:$0xf]
  %v1822 = vld [vmem:[%s1818 + $0xc] sm:$0xf]
  %v1823 = vpack.c.bf16 %v1813, %v1813
  %v1824 = vpack.c.bf16 %v1814, %v1814
  %v1825 = vpack.c.bf16 %v1815, %v1815
  %v1826 = vpack.c.bf16 %v1816, %v1816
  %v1827 = vpack.c.bf16 %v1817, %v1817
  %v1832 = vunpack.c.l.b16 %v1819
  %v1833 = vunpack.c.l.b16 %v1820
  %v1834 = vunpack.c.l.b16 %v1821
  %v1835 = vunpack.c.l.b16 %v1822
  %v1836 = vpack.c.b16 %v1833, %v1832
  %v1837 = vpack.c.b16 %v1835, %v1834
  %1843 = vrot.lane.b32.xlu0 %v1823, 111
  %v1844 = vpop.permute.xlu0 %1843
  %1845 = vrot.lane.b32.xlu0 %v1824, 111
  %v1846 = vpop.permute.xlu0 %1845
  %1847 = vrot.lane.b32.xlu0 %v1825, 111
  %v1848 = vpop.permute.xlu0 %1847
  %1849 = vrot.lane.b32.xlu0 %v1826, 111
  %v1850 = vpop.permute.xlu0 %1849
  %1851 = vrot.lane.b32.xlu0 %v1827, 111
  %v1852 = vpop.permute.xlu0 %1851
  %vm1853 = vcmask 908288
  %v1854 = vsel %vm1853, %v1844, %v1846
  %v1855 = vsel %vm1853, %v1846, %v1848
  %v1856 = vsel %vm1853, %v1848, %v1850
  %v1857 = vsel %vm1853, %v1850, %v1852
  %v1859 = vsel %vm225, %v1836, 0
  %v1862 = vsel %vm225, %v1837, 0
  %v1865 = vand.u32 %v1854, %v235
  %v1868 = vand.u32 %v1855, %v235
  %v1871 = vand.u32 %v1856, %v235
  %v1874 = vand.u32 %v1857, %v235
  %1876 = vmatprep.subr.bf16.mxu0 0
  %1877 = vmatpush1.bf16.msra.mxu0 0
  %1878 = vmatprep.subr.bf16.mxu0 0
  %1879 = vmatpush1.bf16.msra.mxu0 0
  %1880 = vmatprep.subr.bf16.mxu0 0
  %1881 = vmatpush1.bf16.msra.mxu0 0
  %1882 = vmatprep.subr.bf16.mxu0 0
  %1883 = vmatpush1.bf16.msra.mxu0 0
  %1884 = vmatprep.subr.bf16.mxu0 0
  %1885 = vmatpush1.bf16.msra.mxu0 0
  %1886 = vmatprep.subr.bf16.mxu0 0
  %1887 = vmatpush1.bf16.msra.mxu0 0
  %1888 = vmatprep.subr.bf16.mxu0 0
  %1889 = vmatpush1.bf16.msra.mxu0 0
  %1890 = vmatprep.subr.bf16.mxu0 %v1868
  %1891 = vmatpush1.bf16.msra.mxu0 %v1865
  %1892 = vmatprep.subr.bf16.mxu0 0
  %1893 = vmatpush2.bf16.msra.mxu0 0
  %1894 = vmatprep.subr.bf16.mxu0 0
  %1895 = vmatpush2.bf16.msra.mxu0 0
  %1896 = vmatprep.subr.bf16.mxu0 0
  %1897 = vmatpush2.bf16.msra.mxu0 0
  %1898 = vmatprep.subr.bf16.mxu0 0
  %1899 = vmatpush2.bf16.msra.mxu0 0
  %1900 = vmatprep.subr.bf16.mxu0 0
  %1901 = vmatpush2.bf16.msra.mxu0 0
  %1902 = vmatprep.subr.bf16.mxu0 0
  %1903 = vmatpush2.bf16.msra.mxu0 0
  %1904 = vmatprep.subr.bf16.mxu0 0
  %1905 = vmatpush2.bf16.msra.mxu0 0
  %1906 = vmatprep.subr.bf16.mxu0 0
  %1907 = vmatpush2.bf16.msra.mxu0 0
  %1908 = vmatprep.mubr.bf16.mxu0 0
  %1909 = vmatmul.mubr.bf16.gmra.mxu0 %v1859
  %v1910 = vpop.f32.mrf.mxu0
  %v1911 = vadd.f32 0.0, %v1910
  %v1912 = vpop.f32.mrf.mxu0
  %v1913 = vadd.f32 0.0, %v1912
  %v1914 = vpop.f32.mrf.mxu0
  %v1915 = vadd.f32 0.0, %v1914
  %v1916 = vpop.f32.mrf.mxu0
  %v1917 = vadd.f32 0.0, %v1916
  %1918 = vmatprep.mubr.bf16.mxu0 0
  %1919 = vmatmul.mubr.bf16.gmra.mxu0 %v1862
  %v1920 = vpop.f32.mrf.mxu0
  %v1921 = vadd.f32 0.0, %v1920
  %v1922 = vpop.f32.mrf.mxu0
  %v1923 = vadd.f32 0.0, %v1922
  %v1924 = vpop.f32.mrf.mxu0
  %v1925 = vadd.f32 0.0, %v1924
  %v1926 = vpop.f32.mrf.mxu0
  %v1927 = vadd.f32 0.0, %v1926
  %1928 = vdwg.mxu0
  %1929 = vmatprep.subr.bf16.mxu0 0
  %1930 = vmatpush1.bf16.msra.mxu0 0
  %1931 = vmatprep.subr.bf16.mxu0 0
  %1932 = vmatpush1.bf16.msra.mxu0 0
  %1933 = vmatprep.subr.bf16.mxu0 0
  %1934 = vmatpush1.bf16.msra.mxu0 0
  %1935 = vmatprep.subr.bf16.mxu0 0
  %1936 = vmatpush1.bf16.msra.mxu0 0
  %1937 = vmatprep.subr.bf16.mxu0 0
  %1938 = vmatpush1.bf16.msra.mxu0 0
  %1939 = vmatprep.subr.bf16.mxu0 0
  %1940 = vmatpush1.bf16.msra.mxu0 0
  %1941 = vmatprep.subr.bf16.mxu0 0
  %1942 = vmatpush1.bf16.msra.mxu0 0
  %1943 = vmatprep.subr.bf16.mxu0 %v1874
  %1944 = vmatpush1.bf16.msra.mxu0 %v1871
  %1945 = vmatprep.subr.bf16.mxu0 0
  %1946 = vmatpush2.bf16.msra.mxu0 0
  %1947 = vmatprep.subr.bf16.mxu0 0
  %1948 = vmatpush2.bf16.msra.mxu0 0
  %1949 = vmatprep.subr.bf16.mxu0 0
  %1950 = vmatpush2.bf16.msra.mxu0 0
  %1951 = vmatprep.subr.bf16.mxu0 0
  %1952 = vmatpush2.bf16.msra.mxu0 0
  %1953 = vmatprep.subr.bf16.mxu0 0
  %1954 = vmatpush2.bf16.msra.mxu0 0
  %1955 = vmatprep.subr.bf16.mxu0 0
  %1956 = vmatpush2.bf16.msra.mxu0 0
  %1957 = vmatprep.subr.bf16.mxu0 0
  %1958 = vmatpush2.bf16.msra.mxu0 0
  %1959 = vmatprep.subr.bf16.mxu0 0
  %1960 = vmatpush2.bf16.msra.mxu0 0
  %1961 = vmatprep.mubr.bf16.mxu0 0
  %1962 = vmatmul.mubr.bf16.gmra.mxu0 %v1859
  %v1963 = vpop.f32.mrf.mxu0
  %v1964 = vadd.f32 0.0, %v1963
  %v1965 = vpop.f32.mrf.mxu0
  %v1966 = vadd.f32 0.0, %v1965
  %v1967 = vpop.f32.mrf.mxu0
  %v1968 = vadd.f32 0.0, %v1967
  %v1969 = vpop.f32.mrf.mxu0
  %v1970 = vadd.f32 0.0, %v1969
  %1971 = vmatprep.mubr.bf16.mxu0 0
  %1972 = vmatmul.mubr.bf16.gmra.mxu0 %v1862
  %v1973 = vpop.f32.mrf.mxu0
  %v1974 = vadd.f32 0.0, %v1973
  %v1975 = vpop.f32.mrf.mxu0
  %v1976 = vadd.f32 0.0, %v1975
  %v1977 = vpop.f32.mrf.mxu0
  %v1978 = vadd.f32 0.0, %v1977
  %v1979 = vpop.f32.mrf.mxu0
  %v1980 = vadd.f32 0.0, %v1979
  %1981 = vdwg.mxu0
  %v1982 = vadd.f32 %v1761, %v1911
  %v1983 = vadd.f32 %v1762, %v1913
  %v1984 = vadd.f32 %v1763, %v1964
  %v1985 = vadd.f32 %v1764, %v1966
  %v1986 = vadd.f32 %v1765, %v1915
  %v1987 = vadd.f32 %v1766, %v1917
  %v1988 = vadd.f32 %v1767, %v1968
  %v1989 = vadd.f32 %v1768, %v1970
  %v1990 = vadd.f32 %v1769, %v1921
  %v1991 = vadd.f32 %v1770, %v1923
  %v1992 = vadd.f32 %v1771, %v1974
  %v1993 = vadd.f32 %v1772, %v1976
  %v1994 = vadd.f32 %v1773, %v1925
  %v1995 = vadd.f32 %v1774, %v1927
  %v1996 = vadd.f32 %v1775, %v1978
  %v1997 = vadd.f32 %v1776, %v1980
  %v1998 = vadd.f32 %v1982, %v1983
  %v1999 = vadd.f32 %v1998, %v1984
  %v2000 = vadd.f32 %v1999, %v1985
  %2001 = vadd.xlane.f32.xlu0 %v2000
  %v2002 = vpop.xlane.xlu0 %2001
  %v2003 = vadd.f32 %v1986, %v1987
  %v2004 = vadd.f32 %v2003, %v1988
  %v2005 = vadd.f32 %v2004, %v1989
  %2006 = vadd.xlane.f32.xlu0 %v2005
  %v2007 = vpop.xlane.xlu0 %2006
  %v2008 = vadd.f32 %v1990, %v1991
  %v2009 = vadd.f32 %v2008, %v1992
  %v2010 = vadd.f32 %v2009, %v1993
  %2011 = vadd.xlane.f32.xlu0 %v2010
  %v2012 = vpop.xlane.xlu0 %2011
  %v2013 = vadd.f32 %v1994, %v1995
  %v2014 = vadd.f32 %v2013, %v1996
  %v2015 = vadd.f32 %v2014, %v1997
  %2016 = vadd.xlane.f32.xlu0 %v2015
  %v2017 = vpop.xlane.xlu0 %2016
  %v2018 = vmul.f32 %v2002, 0.001953125
  %v2019 = vmul.f32 %v2007, 0.001953125
  %v2020 = vmul.f32 %v2012, 0.001953125
  %v2021 = vmul.f32 %v2017, 0.001953125
  %v2022 = vmul.f32 %v1982, %v1982
  %v2023 = vmul.f32 %v1983, %v1983
  %v2024 = vmul.f32 %v1984, %v1984
  %v2025 = vmul.f32 %v1985, %v1985
  %v2026 = vmul.f32 %v1986, %v1986
  %v2027 = vmul.f32 %v1987, %v1987
  %v2028 = vmul.f32 %v1988, %v1988
  %v2029 = vmul.f32 %v1989, %v1989
  %v2030 = vmul.f32 %v1990, %v1990
  %v2031 = vmul.f32 %v1991, %v1991
  %v2032 = vmul.f32 %v1992, %v1992
  %v2033 = vmul.f32 %v1993, %v1993
  %v2034 = vmul.f32 %v1994, %v1994
  %v2035 = vmul.f32 %v1995, %v1995
  %v2036 = vmul.f32 %v1996, %v1996
  %v2037 = vmul.f32 %v1997, %v1997
  %v2038 = vadd.f32 %v2022, %v2023
  %v2039 = vadd.f32 %v2038, %v2024
  %v2040 = vadd.f32 %v2039, %v2025
  %2041 = vadd.xlane.f32.xlu0 %v2040
  %v2042 = vpop.xlane.xlu0 %2041
  %v2043 = vadd.f32 %v2026, %v2027
  %v2044 = vadd.f32 %v2043, %v2028
  %v2045 = vadd.f32 %v2044, %v2029
  %2046 = vadd.xlane.f32.xlu0 %v2045
  %v2047 = vpop.xlane.xlu0 %2046
  %v2048 = vadd.f32 %v2030, %v2031
  %v2049 = vadd.f32 %v2048, %v2032
  %v2050 = vadd.f32 %v2049, %v2033
  %2051 = vadd.xlane.f32.xlu0 %v2050
  %v2052 = vpop.xlane.xlu0 %2051
  %v2053 = vadd.f32 %v2034, %v2035
  %v2054 = vadd.f32 %v2053, %v2036
  %v2055 = vadd.f32 %v2054, %v2037
  %2056 = vadd.xlane.f32.xlu0 %v2055
  %v2057 = vpop.xlane.xlu0 %2056
  %v2058 = vmul.f32 %v2042, 0.001953125
  %v2059 = vmul.f32 %v2047, 0.001953125
  %v2060 = vmul.f32 %v2052, 0.001953125
  %v2061 = vmul.f32 %v2057, 0.001953125
  %v2062 = vmul.f32 %v2018, %v2018
  %v2063 = vmul.f32 %v2019, %v2019
  %v2064 = vmul.f32 %v2020, %v2020
  %v2065 = vmul.f32 %v2021, %v2021
  %v2066 = vsub.f32 %v2058, %v2062
  %v2067 = vsub.f32 %v2059, %v2063
  %v2068 = vsub.f32 %v2060, %v2064
  %v2069 = vsub.f32 %v2061, %v2065
  %v2070 = vmax.f32 %v2066, 0.0
  %v2071 = vmax.f32 %v2067, 0.0
  %v2072 = vmax.f32 %v2068, 0.0
  %v2073 = vmax.f32 %v2069, 0.0
  %v2074 = vld [vmem:[%s3] sm:$0xff]
  %v2075 = vld [vmem:[%s3 + $0x8] sm:$0xff]
  %v2076 = vld [vmem:[%s3 + $0x10] sm:$0xff]
  %v2077 = vld [vmem:[%s3 + $0x18] sm:$0xff]
  %v2078 = vadd.f32 %v2070, 1e-05
  %v2079 = vadd.f32 %v2071, 1e-05
  %v2080 = vadd.f32 %v2072, 1e-05
  %v2081 = vadd.f32 %v2073, 1e-05
  %v2082 = vrsqrt.pop %v2078
  %v2083 = vrsqrt.pop %v2079
  %v2084 = vrsqrt.pop %v2080
  %v2085 = vrsqrt.pop %v2081
  %v2086 = vmul.f32 %v2074, %v2082
  %v2087 = vmul.f32 %v2075, %v2083
  %v2088 = vmul.f32 %v2076, %v2084
  %v2089 = vmul.f32 %v2077, %v2085
  %v2090 = vld [vmem:[%s4] sm:$0xff]
  %v2091 = vld [vmem:[%s4 + $0x8] sm:$0xff]
  %v2092 = vld [vmem:[%s4 + $0x10] sm:$0xff]
  %v2093 = vld [vmem:[%s4 + $0x18] sm:$0xff]
  %v2094 = vmul.f32 %v2018, %v2086
  %v2095 = vmul.f32 %v2019, %v2087
  %v2096 = vmul.f32 %v2020, %v2088
  %v2097 = vmul.f32 %v2021, %v2089
  %v2098 = vsub.f32 %v2090, %v2094
  %v2099 = vsub.f32 %v2091, %v2095
  %v2100 = vsub.f32 %v2092, %v2096
  %v2101 = vsub.f32 %v2093, %v2097
  %2103 = vset.pattern.permute.xlu0 0
  %2104 = vperm.xlu0 %2103, %v2086
  %v2105 = vpop.permute.xlu0 %2104
  %2108 = vset.pattern.permute.xlu0 0
  %2109 = vperm.xlu0 %2108, %v2087
  %v2110 = vpop.permute.xlu0 %2109
  %2113 = vset.pattern.permute.xlu0 0
  %2114 = vperm.xlu0 %2113, %v2088
  %v2115 = vpop.permute.xlu0 %2114
  %2118 = vset.pattern.permute.xlu0 0
  %2119 = vperm.xlu0 %2118, %v2089
  %v2120 = vpop.permute.xlu0 %2119
  %v2122 = vmul.f32 %v1982, %v2105
  %v2123 = vmul.f32 %v1983, %v2105
  %v2124 = vmul.f32 %v1984, %v2105
  %v2125 = vmul.f32 %v1985, %v2105
  %v2126 = vmul.f32 %v1986, %v2110
  %v2127 = vmul.f32 %v1987, %v2110
  %v2128 = vmul.f32 %v1988, %v2110
  %v2129 = vmul.f32 %v1989, %v2110
  %v2130 = vmul.f32 %v1990, %v2115
  %v2131 = vmul.f32 %v1991, %v2115
  %v2132 = vmul.f32 %v1992, %v2115
  %v2133 = vmul.f32 %v1993, %v2115
  %v2134 = vmul.f32 %v1994, %v2120
  %v2135 = vmul.f32 %v1995, %v2120
  %v2136 = vmul.f32 %v1996, %v2120
  %v2137 = vmul.f32 %v1997, %v2120
  %2139 = vset.pattern.permute.xlu0 0
  %2140 = vperm.xlu0 %2139, %v2098
  %v2141 = vpop.permute.xlu0 %2140
  %2144 = vset.pattern.permute.xlu0 0
  %2145 = vperm.xlu0 %2144, %v2099
  %v2146 = vpop.permute.xlu0 %2145
  %2149 = vset.pattern.permute.xlu0 0
  %2150 = vperm.xlu0 %2149, %v2100
  %v2151 = vpop.permute.xlu0 %2150
  %2154 = vset.pattern.permute.xlu0 0
  %2155 = vperm.xlu0 %2154, %v2101
  %v2156 = vpop.permute.xlu0 %2155
  %v2158 = vadd.f32 %v2122, %v2141
  %v2159 = vadd.f32 %v2123, %v2141
  %v2160 = vadd.f32 %v2124, %v2141
  %v2161 = vadd.f32 %v2125, %v2141
  %v2162 = vadd.f32 %v2126, %v2146
  %v2163 = vadd.f32 %v2127, %v2146
  %v2164 = vadd.f32 %v2128, %v2146
  %v2165 = vadd.f32 %v2129, %v2146
  %v2166 = vadd.f32 %v2130, %v2151
  %v2167 = vadd.f32 %v2131, %v2151
  %v2168 = vadd.f32 %v2132, %v2151
  %v2169 = vadd.f32 %v2133, %v2151
  %v2170 = vadd.f32 %v2134, %v2156
  %v2171 = vadd.f32 %v2135, %v2156
  %v2172 = vadd.f32 %v2136, %v2156
  %v2173 = vadd.f32 %v2137, %v2156
  %v2174 = vmax.f32 %v2158, 0.0
  %v2175 = vmax.f32 %v2159, 0.0
  %v2176 = vmax.f32 %v2160, 0.0
  %v2177 = vmax.f32 %v2161, 0.0
  %v2178 = vmax.f32 %v2162, 0.0
  %v2179 = vmax.f32 %v2163, 0.0
  %v2180 = vmax.f32 %v2164, 0.0
  %v2181 = vmax.f32 %v2165, 0.0
  %v2182 = vmax.f32 %v2166, 0.0
  %v2183 = vmax.f32 %v2167, 0.0
  %v2184 = vmax.f32 %v2168, 0.0
  %v2185 = vmax.f32 %v2169, 0.0
  %v2186 = vmax.f32 %v2170, 0.0
  %v2187 = vmax.f32 %v2171, 0.0
  %v2188 = vmax.f32 %v2172, 0.0
  %v2189 = vmax.f32 %v2173, 0.0
  %2190 = vst [vmem:[#allocation2 + $0x8] sm:$0xff] %v2174
  %2191 = vst [vmem:[#allocation2 + $0x10] sm:$0xff] %v2175
  %2192 = vst [vmem:[#allocation2 + $0x18] sm:$0xff] %v2176
  %2193 = vst [vmem:[#allocation2 + $0x20] sm:$0xff] %v2177
  %2194 = vst [vmem:[#allocation2 + $0x38] sm:$0xff] %v2178
  %2195 = vst [vmem:[#allocation2 + $0x40] sm:$0xff] %v2179
  %2196 = vst [vmem:[#allocation2 + $0x48] sm:$0xff] %v2180
  %2197 = vst [vmem:[#allocation2 + $0x50] sm:$0xff] %v2181
  %2198 = vst [vmem:[#allocation2 + $0x68] sm:$0xff] %v2182
  %2199 = vst [vmem:[#allocation2 + $0x70] sm:$0xff] %v2183
  %2200 = vst [vmem:[#allocation2 + $0x78] sm:$0xff] %v2184
  %2201 = vst [vmem:[#allocation2 + $0x80] sm:$0xff] %v2185
  %2202 = vst [vmem:[#allocation2 + $0x98] sm:$0xff] %v2186
  %2203 = vst [vmem:[#allocation2 + $0xa0] sm:$0xff] %v2187
  %2204 = vst [vmem:[#allocation2 + $0xa8] sm:$0xff] %v2188
  %2205 = vst [vmem:[#allocation2 + $0xb0] sm:$0xff] %v2189
  %v2206 = vld [vmem:[#allocation2] sm:$0xff]
  %v2207 = vld [vmem:[#allocation2 + $0x8] sm:$0xff]
  %v2208 = vld [vmem:[#allocation2 + $0x10] sm:$0xff]
  %v2209 = vld [vmem:[#allocation2 + $0x18] sm:$0xff]
  %v2210 = vld [vmem:[#allocation2 + $0x20] sm:$0xff]
  %v2211 = vld [vmem:[#allocation2 + $0x30] sm:$0xff]
  %v2212 = vld [vmem:[#allocation2 + $0x38] sm:$0xff]
  %v2213 = vld [vmem:[#allocation2 + $0x40] sm:$0xff]
  %v2214 = vld [vmem:[#allocation2 + $0x48] sm:$0xff]
  %v2215 = vld [vmem:[#allocation2 + $0x50] sm:$0xff]
  %v2216 = vld [vmem:[#allocation2 + $0x60] sm:$0xff]
  %v2217 = vld [vmem:[#allocation2 + $0x68] sm:$0xff]
  %v2218 = vld [vmem:[#allocation2 + $0x70] sm:$0xff]
  %v2219 = vld [vmem:[#allocation2 + $0x78] sm:$0xff]
  %v2220 = vld [vmem:[#allocation2 + $0x80] sm:$0xff]
  %v2221 = vld [vmem:[#allocation2 + $0x90] sm:$0xff]
  %v2222 = vld [vmem:[#allocation2 + $0x98] sm:$0xff]
  %v2223 = vld [vmem:[#allocation2 + $0xa0] sm:$0xff]
  %v2224 = vld [vmem:[#allocation2 + $0xa8] sm:$0xff]
  %v2225 = vld [vmem:[#allocation2 + $0xb0] sm:$0xff]
  %v2226 = vld [vmem:[%s1] sm:$0xf]
  %v2228 = vlaneseq
  %v2229 = vshrl.u32 %v2228, 7
  %v2230 = vsub.s32 0, %v2229
  %v2231 = vrot.slane %v2226, %v2230
  %v2232 = vlaneseq
  %v2233 = vshrl.u32 %v2232, 7
  %v2234 = vsub.s32 1, %v2233
  %v2235 = vrot.slane %v2226, %v2234
  %v2236 = vlaneseq
  %v2237 = vshrl.u32 %v2236, 7
  %v2238 = vsub.s32 2, %v2237
  %v2239 = vrot.slane %v2226, %v2238
  %v2240 = vlaneseq
  %v2241 = vshrl.u32 %v2240, 7
  %v2242 = vsub.s32 3, %v2241
  %v2243 = vrot.slane %v2226, %v2242
  %2244 = vrot.lane.b32.xlu0 %v2231, 111
  %v2245 = vpop.permute.xlu0 %2244
  %2246 = vrot.lane.b32.xlu0 %v2235, 111
  %v2247 = vpop.permute.xlu0 %2246
  %2248 = vrot.lane.b32.xlu0 %v2239, 111
  %v2249 = vpop.permute.xlu0 %2248
  %2250 = vrot.lane.b32.xlu0 %v2243, 111
  %v2251 = vpop.permute.xlu0 %2250
  %v2252 = vsel %vm121, %v2245, %v2247
  %v2253 = vsel %vm121, %v2247, %v2249
  %v2254 = vsel %vm121, %v2249, %v2251
  %v2260 = vmul.f32 %v2206, %v2245
  %v2261 = vmul.f32 %v2207, %v2252
  %v2262 = vmul.f32 %v2208, %v2253
  %v2263 = vmul.f32 %v2209, %v2254
  %v2264 = vmul.f32 %v2210, %v2251
  %v2265 = vmul.f32 %v2211, %v2245
  %v2266 = vmul.f32 %v2212, %v2252
  %v2267 = vmul.f32 %v2213, %v2253
  %v2268 = vmul.f32 %v2214, %v2254
  %v2269 = vmul.f32 %v2215, %v2251
  %v2270 = vmul.f32 %v2216, %v2245
  %v2271 = vmul.f32 %v2217, %v2252
  %v2272 = vmul.f32 %v2218, %v2253
  %v2273 = vmul.f32 %v2219, %v2254
  %v2274 = vmul.f32 %v2220, %v2251
  %v2275 = vmul.f32 %v2221, %v2245
  %v2276 = vmul.f32 %v2222, %v2252
  %v2277 = vmul.f32 %v2223, %v2253
  %v2278 = vmul.f32 %v2224, %v2254
  %v2279 = vmul.f32 %v2225, %v2251
  %v2280 = vpack.c.bf16 %v2265, %v2260
  %v2281 = vpack.c.bf16 %v2266, %v2261
  %v2282 = vpack.c.bf16 %v2267, %v2262
  %v2283 = vpack.c.bf16 %v2268, %v2263
  %v2284 = vpack.c.bf16 %v2269, %v2264
  %v2285 = vpack.c.bf16 %v2275, %v2270
  %v2286 = vpack.c.bf16 %v2276, %v2271
  %v2287 = vpack.c.bf16 %v2277, %v2272
  %v2288 = vpack.c.bf16 %v2278, %v2273
  %v2289 = vpack.c.bf16 %v2279, %v2274
  %v2300 = vunpack.c.l.b16 %v2280
  %v2301 = vunpack.c.l.b16 %v2281
  %v2302 = vunpack.c.l.b16 %v2282
  %v2303 = vunpack.c.l.b16 %v2283
  %v2304 = vunpack.c.l.b16 %v2284
  %v2305 = vunpack.c.h.b16 %v2280
  %v2306 = vunpack.c.h.b16 %v2281
  %v2307 = vunpack.c.h.b16 %v2282
  %v2308 = vunpack.c.h.b16 %v2283
  %v2309 = vunpack.c.h.b16 %v2284
  %v2310 = vunpack.c.l.b16 %v2285
  %v2311 = vunpack.c.l.b16 %v2286
  %v2312 = vunpack.c.l.b16 %v2287
  %v2313 = vunpack.c.l.b16 %v2288
  %v2314 = vunpack.c.l.b16 %v2289
  %v2315 = vunpack.c.h.b16 %v2285
  %v2316 = vunpack.c.h.b16 %v2286
  %v2317 = vunpack.c.h.b16 %v2287
  %v2318 = vunpack.c.h.b16 %v2288
  %v2319 = vunpack.c.h.b16 %v2289
  %v2320 = vpack.c.b16 %v2301, %v2300
  %v2321 = vpack.c.b16 %v2303, %v2302
  %v2322 = vpack.c.b16 %v2304, %v2304
  %v2323 = vpack.c.b16 %v2306, %v2305
  %v2324 = vpack.c.b16 %v2308, %v2307
  %v2325 = vpack.c.b16 %v2309, %v2309
  %v2326 = vpack.c.b16 %v2311, %v2310
  %v2327 = vpack.c.b16 %v2313, %v2312
  %v2328 = vpack.c.b16 %v2314, %v2314
  %v2329 = vpack.c.b16 %v2316, %v2315
  %v2330 = vpack.c.b16 %v2318, %v2317
  %v2331 = vpack.c.b16 %v2319, %v2319
  %2332 = vrot.lane.b32.xlu0 %v2320, 17
  %v2333 = vpop.permute.xlu0 %2332
  %2334 = vrot.lane.b32.xlu0 %v2321, 17
  %v2335 = vpop.permute.xlu0 %2334
  %2336 = vrot.lane.b32.xlu0 %v2322, 17
  %v2337 = vpop.permute.xlu0 %2336
  %2338 = vrot.lane.b32.xlu0 %v2323, 17
  %v2339 = vpop.permute.xlu0 %2338
  %2340 = vrot.lane.b32.xlu0 %v2324, 17
  %v2341 = vpop.permute.xlu0 %2340
  %2342 = vrot.lane.b32.xlu0 %v2325, 17
  %v2343 = vpop.permute.xlu0 %2342
  %2344 = vrot.lane.b32.xlu0 %v2326, 17
  %v2345 = vpop.permute.xlu0 %2344
  %2346 = vrot.lane.b32.xlu0 %v2327, 17
  %v2347 = vpop.permute.xlu0 %2346
  %2348 = vrot.lane.b32.xlu0 %v2328, 17
  %v2349 = vpop.permute.xlu0 %2348
  %2350 = vrot.lane.b32.xlu0 %v2329, 17
  %v2351 = vpop.permute.xlu0 %2350
  %2352 = vrot.lane.b32.xlu0 %v2330, 17
  %v2353 = vpop.permute.xlu0 %2352
  %2354 = vrot.lane.b32.xlu0 %v2331, 17
  %v2355 = vpop.permute.xlu0 %2354
  %v2356 = vrot.slane %v2333, 4
  %v2357 = vrot.slane %v2335, 4
  %v2358 = vrot.slane %v2337, 4
  %v2359 = vrot.slane %v2339, 4
  %v2360 = vrot.slane %v2341, 4
  %v2361 = vrot.slane %v2343, 4
  %v2362 = vrot.slane %v2345, 4
  %v2363 = vrot.slane %v2347, 4
  %v2364 = vrot.slane %v2349, 4
  %v2365 = vrot.slane %v2351, 4
  %v2366 = vrot.slane %v2353, 4
  %v2367 = vrot.slane %v2355, 4
  %vm2368 = vcmask 1043456
  %v2369 = vsel %vm2368, %v2356, %v2357
  %v2370 = vsel %vm379, %v2333, %v2369
  %v2371 = vsel %vm2368, %v2357, %v2358
  %v2372 = vsel %vm379, %v2335, %v2371
  %v2373 = vsel %vm2368, %v2359, %v2360
  %v2374 = vsel %vm379, %v2339, %v2373
  %v2375 = vsel %vm2368, %v2360, %v2361
  %v2376 = vsel %vm379, %v2341, %v2375
  %v2377 = vsel %vm2368, %v2362, %v2363
  %v2378 = vsel %vm379, %v2345, %v2377
  %v2379 = vsel %vm2368, %v2363, %v2364
  %v2380 = vsel %vm379, %v2347, %v2379
  %v2381 = vsel %vm2368, %v2365, %v2366
  %v2382 = vsel %vm379, %v2351, %v2381
  %v2383 = vsel %vm2368, %v2366, %v2367
  %v2384 = vsel %vm379, %v2353, %v2383
  %2393 = vst [vmem:[#allocation3] sm:$0xff] %v2370
  %2394 = vst [vmem:[#allocation3 + $0x8] sm:$0xff] %v2372
  %2395 = vst [vmem:[#allocation3 + $0x10] sm:$0xff] %v2374
  %2396 = vst [vmem:[#allocation3 + $0x18] sm:$0xff] %v2376
  %2397 = vst [vmem:[#allocation3 + $0x20] sm:$0xff] %v2378
  %2398 = vst [vmem:[#allocation3 + $0x28] sm:$0xff] %v2380
  %2399 = vst [vmem:[#allocation3 + $0x30] sm:$0xff] %v2382
  %2400 = vst [vmem:[#allocation3 + $0x38] sm:$0xff] %v2384
  %v2401 = vld [vmem:[#allocation2] sm:$0xff]
  %v2402 = vld [vmem:[#allocation2 + $0x8] sm:$0xff]
  %v2403 = vld [vmem:[#allocation2 + $0x10] sm:$0xff]
  %v2404 = vld [vmem:[#allocation2 + $0x18] sm:$0xff]
  %v2405 = vld [vmem:[#allocation2 + $0x20] sm:$0xff]
  %v2406 = vld [vmem:[#allocation2 + $0x30] sm:$0xff]
  %v2407 = vld [vmem:[#allocation2 + $0x38] sm:$0xff]
  %v2408 = vld [vmem:[#allocation2 + $0x40] sm:$0xff]
  %v2409 = vld [vmem:[#allocation2 + $0x48] sm:$0xff]
  %v2410 = vld [vmem:[#allocation2 + $0x50] sm:$0xff]
  %v2411 = vld [vmem:[#allocation2 + $0x60] sm:$0xff]
  %v2412 = vld [vmem:[#allocation2 + $0x68] sm:$0xff]
  %v2413 = vld [vmem:[#allocation2 + $0x70] sm:$0xff]
  %v2414 = vld [vmem:[#allocation2 + $0x78] sm:$0xff]
  %v2415 = vld [vmem:[#allocation2 + $0x80] sm:$0xff]
  %v2416 = vld [vmem:[#allocation2 + $0x90] sm:$0xff]
  %v2417 = vld [vmem:[#allocation2 + $0x98] sm:$0xff]
  %v2418 = vld [vmem:[#allocation2 + $0xa0] sm:$0xff]
  %v2419 = vld [vmem:[#allocation2 + $0xa8] sm:$0xff]
  %v2420 = vld [vmem:[#allocation2 + $0xb0] sm:$0xff]
  %v2421 = vld [vmem:[%s144] sm:$0xf]
  %v2423 = vlaneseq
  %v2424 = vshrl.u32 %v2423, 7
  %v2425 = vsub.s32 0, %v2424
  %v2426 = vrot.slane %v2421, %v2425
  %v2427 = vlaneseq
  %v2428 = vshrl.u32 %v2427, 7
  %v2429 = vsub.s32 1, %v2428
  %v2430 = vrot.slane %v2421, %v2429
  %v2431 = vlaneseq
  %v2432 = vshrl.u32 %v2431, 7
  %v2433 = vsub.s32 2, %v2432
  %v2434 = vrot.slane %v2421, %v2433
  %v2435 = vlaneseq
  %v2436 = vshrl.u32 %v2435, 7
  %v2437 = vsub.s32 3, %v2436
  %v2438 = vrot.slane %v2421, %v2437
  %2439 = vrot.lane.b32.xlu0 %v2426, 112
  %v2440 = vpop.permute.xlu0 %2439
  %2441 = vrot.lane.b32.xlu0 %v2430, 112
  %v2442 = vpop.permute.xlu0 %2441
  %2443 = vrot.lane.b32.xlu0 %v2434, 112
  %v2444 = vpop.permute.xlu0 %2443
  %2445 = vrot.lane.b32.xlu0 %v2438, 112
  %v2446 = vpop.permute.xlu0 %2445
  %v2447 = vsel %vm171, %v2440, %v2442
  %v2448 = vsel %vm171, %v2442, %v2444
  %v2449 = vsel %vm171, %v2444, %v2446
  %v2455 = vmul.f32 %v2401, %v2440
  %v2456 = vmul.f32 %v2402, %v2447
  %v2457 = vmul.f32 %v2403, %v2448
  %v2458 = vmul.f32 %v2404, %v2449
  %v2459 = vmul.f32 %v2405, %v2446
  %v2460 = vmul.f32 %v2406, %v2440
  %v2461 = vmul.f32 %v2407, %v2447
  %v2462 = vmul.f32 %v2408, %v2448
  %v2463 = vmul.f32 %v2409, %v2449
  %v2464 = vmul.f32 %v2410, %v2446
  %v2465 = vmul.f32 %v2411, %v2440
  %v2466 = vmul.f32 %v2412, %v2447
  %v2467 = vmul.f32 %v2413, %v2448
  %v2468 = vmul.f32 %v2414, %v2449
  %v2469 = vmul.f32 %v2415, %v2446
  %v2470 = vmul.f32 %v2416, %v2440
  %v2471 = vmul.f32 %v2417, %v2447
  %v2472 = vmul.f32 %v2418, %v2448
  %v2473 = vmul.f32 %v2419, %v2449
  %v2474 = vmul.f32 %v2420, %v2446
  %v2475 = vpack.c.bf16 %v2460, %v2455
  %v2476 = vpack.c.bf16 %v2461, %v2456
  %v2477 = vpack.c.bf16 %v2462, %v2457
  %v2478 = vpack.c.bf16 %v2463, %v2458
  %v2479 = vpack.c.bf16 %v2464, %v2459
  %v2480 = vpack.c.bf16 %v2470, %v2465
  %v2481 = vpack.c.bf16 %v2471, %v2466
  %v2482 = vpack.c.bf16 %v2472, %v2467
  %v2483 = vpack.c.bf16 %v2473, %v2468
  %v2484 = vpack.c.bf16 %v2474, %v2469
  %v2495 = vunpack.c.l.b16 %v2475
  %v2496 = vunpack.c.l.b16 %v2476
  %v2497 = vunpack.c.l.b16 %v2477
  %v2498 = vunpack.c.l.b16 %v2478
  %v2499 = vunpack.c.l.b16 %v2479
  %v2500 = vunpack.c.h.b16 %v2475
  %v2501 = vunpack.c.h.b16 %v2476
  %v2502 = vunpack.c.h.b16 %v2477
  %v2503 = vunpack.c.h.b16 %v2478
  %v2504 = vunpack.c.h.b16 %v2479
  %v2505 = vunpack.c.l.b16 %v2480
  %v2506 = vunpack.c.l.b16 %v2481
  %v2507 = vunpack.c.l.b16 %v2482
  %v2508 = vunpack.c.l.b16 %v2483
  %v2509 = vunpack.c.l.b16 %v2484
  %v2510 = vunpack.c.h.b16 %v2480
  %v2511 = vunpack.c.h.b16 %v2481
  %v2512 = vunpack.c.h.b16 %v2482
  %v2513 = vunpack.c.h.b16 %v2483
  %v2514 = vunpack.c.h.b16 %v2484
  %v2515 = vpack.c.b16 %v2496, %v2495
  %v2516 = vpack.c.b16 %v2498, %v2497
  %v2517 = vpack.c.b16 %v2499, %v2499
  %v2518 = vpack.c.b16 %v2501, %v2500
  %v2519 = vpack.c.b16 %v2503, %v2502
  %v2520 = vpack.c.b16 %v2504, %v2504
  %v2521 = vpack.c.b16 %v2506, %v2505
  %v2522 = vpack.c.b16 %v2508, %v2507
  %v2523 = vpack.c.b16 %v2509, %v2509
  %v2524 = vpack.c.b16 %v2511, %v2510
  %v2525 = vpack.c.b16 %v2513, %v2512
  %v2526 = vpack.c.b16 %v2514, %v2514
  %2527 = vrot.lane.b32.xlu0 %v2515, 16
  %v2528 = vpop.permute.xlu0 %2527
  %2529 = vrot.lane.b32.xlu0 %v2516, 16
  %v2530 = vpop.permute.xlu0 %2529
  %2531 = vrot.lane.b32.xlu0 %v2517, 16
  %v2532 = vpop.permute.xlu0 %2531
  %2533 = vrot.lane.b32.xlu0 %v2518, 16
  %v2534 = vpop.permute.xlu0 %2533
  %2535 = vrot.lane.b32.xlu0 %v2519, 16
  %v2536 = vpop.permute.xlu0 %2535
  %2537 = vrot.lane.b32.xlu0 %v2520, 16
  %v2538 = vpop.permute.xlu0 %2537
  %2539 = vrot.lane.b32.xlu0 %v2521, 16
  %v2540 = vpop.permute.xlu0 %2539
  %2541 = vrot.lane.b32.xlu0 %v2522, 16
  %v2542 = vpop.permute.xlu0 %2541
  %2543 = vrot.lane.b32.xlu0 %v2523, 16
  %v2544 = vpop.permute.xlu0 %2543
  %2545 = vrot.lane.b32.xlu0 %v2524, 16
  %v2546 = vpop.permute.xlu0 %2545
  %2547 = vrot.lane.b32.xlu0 %v2525, 16
  %v2548 = vpop.permute.xlu0 %2547
  %2549 = vrot.lane.b32.xlu0 %v2526, 16
  %v2550 = vpop.permute.xlu0 %2549
  %v2551 = vrot.slane %v2528, 4
  %v2552 = vrot.slane %v2530, 4
  %v2553 = vrot.slane %v2532, 4
  %v2554 = vrot.slane %v2534, 4
  %v2555 = vrot.slane %v2536, 4
  %v2556 = vrot.slane %v2538, 4
  %v2557 = vrot.slane %v2540, 4
  %v2558 = vrot.slane %v2542, 4
  %v2559 = vrot.slane %v2544, 4
  %v2560 = vrot.slane %v2546, 4
  %v2561 = vrot.slane %v2548, 4
  %v2562 = vrot.slane %v2550, 4
  %v2563 = vsel %vm2368, %v2551, %v2552
  %v2564 = vsel %vm220, %v2528, %v2563
  %v2565 = vsel %vm2368, %v2552, %v2553
  %v2566 = vsel %vm220, %v2530, %v2565
  %v2567 = vsel %vm2368, %v2554, %v2555
  %v2568 = vsel %vm220, %v2534, %v2567
  %v2569 = vsel %vm2368, %v2555, %v2556
  %v2570 = vsel %vm220, %v2536, %v2569
  %v2571 = vsel %vm2368, %v2557, %v2558
  %v2572 = vsel %vm220, %v2540, %v2571
  %v2573 = vsel %vm2368, %v2558, %v2559
  %v2574 = vsel %vm220, %v2542, %v2573
  %v2575 = vsel %vm2368, %v2560, %v2561
  %v2576 = vsel %vm220, %v2546, %v2575
  %v2577 = vsel %vm2368, %v2561, %v2562
  %v2578 = vsel %vm220, %v2548, %v2577
  %2587 = vst [vmem:[#allocation3 + $0x40] sm:$0xff] %v2564
  %2588 = vst [vmem:[#allocation3 + $0x48] sm:$0xff] %v2566
  %2589 = vst [vmem:[#allocation3 + $0x50] sm:$0xff] %v2568
  %2590 = vst [vmem:[#allocation3 + $0x58] sm:$0xff] %v2570
  %2591 = vst [vmem:[#allocation3 + $0x60] sm:$0xff] %v2572
  %2592 = vst [vmem:[#allocation3 + $0x68] sm:$0xff] %v2574
  %2593 = vst [vmem:[#allocation3 + $0x70] sm:$0xff] %v2576
  %2594 = vst [vmem:[#allocation3 + $0x78] sm:$0xff] %v2578
  %v2595 = vld [vmem:[#allocation2] sm:$0xff]
  %v2596 = vld [vmem:[#allocation2 + $0x8] sm:$0xff]
  %v2597 = vld [vmem:[#allocation2 + $0x10] sm:$0xff]
  %v2598 = vld [vmem:[#allocation2 + $0x18] sm:$0xff]
  %v2599 = vld [vmem:[#allocation2 + $0x20] sm:$0xff]
  %v2600 = vld [vmem:[#allocation2 + $0x30] sm:$0xff]
  %v2601 = vld [vmem:[#allocation2 + $0x38] sm:$0xff]
  %v2602 = vld [vmem:[#allocation2 + $0x40] sm:$0xff]
  %v2603 = vld [vmem:[#allocation2 + $0x48] sm:$0xff]
  %v2604 = vld [vmem:[#allocation2 + $0x50] sm:$0xff]
  %v2605 = vld [vmem:[#allocation2 + $0x60] sm:$0xff]
  %v2606 = vld [vmem:[#allocation2 + $0x68] sm:$0xff]
  %v2607 = vld [vmem:[#allocation2 + $0x70] sm:$0xff]
  %v2608 = vld [vmem:[#allocation2 + $0x78] sm:$0xff]
  %v2609 = vld [vmem:[#allocation2 + $0x80] sm:$0xff]
  %v2610 = vld [vmem:[#allocation2 + $0x90] sm:$0xff]
  %v2611 = vld [vmem:[#allocation2 + $0x98] sm:$0xff]
  %v2612 = vld [vmem:[#allocation2 + $0xa0] sm:$0xff]
  %v2613 = vld [vmem:[#allocation2 + $0xa8] sm:$0xff]
  %v2614 = vld [vmem:[#allocation2 + $0xb0] sm:$0xff]
  %v2615 = vld [vmem:[%s508] sm:$0xf]
  %v2617 = vlaneseq
  %v2618 = vshrl.u32 %v2617, 7
  %v2619 = vsub.s32 0, %v2618
  %v2620 = vrot.slane %v2615, %v2619
  %v2621 = vlaneseq
  %v2622 = vshrl.u32 %v2621, 7
  %v2623 = vsub.s32 1, %v2622
  %v2624 = vrot.slane %v2615, %v2623
  %v2625 = vlaneseq
  %v2626 = vshrl.u32 %v2625, 7
  %v2627 = vsub.s32 2, %v2626
  %v2628 = vrot.slane %v2615, %v2627
  %v2629 = vlaneseq
  %v2630 = vshrl.u32 %v2629, 7
  %v2631 = vsub.s32 3, %v2630
  %v2632 = vrot.slane %v2615, %v2631
  %2633 = vrot.lane.b32.xlu0 %v2620, 113
  %v2634 = vpop.permute.xlu0 %2633
  %2635 = vrot.lane.b32.xlu0 %v2624, 113
  %v2636 = vpop.permute.xlu0 %2635
  %2637 = vrot.lane.b32.xlu0 %v2628, 113
  %v2638 = vpop.permute.xlu0 %2637
  %2639 = vrot.lane.b32.xlu0 %v2632, 113
  %v2640 = vpop.permute.xlu0 %2639
  %v2641 = vsel %vm535, %v2634, %v2636
  %v2642 = vsel %vm535, %v2636, %v2638
  %v2643 = vsel %vm535, %v2638, %v2640
  %v2649 = vmul.f32 %v2595, %v2634
  %v2650 = vmul.f32 %v2596, %v2641
  %v2651 = vmul.f32 %v2597, %v2642
  %v2652 = vmul.f32 %v2598, %v2643
  %v2653 = vmul.f32 %v2599, %v2640
  %v2654 = vmul.f32 %v2600, %v2634
  %v2655 = vmul.f32 %v2601, %v2641
  %v2656 = vmul.f32 %v2602, %v2642
  %v2657 = vmul.f32 %v2603, %v2643
  %v2658 = vmul.f32 %v2604, %v2640
  %v2659 = vmul.f32 %v2605, %v2634
  %v2660 = vmul.f32 %v2606, %v2641
  %v2661 = vmul.f32 %v2607, %v2642
  %v2662 = vmul.f32 %v2608, %v2643
  %v2663 = vmul.f32 %v2609, %v2640
  %v2664 = vmul.f32 %v2610, %v2634
  %v2665 = vmul.f32 %v2611, %v2641
  %v2666 = vmul.f32 %v2612, %v2642
  %v2667 = vmul.f32 %v2613, %v2643
  %v2668 = vmul.f32 %v2614, %v2640
  %v2669 = vpack.c.bf16 %v2654, %v2649
  %v2670 = vpack.c.bf16 %v2655, %v2650
  %v2671 = vpack.c.bf16 %v2656, %v2651
  %v2672 = vpack.c.bf16 %v2657, %v2652
  %v2673 = vpack.c.bf16 %v2658, %v2653
  %v2674 = vpack.c.bf16 %v2664, %v2659
  %v2675 = vpack.c.bf16 %v2665, %v2660
  %v2676 = vpack.c.bf16 %v2666, %v2661
  %v2677 = vpack.c.bf16 %v2667, %v2662
  %v2678 = vpack.c.bf16 %v2668, %v2663
  %v2689 = vunpack.c.l.b16 %v2669
  %v2690 = vunpack.c.l.b16 %v2670
  %v2691 = vunpack.c.l.b16 %v2671
  %v2692 = vunpack.c.l.b16 %v2672
  %v2693 = vunpack.c.l.b16 %v2673
  %v2694 = vunpack.c.h.b16 %v2669
  %v2695 = vunpack.c.h.b16 %v2670
  %v2696 = vunpack.c.h.b16 %v2671
  %v2697 = vunpack.c.h.b16 %v2672
  %v2698 = vunpack.c.h.b16 %v2673
  %v2699 = vunpack.c.l.b16 %v2674
  %v2700 = vunpack.c.l.b16 %v2675
  %v2701 = vunpack.c.l.b16 %v2676
  %v2702 = vunpack.c.l.b16 %v2677
  %v2703 = vunpack.c.l.b16 %v2678
  %v2704 = vunpack.c.h.b16 %v2674
  %v2705 = vunpack.c.h.b16 %v2675
  %v2706 = vunpack.c.h.b16 %v2676
  %v2707 = vunpack.c.h.b16 %v2677
  %v2708 = vunpack.c.h.b16 %v2678
  %v2709 = vpack.c.b16 %v2690, %v2689
  %v2710 = vpack.c.b16 %v2692, %v2691
  %v2711 = vpack.c.b16 %v2693, %v2693
  %v2712 = vpack.c.b16 %v2695, %v2694
  %v2713 = vpack.c.b16 %v2697, %v2696
  %v2714 = vpack.c.b16 %v2698, %v2698
  %v2715 = vpack.c.b16 %v2700, %v2699
  %v2716 = vpack.c.b16 %v2702, %v2701
  %v2717 = vpack.c.b16 %v2703, %v2703
  %v2718 = vpack.c.b16 %v2705, %v2704
  %v2719 = vpack.c.b16 %v2707, %v2706
  %v2720 = vpack.c.b16 %v2708, %v2708
  %2721 = vrot.lane.b32.xlu0 %v2709, 15
  %v2722 = vpop.permute.xlu0 %2721
  %2723 = vrot.lane.b32.xlu0 %v2710, 15
  %v2724 = vpop.permute.xlu0 %2723
  %2725 = vrot.lane.b32.xlu0 %v2711, 15
  %v2726 = vpop.permute.xlu0 %2725
  %2727 = vrot.lane.b32.xlu0 %v2712, 15
  %v2728 = vpop.permute.xlu0 %2727
  %2729 = vrot.lane.b32.xlu0 %v2713, 15
  %v2730 = vpop.permute.xlu0 %2729
  %2731 = vrot.lane.b32.xlu0 %v2714, 15
  %v2732 = vpop.permute.xlu0 %2731
  %2733 = vrot.lane.b32.xlu0 %v2715, 15
  %v2734 = vpop.permute.xlu0 %2733
  %2735 = vrot.lane.b32.xlu0 %v2716, 15
  %v2736 = vpop.permute.xlu0 %2735
  %2737 = vrot.lane.b32.xlu0 %v2717, 15
  %v2738 = vpop.permute.xlu0 %2737
  %2739 = vrot.lane.b32.xlu0 %v2718, 15
  %v2740 = vpop.permute.xlu0 %2739
  %2741 = vrot.lane.b32.xlu0 %v2719, 15
  %v2742 = vpop.permute.xlu0 %2741
  %2743 = vrot.lane.b32.xlu0 %v2720, 15
  %v2744 = vpop.permute.xlu0 %2743
  %v2745 = vrot.slane %v2722, 4
  %v2746 = vrot.slane %v2724, 4
  %v2747 = vrot.slane %v2726, 4
  %v2748 = vrot.slane %v2728, 4
  %v2749 = vrot.slane %v2730, 4
  %v2750 = vrot.slane %v2732, 4
  %v2751 = vrot.slane %v2734, 4
  %v2752 = vrot.slane %v2736, 4
  %v2753 = vrot.slane %v2738, 4
  %v2754 = vrot.slane %v2740, 4
  %v2755 = vrot.slane %v2742, 4
  %v2756 = vrot.slane %v2744, 4
  %v2757 = vsel %vm2368, %v2745, %v2746
  %v2758 = vsel %vm584, %v2722, %v2757
  %v2759 = vsel %vm2368, %v2746, %v2747
  %v2760 = vsel %vm584, %v2724, %v2759
  %v2761 = vsel %vm2368, %v2748, %v2749
  %v2762 = vsel %vm584, %v2728, %v2761
  %v2763 = vsel %vm2368, %v2749, %v2750
  %v2764 = vsel %vm584, %v2730, %v2763
  %v2765 = vsel %vm2368, %v2751, %v2752
  %v2766 = vsel %vm584, %v2734, %v2765
  %v2767 = vsel %vm2368, %v2752, %v2753
  %v2768 = vsel %vm584, %v2736, %v2767
  %v2769 = vsel %vm2368, %v2754, %v2755
  %v2770 = vsel %vm584, %v2740, %v2769
  %v2771 = vsel %vm2368, %v2755, %v2756
  %v2772 = vsel %vm584, %v2742, %v2771
  %2781 = vst [vmem:[#allocation3 + $0x80] sm:$0xff] %v2758
  %2782 = vst [vmem:[#allocation3 + $0x88] sm:$0xff] %v2760
  %2783 = vst [vmem:[#allocation3 + $0x90] sm:$0xff] %v2762
  %2784 = vst [vmem:[#allocation3 + $0x98] sm:$0xff] %v2764
  %2785 = vst [vmem:[#allocation3 + $0xa0] sm:$0xff] %v2766
  %2786 = vst [vmem:[#allocation3 + $0xa8] sm:$0xff] %v2768
  %2787 = vst [vmem:[#allocation3 + $0xb0] sm:$0xff] %v2770
  %2788 = vst [vmem:[#allocation3 + $0xb8] sm:$0xff] %v2772
  %v2789 = vld [vmem:[#allocation2] sm:$0xff]
  %v2790 = vld [vmem:[#allocation2 + $0x8] sm:$0xff]
  %v2791 = vld [vmem:[#allocation2 + $0x10] sm:$0xff]
  %v2792 = vld [vmem:[#allocation2 + $0x18] sm:$0xff]
  %v2793 = vld [vmem:[#allocation2 + $0x20] sm:$0xff]
  %v2794 = vld [vmem:[#allocation2 + $0x30] sm:$0xff]
  %v2795 = vld [vmem:[#allocation2 + $0x38] sm:$0xff]
  %v2796 = vld [vmem:[#allocation2 + $0x40] sm:$0xff]
  %v2797 = vld [vmem:[#allocation2 + $0x48] sm:$0xff]
  %v2798 = vld [vmem:[#allocation2 + $0x50] sm:$0xff]
  %v2799 = vld [vmem:[#allocation2 + $0x60] sm:$0xff]
  %v2800 = vld [vmem:[#allocation2 + $0x68] sm:$0xff]
  %v2801 = vld [vmem:[#allocation2 + $0x70] sm:$0xff]
  %v2802 = vld [vmem:[#allocation2 + $0x78] sm:$0xff]
  %v2803 = vld [vmem:[#allocation2 + $0x80] sm:$0xff]
  %v2804 = vld [vmem:[#allocation2 + $0x90] sm:$0xff]
  %v2805 = vld [vmem:[#allocation2 + $0x98] sm:$0xff]
  %v2806 = vld [vmem:[#allocation2 + $0xa0] sm:$0xff]
  %v2807 = vld [vmem:[#allocation2 + $0xa8] sm:$0xff]
  %v2808 = vld [vmem:[#allocation2 + $0xb0] sm:$0xff]
  %v2809 = vld [vmem:[%s729] sm:$0xf]
  %v2811 = vlaneseq
  %v2812 = vshrl.u32 %v2811, 7
  %v2813 = vsub.s32 0, %v2812
  %v2814 = vrot.slane %v2809, %v2813
  %v2815 = vlaneseq
  %v2816 = vshrl.u32 %v2815, 7
  %v2817 = vsub.s32 1, %v2816
  %v2818 = vrot.slane %v2809, %v2817
  %v2819 = vlaneseq
  %v2820 = vshrl.u32 %v2819, 7
  %v2821 = vsub.s32 2, %v2820
  %v2822 = vrot.slane %v2809, %v2821
  %v2823 = vlaneseq
  %v2824 = vshrl.u32 %v2823, 7
  %v2825 = vsub.s32 3, %v2824
  %v2826 = vrot.slane %v2809, %v2825
  %2827 = vrot.lane.b32.xlu0 %v2814, 127
  %v2828 = vpop.permute.xlu0 %2827
  %2829 = vrot.lane.b32.xlu0 %v2818, 127
  %v2830 = vpop.permute.xlu0 %2829
  %2831 = vrot.lane.b32.xlu0 %v2822, 127
  %v2832 = vpop.permute.xlu0 %2831
  %2833 = vrot.lane.b32.xlu0 %v2826, 127
  %v2834 = vpop.permute.xlu0 %2833
  %v2835 = vsel %vm756, %v2828, %v2830
  %v2836 = vsel %vm756, %v2830, %v2832
  %v2837 = vsel %vm756, %v2832, %v2834
  %v2843 = vmul.f32 %v2789, %v2828
  %v2844 = vmul.f32 %v2790, %v2835
  %v2845 = vmul.f32 %v2791, %v2836
  %v2846 = vmul.f32 %v2792, %v2837
  %v2847 = vmul.f32 %v2793, %v2834
  %v2848 = vmul.f32 %v2794, %v2828
  %v2849 = vmul.f32 %v2795, %v2835
  %v2850 = vmul.f32 %v2796, %v2836
  %v2851 = vmul.f32 %v2797, %v2837
  %v2852 = vmul.f32 %v2798, %v2834
  %v2853 = vmul.f32 %v2799, %v2828
  %v2854 = vmul.f32 %v2800, %v2835
  %v2855 = vmul.f32 %v2801, %v2836
  %v2856 = vmul.f32 %v2802, %v2837
  %v2857 = vmul.f32 %v2803, %v2834
  %v2858 = vmul.f32 %v2804, %v2828
  %v2859 = vmul.f32 %v2805, %v2835
  %v2860 = vmul.f32 %v2806, %v2836
  %v2861 = vmul.f32 %v2807, %v2837
  %v2862 = vmul.f32 %v2808, %v2834
  %v2863 = vpack.c.bf16 %v2848, %v2843
  %v2864 = vpack.c.bf16 %v2849, %v2844
  %v2865 = vpack.c.bf16 %v2850, %v2845
  %v2866 = vpack.c.bf16 %v2851, %v2846
  %v2867 = vpack.c.bf16 %v2852, %v2847
  %v2868 = vpack.c.bf16 %v2858, %v2853
  %v2869 = vpack.c.bf16 %v2859, %v2854
  %v2870 = vpack.c.bf16 %v2860, %v2855
  %v2871 = vpack.c.bf16 %v2861, %v2856
  %v2872 = vpack.c.bf16 %v2862, %v2857
  %v2883 = vunpack.c.l.b16 %v2863
  %v2884 = vunpack.c.l.b16 %v2864
  %v2885 = vunpack.c.l.b16 %v2865
  %v2886 = vunpack.c.l.b16 %v2866
  %v2887 = vunpack.c.l.b16 %v2867
  %v2888 = vunpack.c.h.b16 %v2863
  %v2889 = vunpack.c.h.b16 %v2864
  %v2890 = vunpack.c.h.b16 %v2865
  %v2891 = vunpack.c.h.b16 %v2866
  %v2892 = vunpack.c.h.b16 %v2867
  %v2893 = vunpack.c.l.b16 %v2868
  %v2894 = vunpack.c.l.b16 %v2869
  %v2895 = vunpack.c.l.b16 %v2870
  %v2896 = vunpack.c.l.b16 %v2871
  %v2897 = vunpack.c.l.b16 %v2872
  %v2898 = vunpack.c.h.b16 %v2868
  %v2899 = vunpack.c.h.b16 %v2869
  %v2900 = vunpack.c.h.b16 %v2870
  %v2901 = vunpack.c.h.b16 %v2871
  %v2902 = vunpack.c.h.b16 %v2872
  %v2903 = vpack.c.b16 %v2884, %v2883
  %v2904 = vpack.c.b16 %v2886, %v2885
  %v2905 = vpack.c.b16 %v2887, %v2887
  %v2906 = vpack.c.b16 %v2889, %v2888
  %v2907 = vpack.c.b16 %v2891, %v2890
  %v2908 = vpack.c.b16 %v2892, %v2892
  %v2909 = vpack.c.b16 %v2894, %v2893
  %v2910 = vpack.c.b16 %v2896, %v2895
  %v2911 = vpack.c.b16 %v2897, %v2897
  %v2912 = vpack.c.b16 %v2899, %v2898
  %v2913 = vpack.c.b16 %v2901, %v2900
  %v2914 = vpack.c.b16 %v2902, %v2902
  %2915 = vrot.lane.b32.xlu0 %v2903, 1
  %v2916 = vpop.permute.xlu0 %2915
  %2917 = vrot.lane.b32.xlu0 %v2904, 1
  %v2918 = vpop.permute.xlu0 %2917
  %2919 = vrot.lane.b32.xlu0 %v2905, 1
  %v2920 = vpop.permute.xlu0 %2919
  %2921 = vrot.lane.b32.xlu0 %v2906, 1
  %v2922 = vpop.permute.xlu0 %2921
  %2923 = vrot.lane.b32.xlu0 %v2907, 1
  %v2924 = vpop.permute.xlu0 %2923
  %2925 = vrot.lane.b32.xlu0 %v2908, 1
  %v2926 = vpop.permute.xlu0 %2925
  %2927 = vrot.lane.b32.xlu0 %v2909, 1
  %v2928 = vpop.permute.xlu0 %2927
  %2929 = vrot.lane.b32.xlu0 %v2910, 1
  %v2930 = vpop.permute.xlu0 %2929
  %2931 = vrot.lane.b32.xlu0 %v2911, 1
  %v2932 = vpop.permute.xlu0 %2931
  %2933 = vrot.lane.b32.xlu0 %v2912, 1
  %v2934 = vpop.permute.xlu0 %2933
  %2935 = vrot.lane.b32.xlu0 %v2913, 1
  %v2936 = vpop.permute.xlu0 %2935
  %2937 = vrot.lane.b32.xlu0 %v2914, 1
  %v2938 = vpop.permute.xlu0 %2937
  %v2939 = vrot.slane %v2916, 4
  %v2940 = vrot.slane %v2918, 4
  %v2941 = vrot.slane %v2920, 4
  %v2942 = vrot.slane %v2922, 4
  %v2943 = vrot.slane %v2924, 4
  %v2944 = vrot.slane %v2926, 4
  %v2945 = vrot.slane %v2928, 4
  %v2946 = vrot.slane %v2930, 4
  %v2947 = vrot.slane %v2932, 4
  %v2948 = vrot.slane %v2934, 4
  %v2949 = vrot.slane %v2936, 4
  %v2950 = vrot.slane %v2938, 4
  %v2951 = vsel %vm2368, %v2939, %v2940
  %v2952 = vsel %vm805, %v2916, %v2951
  %v2953 = vsel %vm2368, %v2940, %v2941
  %v2954 = vsel %vm805, %v2918, %v2953
  %v2955 = vsel %vm2368, %v2942, %v2943
  %v2956 = vsel %vm805, %v2922, %v2955
  %v2957 = vsel %vm2368, %v2943, %v2944
  %v2958 = vsel %vm805, %v2924, %v2957
  %v2959 = vsel %vm2368, %v2945, %v2946
  %v2960 = vsel %vm805, %v2928, %v2959
  %v2961 = vsel %vm2368, %v2946, %v2947
  %v2962 = vsel %vm805, %v2930, %v2961
  %v2963 = vsel %vm2368, %v2948, %v2949
  %v2964 = vsel %vm805, %v2934, %v2963
  %v2965 = vsel %vm2368, %v2949, %v2950
  %v2966 = vsel %vm805, %v2936, %v2965
  %2975 = vst [vmem:[#allocation3 + $0xc0] sm:$0xff] %v2952
  %2976 = vst [vmem:[#allocation3 + $0xc8] sm:$0xff] %v2954
  %2977 = vst [vmem:[#allocation3 + $0xd0] sm:$0xff] %v2956
  %2978 = vst [vmem:[#allocation3 + $0xd8] sm:$0xff] %v2958
  %2979 = vst [vmem:[#allocation3 + $0xe0] sm:$0xff] %v2960
  %2980 = vst [vmem:[#allocation3 + $0xe8] sm:$0xff] %v2962
  %2981 = vst [vmem:[#allocation3 + $0xf0] sm:$0xff] %v2964
  %2982 = vst [vmem:[#allocation3 + $0xf8] sm:$0xff] %v2966
  %v2983 = vld [vmem:[#allocation2 + $0x8] sm:$0xff]
  %v2984 = vld [vmem:[#allocation2 + $0x10] sm:$0xff]
  %v2985 = vld [vmem:[#allocation2 + $0x18] sm:$0xff]
  %v2986 = vld [vmem:[#allocation2 + $0x20] sm:$0xff]
  %v2987 = vld [vmem:[#allocation2 + $0x38] sm:$0xff]
  %v2988 = vld [vmem:[#allocation2 + $0x40] sm:$0xff]
  %v2989 = vld [vmem:[#allocation2 + $0x48] sm:$0xff]
  %v2990 = vld [vmem:[#allocation2 + $0x50] sm:$0xff]
  %v2991 = vld [vmem:[#allocation2 + $0x68] sm:$0xff]
  %v2992 = vld [vmem:[#allocation2 + $0x70] sm:$0xff]
  %v2993 = vld [vmem:[#allocation2 + $0x78] sm:$0xff]
  %v2994 = vld [vmem:[#allocation2 + $0x80] sm:$0xff]
  %v2995 = vld [vmem:[#allocation2 + $0x98] sm:$0xff]
  %v2996 = vld [vmem:[#allocation2 + $0xa0] sm:$0xff]
  %v2997 = vld [vmem:[#allocation2 + $0xa8] sm:$0xff]
  %v2998 = vld [vmem:[#allocation2 + $0xb0] sm:$0xff]
  %v2999 = vpack.c.bf16 %v2987, %v2983
  %v3000 = vpack.c.bf16 %v2988, %v2984
  %v3001 = vpack.c.bf16 %v2989, %v2985
  %v3002 = vpack.c.bf16 %v2990, %v2986
  %v3003 = vpack.c.bf16 %v2995, %v2991
  %v3004 = vpack.c.bf16 %v2996, %v2992
  %v3005 = vpack.c.bf16 %v2997, %v2993
  %v3006 = vpack.c.bf16 %v2998, %v2994
  %v3015 = vunpack.c.l.b16 %v2999
  %v3016 = vunpack.c.l.b16 %v3000
  %v3017 = vunpack.c.l.b16 %v3001
  %v3018 = vunpack.c.l.b16 %v3002
  %v3019 = vunpack.c.h.b16 %v2999
  %v3020 = vunpack.c.h.b16 %v3000
  %v3021 = vunpack.c.h.b16 %v3001
  %v3022 = vunpack.c.h.b16 %v3002
  %v3023 = vunpack.c.l.b16 %v3003
  %v3024 = vunpack.c.l.b16 %v3004
  %v3025 = vunpack.c.l.b16 %v3005
  %v3026 = vunpack.c.l.b16 %v3006
  %v3027 = vunpack.c.h.b16 %v3003
  %v3028 = vunpack.c.h.b16 %v3004
  %v3029 = vunpack.c.h.b16 %v3005
  %v3030 = vunpack.c.h.b16 %v3006
  %v3031 = vpack.c.b16 %v3016, %v3015
  %v3032 = vpack.c.b16 %v3018, %v3017
  %v3033 = vpack.c.b16 %v3020, %v3019
  %v3034 = vpack.c.b16 %v3022, %v3021
  %v3035 = vpack.c.b16 %v3024, %v3023
  %v3036 = vpack.c.b16 %v3026, %v3025
  %v3037 = vpack.c.b16 %v3028, %v3027
  %v3038 = vpack.c.b16 %v3030, %v3029
  %3047 = vst [vmem:[#allocation3 + $0x100] sm:$0xff] %v3031
  %3048 = vst [vmem:[#allocation3 + $0x108] sm:$0xff] %v3032
  %3049 = vst [vmem:[#allocation3 + $0x110] sm:$0xff] %v3033
  %3050 = vst [vmem:[#allocation3 + $0x118] sm:$0xff] %v3034
  %3051 = vst [vmem:[#allocation3 + $0x120] sm:$0xff] %v3035
  %3052 = vst [vmem:[#allocation3 + $0x128] sm:$0xff] %v3036
  %3053 = vst [vmem:[#allocation3 + $0x130] sm:$0xff] %v3037
  %3054 = vst [vmem:[#allocation3 + $0x138] sm:$0xff] %v3038
  %v3055 = vld [vmem:[#allocation2 + $0x8] sm:$0xff]
  %v3056 = vld [vmem:[#allocation2 + $0x10] sm:$0xff]
  %v3057 = vld [vmem:[#allocation2 + $0x18] sm:$0xff]
  %v3058 = vld [vmem:[#allocation2 + $0x20] sm:$0xff]
  %v3059 = vld [vmem:[#allocation2 + $0x28] sm:$0xff]
  %v3060 = vld [vmem:[#allocation2 + $0x38] sm:$0xff]
  %v3061 = vld [vmem:[#allocation2 + $0x40] sm:$0xff]
  %v3062 = vld [vmem:[#allocation2 + $0x48] sm:$0xff]
  %v3063 = vld [vmem:[#allocation2 + $0x50] sm:$0xff]
  %v3064 = vld [vmem:[#allocation2 + $0x58] sm:$0xff]
  %v3065 = vld [vmem:[#allocation2 + $0x68] sm:$0xff]
  %v3066 = vld [vmem:[#allocation2 + $0x70] sm:$0xff]
  %v3067 = vld [vmem:[#allocation2 + $0x78] sm:$0xff]
  %v3068 = vld [vmem:[#allocation2 + $0x80] sm:$0xff]
  %v3069 = vld [vmem:[#allocation2 + $0x88] sm:$0xff]
  %v3070 = vld [vmem:[#allocation2 + $0x98] sm:$0xff]
  %v3071 = vld [vmem:[#allocation2 + $0xa0] sm:$0xff]
  %v3072 = vld [vmem:[#allocation2 + $0xa8] sm:$0xff]
  %v3073 = vld [vmem:[#allocation2 + $0xb0] sm:$0xff]
  %v3074 = vld [vmem:[#allocation2 + $0xb8] sm:$0xff]
  %v3075 = vld [vmem:[%s1114] sm:$0xf]
  %v3077 = vlaneseq
  %v3078 = vshrl.u32 %v3077, 7
  %v3079 = vsub.s32 0, %v3078
  %v3080 = vrot.slane %v3075, %v3079
  %v3081 = vlaneseq
  %v3082 = vshrl.u32 %v3081, 7
  %v3083 = vsub.s32 1, %v3082
  %v3084 = vrot.slane %v3075, %v3083
  %v3085 = vlaneseq
  %v3086 = vshrl.u32 %v3085, 7
  %v3087 = vsub.s32 2, %v3086
  %v3088 = vrot.slane %v3075, %v3087
  %v3089 = vlaneseq
  %v3090 = vshrl.u32 %v3089, 7
  %v3091 = vsub.s32 3, %v3090
  %v3092 = vrot.slane %v3075, %v3091
  %3093 = vrot.lane.b32.xlu0 %v3080, 1
  %v3094 = vpop.permute.xlu0 %3093
  %3095 = vrot.lane.b32.xlu0 %v3084, 1
  %v3096 = vpop.permute.xlu0 %3095
  %3097 = vrot.lane.b32.xlu0 %v3088, 1
  %v3098 = vpop.permute.xlu0 %3097
  %3099 = vrot.lane.b32.xlu0 %v3092, 1
  %v3100 = vpop.permute.xlu0 %3099
  %v3101 = vsel %vm1141, %v3094, %v3096
  %v3102 = vsel %vm1141, %v3096, %v3098
  %v3103 = vsel %vm1141, %v3098, %v3100
  %v3109 = vmul.f32 %v3055, %v3094
  %v3110 = vmul.f32 %v3056, %v3101
  %v3111 = vmul.f32 %v3057, %v3102
  %v3112 = vmul.f32 %v3058, %v3103
  %v3113 = vmul.f32 %v3059, %v3100
  %v3114 = vmul.f32 %v3060, %v3094
  %v3115 = vmul.f32 %v3061, %v3101
  %v3116 = vmul.f32 %v3062, %v3102
  %v3117 = vmul.f32 %v3063, %v3103
  %v3118 = vmul.f32 %v3064, %v3100
  %v3119 = vmul.f32 %v3065, %v3094
  %v3120 = vmul.f32 %v3066, %v3101
  %v3121 = vmul.f32 %v3067, %v3102
  %v3122 = vmul.f32 %v3068, %v3103
  %v3123 = vmul.f32 %v3069, %v3100
  %v3124 = vmul.f32 %v3070, %v3094
  %v3125 = vmul.f32 %v3071, %v3101
  %v3126 = vmul.f32 %v3072, %v3102
  %v3127 = vmul.f32 %v3073, %v3103
  %v3128 = vmul.f32 %v3074, %v3100
  %v3129 = vpack.c.bf16 %v3114, %v3109
  %v3130 = vpack.c.bf16 %v3115, %v3110
  %v3131 = vpack.c.bf16 %v3116, %v3111
  %v3132 = vpack.c.bf16 %v3117, %v3112
  %v3133 = vpack.c.bf16 %v3118, %v3113
  %v3134 = vpack.c.bf16 %v3124, %v3119
  %v3135 = vpack.c.bf16 %v3125, %v3120
  %v3136 = vpack.c.bf16 %v3126, %v3121
  %v3137 = vpack.c.bf16 %v3127, %v3122
  %v3138 = vpack.c.bf16 %v3128, %v3123
  %v3149 = vunpack.c.l.b16 %v3129
  %v3150 = vunpack.c.l.b16 %v3130
  %v3151 = vunpack.c.l.b16 %v3131
  %v3152 = vunpack.c.l.b16 %v3132
  %v3153 = vunpack.c.l.b16 %v3133
  %v3154 = vunpack.c.h.b16 %v3129
  %v3155 = vunpack.c.h.b16 %v3130
  %v3156 = vunpack.c.h.b16 %v3131
  %v3157 = vunpack.c.h.b16 %v3132
  %v3158 = vunpack.c.h.b16 %v3133
  %v3159 = vunpack.c.l.b16 %v3134
  %v3160 = vunpack.c.l.b16 %v3135
  %v3161 = vunpack.c.l.b16 %v3136
  %v3162 = vunpack.c.l.b16 %v3137
  %v3163 = vunpack.c.l.b16 %v3138
  %v3164 = vunpack.c.h.b16 %v3134
  %v3165 = vunpack.c.h.b16 %v3135
  %v3166 = vunpack.c.h.b16 %v3136
  %v3167 = vunpack.c.h.b16 %v3137
  %v3168 = vunpack.c.h.b16 %v3138
  %v3169 = vpack.c.b16 %v3150, %v3149
  %v3170 = vpack.c.b16 %v3152, %v3151
  %v3171 = vpack.c.b16 %v3153, %v3153
  %v3172 = vpack.c.b16 %v3155, %v3154
  %v3173 = vpack.c.b16 %v3157, %v3156
  %v3174 = vpack.c.b16 %v3158, %v3158
  %v3175 = vpack.c.b16 %v3160, %v3159
  %v3176 = vpack.c.b16 %v3162, %v3161
  %v3177 = vpack.c.b16 %v3163, %v3163
  %v3178 = vpack.c.b16 %v3165, %v3164
  %v3179 = vpack.c.b16 %v3167, %v3166
  %v3180 = vpack.c.b16 %v3168, %v3168
  %3181 = vrot.lane.b32.xlu0 %v3169, 127
  %v3182 = vpop.permute.xlu0 %3181
  %3183 = vrot.lane.b32.xlu0 %v3170, 127
  %v3184 = vpop.permute.xlu0 %3183
  %3185 = vrot.lane.b32.xlu0 %v3171, 127
  %v3186 = vpop.permute.xlu0 %3185
  %3187 = vrot.lane.b32.xlu0 %v3172, 127
  %v3188 = vpop.permute.xlu0 %3187
  %3189 = vrot.lane.b32.xlu0 %v3173, 127
  %v3190 = vpop.permute.xlu0 %3189
  %3191 = vrot.lane.b32.xlu0 %v3174, 127
  %v3192 = vpop.permute.xlu0 %3191
  %3193 = vrot.lane.b32.xlu0 %v3175, 127
  %v3194 = vpop.permute.xlu0 %3193
  %3195 = vrot.lane.b32.xlu0 %v3176, 127
  %v3196 = vpop.permute.xlu0 %3195
  %3197 = vrot.lane.b32.xlu0 %v3177, 127
  %v3198 = vpop.permute.xlu0 %3197
  %3199 = vrot.lane.b32.xlu0 %v3178, 127
  %v3200 = vpop.permute.xlu0 %3199
  %3201 = vrot.lane.b32.xlu0 %v3179, 127
  %v3202 = vpop.permute.xlu0 %3201
  %3203 = vrot.lane.b32.xlu0 %v3180, 127
  %v3204 = vpop.permute.xlu0 %3203
  %v3205 = vrot.slane %v3182, 4
  %v3206 = vrot.slane %v3184, 4
  %v3207 = vrot.slane %v3186, 4
  %v3208 = vrot.slane %v3188, 4
  %v3209 = vrot.slane %v3190, 4
  %v3210 = vrot.slane %v3192, 4
  %v3211 = vrot.slane %v3194, 4
  %v3212 = vrot.slane %v3196, 4
  %v3213 = vrot.slane %v3198, 4
  %v3214 = vrot.slane %v3200, 4
  %v3215 = vrot.slane %v3202, 4
  %v3216 = vrot.slane %v3204, 4
  %v3217 = vsel %vm2368, %v3205, %v3206
  %v3218 = vsel %vm1190, %v3182, %v3217
  %v3219 = vsel %vm2368, %v3206, %v3207
  %v3220 = vsel %vm1190, %v3184, %v3219
  %v3221 = vsel %vm2368, %v3208, %v3209
  %v3222 = vsel %vm1190, %v3188, %v3221
  %v3223 = vsel %vm2368, %v3209, %v3210
  %v3224 = vsel %vm1190, %v3190, %v3223
  %v3225 = vsel %vm2368, %v3211, %v3212
  %v3226 = vsel %vm1190, %v3194, %v3225
  %v3227 = vsel %vm2368, %v3212, %v3213
  %v3228 = vsel %vm1190, %v3196, %v3227
  %v3229 = vsel %vm2368, %v3214, %v3215
  %v3230 = vsel %vm1190, %v3200, %v3229
  %v3231 = vsel %vm2368, %v3215, %v3216
  %v3232 = vsel %vm1190, %v3202, %v3231
  %3241 = vst [vmem:[#allocation3 + $0x140] sm:$0xff] %v3218
  %3242 = vst [vmem:[#allocation3 + $0x148] sm:$0xff] %v3220
  %3243 = vst [vmem:[#allocation3 + $0x150] sm:$0xff] %v3222
  %3244 = vst [vmem:[#allocation3 + $0x158] sm:$0xff] %v3224
  %3245 = vst [vmem:[#allocation3 + $0x160] sm:$0xff] %v3226
  %3246 = vst [vmem:[#allocation3 + $0x168] sm:$0xff] %v3228
  %3247 = vst [vmem:[#allocation3 + $0x170] sm:$0xff] %v3230
  %3248 = vst [vmem:[#allocation3 + $0x178] sm:$0xff] %v3232
  %v3249 = vld [vmem:[#allocation2 + $0x8] sm:$0xff]
  %v3250 = vld [vmem:[#allocation2 + $0x10] sm:$0xff]
  %v3251 = vld [vmem:[#allocation2 + $0x18] sm:$0xff]
  %v3252 = vld [vmem:[#allocation2 + $0x20] sm:$0xff]
  %v3253 = vld [vmem:[#allocation2 + $0x28] sm:$0xff]
  %v3254 = vld [vmem:[#allocation2 + $0x38] sm:$0xff]
  %v3255 = vld [vmem:[#allocation2 + $0x40] sm:$0xff]
  %v3256 = vld [vmem:[#allocation2 + $0x48] sm:$0xff]
  %v3257 = vld [vmem:[#allocation2 + $0x50] sm:$0xff]
  %v3258 = vld [vmem:[#allocation2 + $0x58] sm:$0xff]
  %v3259 = vld [vmem:[#allocation2 + $0x68] sm:$0xff]
  %v3260 = vld [vmem:[#allocation2 + $0x70] sm:$0xff]
  %v3261 = vld [vmem:[#allocation2 + $0x78] sm:$0xff]
  %v3262 = vld [vmem:[#allocation2 + $0x80] sm:$0xff]
  %v3263 = vld [vmem:[#allocation2 + $0x88] sm:$0xff]
  %v3264 = vld [vmem:[#allocation2 + $0x98] sm:$0xff]
  %v3265 = vld [vmem:[#allocation2 + $0xa0] sm:$0xff]
  %v3266 = vld [vmem:[#allocation2 + $0xa8] sm:$0xff]
  %v3267 = vld [vmem:[#allocation2 + $0xb0] sm:$0xff]
  %v3268 = vld [vmem:[#allocation2 + $0xb8] sm:$0xff]
  %v3269 = vld [vmem:[%s1335] sm:$0xf]
  %v3271 = vlaneseq
  %v3272 = vshrl.u32 %v3271, 7
  %v3273 = vsub.s32 0, %v3272
  %v3274 = vrot.slane %v3269, %v3273
  %v3275 = vlaneseq
  %v3276 = vshrl.u32 %v3275, 7
  %v3277 = vsub.s32 1, %v3276
  %v3278 = vrot.slane %v3269, %v3277
  %v3279 = vlaneseq
  %v3280 = vshrl.u32 %v3279, 7
  %v3281 = vsub.s32 2, %v3280
  %v3282 = vrot.slane %v3269, %v3281
  %v3283 = vlaneseq
  %v3284 = vshrl.u32 %v3283, 7
  %v3285 = vsub.s32 3, %v3284
  %v3286 = vrot.slane %v3269, %v3285
  %3287 = vrot.lane.b32.xlu0 %v3274, 15
  %v3288 = vpop.permute.xlu0 %3287
  %3289 = vrot.lane.b32.xlu0 %v3278, 15
  %v3290 = vpop.permute.xlu0 %3289
  %3291 = vrot.lane.b32.xlu0 %v3282, 15
  %v3292 = vpop.permute.xlu0 %3291
  %3293 = vrot.lane.b32.xlu0 %v3286, 15
  %v3294 = vpop.permute.xlu0 %3293
  %v3295 = vsel %vm1362, %v3288, %v3290
  %v3296 = vsel %vm1362, %v3290, %v3292
  %v3297 = vsel %vm1362, %v3292, %v3294
  %v3303 = vmul.f32 %v3249, %v3288
  %v3304 = vmul.f32 %v3250, %v3295
  %v3305 = vmul.f32 %v3251, %v3296
  %v3306 = vmul.f32 %v3252, %v3297
  %v3307 = vmul.f32 %v3253, %v3294
  %v3308 = vmul.f32 %v3254, %v3288
  %v3309 = vmul.f32 %v3255, %v3295
  %v3310 = vmul.f32 %v3256, %v3296
  %v3311 = vmul.f32 %v3257, %v3297
  %v3312 = vmul.f32 %v3258, %v3294
  %v3313 = vmul.f32 %v3259, %v3288
  %v3314 = vmul.f32 %v3260, %v3295
  %v3315 = vmul.f32 %v3261, %v3296
  %v3316 = vmul.f32 %v3262, %v3297
  %v3317 = vmul.f32 %v3263, %v3294
  %v3318 = vmul.f32 %v3264, %v3288
  %v3319 = vmul.f32 %v3265, %v3295
  %v3320 = vmul.f32 %v3266, %v3296
  %v3321 = vmul.f32 %v3267, %v3297
  %v3322 = vmul.f32 %v3268, %v3294
  %v3323 = vpack.c.bf16 %v3308, %v3303
  %v3324 = vpack.c.bf16 %v3309, %v3304
  %v3325 = vpack.c.bf16 %v3310, %v3305
  %v3326 = vpack.c.bf16 %v3311, %v3306
  %v3327 = vpack.c.bf16 %v3312, %v3307
  %v3328 = vpack.c.bf16 %v3318, %v3313
  %v3329 = vpack.c.bf16 %v3319, %v3314
  %v3330 = vpack.c.bf16 %v3320, %v3315
  %v3331 = vpack.c.bf16 %v3321, %v3316
  %v3332 = vpack.c.bf16 %v3322, %v3317
  %v3343 = vunpack.c.l.b16 %v3323
  %v3344 = vunpack.c.l.b16 %v3324
  %v3345 = vunpack.c.l.b16 %v3325
  %v3346 = vunpack.c.l.b16 %v3326
  %v3347 = vunpack.c.l.b16 %v3327
  %v3348 = vunpack.c.h.b16 %v3323
  %v3349 = vunpack.c.h.b16 %v3324
  %v3350 = vunpack.c.h.b16 %v3325
  %v3351 = vunpack.c.h.b16 %v3326
  %v3352 = vunpack.c.h.b16 %v3327
  %v3353 = vunpack.c.l.b16 %v3328
  %v3354 = vunpack.c.l.b16 %v3329
  %v3355 = vunpack.c.l.b16 %v3330
  %v3356 = vunpack.c.l.b16 %v3331
  %v3357 = vunpack.c.l.b16 %v3332
  %v3358 = vunpack.c.h.b16 %v3328
  %v3359 = vunpack.c.h.b16 %v3329
  %v3360 = vunpack.c.h.b16 %v3330
  %v3361 = vunpack.c.h.b16 %v3331
  %v3362 = vunpack.c.h.b16 %v3332
  %v3363 = vpack.c.b16 %v3344, %v3343
  %v3364 = vpack.c.b16 %v3346, %v3345
  %v3365 = vpack.c.b16 %v3347, %v3347
  %v3366 = vpack.c.b16 %v3349, %v3348
  %v3367 = vpack.c.b16 %v3351, %v3350
  %v3368 = vpack.c.b16 %v3352, %v3352
  %v3369 = vpack.c.b16 %v3354, %v3353
  %v3370 = vpack.c.b16 %v3356, %v3355
  %v3371 = vpack.c.b16 %v3357, %v3357
  %v3372 = vpack.c.b16 %v3359, %v3358
  %v3373 = vpack.c.b16 %v3361, %v3360
  %v3374 = vpack.c.b16 %v3362, %v3362
  %3375 = vrot.lane.b32.xlu0 %v3363, 113
  %v3376 = vpop.permute.xlu0 %3375
  %3377 = vrot.lane.b32.xlu0 %v3364, 113
  %v3378 = vpop.permute.xlu0 %3377
  %3379 = vrot.lane.b32.xlu0 %v3365, 113
  %v3380 = vpop.permute.xlu0 %3379
  %3381 = vrot.lane.b32.xlu0 %v3366, 113
  %v3382 = vpop.permute.xlu0 %3381
  %3383 = vrot.lane.b32.xlu0 %v3367, 113
  %v3384 = vpop.permute.xlu0 %3383
  %3385 = vrot.lane.b32.xlu0 %v3368, 113
  %v3386 = vpop.permute.xlu0 %3385
  %3387 = vrot.lane.b32.xlu0 %v3369, 113
  %v3388 = vpop.permute.xlu0 %3387
  %3389 = vrot.lane.b32.xlu0 %v3370, 113
  %v3390 = vpop.permute.xlu0 %3389
  %3391 = vrot.lane.b32.xlu0 %v3371, 113
  %v3392 = vpop.permute.xlu0 %3391
  %3393 = vrot.lane.b32.xlu0 %v3372, 113
  %v3394 = vpop.permute.xlu0 %3393
  %3395 = vrot.lane.b32.xlu0 %v3373, 113
  %v3396 = vpop.permute.xlu0 %3395
  %3397 = vrot.lane.b32.xlu0 %v3374, 113
  %v3398 = vpop.permute.xlu0 %3397
  %v3399 = vrot.slane %v3376, 4
  %v3400 = vrot.slane %v3378, 4
  %v3401 = vrot.slane %v3380, 4
  %v3402 = vrot.slane %v3382, 4
  %v3403 = vrot.slane %v3384, 4
  %v3404 = vrot.slane %v3386, 4
  %v3405 = vrot.slane %v3388, 4
  %v3406 = vrot.slane %v3390, 4
  %v3407 = vrot.slane %v3392, 4
  %v3408 = vrot.slane %v3394, 4
  %v3409 = vrot.slane %v3396, 4
  %v3410 = vrot.slane %v3398, 4
  %v3411 = vsel %vm2368, %v3399, %v3400
  %v3412 = vsel %vm1411, %v3376, %v3411
  %v3413 = vsel %vm2368, %v3400, %v3401
  %v3414 = vsel %vm1411, %v3378, %v3413
  %v3415 = vsel %vm2368, %v3402, %v3403
  %v3416 = vsel %vm1411, %v3382, %v3415
  %v3417 = vsel %vm2368, %v3403, %v3404
  %v3418 = vsel %vm1411, %v3384, %v3417
  %v3419 = vsel %vm2368, %v3405, %v3406
  %v3420 = vsel %vm1411, %v3388, %v3419
  %v3421 = vsel %vm2368, %v3406, %v3407
  %v3422 = vsel %vm1411, %v3390, %v3421
  %v3423 = vsel %vm2368, %v3408, %v3409
  %v3424 = vsel %vm1411, %v3394, %v3423
  %v3425 = vsel %vm2368, %v3409, %v3410
  %v3426 = vsel %vm1411, %v3396, %v3425
  %3435 = vst [vmem:[#allocation3 + $0x180] sm:$0xff] %v3412
  %3436 = vst [vmem:[#allocation3 + $0x188] sm:$0xff] %v3414
  %3437 = vst [vmem:[#allocation3 + $0x190] sm:$0xff] %v3416
  %3438 = vst [vmem:[#allocation3 + $0x198] sm:$0xff] %v3418
  %3439 = vst [vmem:[#allocation3 + $0x1a0] sm:$0xff] %v3420
  %3440 = vst [vmem:[#allocation3 + $0x1a8] sm:$0xff] %v3422
  %3441 = vst [vmem:[#allocation3 + $0x1b0] sm:$0xff] %v3424
  %3442 = vst [vmem:[#allocation3 + $0x1b8] sm:$0xff] %v3426
  %v3443 = vld [vmem:[#allocation2 + $0x8] sm:$0xff]
  %v3444 = vld [vmem:[#allocation2 + $0x10] sm:$0xff]
  %v3445 = vld [vmem:[#allocation2 + $0x18] sm:$0xff]
  %v3446 = vld [vmem:[#allocation2 + $0x20] sm:$0xff]
  %v3447 = vld [vmem:[#allocation2 + $0x28] sm:$0xff]
  %v3448 = vld [vmem:[#allocation2 + $0x38] sm:$0xff]
  %v3449 = vld [vmem:[#allocation2 + $0x40] sm:$0xff]
  %v3450 = vld [vmem:[#allocation2 + $0x48] sm:$0xff]
  %v3451 = vld [vmem:[#allocation2 + $0x50] sm:$0xff]
  %v3452 = vld [vmem:[#allocation2 + $0x58] sm:$0xff]
  %v3453 = vld [vmem:[#allocation2 + $0x68] sm:$0xff]
  %v3454 = vld [vmem:[#allocation2 + $0x70] sm:$0xff]
  %v3455 = vld [vmem:[#allocation2 + $0x78] sm:$0xff]
  %v3456 = vld [vmem:[#allocation2 + $0x80] sm:$0xff]
  %v3457 = vld [vmem:[#allocation2 + $0x88] sm:$0xff]
  %v3458 = vld [vmem:[#allocation2 + $0x98] sm:$0xff]
  %v3459 = vld [vmem:[#allocation2 + $0xa0] sm:$0xff]
  %v3460 = vld [vmem:[#allocation2 + $0xa8] sm:$0xff]
  %v3461 = vld [vmem:[#allocation2 + $0xb0] sm:$0xff]
  %v3462 = vld [vmem:[#allocation2 + $0xb8] sm:$0xff]
  %v3463 = vld [vmem:[%s1556] sm:$0xf]
  %v3465 = vlaneseq
  %v3466 = vshrl.u32 %v3465, 7
  %v3467 = vsub.s32 0, %v3466
  %v3468 = vrot.slane %v3463, %v3467
  %v3469 = vlaneseq
  %v3470 = vshrl.u32 %v3469, 7
  %v3471 = vsub.s32 1, %v3470
  %v3472 = vrot.slane %v3463, %v3471
  %v3473 = vlaneseq
  %v3474 = vshrl.u32 %v3473, 7
  %v3475 = vsub.s32 2, %v3474
  %v3476 = vrot.slane %v3463, %v3475
  %v3477 = vlaneseq
  %v3478 = vshrl.u32 %v3477, 7
  %v3479 = vsub.s32 3, %v3478
  %v3480 = vrot.slane %v3463, %v3479
  %3481 = vrot.lane.b32.xlu0 %v3468, 16
  %v3482 = vpop.permute.xlu0 %3481
  %3483 = vrot.lane.b32.xlu0 %v3472, 16
  %v3484 = vpop.permute.xlu0 %3483
  %3485 = vrot.lane.b32.xlu0 %v3476, 16
  %v3486 = vpop.permute.xlu0 %3485
  %3487 = vrot.lane.b32.xlu0 %v3480, 16
  %v3488 = vpop.permute.xlu0 %3487
  %v3489 = vsel %vm1583, %v3482, %v3484
  %v3490 = vsel %vm1583, %v3484, %v3486
  %v3491 = vsel %vm1583, %v3486, %v3488
  %v3497 = vmul.f32 %v3443, %v3482
  %v3498 = vmul.f32 %v3444, %v3489
  %v3499 = vmul.f32 %v3445, %v3490
  %v3500 = vmul.f32 %v3446, %v3491
  %v3501 = vmul.f32 %v3447, %v3488
  %v3502 = vmul.f32 %v3448, %v3482
  %v3503 = vmul.f32 %v3449, %v3489
  %v3504 = vmul.f32 %v3450, %v3490
  %v3505 = vmul.f32 %v3451, %v3491
  %v3506 = vmul.f32 %v3452, %v3488
  %v3507 = vmul.f32 %v3453, %v3482
  %v3508 = vmul.f32 %v3454, %v3489
  %v3509 = vmul.f32 %v3455, %v3490
  %v3510 = vmul.f32 %v3456, %v3491
  %v3511 = vmul.f32 %v3457, %v3488
  %v3512 = vmul.f32 %v3458, %v3482
  %v3513 = vmul.f32 %v3459, %v3489
  %v3514 = vmul.f32 %v3460, %v3490
  %v3515 = vmul.f32 %v3461, %v3491
  %v3516 = vmul.f32 %v3462, %v3488
  %v3517 = vpack.c.bf16 %v3502, %v3497
  %v3518 = vpack.c.bf16 %v3503, %v3498
  %v3519 = vpack.c.bf16 %v3504, %v3499
  %v3520 = vpack.c.bf16 %v3505, %v3500
  %v3521 = vpack.c.bf16 %v3506, %v3501
  %v3522 = vpack.c.bf16 %v3512, %v3507
  %v3523 = vpack.c.bf16 %v3513, %v3508
  %v3524 = vpack.c.bf16 %v3514, %v3509
  %v3525 = vpack.c.bf16 %v3515, %v3510
  %v3526 = vpack.c.bf16 %v3516, %v3511
  %v3537 = vunpack.c.l.b16 %v3517
  %v3538 = vunpack.c.l.b16 %v3518
  %v3539 = vunpack.c.l.b16 %v3519
  %v3540 = vunpack.c.l.b16 %v3520
  %v3541 = vunpack.c.l.b16 %v3521
  %v3542 = vunpack.c.h.b16 %v3517
  %v3543 = vunpack.c.h.b16 %v3518
  %v3544 = vunpack.c.h.b16 %v3519
  %v3545 = vunpack.c.h.b16 %v3520
  %v3546 = vunpack.c.h.b16 %v3521
  %v3547 = vunpack.c.l.b16 %v3522
  %v3548 = vunpack.c.l.b16 %v3523
  %v3549 = vunpack.c.l.b16 %v3524
  %v3550 = vunpack.c.l.b16 %v3525
  %v3551 = vunpack.c.l.b16 %v3526
  %v3552 = vunpack.c.h.b16 %v3522
  %v3553 = vunpack.c.h.b16 %v3523
  %v3554 = vunpack.c.h.b16 %v3524
  %v3555 = vunpack.c.h.b16 %v3525
  %v3556 = vunpack.c.h.b16 %v3526
  %v3557 = vpack.c.b16 %v3538, %v3537
  %v3558 = vpack.c.b16 %v3540, %v3539
  %v3559 = vpack.c.b16 %v3541, %v3541
  %v3560 = vpack.c.b16 %v3543, %v3542
  %v3561 = vpack.c.b16 %v3545, %v3544
  %v3562 = vpack.c.b16 %v3546, %v3546
  %v3563 = vpack.c.b16 %v3548, %v3547
  %v3564 = vpack.c.b16 %v3550, %v3549
  %v3565 = vpack.c.b16 %v3551, %v3551
  %v3566 = vpack.c.b16 %v3553, %v3552
  %v3567 = vpack.c.b16 %v3555, %v3554
  %v3568 = vpack.c.b16 %v3556, %v3556
  %3569 = vrot.lane.b32.xlu0 %v3557, 112
  %v3570 = vpop.permute.xlu0 %3569
  %3571 = vrot.lane.b32.xlu0 %v3558, 112
  %v3572 = vpop.permute.xlu0 %3571
  %3573 = vrot.lane.b32.xlu0 %v3559, 112
  %v3574 = vpop.permute.xlu0 %3573
  %3575 = vrot.lane.b32.xlu0 %v3560, 112
  %v3576 = vpop.permute.xlu0 %3575
  %3577 = vrot.lane.b32.xlu0 %v3561, 112
  %v3578 = vpop.permute.xlu0 %3577
  %3579 = vrot.lane.b32.xlu0 %v3562, 112
  %v3580 = vpop.permute.xlu0 %3579
  %3581 = vrot.lane.b32.xlu0 %v3563, 112
  %v3582 = vpop.permute.xlu0 %3581
  %3583 = vrot.lane.b32.xlu0 %v3564, 112
  %v3584 = vpop.permute.xlu0 %3583
  %3585 = vrot.lane.b32.xlu0 %v3565, 112
  %v3586 = vpop.permute.xlu0 %3585
  %3587 = vrot.lane.b32.xlu0 %v3566, 112
  %v3588 = vpop.permute.xlu0 %3587
  %3589 = vrot.lane.b32.xlu0 %v3567, 112
  %v3590 = vpop.permute.xlu0 %3589
  %3591 = vrot.lane.b32.xlu0 %v3568, 112
  %v3592 = vpop.permute.xlu0 %3591
  %v3593 = vrot.slane %v3570, 4
  %v3594 = vrot.slane %v3572, 4
  %v3595 = vrot.slane %v3574, 4
  %v3596 = vrot.slane %v3576, 4
  %v3597 = vrot.slane %v3578, 4
  %v3598 = vrot.slane %v3580, 4
  %v3599 = vrot.slane %v3582, 4
  %v3600 = vrot.slane %v3584, 4
  %v3601 = vrot.slane %v3586, 4
  %v3602 = vrot.slane %v3588, 4
  %v3603 = vrot.slane %v3590, 4
  %v3604 = vrot.slane %v3592, 4
  %v3605 = vsel %vm2368, %v3593, %v3594
  %v3606 = vsel %vm1632, %v3570, %v3605
  %v3607 = vsel %vm2368, %v3594, %v3595
  %v3608 = vsel %vm1632, %v3572, %v3607
  %v3609 = vsel %vm2368, %v3596, %v3597
  %v3610 = vsel %vm1632, %v3576, %v3609
  %v3611 = vsel %vm2368, %v3597, %v3598
  %v3612 = vsel %vm1632, %v3578, %v3611
  %v3613 = vsel %vm2368, %v3599, %v3600
  %v3614 = vsel %vm1632, %v3582, %v3613
  %v3615 = vsel %vm2368, %v3600, %v3601
  %v3616 = vsel %vm1632, %v3584, %v3615
  %v3617 = vsel %vm2368, %v3602, %v3603
  %v3618 = vsel %vm1632, %v3588, %v3617
  %v3619 = vsel %vm2368, %v3603, %v3604
  %v3620 = vsel %vm1632, %v3590, %v3619
  %3629 = vst [vmem:[#allocation3 + $0x1c0] sm:$0xff] %v3606
  %3630 = vst [vmem:[#allocation3 + $0x1c8] sm:$0xff] %v3608
  %3631 = vst [vmem:[#allocation3 + $0x1d0] sm:$0xff] %v3610
  %3632 = vst [vmem:[#allocation3 + $0x1d8] sm:$0xff] %v3612
  %3633 = vst [vmem:[#allocation3 + $0x1e0] sm:$0xff] %v3614
  %3634 = vst [vmem:[#allocation3 + $0x1e8] sm:$0xff] %v3616
  %3635 = vst [vmem:[#allocation3 + $0x1f0] sm:$0xff] %v3618
  %3636 = vst [vmem:[#allocation3 + $0x1f8] sm:$0xff] %v3620
  %v3637 = vld [vmem:[#allocation2 + $0x8] sm:$0xff]
  %v3638 = vld [vmem:[#allocation2 + $0x10] sm:$0xff]
  %v3639 = vld [vmem:[#allocation2 + $0x18] sm:$0xff]
  %v3640 = vld [vmem:[#allocation2 + $0x20] sm:$0xff]
  %v3641 = vld [vmem:[#allocation2 + $0x28] sm:$0xff]
  %v3642 = vld [vmem:[#allocation2 + $0x38] sm:$0xff]
  %v3643 = vld [vmem:[#allocation2 + $0x40] sm:$0xff]
  %v3644 = vld [vmem:[#allocation2 + $0x48] sm:$0xff]
  %v3645 = vld [vmem:[#allocation2 + $0x50] sm:$0xff]
  %v3646 = vld [vmem:[#allocation2 + $0x58] sm:$0xff]
  %v3647 = vld [vmem:[#allocation2 + $0x68] sm:$0xff]
  %v3648 = vld [vmem:[#allocation2 + $0x70] sm:$0xff]
  %v3649 = vld [vmem:[#allocation2 + $0x78] sm:$0xff]
  %v3650 = vld [vmem:[#allocation2 + $0x80] sm:$0xff]
  %v3651 = vld [vmem:[#allocation2 + $0x88] sm:$0xff]
  %v3652 = vld [vmem:[#allocation2 + $0x98] sm:$0xff]
  %v3653 = vld [vmem:[#allocation2 + $0xa0] sm:$0xff]
  %v3654 = vld [vmem:[#allocation2 + $0xa8] sm:$0xff]
  %v3655 = vld [vmem:[#allocation2 + $0xb0] sm:$0xff]
  %v3656 = vld [vmem:[#allocation2 + $0xb8] sm:$0xff]
  %v3657 = vld [vmem:[%s1777] sm:$0xf]
  %v3659 = vlaneseq
  %v3660 = vshrl.u32 %v3659, 7
  %v3661 = vsub.s32 0, %v3660
  %v3662 = vrot.slane %v3657, %v3661
  %v3663 = vlaneseq
  %v3664 = vshrl.u32 %v3663, 7
  %v3665 = vsub.s32 1, %v3664
  %v3666 = vrot.slane %v3657, %v3665
  %v3667 = vlaneseq
  %v3668 = vshrl.u32 %v3667, 7
  %v3669 = vsub.s32 2, %v3668
  %v3670 = vrot.slane %v3657, %v3669
  %v3671 = vlaneseq
  %v3672 = vshrl.u32 %v3671, 7
  %v3673 = vsub.s32 3, %v3672
  %v3674 = vrot.slane %v3657, %v3673
  %3675 = vrot.lane.b32.xlu0 %v3662, 17
  %v3676 = vpop.permute.xlu0 %3675
  %3677 = vrot.lane.b32.xlu0 %v3666, 17
  %v3678 = vpop.permute.xlu0 %3677
  %3679 = vrot.lane.b32.xlu0 %v3670, 17
  %v3680 = vpop.permute.xlu0 %3679
  %3681 = vrot.lane.b32.xlu0 %v3674, 17
  %v3682 = vpop.permute.xlu0 %3681
  %v3683 = vsel %vm1804, %v3676, %v3678
  %v3684 = vsel %vm1804, %v3678, %v3680
  %v3685 = vsel %vm1804, %v3680, %v3682
  %v3691 = vmul.f32 %v3637, %v3676
  %v3692 = vmul.f32 %v3638, %v3683
  %v3693 = vmul.f32 %v3639, %v3684
  %v3694 = vmul.f32 %v3640, %v3685
  %v3695 = vmul.f32 %v3641, %v3682
  %v3696 = vmul.f32 %v3642, %v3676
  %v3697 = vmul.f32 %v3643, %v3683
  %v3698 = vmul.f32 %v3644, %v3684
  %v3699 = vmul.f32 %v3645, %v3685
  %v3700 = vmul.f32 %v3646, %v3682
  %v3701 = vmul.f32 %v3647, %v3676
  %v3702 = vmul.f32 %v3648, %v3683
  %v3703 = vmul.f32 %v3649, %v3684
  %v3704 = vmul.f32 %v3650, %v3685
  %v3705 = vmul.f32 %v3651, %v3682
  %v3706 = vmul.f32 %v3652, %v3676
  %v3707 = vmul.f32 %v3653, %v3683
  %v3708 = vmul.f32 %v3654, %v3684
  %v3709 = vmul.f32 %v3655, %v3685
  %v3710 = vmul.f32 %v3656, %v3682
  %v3711 = vpack.c.bf16 %v3696, %v3691
  %v3712 = vpack.c.bf16 %v3697, %v3692
  %v3713 = vpack.c.bf16 %v3698, %v3693
  %v3714 = vpack.c.bf16 %v3699, %v3694
  %v3715 = vpack.c.bf16 %v3700, %v3695
  %v3716 = vpack.c.bf16 %v3706, %v3701
  %v3717 = vpack.c.bf16 %v3707, %v3702
  %v3718 = vpack.c.bf16 %v3708, %v3703
  %v3719 = vpack.c.bf16 %v3709, %v3704
  %v3720 = vpack.c.bf16 %v3710, %v3705
  %v3731 = vunpack.c.l.b16 %v3711
  %v3732 = vunpack.c.l.b16 %v3712
  %v3733 = vunpack.c.l.b16 %v3713
  %v3734 = vunpack.c.l.b16 %v3714
  %v3735 = vunpack.c.l.b16 %v3715
  %v3736 = vunpack.c.h.b16 %v3711
  %v3737 = vunpack.c.h.b16 %v3712
  %v3738 = vunpack.c.h.b16 %v3713
  %v3739 = vunpack.c.h.b16 %v3714
  %v3740 = vunpack.c.h.b16 %v3715
  %v3741 = vunpack.c.l.b16 %v3716
  %v3742 = vunpack.c.l.b16 %v3717
  %v3743 = vunpack.c.l.b16 %v3718
  %v3744 = vunpack.c.l.b16 %v3719
  %v3745 = vunpack.c.l.b16 %v3720
  %v3746 = vunpack.c.h.b16 %v3716
  %v3747 = vunpack.c.h.b16 %v3717
  %v3748 = vunpack.c.h.b16 %v3718
  %v3749 = vunpack.c.h.b16 %v3719
  %v3750 = vunpack.c.h.b16 %v3720
  %v3751 = vpack.c.b16 %v3732, %v3731
  %v3752 = vpack.c.b16 %v3734, %v3733
  %v3753 = vpack.c.b16 %v3735, %v3735
  %v3754 = vpack.c.b16 %v3737, %v3736
  %v3755 = vpack.c.b16 %v3739, %v3738
  %v3756 = vpack.c.b16 %v3740, %v3740
  %v3757 = vpack.c.b16 %v3742, %v3741
  %v3758 = vpack.c.b16 %v3744, %v3743
  %v3759 = vpack.c.b16 %v3745, %v3745
  %v3760 = vpack.c.b16 %v3747, %v3746
  %v3761 = vpack.c.b16 %v3749, %v3748
  %v3762 = vpack.c.b16 %v3750, %v3750
  %3763 = vrot.lane.b32.xlu0 %v3751, 111
  %v3764 = vpop.permute.xlu0 %3763
  %3765 = vrot.lane.b32.xlu0 %v3752, 111
  %v3766 = vpop.permute.xlu0 %3765
  %3767 = vrot.lane.b32.xlu0 %v3753, 111
  %v3768 = vpop.permute.xlu0 %3767
  %3769 = vrot.lane.b32.xlu0 %v3754, 111
  %v3770 = vpop.permute.xlu0 %3769
  %3771 = vrot.lane.b32.xlu0 %v3755, 111
  %v3772 = vpop.permute.xlu0 %3771
  %3773 = vrot.lane.b32.xlu0 %v3756, 111
  %v3774 = vpop.permute.xlu0 %3773
  %3775 = vrot.lane.b32.xlu0 %v3757, 111
  %v3776 = vpop.permute.xlu0 %3775
  %3777 = vrot.lane.b32.xlu0 %v3758, 111
  %v3778 = vpop.permute.xlu0 %3777
  %3779 = vrot.lane.b32.xlu0 %v3759, 111
  %v3780 = vpop.permute.xlu0 %3779
  %3781 = vrot.lane.b32.xlu0 %v3760, 111
  %v3782 = vpop.permute.xlu0 %3781
  %3783 = vrot.lane.b32.xlu0 %v3761, 111
  %v3784 = vpop.permute.xlu0 %3783
  %3785 = vrot.lane.b32.xlu0 %v3762, 111
  %v3786 = vpop.permute.xlu0 %3785
  %v3787 = vrot.slane %v3764, 4
  %v3788 = vrot.slane %v3766, 4
  %v3789 = vrot.slane %v3768, 4
  %v3790 = vrot.slane %v3770, 4
  %v3791 = vrot.slane %v3772, 4
  %v3792 = vrot.slane %v3774, 4
  %v3793 = vrot.slane %v3776, 4
  %v3794 = vrot.slane %v3778, 4
  %v3795 = vrot.slane %v3780, 4
  %v3796 = vrot.slane %v3782, 4
  %v3797 = vrot.slane %v3784, 4
  %v3798 = vrot.slane %v3786, 4
  %v3799 = vsel %vm2368, %v3787, %v3788
  %v3800 = vsel %vm1853, %v3764, %v3799
  %v3801 = vsel %vm2368, %v3788, %v3789
  %v3802 = vsel %vm1853, %v3766, %v3801
  %v3803 = vsel %vm2368, %v3790, %v3791
  %v3804 = vsel %vm1853, %v3770, %v3803
  %v3805 = vsel %vm2368, %v3791, %v3792
  %v3806 = vsel %vm1853, %v3772, %v3805
  %v3807 = vsel %vm2368, %v3793, %v3794
  %v3808 = vsel %vm1853, %v3776, %v3807
  %v3809 = vsel %vm2368, %v3794, %v3795
  %v3810 = vsel %vm1853, %v3778, %v3809
  %v3811 = vsel %vm2368, %v3796, %v3797
  %v3812 = vsel %vm1853, %v3782, %v3811
  %v3813 = vsel %vm2368, %v3797, %v3798
  %v3814 = vsel %vm1853, %v3784, %v3813
  %3823 = vst [vmem:[#allocation3 + $0x200] sm:$0xff] %v3800
  %3824 = vst [vmem:[#allocation3 + $0x208] sm:$0xff] %v3802
  %3825 = vst [vmem:[#allocation3 + $0x210] sm:$0xff] %v3804
  %3826 = vst [vmem:[#allocation3 + $0x218] sm:$0xff] %v3806
  %3827 = vst [vmem:[#allocation3 + $0x220] sm:$0xff] %v3808
  %3828 = vst [vmem:[#allocation3 + $0x228] sm:$0xff] %v3810
  %3829 = vst [vmem:[#allocation3 + $0x230] sm:$0xff] %v3812
  %3830 = vst [vmem:[#allocation3 + $0x238] sm:$0xff] %v3814
  %v3831 = vld [vmem:[%s5] sm:$0xff]
  %v3832 = vld [vmem:[%s5 + $0x8] sm:$0xf]
  %v3833 = vld [vmem:[%s5 + $0xc] sm:$0xff]
  %v3834 = vld [vmem:[%s5 + $0x14] sm:$0xf]
  %v3835 = vld [vmem:[%s5 + $0x18] sm:$0xff]
  %v3836 = vld [vmem:[%s5 + $0x20] sm:$0xf]
  %v3837 = vld [vmem:[%s5 + $0x24] sm:$0xff]
  %v3838 = vld [vmem:[%s5 + $0x2c] sm:$0xf]
  %v3839 = vld [vmem:[#allocation3] sm:$0xff]
  %v3840 = vld [vmem:[#allocation3 + $0x8] sm:$0xff]
  %v3841 = vld [vmem:[#allocation3 + $0x10] sm:$0xff]
  %v3842 = vld [vmem:[#allocation3 + $0x18] sm:$0xff]
  %v3843 = vld [vmem:[#allocation3 + $0x20] sm:$0xff]
  %v3844 = vld [vmem:[#allocation3 + $0x28] sm:$0xff]
  %v3845 = vld [vmem:[#allocation3 + $0x30] sm:$0xff]
  %v3846 = vld [vmem:[#allocation3 + $0x38] sm:$0xff]
  %v3847 = vld [vmem:[#allocation3 + $0x40] sm:$0xff]
  %v3848 = vld [vmem:[#allocation3 + $0x48] sm:$0xff]
  %v3849 = vld [vmem:[#allocation3 + $0x50] sm:$0xff]
  %v3850 = vld [vmem:[#allocation3 + $0x58] sm:$0xff]
  %v3851 = vld [vmem:[#allocation3 + $0x60] sm:$0xff]
  %v3852 = vld [vmem:[#allocation3 + $0x68] sm:$0xff]
  %v3853 = vld [vmem:[#allocation3 + $0x70] sm:$0xff]
  %v3854 = vld [vmem:[#allocation3 + $0x78] sm:$0xff]
  %v3855 = vld [vmem:[#allocation3 + $0x80] sm:$0xff]
  %v3856 = vld [vmem:[#allocation3 + $0x88] sm:$0xff]
  %v3857 = vld [vmem:[#allocation3 + $0x90] sm:$0xff]
  %v3858 = vld [vmem:[#allocation3 + $0x98] sm:$0xff]
  %v3859 = vld [vmem:[#allocation3 + $0xa0] sm:$0xff]
  %v3860 = vld [vmem:[#allocation3 + $0xa8] sm:$0xff]
  %v3861 = vld [vmem:[#allocation3 + $0xb0] sm:$0xff]
  %v3862 = vld [vmem:[#allocation3 + $0xb8] sm:$0xff]
  %v3863 = vld [vmem:[#allocation3 + $0xc0] sm:$0xff]
  %v3864 = vld [vmem:[#allocation3 + $0xc8] sm:$0xff]
  %v3865 = vld [vmem:[#allocation3 + $0xd0] sm:$0xff]
  %v3866 = vld [vmem:[#allocation3 + $0xd8] sm:$0xff]
  %v3867 = vld [vmem:[#allocation3 + $0xe0] sm:$0xff]
  %v3868 = vld [vmem:[#allocation3 + $0xe8] sm:$0xff]
  %v3869 = vld [vmem:[#allocation3 + $0xf0] sm:$0xff]
  %v3870 = vld [vmem:[#allocation3 + $0xf8] sm:$0xff]
  %v3871 = vld [vmem:[#allocation3 + $0x100] sm:$0xff]
  %v3872 = vld [vmem:[#allocation3 + $0x108] sm:$0xff]
  %v3873 = vld [vmem:[#allocation3 + $0x110] sm:$0xff]
  %v3874 = vld [vmem:[#allocation3 + $0x118] sm:$0xff]
  %v3875 = vld [vmem:[#allocation3 + $0x120] sm:$0xff]
  %v3876 = vld [vmem:[#allocation3 + $0x128] sm:$0xff]
  %v3877 = vld [vmem:[#allocation3 + $0x130] sm:$0xff]
  %v3878 = vld [vmem:[#allocation3 + $0x138] sm:$0xff]
  %v3879 = vld [vmem:[#allocation3 + $0x140] sm:$0xff]
  %v3880 = vld [vmem:[#allocation3 + $0x148] sm:$0xff]
  %v3881 = vld [vmem:[#allocation3 + $0x150] sm:$0xff]
  %v3882 = vld [vmem:[#allocation3 + $0x158] sm:$0xff]
  %v3883 = vld [vmem:[#allocation3 + $0x160] sm:$0xff]
  %v3884 = vld [vmem:[#allocation3 + $0x168] sm:$0xff]
  %v3885 = vld [vmem:[#allocation3 + $0x170] sm:$0xff]
  %v3886 = vld [vmem:[#allocation3 + $0x178] sm:$0xff]
  %v3887 = vld [vmem:[#allocation3 + $0x180] sm:$0xff]
  %v3888 = vld [vmem:[#allocation3 + $0x188] sm:$0xff]
  %v3889 = vld [vmem:[#allocation3 + $0x190] sm:$0xff]
  %v3890 = vld [vmem:[#allocation3 + $0x198] sm:$0xff]
  %v3891 = vld [vmem:[#allocation3 + $0x1a0] sm:$0xff]
  %v3892 = vld [vmem:[#allocation3 + $0x1a8] sm:$0xff]
  %v3893 = vld [vmem:[#allocation3 + $0x1b0] sm:$0xff]
  %v3894 = vld [vmem:[#allocation3 + $0x1b8] sm:$0xff]
  %v3895 = vld [vmem:[#allocation3 + $0x1c0] sm:$0xff]
  %v3896 = vld [vmem:[#allocation3 + $0x1c8] sm:$0xff]
  %v3897 = vld [vmem:[#allocation3 + $0x1d0] sm:$0xff]
  %v3898 = vld [vmem:[#allocation3 + $0x1d8] sm:$0xff]
  %v3899 = vld [vmem:[#allocation3 + $0x1e0] sm:$0xff]
  %v3900 = vld [vmem:[#allocation3 + $0x1e8] sm:$0xff]
  %v3901 = vld [vmem:[#allocation3 + $0x1f0] sm:$0xff]
  %v3902 = vld [vmem:[#allocation3 + $0x1f8] sm:$0xff]
  %v3903 = vld [vmem:[#allocation3 + $0x200] sm:$0xff]
  %v3904 = vld [vmem:[#allocation3 + $0x208] sm:$0xff]
  %v3905 = vld [vmem:[#allocation3 + $0x210] sm:$0xff]
  %v3906 = vld [vmem:[#allocation3 + $0x218] sm:$0xff]
  %v3907 = vld [vmem:[#allocation3 + $0x220] sm:$0xff]
  %v3908 = vld [vmem:[#allocation3 + $0x228] sm:$0xff]
  %v3909 = vld [vmem:[#allocation3 + $0x230] sm:$0xff]
  %v3910 = vld [vmem:[#allocation3 + $0x238] sm:$0xff]
  %v3919 = vunpack.c.l.b16 %v3831
  %v3920 = vunpack.c.h.b16 %v3831
  %v3921 = vunpack.c.l.b16 %v3832
  %v3922 = vunpack.c.l.b16 %v3833
  %v3923 = vunpack.c.h.b16 %v3833
  %v3924 = vunpack.c.l.b16 %v3834
  %v3925 = vunpack.c.l.b16 %v3835
  %v3926 = vunpack.c.h.b16 %v3835
  %v3927 = vunpack.c.l.b16 %v3836
  %v3928 = vunpack.c.l.b16 %v3837
  %v3929 = vunpack.c.h.b16 %v3837
  %v3930 = vunpack.c.l.b16 %v3838
  %v3931 = vpack.c.b16 %v3922, %v3919
  %v3932 = vpack.c.b16 %v3923, %v3920
  %v3933 = vpack.c.b16 %v3924, %v3921
  %v3934 = vpack.c.b16 %v3928, %v3925
  %v3935 = vpack.c.b16 %v3929, %v3926
  %v3936 = vpack.c.b16 %v3930, %v3927
  %v4013 = vunpack.c.l.b16 %v3839
  %v4014 = vunpack.c.h.b16 %v3839
  %v4015 = vunpack.c.l.b16 %v3840
  %v4016 = vunpack.c.h.b16 %v3840
  %v4017 = vunpack.c.l.b16 %v3841
  %v4018 = vunpack.c.h.b16 %v3841
  %v4019 = vunpack.c.l.b16 %v3842
  %v4020 = vunpack.c.h.b16 %v3842
  %v4021 = vunpack.c.l.b16 %v3843
  %v4022 = vunpack.c.h.b16 %v3843
  %v4023 = vunpack.c.l.b16 %v3844
  %v4024 = vunpack.c.h.b16 %v3844
  %v4025 = vunpack.c.l.b16 %v3845
  %v4026 = vunpack.c.h.b16 %v3845
  %v4027 = vunpack.c.l.b16 %v3846
  %v4028 = vunpack.c.h.b16 %v3846
  %v4029 = vunpack.c.l.b16 %v3847
  %v4030 = vunpack.c.h.b16 %v3847
  %v4031 = vunpack.c.l.b16 %v3848
  %v4032 = vunpack.c.h.b16 %v3848
  %v4033 = vunpack.c.l.b16 %v3849
  %v4034 = vunpack.c.h.b16 %v3849
  %v4035 = vunpack.c.l.b16 %v3850
  %v4036 = vunpack.c.h.b16 %v3850
  %v4037 = vunpack.c.l.b16 %v3851
  %v4038 = vunpack.c.h.b16 %v3851
  %v4039 = vunpack.c.l.b16 %v3852
  %v4040 = vunpack.c.h.b16 %v3852
  %v4041 = vunpack.c.l.b16 %v3853
  %v4042 = vunpack.c.h.b16 %v3853
  %v4043 = vunpack.c.l.b16 %v3854
  %v4044 = vunpack.c.h.b16 %v3854
  %v4045 = vunpack.c.l.b16 %v3855
  %v4046 = vunpack.c.h.b16 %v3855
  %v4047 = vunpack.c.l.b16 %v3856
  %v4048 = vunpack.c.h.b16 %v3856
  %v4049 = vunpack.c.l.b16 %v3857
  %v4050 = vunpack.c.h.b16 %v3857
  %v4051 = vunpack.c.l.b16 %v3858
  %v4052 = vunpack.c.h.b16 %v3858
  %v4053 = vunpack.c.l.b16 %v3859
  %v4054 = vunpack.c.h.b16 %v3859
  %v4055 = vunpack.c.l.b16 %v3860
  %v4056 = vunpack.c.h.b16 %v3860
  %v4057 = vunpack.c.l.b16 %v3861
  %v4058 = vunpack.c.h.b16 %v3861
  %v4059 = vunpack.c.l.b16 %v3862
  %v4060 = vunpack.c.h.b16 %v3862
  %v4061 = vunpack.c.l.b16 %v3863
  %v4062 = vunpack.c.h.b16 %v3863
  %v4063 = vunpack.c.l.b16 %v3864
  %v4064 = vunpack.c.h.b16 %v3864
  %v4065 = vunpack.c.l.b16 %v3865
  %v4066 = vunpack.c.h.b16 %v3865
  %v4067 = vunpack.c.l.b16 %v3866
  %v4068 = vunpack.c.h.b16 %v3866
  %v4069 = vunpack.c.l.b16 %v3867
  %v4070 = vunpack.c.h.b16 %v3867
  %v4071 = vunpack.c.l.b16 %v3868
  %v4072 = vunpack.c.h.b16 %v3868
  %v4073 = vunpack.c.l.b16 %v3869
  %v4074 = vunpack.c.h.b16 %v3869
  %v4075 = vunpack.c.l.b16 %v3870
  %v4076 = vunpack.c.h.b16 %v3870
  %v4077 = vunpack.c.l.b16 %v3871
  %v4078 = vunpack.c.h.b16 %v3871
  %v4079 = vunpack.c.l.b16 %v3872
  %v4080 = vunpack.c.h.b16 %v3872
  %v4081 = vunpack.c.l.b16 %v3873
  %v4082 = vunpack.c.h.b16 %v3873
  %v4083 = vunpack.c.l.b16 %v3874
  %v4084 = vunpack.c.h.b16 %v3874
  %v4085 = vunpack.c.l.b16 %v3875
  %v4086 = vunpack.c.h.b16 %v3875
  %v4087 = vunpack.c.l.b16 %v3876
  %v4088 = vunpack.c.h.b16 %v3876
  %v4089 = vunpack.c.l.b16 %v3877
  %v4090 = vunpack.c.h.b16 %v3877
  %v4091 = vunpack.c.l.b16 %v3878
  %v4092 = vunpack.c.h.b16 %v3878
  %v4093 = vunpack.c.l.b16 %v3879
  %v4094 = vunpack.c.h.b16 %v3879
  %v4095 = vunpack.c.l.b16 %v3880
  %v4096 = vunpack.c.h.b16 %v3880
  %v4097 = vunpack.c.l.b16 %v3881
  %v4098 = vunpack.c.h.b16 %v3881
  %v4099 = vunpack.c.l.b16 %v3882
  %v4100 = vunpack.c.h.b16 %v3882
  %v4101 = vunpack.c.l.b16 %v3883
  %v4102 = vunpack.c.h.b16 %v3883
  %v4103 = vunpack.c.l.b16 %v3884
  %v4104 = vunpack.c.h.b16 %v3884
  %v4105 = vunpack.c.l.b16 %v3885
  %v4106 = vunpack.c.h.b16 %v3885
  %v4107 = vunpack.c.l.b16 %v3886
  %v4108 = vunpack.c.h.b16 %v3886
  %v4109 = vunpack.c.l.b16 %v3887
  %v4110 = vunpack.c.h.b16 %v3887
  %v4111 = vunpack.c.l.b16 %v3888
  %v4112 = vunpack.c.h.b16 %v3888
  %v4113 = vunpack.c.l.b16 %v3889
  %v4114 = vunpack.c.h.b16 %v3889
  %v4115 = vunpack.c.l.b16 %v3890
  %v4116 = vunpack.c.h.b16 %v3890
  %v4117 = vunpack.c.l.b16 %v3891
  %v4118 = vunpack.c.h.b16 %v3891
  %v4119 = vunpack.c.l.b16 %v3892
  %v4120 = vunpack.c.h.b16 %v3892
  %v4121 = vunpack.c.l.b16 %v3893
  %v4122 = vunpack.c.h.b16 %v3893
  %v4123 = vunpack.c.l.b16 %v3894
  %v4124 = vunpack.c.h.b16 %v3894
  %v4125 = vunpack.c.l.b16 %v3895
  %v4126 = vunpack.c.h.b16 %v3895
  %v4127 = vunpack.c.l.b16 %v3896
  %v4128 = vunpack.c.h.b16 %v3896
  %v4129 = vunpack.c.l.b16 %v3897
  %v4130 = vunpack.c.h.b16 %v3897
  %v4131 = vunpack.c.l.b16 %v3898
  %v4132 = vunpack.c.h.b16 %v3898
  %v4133 = vunpack.c.l.b16 %v3899
  %v4134 = vunpack.c.h.b16 %v3899
  %v4135 = vunpack.c.l.b16 %v3900
  %v4136 = vunpack.c.h.b16 %v3900
  %v4137 = vunpack.c.l.b16 %v3901
  %v4138 = vunpack.c.h.b16 %v3901
  %v4139 = vunpack.c.l.b16 %v3902
  %v4140 = vunpack.c.h.b16 %v3902
  %v4141 = vunpack.c.l.b16 %v3903
  %v4142 = vunpack.c.h.b16 %v3903
  %v4143 = vunpack.c.l.b16 %v3904
  %v4144 = vunpack.c.h.b16 %v3904
  %v4145 = vunpack.c.l.b16 %v3905
  %v4146 = vunpack.c.h.b16 %v3905
  %v4147 = vunpack.c.l.b16 %v3906
  %v4148 = vunpack.c.h.b16 %v3906
  %v4149 = vunpack.c.l.b16 %v3907
  %v4150 = vunpack.c.h.b16 %v3907
  %v4151 = vunpack.c.l.b16 %v3908
  %v4152 = vunpack.c.h.b16 %v3908
  %v4153 = vunpack.c.l.b16 %v3909
  %v4154 = vunpack.c.h.b16 %v3909
  %v4155 = vunpack.c.l.b16 %v3910
  %v4156 = vunpack.c.h.b16 %v3910
  %v4157 = vpack.c.b16 %v4017, %v4013
  %v4158 = vpack.c.b16 %v4018, %v4014
  %v4159 = vpack.c.b16 %v4019, %v4015
  %v4160 = vpack.c.b16 %v4020, %v4016
  %v4161 = vpack.c.b16 %v4025, %v4021
  %v4162 = vpack.c.b16 %v4026, %v4022
  %v4163 = vpack.c.b16 %v4027, %v4023
  %v4164 = vpack.c.b16 %v4028, %v4024
  %v4165 = vpack.c.b16 %v4033, %v4029
  %v4166 = vpack.c.b16 %v4034, %v4030
  %v4167 = vpack.c.b16 %v4035, %v4031
  %v4168 = vpack.c.b16 %v4036, %v4032
  %v4169 = vpack.c.b16 %v4041, %v4037
  %v4170 = vpack.c.b16 %v4042, %v4038
  %v4171 = vpack.c.b16 %v4043, %v4039
  %v4172 = vpack.c.b16 %v4044, %v4040
  %v4173 = vpack.c.b16 %v4049, %v4045
  %v4174 = vpack.c.b16 %v4050, %v4046
  %v4175 = vpack.c.b16 %v4051, %v4047
  %v4176 = vpack.c.b16 %v4052, %v4048
  %v4177 = vpack.c.b16 %v4057, %v4053
  %v4178 = vpack.c.b16 %v4058, %v4054
  %v4179 = vpack.c.b16 %v4059, %v4055
  %v4180 = vpack.c.b16 %v4060, %v4056
  %v4181 = vpack.c.b16 %v4065, %v4061
  %v4182 = vpack.c.b16 %v4066, %v4062
  %v4183 = vpack.c.b16 %v4067, %v4063
  %v4184 = vpack.c.b16 %v4068, %v4064
  %v4185 = vpack.c.b16 %v4073, %v4069
  %v4186 = vpack.c.b16 %v4074, %v4070
  %v4187 = vpack.c.b16 %v4075, %v4071
  %v4188 = vpack.c.b16 %v4076, %v4072
  %v4189 = vpack.c.b16 %v4081, %v4077
  %v4190 = vpack.c.b16 %v4082, %v4078
  %v4191 = vpack.c.b16 %v4083, %v4079
  %v4192 = vpack.c.b16 %v4084, %v4080
  %v4193 = vpack.c.b16 %v4089, %v4085
  %v4194 = vpack.c.b16 %v4090, %v4086
  %v4195 = vpack.c.b16 %v4091, %v4087
  %v4196 = vpack.c.b16 %v4092, %v4088
  %v4197 = vpack.c.b16 %v4097, %v4093
  %v4198 = vpack.c.b16 %v4098, %v4094
  %v4199 = vpack.c.b16 %v4099, %v4095
  %v4200 = vpack.c.b16 %v4100, %v4096
  %v4201 = vpack.c.b16 %v4105, %v4101
  %v4202 = vpack.c.b16 %v4106, %v4102
  %v4203 = vpack.c.b16 %v4107, %v4103
  %v4204 = vpack.c.b16 %v4108, %v4104
  %v4205 = vpack.c.b16 %v4113, %v4109
  %v4206 = vpack.c.b16 %v4114, %v4110
  %v4207 = vpack.c.b16 %v4115, %v4111
  %v4208 = vpack.c.b16 %v4116, %v4112
  %v4209 = vpack.c.b16 %v4121, %v4117
  %v4210 = vpack.c.b16 %v4122, %v4118
  %v4211 = vpack.c.b16 %v4123, %v4119
  %v4212 = vpack.c.b16 %v4124, %v4120
  %v4213 = vpack.c.b16 %v4129, %v4125
  %v4214 = vpack.c.b16 %v4130, %v4126
  %v4215 = vpack.c.b16 %v4131, %v4127
  %v4216 = vpack.c.b16 %v4132, %v4128
  %v4217 = vpack.c.b16 %v4137, %v4133
  %v4218 = vpack.c.b16 %v4138, %v4134
  %v4219 = vpack.c.b16 %v4139, %v4135
  %v4220 = vpack.c.b16 %v4140, %v4136
  %v4221 = vpack.c.b16 %v4145, %v4141
  %v4222 = vpack.c.b16 %v4146, %v4142
  %v4223 = vpack.c.b16 %v4147, %v4143
  %v4224 = vpack.c.b16 %v4148, %v4144
  %v4225 = vpack.c.b16 %v4153, %v4149
  %v4226 = vpack.c.b16 %v4154, %v4150
  %v4227 = vpack.c.b16 %v4155, %v4151
  %v4228 = vpack.c.b16 %v4156, %v4152
  %vm4301 = vcmask 261120
  %v4303 = vsel %vm4301, %v3933, 0
  %v4306 = vsel %vm4301, %v3936, 0
  %4308 = vmatprep.subr.bf16.mxu0 %v4186
  %4309 = vmatpush1.bf16.msra.mxu0 %v4185
  %4310 = vmatprep.subr.bf16.mxu0 %v4182
  %4311 = vmatpush1.bf16.msra.mxu0 %v4181
  %4312 = vmatprep.subr.bf16.mxu0 %v4178
  %4313 = vmatpush1.bf16.msra.mxu0 %v4177
  %4314 = vmatprep.subr.bf16.mxu0 %v4174
  %4315 = vmatpush1.bf16.msra.mxu0 %v4173
  %4316 = vmatprep.subr.bf16.mxu0 %v4170
  %4317 = vmatpush1.bf16.msra.mxu0 %v4169
  %4318 = vmatprep.subr.bf16.mxu0 %v4166
  %4319 = vmatpush1.bf16.msra.mxu0 %v4165
  %4320 = vmatprep.subr.bf16.mxu0 %v4162
  %4321 = vmatpush1.bf16.msra.mxu0 %v4161
  %4322 = vmatprep.subr.bf16.mxu0 %v4158
  %4323 = vmatpush1.bf16.msra.mxu0 %v4157
  %4324 = vmatprep.subr.bf16.mxu0 %v4218
  %4325 = vmatpush2.bf16.msra.mxu0 %v4217
  %4326 = vmatprep.subr.bf16.mxu0 %v4214
  %4327 = vmatpush2.bf16.msra.mxu0 %v4213
  %4328 = vmatprep.subr.bf16.mxu0 %v4210
  %4329 = vmatpush2.bf16.msra.mxu0 %v4209
  %4330 = vmatprep.subr.bf16.mxu0 %v4206
  %4331 = vmatpush2.bf16.msra.mxu0 %v4205
  %4332 = vmatprep.subr.bf16.mxu0 %v4202
  %4333 = vmatpush2.bf16.msra.mxu0 %v4201
  %4334 = vmatprep.subr.bf16.mxu0 %v4198
  %4335 = vmatpush2.bf16.msra.mxu0 %v4197
  %4336 = vmatprep.subr.bf16.mxu0 %v4194
  %4337 = vmatpush2.bf16.msra.mxu0 %v4193
  %4338 = vmatprep.subr.bf16.mxu0 %v4190
  %4339 = vmatpush2.bf16.msra.mxu0 %v4189
  %4340 = vmatprep.mubr.bf16.mxu0 %v3932
  %4341 = vmatmul.mubr.bf16.gmra.mxu0 %v3931
  %v4342 = vpop.f32.mrf.mxu0
  %v4343 = vadd.f32 0.0, %v4342
  %v4344 = vpop.f32.mrf.mxu0
  %v4345 = vadd.f32 0.0, %v4344
  %v4346 = vpop.f32.mrf.mxu0
  %v4347 = vadd.f32 0.0, %v4346
  %v4348 = vpop.f32.mrf.mxu0
  %v4349 = vadd.f32 0.0, %v4348
  %4350 = vmatprep.mubr.bf16.mxu0 %v3935
  %4351 = vmatmul.mubr.bf16.gmra.mxu0 %v3934
  %v4352 = vpop.f32.mrf.mxu0
  %v4353 = vadd.f32 0.0, %v4352
  %v4354 = vpop.f32.mrf.mxu0
  %v4355 = vadd.f32 0.0, %v4354
  %v4356 = vpop.f32.mrf.mxu0
  %v4357 = vadd.f32 0.0, %v4356
  %v4358 = vpop.f32.mrf.mxu0
  %v4359 = vadd.f32 0.0, %v4358
  %4360 = vdwg.mxu0
  %4361 = vmatprep.subr.bf16.mxu0 0
  %4362 = vmatpush1.bf16.msra.mxu0 0
  %4363 = vmatprep.subr.bf16.mxu0 0
  %4364 = vmatpush1.bf16.msra.mxu0 0
  %4365 = vmatprep.subr.bf16.mxu0 0
  %4366 = vmatpush1.bf16.msra.mxu0 0
  %4367 = vmatprep.subr.bf16.mxu0 0
  %4368 = vmatpush1.bf16.msra.mxu0 0
  %4369 = vmatprep.subr.bf16.mxu0 0
  %4370 = vmatpush1.bf16.msra.mxu0 0
  %4371 = vmatprep.subr.bf16.mxu0 0
  %4372 = vmatpush1.bf16.msra.mxu0 0
  %4373 = vmatprep.subr.bf16.mxu0 %v4226
  %4374 = vmatpush1.bf16.msra.mxu0 %v4225
  %4375 = vmatprep.subr.bf16.mxu0 %v4222
  %4376 = vmatpush1.bf16.msra.mxu0 %v4221
  %4377 = vmatprep.subr.bf16.mxu0 0
  %4378 = vmatpush2.bf16.msra.mxu0 0
  %4379 = vmatprep.subr.bf16.mxu0 0
  %4380 = vmatpush2.bf16.msra.mxu0 0
  %4381 = vmatprep.subr.bf16.mxu0 0
  %4382 = vmatpush2.bf16.msra.mxu0 0
  %4383 = vmatprep.subr.bf16.mxu0 0
  %4384 = vmatpush2.bf16.msra.mxu0 0
  %4385 = vmatprep.subr.bf16.mxu0 0
  %4386 = vmatpush2.bf16.msra.mxu0 0
  %4387 = vmatprep.subr.bf16.mxu0 0
  %4388 = vmatpush2.bf16.msra.mxu0 0
  %4389 = vmatprep.subr.bf16.mxu0 0
  %4390 = vmatpush2.bf16.msra.mxu0 0
  %4391 = vmatprep.subr.bf16.mxu0 0
  %4392 = vmatpush2.bf16.msra.mxu0 0
  %4393 = vmatprep.mubr.bf16.mxu0 0
  %4394 = vmatmul.mubr.bf16.gmra.mxu0 %v4303
  %v4395 = vpop.f32.mrf.mxu0
  %v4396 = vadd.f32 %v4343, %v4395
  %v4397 = vpop.f32.mrf.mxu0
  %v4398 = vadd.f32 %v4345, %v4397
  %v4399 = vpop.f32.mrf.mxu0
  %v4400 = vadd.f32 %v4347, %v4399
  %v4401 = vpop.f32.mrf.mxu0
  %v4402 = vadd.f32 %v4349, %v4401
  %4403 = vmatprep.mubr.bf16.mxu0 0
  %4404 = vmatmul.mubr.bf16.gmra.mxu0 %v4306
  %v4405 = vpop.f32.mrf.mxu0
  %v4406 = vadd.f32 %v4353, %v4405
  %v4407 = vpop.f32.mrf.mxu0
  %v4408 = vadd.f32 %v4355, %v4407
  %v4409 = vpop.f32.mrf.mxu0
  %v4410 = vadd.f32 %v4357, %v4409
  %v4411 = vpop.f32.mrf.mxu0
  %v4412 = vadd.f32 %v4359, %v4411
  %4413 = vdwg.mxu0
  %4414 = vmatprep.subr.bf16.mxu0 %v4188
  %4415 = vmatpush1.bf16.msra.mxu0 %v4187
  %4416 = vmatprep.subr.bf16.mxu0 %v4184
  %4417 = vmatpush1.bf16.msra.mxu0 %v4183
  %4418 = vmatprep.subr.bf16.mxu0 %v4180
  %4419 = vmatpush1.bf16.msra.mxu0 %v4179
  %4420 = vmatprep.subr.bf16.mxu0 %v4176
  %4421 = vmatpush1.bf16.msra.mxu0 %v4175
  %4422 = vmatprep.subr.bf16.mxu0 %v4172
  %4423 = vmatpush1.bf16.msra.mxu0 %v4171
  %4424 = vmatprep.subr.bf16.mxu0 %v4168
  %4425 = vmatpush1.bf16.msra.mxu0 %v4167
  %4426 = vmatprep.subr.bf16.mxu0 %v4164
  %4427 = vmatpush1.bf16.msra.mxu0 %v4163
  %4428 = vmatprep.subr.bf16.mxu0 %v4160
  %4429 = vmatpush1.bf16.msra.mxu0 %v4159
  %4430 = vmatprep.subr.bf16.mxu0 %v4220
  %4431 = vmatpush2.bf16.msra.mxu0 %v4219
  %4432 = vmatprep.subr.bf16.mxu0 %v4216
  %4433 = vmatpush2.bf16.msra.mxu0 %v4215
  %4434 = vmatprep.subr.bf16.mxu0 %v4212
  %4435 = vmatpush2.bf16.msra.mxu0 %v4211
  %4436 = vmatprep.subr.bf16.mxu0 %v4208
  %4437 = vmatpush2.bf16.msra.mxu0 %v4207
  %4438 = vmatprep.subr.bf16.mxu0 %v4204
  %4439 = vmatpush2.bf16.msra.mxu0 %v4203
  %4440 = vmatprep.subr.bf16.mxu0 %v4200
  %4441 = vmatpush2.bf16.msra.mxu0 %v4199
  %4442 = vmatprep.subr.bf16.mxu0 %v4196
  %4443 = vmatpush2.bf16.msra.mxu0 %v4195
  %4444 = vmatprep.subr.bf16.mxu0 %v4192
  %4445 = vmatpush2.bf16.msra.mxu0 %v4191
  %4446 = vmatprep.mubr.bf16.mxu0 %v3932
  %4447 = vmatmul.mubr.bf16.gmra.mxu0 %v3931
  %v4448 = vpop.f32.mrf.mxu0
  %v4449 = vadd.f32 0.0, %v4448
  %v4450 = vpop.f32.mrf.mxu0
  %v4451 = vadd.f32 0.0, %v4450
  %v4452 = vpop.f32.mrf.mxu0
  %v4453 = vadd.f32 0.0, %v4452
  %v4454 = vpop.f32.mrf.mxu0
  %v4455 = vadd.f32 0.0, %v4454
  %4456 = vmatprep.mubr.bf16.mxu0 %v3935
  %4457 = vmatmul.mubr.bf16.gmra.mxu0 %v3934
  %v4458 = vpop.f32.mrf.mxu0
  %v4459 = vadd.f32 0.0, %v4458
  %v4460 = vpop.f32.mrf.mxu0
  %v4461 = vadd.f32 0.0, %v4460
  %v4462 = vpop.f32.mrf.mxu0
  %v4463 = vadd.f32 0.0, %v4462
  %v4464 = vpop.f32.mrf.mxu0
  %v4465 = vadd.f32 0.0, %v4464
  %4466 = vdwg.mxu0
  %4467 = vmatprep.subr.bf16.mxu0 0
  %4468 = vmatpush1.bf16.msra.mxu0 0
  %4469 = vmatprep.subr.bf16.mxu0 0
  %4470 = vmatpush1.bf16.msra.mxu0 0
  %4471 = vmatprep.subr.bf16.mxu0 0
  %4472 = vmatpush1.bf16.msra.mxu0 0
  %4473 = vmatprep.subr.bf16.mxu0 0
  %4474 = vmatpush1.bf16.msra.mxu0 0
  %4475 = vmatprep.subr.bf16.mxu0 0
  %4476 = vmatpush1.bf16.msra.mxu0 0
  %4477 = vmatprep.subr.bf16.mxu0 0
  %4478 = vmatpush1.bf16.msra.mxu0 0
  %4479 = vmatprep.subr.bf16.mxu0 %v4228
  %4480 = vmatpush1.bf16.msra.mxu0 %v4227
  %4481 = vmatprep.subr.bf16.mxu0 %v4224
  %4482 = vmatpush1.bf16.msra.mxu0 %v4223
  %4483 = vmatprep.subr.bf16.mxu0 0
  %4484 = vmatpush2.bf16.msra.mxu0 0
  %4485 = vmatprep.subr.bf16.mxu0 0
  %4486 = vmatpush2.bf16.msra.mxu0 0
  %4487 = vmatprep.subr.bf16.mxu0 0
  %4488 = vmatpush2.bf16.msra.mxu0 0
  %4489 = vmatprep.subr.bf16.mxu0 0
  %4490 = vmatpush2.bf16.msra.mxu0 0
  %4491 = vmatprep.subr.bf16.mxu0 0
  %4492 = vmatpush2.bf16.msra.mxu0 0
  %4493 = vmatprep.subr.bf16.mxu0 0
  %4494 = vmatpush2.bf16.msra.mxu0 0
  %4495 = vmatprep.subr.bf16.mxu0 0
  %4496 = vmatpush2.bf16.msra.mxu0 0
  %4497 = vmatprep.subr.bf16.mxu0 0
  %4498 = vmatpush2.bf16.msra.mxu0 0
  %4499 = vmatprep.mubr.bf16.mxu0 0
  %4500 = vmatmul.mubr.bf16.gmra.mxu0 %v4303
  %v4501 = vpop.f32.mrf.mxu0
  %v4502 = vadd.f32 %v4449, %v4501
  %v4503 = vpop.f32.mrf.mxu0
  %v4504 = vadd.f32 %v4451, %v4503
  %v4505 = vpop.f32.mrf.mxu0
  %v4506 = vadd.f32 %v4453, %v4505
  %v4507 = vpop.f32.mrf.mxu0
  %v4508 = vadd.f32 %v4455, %v4507
  %4509 = vmatprep.mubr.bf16.mxu0 0
  %4510 = vmatmul.mubr.bf16.gmra.mxu0 %v4306
  %v4511 = vpop.f32.mrf.mxu0
  %v4512 = vadd.f32 %v4459, %v4511
  %v4513 = vpop.f32.mrf.mxu0
  %v4514 = vadd.f32 %v4461, %v4513
  %v4515 = vpop.f32.mrf.mxu0
  %v4516 = vadd.f32 %v4463, %v4515
  %v4517 = vpop.f32.mrf.mxu0
  %v4518 = vadd.f32 %v4465, %v4517
  %4519 = vdwg.mxu0
  %v4520 = vadd.f32 %v4396, %v4398
  %v4521 = vadd.f32 %v4520, %v4502
  %v4522 = vadd.f32 %v4521, %v4504
  %4523 = vadd.xlane.f32.xlu0 %v4522
  %v4524 = vpop.xlane.xlu0 %4523
  %v4525 = vadd.f32 %v4400, %v4402
  %v4526 = vadd.f32 %v4525, %v4506
  %v4527 = vadd.f32 %v4526, %v4508
  %4528 = vadd.xlane.f32.xlu0 %v4527
  %v4529 = vpop.xlane.xlu0 %4528
  %v4530 = vadd.f32 %v4406, %v4408
  %v4531 = vadd.f32 %v4530, %v4512
  %v4532 = vadd.f32 %v4531, %v4514
  %4533 = vadd.xlane.f32.xlu0 %v4532
  %v4534 = vpop.xlane.xlu0 %4533
  %v4535 = vadd.f32 %v4410, %v4412
  %v4536 = vadd.f32 %v4535, %v4516
  %v4537 = vadd.f32 %v4536, %v4518
  %4538 = vadd.xlane.f32.xlu0 %v4537
  %v4539 = vpop.xlane.xlu0 %4538
  %v4540 = vmul.f32 %v4524, 0.001953125
  %v4541 = vmul.f32 %v4529, 0.001953125
  %v4542 = vmul.f32 %v4534, 0.001953125
  %v4543 = vmul.f32 %v4539, 0.001953125
  %v4544 = vmul.f32 %v4396, %v4396
  %v4545 = vmul.f32 %v4398, %v4398
  %v4546 = vmul.f32 %v4502, %v4502
  %v4547 = vmul.f32 %v4504, %v4504
  %v4548 = vmul.f32 %v4400, %v4400
  %v4549 = vmul.f32 %v4402, %v4402
  %v4550 = vmul.f32 %v4506, %v4506
  %v4551 = vmul.f32 %v4508, %v4508
  %v4552 = vmul.f32 %v4406, %v4406
  %v4553 = vmul.f32 %v4408, %v4408
  %v4554 = vmul.f32 %v4512, %v4512
  %v4555 = vmul.f32 %v4514, %v4514
  %v4556 = vmul.f32 %v4410, %v4410
  %v4557 = vmul.f32 %v4412, %v4412
  %v4558 = vmul.f32 %v4516, %v4516
  %v4559 = vmul.f32 %v4518, %v4518
  %v4560 = vadd.f32 %v4544, %v4545
  %v4561 = vadd.f32 %v4560, %v4546
  %v4562 = vadd.f32 %v4561, %v4547
  %4563 = vadd.xlane.f32.xlu0 %v4562
  %v4564 = vpop.xlane.xlu0 %4563
  %v4565 = vadd.f32 %v4548, %v4549
  %v4566 = vadd.f32 %v4565, %v4550
  %v4567 = vadd.f32 %v4566, %v4551
  %4568 = vadd.xlane.f32.xlu0 %v4567
  %v4569 = vpop.xlane.xlu0 %4568
  %v4570 = vadd.f32 %v4552, %v4553
  %v4571 = vadd.f32 %v4570, %v4554
  %v4572 = vadd.f32 %v4571, %v4555
  %4573 = vadd.xlane.f32.xlu0 %v4572
  %v4574 = vpop.xlane.xlu0 %4573
  %v4575 = vadd.f32 %v4556, %v4557
  %v4576 = vadd.f32 %v4575, %v4558
  %v4577 = vadd.f32 %v4576, %v4559
  %4578 = vadd.xlane.f32.xlu0 %v4577
  %v4579 = vpop.xlane.xlu0 %4578
  %v4580 = vmul.f32 %v4564, 0.001953125
  %v4581 = vmul.f32 %v4569, 0.001953125
  %v4582 = vmul.f32 %v4574, 0.001953125
  %v4583 = vmul.f32 %v4579, 0.001953125
  %v4584 = vmul.f32 %v4540, %v4540
  %v4585 = vmul.f32 %v4541, %v4541
  %v4586 = vmul.f32 %v4542, %v4542
  %v4587 = vmul.f32 %v4543, %v4543
  %v4588 = vsub.f32 %v4580, %v4584
  %v4589 = vsub.f32 %v4581, %v4585
  %v4590 = vsub.f32 %v4582, %v4586
  %v4591 = vsub.f32 %v4583, %v4587
  %v4592 = vmax.f32 %v4588, 0.0
  %v4593 = vmax.f32 %v4589, 0.0
  %v4594 = vmax.f32 %v4590, 0.0
  %v4595 = vmax.f32 %v4591, 0.0
  %v4596 = vld [vmem:[%s6] sm:$0xff]
  %v4597 = vld [vmem:[%s6 + $0x8] sm:$0xff]
  %v4598 = vld [vmem:[%s6 + $0x10] sm:$0xff]
  %v4599 = vld [vmem:[%s6 + $0x18] sm:$0xff]
  %v4600 = vadd.f32 %v4592, 1e-05
  %v4601 = vadd.f32 %v4593, 1e-05
  %v4602 = vadd.f32 %v4594, 1e-05
  %v4603 = vadd.f32 %v4595, 1e-05
  %v4604 = vrsqrt.pop %v4600
  %v4605 = vrsqrt.pop %v4601
  %v4606 = vrsqrt.pop %v4602
  %v4607 = vrsqrt.pop %v4603
  %v4608 = vmul.f32 %v4596, %v4604
  %v4609 = vmul.f32 %v4597, %v4605
  %v4610 = vmul.f32 %v4598, %v4606
  %v4611 = vmul.f32 %v4599, %v4607
  %v4612 = vld [vmem:[%s7] sm:$0xff]
  %v4613 = vld [vmem:[%s7 + $0x8] sm:$0xff]
  %v4614 = vld [vmem:[%s7 + $0x10] sm:$0xff]
  %v4615 = vld [vmem:[%s7 + $0x18] sm:$0xff]
  %v4616 = vmul.f32 %v4540, %v4608
  %v4617 = vmul.f32 %v4541, %v4609
  %v4618 = vmul.f32 %v4542, %v4610
  %v4619 = vmul.f32 %v4543, %v4611
  %v4620 = vsub.f32 %v4612, %v4616
  %v4621 = vsub.f32 %v4613, %v4617
  %v4622 = vsub.f32 %v4614, %v4618
  %v4623 = vsub.f32 %v4615, %v4619
  %4625 = vset.pattern.permute.xlu0 0
  %4626 = vperm.xlu0 %4625, %v4608
  %v4627 = vpop.permute.xlu0 %4626
  %4630 = vset.pattern.permute.xlu0 0
  %4631 = vperm.xlu0 %4630, %v4609
  %v4632 = vpop.permute.xlu0 %4631
  %4635 = vset.pattern.permute.xlu0 0
  %4636 = vperm.xlu0 %4635, %v4610
  %v4637 = vpop.permute.xlu0 %4636
  %4640 = vset.pattern.permute.xlu0 0
  %4641 = vperm.xlu0 %4640, %v4611
  %v4642 = vpop.permute.xlu0 %4641
  %v4644 = vmul.f32 %v4396, %v4627
  %v4645 = vmul.f32 %v4398, %v4627
  %v4646 = vmul.f32 %v4502, %v4627
  %v4647 = vmul.f32 %v4504, %v4627
  %v4648 = vmul.f32 %v4400, %v4632
  %v4649 = vmul.f32 %v4402, %v4632
  %v4650 = vmul.f32 %v4506, %v4632
  %v4651 = vmul.f32 %v4508, %v4632
  %v4652 = vmul.f32 %v4406, %v4637
  %v4653 = vmul.f32 %v4408, %v4637
  %v4654 = vmul.f32 %v4512, %v4637
  %v4655 = vmul.f32 %v4514, %v4637
  %v4656 = vmul.f32 %v4410, %v4642
  %v4657 = vmul.f32 %v4412, %v4642
  %v4658 = vmul.f32 %v4516, %v4642
  %v4659 = vmul.f32 %v4518, %v4642
  %4661 = vset.pattern.permute.xlu0 0
  %4662 = vperm.xlu0 %4661, %v4620
  %v4663 = vpop.permute.xlu0 %4662
  %4666 = vset.pattern.permute.xlu0 0
  %4667 = vperm.xlu0 %4666, %v4621
  %v4668 = vpop.permute.xlu0 %4667
  %4671 = vset.pattern.permute.xlu0 0
  %4672 = vperm.xlu0 %4671, %v4622
  %v4673 = vpop.permute.xlu0 %4672
  %4676 = vset.pattern.permute.xlu0 0
  %4677 = vperm.xlu0 %4676, %v4623
  %v4678 = vpop.permute.xlu0 %4677
  %v4680 = vadd.f32 %v4644, %v4663
  %v4681 = vadd.f32 %v4645, %v4663
  %v4682 = vadd.f32 %v4646, %v4663
  %v4683 = vadd.f32 %v4647, %v4663
  %v4684 = vadd.f32 %v4648, %v4668
  %v4685 = vadd.f32 %v4649, %v4668
  %v4686 = vadd.f32 %v4650, %v4668
  %v4687 = vadd.f32 %v4651, %v4668
  %v4688 = vadd.f32 %v4652, %v4673
  %v4689 = vadd.f32 %v4653, %v4673
  %v4690 = vadd.f32 %v4654, %v4673
  %v4691 = vadd.f32 %v4655, %v4673
  %v4692 = vadd.f32 %v4656, %v4678
  %v4693 = vadd.f32 %v4657, %v4678
  %v4694 = vadd.f32 %v4658, %v4678
  %v4695 = vadd.f32 %v4659, %v4678
  %v4696 = vmax.f32 %v4680, 0.0
  %v4697 = vmax.f32 %v4681, 0.0
  %v4698 = vmax.f32 %v4682, 0.0
  %v4699 = vmax.f32 %v4683, 0.0
  %v4700 = vmax.f32 %v4684, 0.0
  %v4701 = vmax.f32 %v4685, 0.0
  %v4702 = vmax.f32 %v4686, 0.0
  %v4703 = vmax.f32 %v4687, 0.0
  %v4704 = vmax.f32 %v4688, 0.0
  %v4705 = vmax.f32 %v4689, 0.0
  %v4706 = vmax.f32 %v4690, 0.0
  %v4707 = vmax.f32 %v4691, 0.0
  %v4708 = vmax.f32 %v4692, 0.0
  %v4709 = vmax.f32 %v4693, 0.0
  %v4710 = vmax.f32 %v4694, 0.0
  %v4711 = vmax.f32 %v4695, 0.0
  %4712 = vst [vmem:[#allocation2 + $0x8] sm:$0xff] %v4696
  %4713 = vst [vmem:[#allocation2 + $0x10] sm:$0xff] %v4697
  %4714 = vst [vmem:[#allocation2 + $0x18] sm:$0xff] %v4698
  %4715 = vst [vmem:[#allocation2 + $0x20] sm:$0xff] %v4699
  %4716 = vst [vmem:[#allocation2 + $0x38] sm:$0xff] %v4700
  %4717 = vst [vmem:[#allocation2 + $0x40] sm:$0xff] %v4701
  %4718 = vst [vmem:[#allocation2 + $0x48] sm:$0xff] %v4702
  %4719 = vst [vmem:[#allocation2 + $0x50] sm:$0xff] %v4703
  %4720 = vst [vmem:[#allocation2 + $0x68] sm:$0xff] %v4704
  %4721 = vst [vmem:[#allocation2 + $0x70] sm:$0xff] %v4705
  %4722 = vst [vmem:[#allocation2 + $0x78] sm:$0xff] %v4706
  %4723 = vst [vmem:[#allocation2 + $0x80] sm:$0xff] %v4707
  %4724 = vst [vmem:[#allocation2 + $0x98] sm:$0xff] %v4708
  %4725 = vst [vmem:[#allocation2 + $0xa0] sm:$0xff] %v4709
  %4726 = vst [vmem:[#allocation2 + $0xa8] sm:$0xff] %v4710
  %4727 = vst [vmem:[#allocation2 + $0xb0] sm:$0xff] %v4711
  %v4728 = vld [vmem:[#allocation2] sm:$0xff]
  %v4729 = vld [vmem:[#allocation2 + $0x8] sm:$0xff]
  %v4730 = vld [vmem:[#allocation2 + $0x10] sm:$0xff]
  %v4731 = vld [vmem:[#allocation2 + $0x18] sm:$0xff]
  %v4732 = vld [vmem:[#allocation2 + $0x20] sm:$0xff]
  %v4733 = vld [vmem:[#allocation2 + $0x30] sm:$0xff]
  %v4734 = vld [vmem:[#allocation2 + $0x38] sm:$0xff]
  %v4735 = vld [vmem:[#allocation2 + $0x40] sm:$0xff]
  %v4736 = vld [vmem:[#allocation2 + $0x48] sm:$0xff]
  %v4737 = vld [vmem:[#allocation2 + $0x50] sm:$0xff]
  %v4738 = vld [vmem:[#allocation2 + $0x60] sm:$0xff]
  %v4739 = vld [vmem:[#allocation2 + $0x68] sm:$0xff]
  %v4740 = vld [vmem:[#allocation2 + $0x70] sm:$0xff]
  %v4741 = vld [vmem:[#allocation2 + $0x78] sm:$0xff]
  %v4742 = vld [vmem:[#allocation2 + $0x80] sm:$0xff]
  %v4743 = vld [vmem:[#allocation2 + $0x90] sm:$0xff]
  %v4744 = vld [vmem:[#allocation2 + $0x98] sm:$0xff]
  %v4745 = vld [vmem:[#allocation2 + $0xa0] sm:$0xff]
  %v4746 = vld [vmem:[#allocation2 + $0xa8] sm:$0xff]
  %v4747 = vld [vmem:[#allocation2 + $0xb0] sm:$0xff]
  %v4748 = vld [vmem:[%s1] sm:$0xf]
  %v4750 = vlaneseq
  %v4751 = vshrl.u32 %v4750, 7
  %v4752 = vsub.s32 0, %v4751
  %v4753 = vrot.slane %v4748, %v4752
  %v4754 = vlaneseq
  %v4755 = vshrl.u32 %v4754, 7
  %v4756 = vsub.s32 1, %v4755
  %v4757 = vrot.slane %v4748, %v4756
  %v4758 = vlaneseq
  %v4759 = vshrl.u32 %v4758, 7
  %v4760 = vsub.s32 2, %v4759
  %v4761 = vrot.slane %v4748, %v4760
  %v4762 = vlaneseq
  %v4763 = vshrl.u32 %v4762, 7
  %v4764 = vsub.s32 3, %v4763
  %v4765 = vrot.slane %v4748, %v4764
  %4766 = vrot.lane.b32.xlu0 %v4753, 111
  %v4767 = vpop.permute.xlu0 %4766
  %4768 = vrot.lane.b32.xlu0 %v4757, 111
  %v4769 = vpop.permute.xlu0 %4768
  %4770 = vrot.lane.b32.xlu0 %v4761, 111
  %v4771 = vpop.permute.xlu0 %4770
  %4772 = vrot.lane.b32.xlu0 %v4765, 111
  %v4773 = vpop.permute.xlu0 %4772
  %v4774 = vsel %vm121, %v4767, %v4769
  %v4775 = vsel %vm121, %v4769, %v4771
  %v4776 = vsel %vm121, %v4771, %v4773
  %v4782 = vmul.f32 %v4728, %v4767
  %v4783 = vmul.f32 %v4729, %v4774
  %v4784 = vmul.f32 %v4730, %v4775
  %v4785 = vmul.f32 %v4731, %v4776
  %v4786 = vmul.f32 %v4732, %v4773
  %v4787 = vmul.f32 %v4733, %v4767
  %v4788 = vmul.f32 %v4734, %v4774
  %v4789 = vmul.f32 %v4735, %v4775
  %v4790 = vmul.f32 %v4736, %v4776
  %v4791 = vmul.f32 %v4737, %v4773
  %v4792 = vmul.f32 %v4738, %v4767
  %v4793 = vmul.f32 %v4739, %v4774
  %v4794 = vmul.f32 %v4740, %v4775
  %v4795 = vmul.f32 %v4741, %v4776
  %v4796 = vmul.f32 %v4742, %v4773
  %v4797 = vmul.f32 %v4743, %v4767
  %v4798 = vmul.f32 %v4744, %v4774
  %v4799 = vmul.f32 %v4745, %v4775
  %v4800 = vmul.f32 %v4746, %v4776
  %v4801 = vmul.f32 %v4747, %v4773
  %v4802 = vpack.c.bf16 %v4787, %v4782
  %v4803 = vpack.c.bf16 %v4788, %v4783
  %v4804 = vpack.c.bf16 %v4789, %v4784
  %v4805 = vpack.c.bf16 %v4790, %v4785
  %v4806 = vpack.c.bf16 %v4791, %v4786
  %v4807 = vpack.c.bf16 %v4797, %v4792
  %v4808 = vpack.c.bf16 %v4798, %v4793
  %v4809 = vpack.c.bf16 %v4799, %v4794
  %v4810 = vpack.c.bf16 %v4800, %v4795
  %v4811 = vpack.c.bf16 %v4801, %v4796
  %v4822 = vunpack.c.l.b16 %v4802
  %v4823 = vunpack.c.l.b16 %v4803
  %v4824 = vunpack.c.l.b16 %v4804
  %v4825 = vunpack.c.l.b16 %v4805
  %v4826 = vunpack.c.l.b16 %v4806
  %v4827 = vunpack.c.h.b16 %v4802
  %v4828 = vunpack.c.h.b16 %v4803
  %v4829 = vunpack.c.h.b16 %v4804
  %v4830 = vunpack.c.h.b16 %v4805
  %v4831 = vunpack.c.h.b16 %v4806
  %v4832 = vunpack.c.l.b16 %v4807
  %v4833 = vunpack.c.l.b16 %v4808
  %v4834 = vunpack.c.l.b16 %v4809
  %v4835 = vunpack.c.l.b16 %v4810
  %v4836 = vunpack.c.l.b16 %v4811
  %v4837 = vunpack.c.h.b16 %v4807
  %v4838 = vunpack.c.h.b16 %v4808
  %v4839 = vunpack.c.h.b16 %v4809
  %v4840 = vunpack.c.h.b16 %v4810
  %v4841 = vunpack.c.h.b16 %v4811
  %v4842 = vpack.c.b16 %v4823, %v4822
  %v4843 = vpack.c.b16 %v4825, %v4824
  %v4844 = vpack.c.b16 %v4826, %v4826
  %v4845 = vpack.c.b16 %v4828, %v4827
  %v4846 = vpack.c.b16 %v4830, %v4829
  %v4847 = vpack.c.b16 %v4831, %v4831
  %v4848 = vpack.c.b16 %v4833, %v4832
  %v4849 = vpack.c.b16 %v4835, %v4834
  %v4850 = vpack.c.b16 %v4836, %v4836
  %v4851 = vpack.c.b16 %v4838, %v4837
  %v4852 = vpack.c.b16 %v4840, %v4839
  %v4853 = vpack.c.b16 %v4841, %v4841
  %4854 = vrot.lane.b32.xlu0 %v4842, 17
  %v4855 = vpop.permute.xlu0 %4854
  %4856 = vrot.lane.b32.xlu0 %v4843, 17
  %v4857 = vpop.permute.xlu0 %4856
  %4858 = vrot.lane.b32.xlu0 %v4844, 17
  %v4859 = vpop.permute.xlu0 %4858
  %4860 = vrot.lane.b32.xlu0 %v4845, 17
  %v4861 = vpop.permute.xlu0 %4860
  %4862 = vrot.lane.b32.xlu0 %v4846, 17
  %v4863 = vpop.permute.xlu0 %4862
  %4864 = vrot.lane.b32.xlu0 %v4847, 17
  %v4865 = vpop.permute.xlu0 %4864
  %4866 = vrot.lane.b32.xlu0 %v4848, 17
  %v4867 = vpop.permute.xlu0 %4866
  %4868 = vrot.lane.b32.xlu0 %v4849, 17
  %v4869 = vpop.permute.xlu0 %4868
  %4870 = vrot.lane.b32.xlu0 %v4850, 17
  %v4871 = vpop.permute.xlu0 %4870
  %4872 = vrot.lane.b32.xlu0 %v4851, 17
  %v4873 = vpop.permute.xlu0 %4872
  %4874 = vrot.lane.b32.xlu0 %v4852, 17
  %v4875 = vpop.permute.xlu0 %4874
  %4876 = vrot.lane.b32.xlu0 %v4853, 17
  %v4877 = vpop.permute.xlu0 %4876
  %v4878 = vrot.slane %v4855, 4
  %v4879 = vrot.slane %v4857, 4
  %v4880 = vrot.slane %v4859, 4
  %v4881 = vrot.slane %v4861, 4
  %v4882 = vrot.slane %v4863, 4
  %v4883 = vrot.slane %v4865, 4
  %v4884 = vrot.slane %v4867, 4
  %v4885 = vrot.slane %v4869, 4
  %v4886 = vrot.slane %v4871, 4
  %v4887 = vrot.slane %v4873, 4
  %v4888 = vrot.slane %v4875, 4
  %v4889 = vrot.slane %v4877, 4
  %v4890 = vsel %vm2368, %v4878, %v4879
  %v4891 = vsel %vm379, %v4855, %v4890
  %v4892 = vsel %vm2368, %v4879, %v4880
  %v4893 = vsel %vm379, %v4857, %v4892
  %v4894 = vsel %vm2368, %v4881, %v4882
  %v4895 = vsel %vm379, %v4861, %v4894
  %v4896 = vsel %vm2368, %v4882, %v4883
  %v4897 = vsel %vm379, %v4863, %v4896
  %v4898 = vsel %vm2368, %v4884, %v4885
  %v4899 = vsel %vm379, %v4867, %v4898
  %v4900 = vsel %vm2368, %v4885, %v4886
  %v4901 = vsel %vm379, %v4869, %v4900
  %v4902 = vsel %vm2368, %v4887, %v4888
  %v4903 = vsel %vm379, %v4873, %v4902
  %v4904 = vsel %vm2368, %v4888, %v4889
  %v4905 = vsel %vm379, %v4875, %v4904
  %4914 = vst [vmem:[#allocation3] sm:$0xff] %v4891
  %4915 = vst [vmem:[#allocation3 + $0x8] sm:$0xff] %v4893
  %4916 = vst [vmem:[#allocation3 + $0x10] sm:$0xff] %v4895
  %4917 = vst [vmem:[#allocation3 + $0x18] sm:$0xff] %v4897
  %4918 = vst [vmem:[#allocation3 + $0x20] sm:$0xff] %v4899
  %4919 = vst [vmem:[#allocation3 + $0x28] sm:$0xff] %v4901
  %4920 = vst [vmem:[#allocation3 + $0x30] sm:$0xff] %v4903
  %4921 = vst [vmem:[#allocation3 + $0x38] sm:$0xff] %v4905
  %v4922 = vld [vmem:[#allocation2] sm:$0xff]
  %v4923 = vld [vmem:[#allocation2 + $0x8] sm:$0xff]
  %v4924 = vld [vmem:[#allocation2 + $0x10] sm:$0xff]
  %v4925 = vld [vmem:[#allocation2 + $0x18] sm:$0xff]
  %v4926 = vld [vmem:[#allocation2 + $0x20] sm:$0xff]
  %v4927 = vld [vmem:[#allocation2 + $0x30] sm:$0xff]
  %v4928 = vld [vmem:[#allocation2 + $0x38] sm:$0xff]
  %v4929 = vld [vmem:[#allocation2 + $0x40] sm:$0xff]
  %v4930 = vld [vmem:[#allocation2 + $0x48] sm:$0xff]
  %v4931 = vld [vmem:[#allocation2 + $0x50] sm:$0xff]
  %v4932 = vld [vmem:[#allocation2 + $0x60] sm:$0xff]
  %v4933 = vld [vmem:[#allocation2 + $0x68] sm:$0xff]
  %v4934 = vld [vmem:[#allocation2 + $0x70] sm:$0xff]
  %v4935 = vld [vmem:[#allocation2 + $0x78] sm:$0xff]
  %v4936 = vld [vmem:[#allocation2 + $0x80] sm:$0xff]
  %v4937 = vld [vmem:[#allocation2 + $0x90] sm:$0xff]
  %v4938 = vld [vmem:[#allocation2 + $0x98] sm:$0xff]
  %v4939 = vld [vmem:[#allocation2 + $0xa0] sm:$0xff]
  %v4940 = vld [vmem:[#allocation2 + $0xa8] sm:$0xff]
  %v4941 = vld [vmem:[#allocation2 + $0xb0] sm:$0xff]
  %v4942 = vld [vmem:[%s144] sm:$0xf]
  %v4944 = vlaneseq
  %v4945 = vshrl.u32 %v4944, 7
  %v4946 = vsub.s32 0, %v4945
  %v4947 = vrot.slane %v4942, %v4946
  %v4948 = vlaneseq
  %v4949 = vshrl.u32 %v4948, 7
  %v4950 = vsub.s32 1, %v4949
  %v4951 = vrot.slane %v4942, %v4950
  %v4952 = vlaneseq
  %v4953 = vshrl.u32 %v4952, 7
  %v4954 = vsub.s32 2, %v4953
  %v4955 = vrot.slane %v4942, %v4954
  %v4956 = vlaneseq
  %v4957 = vshrl.u32 %v4956, 7
  %v4958 = vsub.s32 3, %v4957
  %v4959 = vrot.slane %v4942, %v4958
  %4960 = vrot.lane.b32.xlu0 %v4947, 112
  %v4961 = vpop.permute.xlu0 %4960
  %4962 = vrot.lane.b32.xlu0 %v4951, 112
  %v4963 = vpop.permute.xlu0 %4962
  %4964 = vrot.lane.b32.xlu0 %v4955, 112
  %v4965 = vpop.permute.xlu0 %4964
  %4966 = vrot.lane.b32.xlu0 %v4959, 112
  %v4967 = vpop.permute.xlu0 %4966
  %v4968 = vsel %vm171, %v4961, %v4963
  %v4969 = vsel %vm171, %v4963, %v4965
  %v4970 = vsel %vm171, %v4965, %v4967
  %v4976 = vmul.f32 %v4922, %v4961
  %v4977 = vmul.f32 %v4923, %v4968
  %v4978 = vmul.f32 %v4924, %v4969
  %v4979 = vmul.f32 %v4925, %v4970
  %v4980 = vmul.f32 %v4926, %v4967
  %v4981 = vmul.f32 %v4927, %v4961
  %v4982 = vmul.f32 %v4928, %v4968
  %v4983 = vmul.f32 %v4929, %v4969
  %v4984 = vmul.f32 %v4930, %v4970
  %v4985 = vmul.f32 %v4931, %v4967
  %v4986 = vmul.f32 %v4932, %v4961
  %v4987 = vmul.f32 %v4933, %v4968
  %v4988 = vmul.f32 %v4934, %v4969
  %v4989 = vmul.f32 %v4935, %v4970
  %v4990 = vmul.f32 %v4936, %v4967
  %v4991 = vmul.f32 %v4937, %v4961
  %v4992 = vmul.f32 %v4938, %v4968
  %v4993 = vmul.f32 %v4939, %v4969
  %v4994 = vmul.f32 %v4940, %v4970
  %v4995 = vmul.f32 %v4941, %v4967
  %v4996 = vpack.c.bf16 %v4981, %v4976
  %v4997 = vpack.c.bf16 %v4982, %v4977
  %v4998 = vpack.c.bf16 %v4983, %v4978
  %v4999 = vpack.c.bf16 %v4984, %v4979
  %v5000 = vpack.c.bf16 %v4985, %v4980
  %v5001 = vpack.c.bf16 %v4991, %v4986
  %v5002 = vpack.c.bf16 %v4992, %v4987
  %v5003 = vpack.c.bf16 %v4993, %v4988
  %v5004 = vpack.c.bf16 %v4994, %v4989
  %v5005 = vpack.c.bf16 %v4995, %v4990
  %v5016 = vunpack.c.l.b16 %v4996
  %v5017 = vunpack.c.l.b16 %v4997
  %v5018 = vunpack.c.l.b16 %v4998
  %v5019 = vunpack.c.l.b16 %v4999
  %v5020 = vunpack.c.l.b16 %v5000
  %v5021 = vunpack.c.h.b16 %v4996
  %v5022 = vunpack.c.h.b16 %v4997
  %v5023 = vunpack.c.h.b16 %v4998
  %v5024 = vunpack.c.h.b16 %v4999
  %v5025 = vunpack.c.h.b16 %v5000
  %v5026 = vunpack.c.l.b16 %v5001
  %v5027 = vunpack.c.l.b16 %v5002
  %v5028 = vunpack.c.l.b16 %v5003
  %v5029 = vunpack.c.l.b16 %v5004
  %v5030 = vunpack.c.l.b16 %v5005
  %v5031 = vunpack.c.h.b16 %v5001
  %v5032 = vunpack.c.h.b16 %v5002
  %v5033 = vunpack.c.h.b16 %v5003
  %v5034 = vunpack.c.h.b16 %v5004
  %v5035 = vunpack.c.h.b16 %v5005
  %v5036 = vpack.c.b16 %v5017, %v5016
  %v5037 = vpack.c.b16 %v5019, %v5018
  %v5038 = vpack.c.b16 %v5020, %v5020
  %v5039 = vpack.c.b16 %v5022, %v5021
  %v5040 = vpack.c.b16 %v5024, %v5023
  %v5041 = vpack.c.b16 %v5025, %v5025
  %v5042 = vpack.c.b16 %v5027, %v5026
  %v5043 = vpack.c.b16 %v5029, %v5028
  %v5044 = vpack.c.b16 %v5030, %v5030
  %v5045 = vpack.c.b16 %v5032, %v5031
  %v5046 = vpack.c.b16 %v5034, %v5033
  %v5047 = vpack.c.b16 %v5035, %v5035
  %5048 = vrot.lane.b32.xlu0 %v5036, 16
  %v5049 = vpop.permute.xlu0 %5048
  %5050 = vrot.lane.b32.xlu0 %v5037, 16
  %v5051 = vpop.permute.xlu0 %5050
  %5052 = vrot.lane.b32.xlu0 %v5038, 16
  %v5053 = vpop.permute.xlu0 %5052
  %5054 = vrot.lane.b32.xlu0 %v5039, 16
  %v5055 = vpop.permute.xlu0 %5054
  %5056 = vrot.lane.b32.xlu0 %v5040, 16
  %v5057 = vpop.permute.xlu0 %5056
  %5058 = vrot.lane.b32.xlu0 %v5041, 16
  %v5059 = vpop.permute.xlu0 %5058
  %5060 = vrot.lane.b32.xlu0 %v5042, 16
  %v5061 = vpop.permute.xlu0 %5060
  %5062 = vrot.lane.b32.xlu0 %v5043, 16
  %v5063 = vpop.permute.xlu0 %5062
  %5064 = vrot.lane.b32.xlu0 %v5044, 16
  %v5065 = vpop.permute.xlu0 %5064
  %5066 = vrot.lane.b32.xlu0 %v5045, 16
  %v5067 = vpop.permute.xlu0 %5066
  %5068 = vrot.lane.b32.xlu0 %v5046, 16
  %v5069 = vpop.permute.xlu0 %5068
  %5070 = vrot.lane.b32.xlu0 %v5047, 16
  %v5071 = vpop.permute.xlu0 %5070
  %v5072 = vrot.slane %v5049, 4
  %v5073 = vrot.slane %v5051, 4
  %v5074 = vrot.slane %v5053, 4
  %v5075 = vrot.slane %v5055, 4
  %v5076 = vrot.slane %v5057, 4
  %v5077 = vrot.slane %v5059, 4
  %v5078 = vrot.slane %v5061, 4
  %v5079 = vrot.slane %v5063, 4
  %v5080 = vrot.slane %v5065, 4
  %v5081 = vrot.slane %v5067, 4
  %v5082 = vrot.slane %v5069, 4
  %v5083 = vrot.slane %v5071, 4
  %v5084 = vsel %vm2368, %v5072, %v5073
  %v5085 = vsel %vm220, %v5049, %v5084
  %v5086 = vsel %vm2368, %v5073, %v5074
  %v5087 = vsel %vm220, %v5051, %v5086
  %v5088 = vsel %vm2368, %v5075, %v5076
  %v5089 = vsel %vm220, %v5055, %v5088
  %v5090 = vsel %vm2368, %v5076, %v5077
  %v5091 = vsel %vm220, %v5057, %v5090
  %v5092 = vsel %vm2368, %v5078, %v5079
  %v5093 = vsel %vm220, %v5061, %v5092
  %v5094 = vsel %vm2368, %v5079, %v5080
  %v5095 = vsel %vm220, %v5063, %v5094
  %v5096 = vsel %vm2368, %v5081, %v5082
  %v5097 = vsel %vm220, %v5067, %v5096
  %v5098 = vsel %vm2368, %v5082, %v5083
  %v5099 = vsel %vm220, %v5069, %v5098
  %5108 = vst [vmem:[#allocation3 + $0x40] sm:$0xff] %v5085
  %5109 = vst [vmem:[#allocation3 + $0x48] sm:$0xff] %v5087
  %5110 = vst [vmem:[#allocation3 + $0x50] sm:$0xff] %v5089
  %5111 = vst [vmem:[#allocation3 + $0x58] sm:$0xff] %v5091
  %5112 = vst [vmem:[#allocation3 + $0x60] sm:$0xff] %v5093
  %5113 = vst [vmem:[#allocation3 + $0x68] sm:$0xff] %v5095
  %5114 = vst [vmem:[#allocation3 + $0x70] sm:$0xff] %v5097
  %5115 = vst [vmem:[#allocation3 + $0x78] sm:$0xff] %v5099
  %v5116 = vld [vmem:[#allocation2] sm:$0xff]
  %v5117 = vld [vmem:[#allocation2 + $0x8] sm:$0xff]
  %v5118 = vld [vmem:[#allocation2 + $0x10] sm:$0xff]
  %v5119 = vld [vmem:[#allocation2 + $0x18] sm:$0xff]
  %v5120 = vld [vmem:[#allocation2 + $0x20] sm:$0xff]
  %v5121 = vld [vmem:[#allocation2 + $0x30] sm:$0xff]
  %v5122 = vld [vmem:[#allocation2 + $0x38] sm:$0xff]
  %v5123 = vld [vmem:[#allocation2 + $0x40] sm:$0xff]
  %v5124 = vld [vmem:[#allocation2 + $0x48] sm:$0xff]
  %v5125 = vld [vmem:[#allocation2 + $0x50] sm:$0xff]
  %v5126 = vld [vmem:[#allocation2 + $0x60] sm:$0xff]
  %v5127 = vld [vmem:[#allocation2 + $0x68] sm:$0xff]
  %v5128 = vld [vmem:[#allocation2 + $0x70] sm:$0xff]
  %v5129 = vld [vmem:[#allocation2 + $0x78] sm:$0xff]
  %v5130 = vld [vmem:[#allocation2 + $0x80] sm:$0xff]
  %v5131 = vld [vmem:[#allocation2 + $0x90] sm:$0xff]
  %v5132 = vld [vmem:[#allocation2 + $0x98] sm:$0xff]
  %v5133 = vld [vmem:[#allocation2 + $0xa0] sm:$0xff]
  %v5134 = vld [vmem:[#allocation2 + $0xa8] sm:$0xff]
  %v5135 = vld [vmem:[#allocation2 + $0xb0] sm:$0xff]
  %v5136 = vld [vmem:[%s508] sm:$0xf]
  %v5138 = vlaneseq
  %v5139 = vshrl.u32 %v5138, 7
  %v5140 = vsub.s32 0, %v5139
  %v5141 = vrot.slane %v5136, %v5140
  %v5142 = vlaneseq
  %v5143 = vshrl.u32 %v5142, 7
  %v5144 = vsub.s32 1, %v5143
  %v5145 = vrot.slane %v5136, %v5144
  %v5146 = vlaneseq
  %v5147 = vshrl.u32 %v5146, 7
  %v5148 = vsub.s32 2, %v5147
  %v5149 = vrot.slane %v5136, %v5148
  %v5150 = vlaneseq
  %v5151 = vshrl.u32 %v5150, 7
  %v5152 = vsub.s32 3, %v5151
  %v5153 = vrot.slane %v5136, %v5152
  %5154 = vrot.lane.b32.xlu0 %v5141, 113
  %v5155 = vpop.permute.xlu0 %5154
  %5156 = vrot.lane.b32.xlu0 %v5145, 113
  %v5157 = vpop.permute.xlu0 %5156
  %5158 = vrot.lane.b32.xlu0 %v5149, 113
  %v5159 = vpop.permute.xlu0 %5158
  %5160 = vrot.lane.b32.xlu0 %v5153, 113
  %v5161 = vpop.permute.xlu0 %5160
  %v5162 = vsel %vm535, %v5155, %v5157
  %v5163 = vsel %vm535, %v5157, %v5159
  %v5164 = vsel %vm535, %v5159, %v5161
  %v5170 = vmul.f32 %v5116, %v5155
  %v5171 = vmul.f32 %v5117, %v5162
  %v5172 = vmul.f32 %v5118, %v5163
  %v5173 = vmul.f32 %v5119, %v5164
  %v5174 = vmul.f32 %v5120, %v5161
  %v5175 = vmul.f32 %v5121, %v5155
  %v5176 = vmul.f32 %v5122, %v5162
  %v5177 = vmul.f32 %v5123, %v5163
  %v5178 = vmul.f32 %v5124, %v5164
  %v5179 = vmul.f32 %v5125, %v5161
  %v5180 = vmul.f32 %v5126, %v5155
  %v5181 = vmul.f32 %v5127, %v5162
  %v5182 = vmul.f32 %v5128, %v5163
  %v5183 = vmul.f32 %v5129, %v5164
  %v5184 = vmul.f32 %v5130, %v5161
  %v5185 = vmul.f32 %v5131, %v5155
  %v5186 = vmul.f32 %v5132, %v5162
  %v5187 = vmul.f32 %v5133, %v5163
  %v5188 = vmul.f32 %v5134, %v5164
  %v5189 = vmul.f32 %v5135, %v5161
  %v5190 = vpack.c.bf16 %v5175, %v5170
  %v5191 = vpack.c.bf16 %v5176, %v5171
  %v5192 = vpack.c.bf16 %v5177, %v5172
  %v5193 = vpack.c.bf16 %v5178, %v5173
  %v5194 = vpack.c.bf16 %v5179, %v5174
  %v5195 = vpack.c.bf16 %v5185, %v5180
  %v5196 = vpack.c.bf16 %v5186, %v5181
  %v5197 = vpack.c.bf16 %v5187, %v5182
  %v5198 = vpack.c.bf16 %v5188, %v5183
  %v5199 = vpack.c.bf16 %v5189, %v5184
  %v5210 = vunpack.c.l.b16 %v5190
  %v5211 = vunpack.c.l.b16 %v5191
  %v5212 = vunpack.c.l.b16 %v5192
  %v5213 = vunpack.c.l.b16 %v5193
  %v5214 = vunpack.c.l.b16 %v5194
  %v5215 = vunpack.c.h.b16 %v5190
  %v5216 = vunpack.c.h.b16 %v5191
  %v5217 = vunpack.c.h.b16 %v5192
  %v5218 = vunpack.c.h.b16 %v5193
  %v5219 = vunpack.c.h.b16 %v5194
  %v5220 = vunpack.c.l.b16 %v5195
  %v5221 = vunpack.c.l.b16 %v5196
  %v5222 = vunpack.c.l.b16 %v5197
  %v5223 = vunpack.c.l.b16 %v5198
  %v5224 = vunpack.c.l.b16 %v5199
  %v5225 = vunpack.c.h.b16 %v5195
  %v5226 = vunpack.c.h.b16 %v5196
  %v5227 = vunpack.c.h.b16 %v5197
  %v5228 = vunpack.c.h.b16 %v5198
  %v5229 = vunpack.c.h.b16 %v5199
  %v5230 = vpack.c.b16 %v5211, %v5210
  %v5231 = vpack.c.b16 %v5213, %v5212
  %v5232 = vpack.c.b16 %v5214, %v5214
  %v5233 = vpack.c.b16 %v5216, %v5215
  %v5234 = vpack.c.b16 %v5218, %v5217
  %v5235 = vpack.c.b16 %v5219, %v5219
  %v5236 = vpack.c.b16 %v5221, %v5220
  %v5237 = vpack.c.b16 %v5223, %v5222
  %v5238 = vpack.c.b16 %v5224, %v5224
  %v5239 = vpack.c.b16 %v5226, %v5225
  %v5240 = vpack.c.b16 %v5228, %v5227
  %v5241 = vpack.c.b16 %v5229, %v5229
  %5242 = vrot.lane.b32.xlu0 %v5230, 15
  %v5243 = vpop.permute.xlu0 %5242
  %5244 = vrot.lane.b32.xlu0 %v5231, 15
  %v5245 = vpop.permute.xlu0 %5244
  %5246 = vrot.lane.b32.xlu0 %v5232, 15
  %v5247 = vpop.permute.xlu0 %5246
  %5248 = vrot.lane.b32.xlu0 %v5233, 15
  %v5249 = vpop.permute.xlu0 %5248
  %5250 = vrot.lane.b32.xlu0 %v5234, 15
  %v5251 = vpop.permute.xlu0 %5250
  %5252 = vrot.lane.b32.xlu0 %v5235, 15
  %v5253 = vpop.permute.xlu0 %5252
  %5254 = vrot.lane.b32.xlu0 %v5236, 15
  %v5255 = vpop.permute.xlu0 %5254
  %5256 = vrot.lane.b32.xlu0 %v5237, 15
  %v5257 = vpop.permute.xlu0 %5256
  %5258 = vrot.lane.b32.xlu0 %v5238, 15
  %v5259 = vpop.permute.xlu0 %5258
  %5260 = vrot.lane.b32.xlu0 %v5239, 15
  %v5261 = vpop.permute.xlu0 %5260
  %5262 = vrot.lane.b32.xlu0 %v5240, 15
  %v5263 = vpop.permute.xlu0 %5262
  %5264 = vrot.lane.b32.xlu0 %v5241, 15
  %v5265 = vpop.permute.xlu0 %5264
  %v5266 = vrot.slane %v5243, 4
  %v5267 = vrot.slane %v5245, 4
  %v5268 = vrot.slane %v5247, 4
  %v5269 = vrot.slane %v5249, 4
  %v5270 = vrot.slane %v5251, 4
  %v5271 = vrot.slane %v5253, 4
  %v5272 = vrot.slane %v5255, 4
  %v5273 = vrot.slane %v5257, 4
  %v5274 = vrot.slane %v5259, 4
  %v5275 = vrot.slane %v5261, 4
  %v5276 = vrot.slane %v5263, 4
  %v5277 = vrot.slane %v5265, 4
  %v5278 = vsel %vm2368, %v5266, %v5267
  %v5279 = vsel %vm584, %v5243, %v5278
  %v5280 = vsel %vm2368, %v5267, %v5268
  %v5281 = vsel %vm584, %v5245, %v5280
  %v5282 = vsel %vm2368, %v5269, %v5270
  %v5283 = vsel %vm584, %v5249, %v5282
  %v5284 = vsel %vm2368, %v5270, %v5271
  %v5285 = vsel %vm584, %v5251, %v5284
  %v5286 = vsel %vm2368, %v5272, %v5273
  %v5287 = vsel %vm584, %v5255, %v5286
  %v5288 = vsel %vm2368, %v5273, %v5274
  %v5289 = vsel %vm584, %v5257, %v5288
  %v5290 = vsel %vm2368, %v5275, %v5276
  %v5291 = vsel %vm584, %v5261, %v5290
  %v5292 = vsel %vm2368, %v5276, %v5277
  %v5293 = vsel %vm584, %v5263, %v5292
  %5302 = vst [vmem:[#allocation3 + $0x80] sm:$0xff] %v5279
  %5303 = vst [vmem:[#allocation3 + $0x88] sm:$0xff] %v5281
  %5304 = vst [vmem:[#allocation3 + $0x90] sm:$0xff] %v5283
  %5305 = vst [vmem:[#allocation3 + $0x98] sm:$0xff] %v5285
  %5306 = vst [vmem:[#allocation3 + $0xa0] sm:$0xff] %v5287
  %5307 = vst [vmem:[#allocation3 + $0xa8] sm:$0xff] %v5289
  %5308 = vst [vmem:[#allocation3 + $0xb0] sm:$0xff] %v5291
  %5309 = vst [vmem:[#allocation3 + $0xb8] sm:$0xff] %v5293
  %v5310 = vld [vmem:[#allocation2] sm:$0xff]
  %v5311 = vld [vmem:[#allocation2 + $0x8] sm:$0xff]
  %v5312 = vld [vmem:[#allocation2 + $0x10] sm:$0xff]
  %v5313 = vld [vmem:[#allocation2 + $0x18] sm:$0xff]
  %v5314 = vld [vmem:[#allocation2 + $0x20] sm:$0xff]
  %v5315 = vld [vmem:[#allocation2 + $0x30] sm:$0xff]
  %v5316 = vld [vmem:[#allocation2 + $0x38] sm:$0xff]
  %v5317 = vld [vmem:[#allocation2 + $0x40] sm:$0xff]
  %v5318 = vld [vmem:[#allocation2 + $0x48] sm:$0xff]
  %v5319 = vld [vmem:[#allocation2 + $0x50] sm:$0xff]
  %v5320 = vld [vmem:[#allocation2 + $0x60] sm:$0xff]
  %v5321 = vld [vmem:[#allocation2 + $0x68] sm:$0xff]
  %v5322 = vld [vmem:[#allocation2 + $0x70] sm:$0xff]
  %v5323 = vld [vmem:[#allocation2 + $0x78] sm:$0xff]
  %v5324 = vld [vmem:[#allocation2 + $0x80] sm:$0xff]
  %v5325 = vld [vmem:[#allocation2 + $0x90] sm:$0xff]
  %v5326 = vld [vmem:[#allocation2 + $0x98] sm:$0xff]
  %v5327 = vld [vmem:[#allocation2 + $0xa0] sm:$0xff]
  %v5328 = vld [vmem:[#allocation2 + $0xa8] sm:$0xff]
  %v5329 = vld [vmem:[#allocation2 + $0xb0] sm:$0xff]
  %v5330 = vld [vmem:[%s729] sm:$0xf]
  %v5332 = vlaneseq
  %v5333 = vshrl.u32 %v5332, 7
  %v5334 = vsub.s32 0, %v5333
  %v5335 = vrot.slane %v5330, %v5334
  %v5336 = vlaneseq
  %v5337 = vshrl.u32 %v5336, 7
  %v5338 = vsub.s32 1, %v5337
  %v5339 = vrot.slane %v5330, %v5338
  %v5340 = vlaneseq
  %v5341 = vshrl.u32 %v5340, 7
  %v5342 = vsub.s32 2, %v5341
  %v5343 = vrot.slane %v5330, %v5342
  %v5344 = vlaneseq
  %v5345 = vshrl.u32 %v5344, 7
  %v5346 = vsub.s32 3, %v5345
  %v5347 = vrot.slane %v5330, %v5346
  %5348 = vrot.lane.b32.xlu0 %v5335, 127
  %v5349 = vpop.permute.xlu0 %5348
  %5350 = vrot.lane.b32.xlu0 %v5339, 127
  %v5351 = vpop.permute.xlu0 %5350
  %5352 = vrot.lane.b32.xlu0 %v5343, 127
  %v5353 = vpop.permute.xlu0 %5352
  %5354 = vrot.lane.b32.xlu0 %v5347, 127
  %v5355 = vpop.permute.xlu0 %5354
  %v5356 = vsel %vm756, %v5349, %v5351
  %v5357 = vsel %vm756, %v5351, %v5353
  %v5358 = vsel %vm756, %v5353, %v5355
  %v5364 = vmul.f32 %v5310, %v5349
  %v5365 = vmul.f32 %v5311, %v5356
  %v5366 = vmul.f32 %v5312, %v5357
  %v5367 = vmul.f32 %v5313, %v5358
  %v5368 = vmul.f32 %v5314, %v5355
  %v5369 = vmul.f32 %v5315, %v5349
  %v5370 = vmul.f32 %v5316, %v5356
  %v5371 = vmul.f32 %v5317, %v5357
  %v5372 = vmul.f32 %v5318, %v5358
  %v5373 = vmul.f32 %v5319, %v5355
  %v5374 = vmul.f32 %v5320, %v5349
  %v5375 = vmul.f32 %v5321, %v5356
  %v5376 = vmul.f32 %v5322, %v5357
  %v5377 = vmul.f32 %v5323, %v5358
  %v5378 = vmul.f32 %v5324, %v5355
  %v5379 = vmul.f32 %v5325, %v5349
  %v5380 = vmul.f32 %v5326, %v5356
  %v5381 = vmul.f32 %v5327, %v5357
  %v5382 = vmul.f32 %v5328, %v5358
  %v5383 = vmul.f32 %v5329, %v5355
  %v5384 = vpack.c.bf16 %v5369, %v5364
  %v5385 = vpack.c.bf16 %v5370, %v5365
  %v5386 = vpack.c.bf16 %v5371, %v5366
  %v5387 = vpack.c.bf16 %v5372, %v5367
  %v5388 = vpack.c.bf16 %v5373, %v5368
  %v5389 = vpack.c.bf16 %v5379, %v5374
  %v5390 = vpack.c.bf16 %v5380, %v5375
  %v5391 = vpack.c.bf16 %v5381, %v5376
  %v5392 = vpack.c.bf16 %v5382, %v5377
  %v5393 = vpack.c.bf16 %v5383, %v5378
  %v5404 = vunpack.c.l.b16 %v5384
  %v5405 = vunpack.c.l.b16 %v5385
  %v5406 = vunpack.c.l.b16 %v5386
  %v5407 = vunpack.c.l.b16 %v5387
  %v5408 = vunpack.c.l.b16 %v5388
  %v5409 = vunpack.c.h.b16 %v5384
  %v5410 = vunpack.c.h.b16 %v5385
  %v5411 = vunpack.c.h.b16 %v5386
  %v5412 = vunpack.c.h.b16 %v5387
  %v5413 = vunpack.c.h.b16 %v5388
  %v5414 = vunpack.c.l.b16 %v5389
  %v5415 = vunpack.c.l.b16 %v5390
  %v5416 = vunpack.c.l.b16 %v5391
  %v5417 = vunpack.c.l.b16 %v5392
  %v5418 = vunpack.c.l.b16 %v5393
  %v5419 = vunpack.c.h.b16 %v5389
  %v5420 = vunpack.c.h.b16 %v5390
  %v5421 = vunpack.c.h.b16 %v5391
  %v5422 = vunpack.c.h.b16 %v5392
  %v5423 = vunpack.c.h.b16 %v5393
  %v5424 = vpack.c.b16 %v5405, %v5404
  %v5425 = vpack.c.b16 %v5407, %v5406
  %v5426 = vpack.c.b16 %v5408, %v5408
  %v5427 = vpack.c.b16 %v5410, %v5409
  %v5428 = vpack.c.b16 %v5412, %v5411
  %v5429 = vpack.c.b16 %v5413, %v5413
  %v5430 = vpack.c.b16 %v5415, %v5414
  %v5431 = vpack.c.b16 %v5417, %v5416
  %v5432 = vpack.c.b16 %v5418, %v5418
  %v5433 = vpack.c.b16 %v5420, %v5419
  %v5434 = vpack.c.b16 %v5422, %v5421
  %v5435 = vpack.c.b16 %v5423, %v5423
  %5436 = vrot.lane.b32.xlu0 %v5424, 1
  %v5437 = vpop.permute.xlu0 %5436
  %5438 = vrot.lane.b32.xlu0 %v5425, 1
  %v5439 = vpop.permute.xlu0 %5438
  %5440 = vrot.lane.b32.xlu0 %v5426, 1
  %v5441 = vpop.permute.xlu0 %5440
  %5442 = vrot.lane.b32.xlu0 %v5427, 1
  %v5443 = vpop.permute.xlu0 %5442
  %5444 = vrot.lane.b32.xlu0 %v5428, 1
  %v5445 = vpop.permute.xlu0 %5444
  %5446 = vrot.lane.b32.xlu0 %v5429, 1
  %v5447 = vpop.permute.xlu0 %5446
  %5448 = vrot.lane.b32.xlu0 %v5430, 1
  %v5449 = vpop.permute.xlu0 %5448
  %5450 = vrot.lane.b32.xlu0 %v5431, 1
  %v5451 = vpop.permute.xlu0 %5450
  %5452 = vrot.lane.b32.xlu0 %v5432, 1
  %v5453 = vpop.permute.xlu0 %5452
  %5454 = vrot.lane.b32.xlu0 %v5433, 1
  %v5455 = vpop.permute.xlu0 %5454
  %5456 = vrot.lane.b32.xlu0 %v5434, 1
  %v5457 = vpop.permute.xlu0 %5456
  %5458 = vrot.lane.b32.xlu0 %v5435, 1
  %v5459 = vpop.permute.xlu0 %5458
  %v5460 = vrot.slane %v5437, 4
  %v5461 = vrot.slane %v5439, 4
  %v5462 = vrot.slane %v5441, 4
  %v5463 = vrot.slane %v5443, 4
  %v5464 = vrot.slane %v5445, 4
  %v5465 = vrot.slane %v5447, 4
  %v5466 = vrot.slane %v5449, 4
  %v5467 = vrot.slane %v5451, 4
  %v5468 = vrot.slane %v5453, 4
  %v5469 = vrot.slane %v5455, 4
  %v5470 = vrot.slane %v5457, 4
  %v5471 = vrot.slane %v5459, 4
  %v5472 = vsel %vm2368, %v5460, %v5461
  %v5473 = vsel %vm805, %v5437, %v5472
  %v5474 = vsel %vm2368, %v5461, %v5462
  %v5475 = vsel %vm805, %v5439, %v5474
  %v5476 = vsel %vm2368, %v5463, %v5464
  %v5477 = vsel %vm805, %v5443, %v5476
  %v5478 = vsel %vm2368, %v5464, %v5465
  %v5479 = vsel %vm805, %v5445, %v5478
  %v5480 = vsel %vm2368, %v5466, %v5467
  %v5481 = vsel %vm805, %v5449, %v5480
  %v5482 = vsel %vm2368, %v5467, %v5468
  %v5483 = vsel %vm805, %v5451, %v5482
  %v5484 = vsel %vm2368, %v5469, %v5470
  %v5485 = vsel %vm805, %v5455, %v5484
  %v5486 = vsel %vm2368, %v5470, %v5471
  %v5487 = vsel %vm805, %v5457, %v5486
  %5496 = vst [vmem:[#allocation3 + $0xc0] sm:$0xff] %v5473
  %5497 = vst [vmem:[#allocation3 + $0xc8] sm:$0xff] %v5475
  %5498 = vst [vmem:[#allocation3 + $0xd0] sm:$0xff] %v5477
  %5499 = vst [vmem:[#allocation3 + $0xd8] sm:$0xff] %v5479
  %5500 = vst [vmem:[#allocation3 + $0xe0] sm:$0xff] %v5481
  %5501 = vst [vmem:[#allocation3 + $0xe8] sm:$0xff] %v5483
  %5502 = vst [vmem:[#allocation3 + $0xf0] sm:$0xff] %v5485
  %5503 = vst [vmem:[#allocation3 + $0xf8] sm:$0xff] %v5487
  %v5504 = vld [vmem:[#allocation2 + $0x8] sm:$0xff]
  %v5505 = vld [vmem:[#allocation2 + $0x10] sm:$0xff]
  %v5506 = vld [vmem:[#allocation2 + $0x18] sm:$0xff]
  %v5507 = vld [vmem:[#allocation2 + $0x20] sm:$0xff]
  %v5508 = vld [vmem:[#allocation2 + $0x38] sm:$0xff]
  %v5509 = vld [vmem:[#allocation2 + $0x40] sm:$0xff]
  %v5510 = vld [vmem:[#allocation2 + $0x48] sm:$0xff]
  %v5511 = vld [vmem:[#allocation2 + $0x50] sm:$0xff]
  %v5512 = vld [vmem:[#allocation2 + $0x68] sm:$0xff]
  %v5513 = vld [vmem:[#allocation2 + $0x70] sm:$0xff]
  %v5514 = vld [vmem:[#allocation2 + $0x78] sm:$0xff]
  %v5515 = vld [vmem:[#allocation2 + $0x80] sm:$0xff]
  %v5516 = vld [vmem:[#allocation2 + $0x98] sm:$0xff]
  %v5517 = vld [vmem:[#allocation2 + $0xa0] sm:$0xff]
  %v5518 = vld [vmem:[#allocation2 + $0xa8] sm:$0xff]
  %v5519 = vld [vmem:[#allocation2 + $0xb0] sm:$0xff]
  %v5520 = vpack.c.bf16 %v5508, %v5504
  %v5521 = vpack.c.bf16 %v5509, %v5505
  %v5522 = vpack.c.bf16 %v5510, %v5506
  %v5523 = vpack.c.bf16 %v5511, %v5507
  %v5524 = vpack.c.bf16 %v5516, %v5512
  %v5525 = vpack.c.bf16 %v5517, %v5513
  %v5526 = vpack.c.bf16 %v5518, %v5514
  %v5527 = vpack.c.bf16 %v5519, %v5515
  %v5536 = vunpack.c.l.b16 %v5520
  %v5537 = vunpack.c.l.b16 %v5521
  %v5538 = vunpack.c.l.b16 %v5522
  %v5539 = vunpack.c.l.b16 %v5523
  %v5540 = vunpack.c.h.b16 %v5520
  %v5541 = vunpack.c.h.b16 %v5521
  %v5542 = vunpack.c.h.b16 %v5522
  %v5543 = vunpack.c.h.b16 %v5523
  %v5544 = vunpack.c.l.b16 %v5524
  %v5545 = vunpack.c.l.b16 %v5525
  %v5546 = vunpack.c.l.b16 %v5526
  %v5547 = vunpack.c.l.b16 %v5527
  %v5548 = vunpack.c.h.b16 %v5524
  %v5549 = vunpack.c.h.b16 %v5525
  %v5550 = vunpack.c.h.b16 %v5526
  %v5551 = vunpack.c.h.b16 %v5527
  %v5552 = vpack.c.b16 %v5537, %v5536
  %v5553 = vpack.c.b16 %v5539, %v5538
  %v5554 = vpack.c.b16 %v5541, %v5540
  %v5555 = vpack.c.b16 %v5543, %v5542
  %v5556 = vpack.c.b16 %v5545, %v5544
  %v5557 = vpack.c.b16 %v5547, %v5546
  %v5558 = vpack.c.b16 %v5549, %v5548
  %v5559 = vpack.c.b16 %v5551, %v5550
  %5568 = vst [vmem:[#allocation3 + $0x100] sm:$0xff] %v5552
  %5569 = vst [vmem:[#allocation3 + $0x108] sm:$0xff] %v5553
  %5570 = vst [vmem:[#allocation3 + $0x110] sm:$0xff] %v5554
  %5571 = vst [vmem:[#allocation3 + $0x118] sm:$0xff] %v5555
  %5572 = vst [vmem:[#allocation3 + $0x120] sm:$0xff] %v5556
  %5573 = vst [vmem:[#allocation3 + $0x128] sm:$0xff] %v5557
  %5574 = vst [vmem:[#allocation3 + $0x130] sm:$0xff] %v5558
  %5575 = vst [vmem:[#allocation3 + $0x138] sm:$0xff] %v5559
  %v5576 = vld [vmem:[#allocation2 + $0x8] sm:$0xff]
  %v5577 = vld [vmem:[#allocation2 + $0x10] sm:$0xff]
  %v5578 = vld [vmem:[#allocation2 + $0x18] sm:$0xff]
  %v5579 = vld [vmem:[#allocation2 + $0x20] sm:$0xff]
  %v5580 = vld [vmem:[#allocation2 + $0x28] sm:$0xff]
  %v5581 = vld [vmem:[#allocation2 + $0x38] sm:$0xff]
  %v5582 = vld [vmem:[#allocation2 + $0x40] sm:$0xff]
  %v5583 = vld [vmem:[#allocation2 + $0x48] sm:$0xff]
  %v5584 = vld [vmem:[#allocation2 + $0x50] sm:$0xff]
  %v5585 = vld [vmem:[#allocation2 + $0x58] sm:$0xff]
  %v5586 = vld [vmem:[#allocation2 + $0x68] sm:$0xff]
  %v5587 = vld [vmem:[#allocation2 + $0x70] sm:$0xff]
  %v5588 = vld [vmem:[#allocation2 + $0x78] sm:$0xff]
  %v5589 = vld [vmem:[#allocation2 + $0x80] sm:$0xff]
  %v5590 = vld [vmem:[#allocation2 + $0x88] sm:$0xff]
  %v5591 = vld [vmem:[#allocation2 + $0x98] sm:$0xff]
  %v5592 = vld [vmem:[#allocation2 + $0xa0] sm:$0xff]
  %v5593 = vld [vmem:[#allocation2 + $0xa8] sm:$0xff]
  %v5594 = vld [vmem:[#allocation2 + $0xb0] sm:$0xff]
  %v5595 = vld [vmem:[#allocation2 + $0xb8] sm:$0xff]
  %v5596 = vld [vmem:[%s1114] sm:$0xf]
  %v5598 = vlaneseq
  %v5599 = vshrl.u32 %v5598, 7
  %v5600 = vsub.s32 0, %v5599
  %v5601 = vrot.slane %v5596, %v5600
  %v5602 = vlaneseq
  %v5603 = vshrl.u32 %v5602, 7
  %v5604 = vsub.s32 1, %v5603
  %v5605 = vrot.slane %v5596, %v5604
  %v5606 = vlaneseq
  %v5607 = vshrl.u32 %v5606, 7
  %v5608 = vsub.s32 2, %v5607
  %v5609 = vrot.slane %v5596, %v5608
  %v5610 = vlaneseq
  %v5611 = vshrl.u32 %v5610, 7
  %v5612 = vsub.s32 3, %v5611
  %v5613 = vrot.slane %v5596, %v5612
  %5614 = vrot.lane.b32.xlu0 %v5601, 1
  %v5615 = vpop.permute.xlu0 %5614
  %5616 = vrot.lane.b32.xlu0 %v5605, 1
  %v5617 = vpop.permute.xlu0 %5616
  %5618 = vrot.lane.b32.xlu0 %v5609, 1
  %v5619 = vpop.permute.xlu0 %5618
  %5620 = vrot.lane.b32.xlu0 %v5613, 1
  %v5621 = vpop.permute.xlu0 %5620
  %v5622 = vsel %vm1141, %v5615, %v5617
  %v5623 = vsel %vm1141, %v5617, %v5619
  %v5624 = vsel %vm1141, %v5619, %v5621
  %v5630 = vmul.f32 %v5576, %v5615
  %v5631 = vmul.f32 %v5577, %v5622
  %v5632 = vmul.f32 %v5578, %v5623
  %v5633 = vmul.f32 %v5579, %v5624
  %v5634 = vmul.f32 %v5580, %v5621
  %v5635 = vmul.f32 %v5581, %v5615
  %v5636 = vmul.f32 %v5582, %v5622
  %v5637 = vmul.f32 %v5583, %v5623
  %v5638 = vmul.f32 %v5584, %v5624
  %v5639 = vmul.f32 %v5585, %v5621
  %v5640 = vmul.f32 %v5586, %v5615
  %v5641 = vmul.f32 %v5587, %v5622
  %v5642 = vmul.f32 %v5588, %v5623
  %v5643 = vmul.f32 %v5589, %v5624
  %v5644 = vmul.f32 %v5590, %v5621
  %v5645 = vmul.f32 %v5591, %v5615
  %v5646 = vmul.f32 %v5592, %v5622
  %v5647 = vmul.f32 %v5593, %v5623
  %v5648 = vmul.f32 %v5594, %v5624
  %v5649 = vmul.f32 %v5595, %v5621
  %v5650 = vpack.c.bf16 %v5635, %v5630
  %v5651 = vpack.c.bf16 %v5636, %v5631
  %v5652 = vpack.c.bf16 %v5637, %v5632
  %v5653 = vpack.c.bf16 %v5638, %v5633
  %v5654 = vpack.c.bf16 %v5639, %v5634
  %v5655 = vpack.c.bf16 %v5645, %v5640
  %v5656 = vpack.c.bf16 %v5646, %v5641
  %v5657 = vpack.c.bf16 %v5647, %v5642
  %v5658 = vpack.c.bf16 %v5648, %v5643
  %v5659 = vpack.c.bf16 %v5649, %v5644
  %v5670 = vunpack.c.l.b16 %v5650
  %v5671 = vunpack.c.l.b16 %v5651
  %v5672 = vunpack.c.l.b16 %v5652
  %v5673 = vunpack.c.l.b16 %v5653
  %v5674 = vunpack.c.l.b16 %v5654
  %v5675 = vunpack.c.h.b16 %v5650
  %v5676 = vunpack.c.h.b16 %v5651
  %v5677 = vunpack.c.h.b16 %v5652
  %v5678 = vunpack.c.h.b16 %v5653
  %v5679 = vunpack.c.h.b16 %v5654
  %v5680 = vunpack.c.l.b16 %v5655
  %v5681 = vunpack.c.l.b16 %v5656
  %v5682 = vunpack.c.l.b16 %v5657
  %v5683 = vunpack.c.l.b16 %v5658
  %v5684 = vunpack.c.l.b16 %v5659
  %v5685 = vunpack.c.h.b16 %v5655
  %v5686 = vunpack.c.h.b16 %v5656
  %v5687 = vunpack.c.h.b16 %v5657
  %v5688 = vunpack.c.h.b16 %v5658
  %v5689 = vunpack.c.h.b16 %v5659
  %v5690 = vpack.c.b16 %v5671, %v5670
  %v5691 = vpack.c.b16 %v5673, %v5672
  %v5692 = vpack.c.b16 %v5674, %v5674
  %v5693 = vpack.c.b16 %v5676, %v5675
  %v5694 = vpack.c.b16 %v5678, %v5677
  %v5695 = vpack.c.b16 %v5679, %v5679
  %v5696 = vpack.c.b16 %v5681, %v5680
  %v5697 = vpack.c.b16 %v5683, %v5682
  %v5698 = vpack.c.b16 %v5684, %v5684
  %v5699 = vpack.c.b16 %v5686, %v5685
  %v5700 = vpack.c.b16 %v5688, %v5687
  %v5701 = vpack.c.b16 %v5689, %v5689
  %5702 = vrot.lane.b32.xlu0 %v5690, 127
  %v5703 = vpop.permute.xlu0 %5702
  %5704 = vrot.lane.b32.xlu0 %v5691, 127
  %v5705 = vpop.permute.xlu0 %5704
  %5706 = vrot.lane.b32.xlu0 %v5692, 127
  %v5707 = vpop.permute.xlu0 %5706
  %5708 = vrot.lane.b32.xlu0 %v5693, 127
  %v5709 = vpop.permute.xlu0 %5708
  %5710 = vrot.lane.b32.xlu0 %v5694, 127
  %v5711 = vpop.permute.xlu0 %5710
  %5712 = vrot.lane.b32.xlu0 %v5695, 127
  %v5713 = vpop.permute.xlu0 %5712
  %5714 = vrot.lane.b32.xlu0 %v5696, 127
  %v5715 = vpop.permute.xlu0 %5714
  %5716 = vrot.lane.b32.xlu0 %v5697, 127
  %v5717 = vpop.permute.xlu0 %5716
  %5718 = vrot.lane.b32.xlu0 %v5698, 127
  %v5719 = vpop.permute.xlu0 %5718
  %5720 = vrot.lane.b32.xlu0 %v5699, 127
  %v5721 = vpop.permute.xlu0 %5720
  %5722 = vrot.lane.b32.xlu0 %v5700, 127
  %v5723 = vpop.permute.xlu0 %5722
  %5724 = vrot.lane.b32.xlu0 %v5701, 127
  %v5725 = vpop.permute.xlu0 %5724
  %v5726 = vrot.slane %v5703, 4
  %v5727 = vrot.slane %v5705, 4
  %v5728 = vrot.slane %v5707, 4
  %v5729 = vrot.slane %v5709, 4
  %v5730 = vrot.slane %v5711, 4
  %v5731 = vrot.slane %v5713, 4
  %v5732 = vrot.slane %v5715, 4
  %v5733 = vrot.slane %v5717, 4
  %v5734 = vrot.slane %v5719, 4
  %v5735 = vrot.slane %v5721, 4
  %v5736 = vrot.slane %v5723, 4
  %v5737 = vrot.slane %v5725, 4
  %v5738 = vsel %vm2368, %v5726, %v5727
  %v5739 = vsel %vm1190, %v5703, %v5738
  %v5740 = vsel %vm2368, %v5727, %v5728
  %v5741 = vsel %vm1190, %v5705, %v5740
  %v5742 = vsel %vm2368, %v5729, %v5730
  %v5743 = vsel %vm1190, %v5709, %v5742
  %v5744 = vsel %vm2368, %v5730, %v5731
  %v5745 = vsel %vm1190, %v5711, %v5744
  %v5746 = vsel %vm2368, %v5732, %v5733
  %v5747 = vsel %vm1190, %v5715, %v5746
  %v5748 = vsel %vm2368, %v5733, %v5734
  %v5749 = vsel %vm1190, %v5717, %v5748
  %v5750 = vsel %vm2368, %v5735, %v5736
  %v5751 = vsel %vm1190, %v5721, %v5750
  %v5752 = vsel %vm2368, %v5736, %v5737
  %v5753 = vsel %vm1190, %v5723, %v5752
  %5762 = vst [vmem:[#allocation3 + $0x140] sm:$0xff] %v5739
  %5763 = vst [vmem:[#allocation3 + $0x148] sm:$0xff] %v5741
  %5764 = vst [vmem:[#allocation3 + $0x150] sm:$0xff] %v5743
  %5765 = vst [vmem:[#allocation3 + $0x158] sm:$0xff] %v5745
  %5766 = vst [vmem:[#allocation3 + $0x160] sm:$0xff] %v5747
  %5767 = vst [vmem:[#allocation3 + $0x168] sm:$0xff] %v5749
  %5768 = vst [vmem:[#allocation3 + $0x170] sm:$0xff] %v5751
  %5769 = vst [vmem:[#allocation3 + $0x178] sm:$0xff] %v5753
  %v5770 = vld [vmem:[#allocation2 + $0x8] sm:$0xff]
  %v5771 = vld [vmem:[#allocation2 + $0x10] sm:$0xff]
  %v5772 = vld [vmem:[#allocation2 + $0x18] sm:$0xff]
  %v5773 = vld [vmem:[#allocation2 + $0x20] sm:$0xff]
  %v5774 = vld [vmem:[#allocation2 + $0x28] sm:$0xff]
  %v5775 = vld [vmem:[#allocation2 + $0x38] sm:$0xff]
  %v5776 = vld [vmem:[#allocation2 + $0x40] sm:$0xff]
  %v5777 = vld [vmem:[#allocation2 + $0x48] sm:$0xff]
  %v5778 = vld [vmem:[#allocation2 + $0x50] sm:$0xff]
  %v5779 = vld [vmem:[#allocation2 + $0x58] sm:$0xff]
  %v5780 = vld [vmem:[#allocation2 + $0x68] sm:$0xff]
  %v5781 = vld [vmem:[#allocation2 + $0x70] sm:$0xff]
  %v5782 = vld [vmem:[#allocation2 + $0x78] sm:$0xff]
  %v5783 = vld [vmem:[#allocation2 + $0x80] sm:$0xff]
  %v5784 = vld [vmem:[#allocation2 + $0x88] sm:$0xff]
  %v5785 = vld [vmem:[#allocation2 + $0x98] sm:$0xff]
  %v5786 = vld [vmem:[#allocation2 + $0xa0] sm:$0xff]
  %v5787 = vld [vmem:[#allocation2 + $0xa8] sm:$0xff]
  %v5788 = vld [vmem:[#allocation2 + $0xb0] sm:$0xff]
  %v5789 = vld [vmem:[#allocation2 + $0xb8] sm:$0xff]
  %v5790 = vld [vmem:[%s1335] sm:$0xf]
  %v5792 = vlaneseq
  %v5793 = vshrl.u32 %v5792, 7
  %v5794 = vsub.s32 0, %v5793
  %v5795 = vrot.slane %v5790, %v5794
  %v5796 = vlaneseq
  %v5797 = vshrl.u32 %v5796, 7
  %v5798 = vsub.s32 1, %v5797
  %v5799 = vrot.slane %v5790, %v5798
  %v5800 = vlaneseq
  %v5801 = vshrl.u32 %v5800, 7
  %v5802 = vsub.s32 2, %v5801
  %v5803 = vrot.slane %v5790, %v5802
  %v5804 = vlaneseq
  %v5805 = vshrl.u32 %v5804, 7
  %v5806 = vsub.s32 3, %v5805
  %v5807 = vrot.slane %v5790, %v5806
  %5808 = vrot.lane.b32.xlu0 %v5795, 15
  %v5809 = vpop.permute.xlu0 %5808
  %5810 = vrot.lane.b32.xlu0 %v5799, 15
  %v5811 = vpop.permute.xlu0 %5810
  %5812 = vrot.lane.b32.xlu0 %v5803, 15
  %v5813 = vpop.permute.xlu0 %5812
  %5814 = vrot.lane.b32.xlu0 %v5807, 15
  %v5815 = vpop.permute.xlu0 %5814
  %v5816 = vsel %vm1362, %v5809, %v5811
  %v5817 = vsel %vm1362, %v5811, %v5813
  %v5818 = vsel %vm1362, %v5813, %v5815
  %v5824 = vmul.f32 %v5770, %v5809
  %v5825 = vmul.f32 %v5771, %v5816
  %v5826 = vmul.f32 %v5772, %v5817
  %v5827 = vmul.f32 %v5773, %v5818
  %v5828 = vmul.f32 %v5774, %v5815
  %v5829 = vmul.f32 %v5775, %v5809
  %v5830 = vmul.f32 %v5776, %v5816
  %v5831 = vmul.f32 %v5777, %v5817
  %v5832 = vmul.f32 %v5778, %v5818
  %v5833 = vmul.f32 %v5779, %v5815
  %v5834 = vmul.f32 %v5780, %v5809
  %v5835 = vmul.f32 %v5781, %v5816
  %v5836 = vmul.f32 %v5782, %v5817
  %v5837 = vmul.f32 %v5783, %v5818
  %v5838 = vmul.f32 %v5784, %v5815
  %v5839 = vmul.f32 %v5785, %v5809
  %v5840 = vmul.f32 %v5786, %v5816
  %v5841 = vmul.f32 %v5787, %v5817
  %v5842 = vmul.f32 %v5788, %v5818
  %v5843 = vmul.f32 %v5789, %v5815
  %v5844 = vpack.c.bf16 %v5829, %v5824
  %v5845 = vpack.c.bf16 %v5830, %v5825
  %v5846 = vpack.c.bf16 %v5831, %v5826
  %v5847 = vpack.c.bf16 %v5832, %v5827
  %v5848 = vpack.c.bf16 %v5833, %v5828
  %v5849 = vpack.c.bf16 %v5839, %v5834
  %v5850 = vpack.c.bf16 %v5840, %v5835
  %v5851 = vpack.c.bf16 %v5841, %v5836
  %v5852 = vpack.c.bf16 %v5842, %v5837
  %v5853 = vpack.c.bf16 %v5843, %v5838
  %v5864 = vunpack.c.l.b16 %v5844
  %v5865 = vunpack.c.l.b16 %v5845
  %v5866 = vunpack.c.l.b16 %v5846
  %v5867 = vunpack.c.l.b16 %v5847
  %v5868 = vunpack.c.l.b16 %v5848
  %v5869 = vunpack.c.h.b16 %v5844
  %v5870 = vunpack.c.h.b16 %v5845
  %v5871 = vunpack.c.h.b16 %v5846
  %v5872 = vunpack.c.h.b16 %v5847
  %v5873 = vunpack.c.h.b16 %v5848
  %v5874 = vunpack.c.l.b16 %v5849
  %v5875 = vunpack.c.l.b16 %v5850
  %v5876 = vunpack.c.l.b16 %v5851
  %v5877 = vunpack.c.l.b16 %v5852
  %v5878 = vunpack.c.l.b16 %v5853
  %v5879 = vunpack.c.h.b16 %v5849
  %v5880 = vunpack.c.h.b16 %v5850
  %v5881 = vunpack.c.h.b16 %v5851
  %v5882 = vunpack.c.h.b16 %v5852
  %v5883 = vunpack.c.h.b16 %v5853
  %v5884 = vpack.c.b16 %v5865, %v5864
  %v5885 = vpack.c.b16 %v5867, %v5866
  %v5886 = vpack.c.b16 %v5868, %v5868
  %v5887 = vpack.c.b16 %v5870, %v5869
  %v5888 = vpack.c.b16 %v5872, %v5871
  %v5889 = vpack.c.b16 %v5873, %v5873
  %v5890 = vpack.c.b16 %v5875, %v5874
  %v5891 = vpack.c.b16 %v5877, %v5876
  %v5892 = vpack.c.b16 %v5878, %v5878
  %v5893 = vpack.c.b16 %v5880, %v5879
  %v5894 = vpack.c.b16 %v5882, %v5881
  %v5895 = vpack.c.b16 %v5883, %v5883
  %5896 = vrot.lane.b32.xlu0 %v5884, 113
  %v5897 = vpop.permute.xlu0 %5896
  %5898 = vrot.lane.b32.xlu0 %v5885, 113
  %v5899 = vpop.permute.xlu0 %5898
  %5900 = vrot.lane.b32.xlu0 %v5886, 113
  %v5901 = vpop.permute.xlu0 %5900
  %5902 = vrot.lane.b32.xlu0 %v5887, 113
  %v5903 = vpop.permute.xlu0 %5902
  %5904 = vrot.lane.b32.xlu0 %v5888, 113
  %v5905 = vpop.permute.xlu0 %5904
  %5906 = vrot.lane.b32.xlu0 %v5889, 113
  %v5907 = vpop.permute.xlu0 %5906
  %5908 = vrot.lane.b32.xlu0 %v5890, 113
  %v5909 = vpop.permute.xlu0 %5908
  %5910 = vrot.lane.b32.xlu0 %v5891, 113
  %v5911 = vpop.permute.xlu0 %5910
  %5912 = vrot.lane.b32.xlu0 %v5892, 113
  %v5913 = vpop.permute.xlu0 %5912
  %5914 = vrot.lane.b32.xlu0 %v5893, 113
  %v5915 = vpop.permute.xlu0 %5914
  %5916 = vrot.lane.b32.xlu0 %v5894, 113
  %v5917 = vpop.permute.xlu0 %5916
  %5918 = vrot.lane.b32.xlu0 %v5895, 113
  %v5919 = vpop.permute.xlu0 %5918
  %v5920 = vrot.slane %v5897, 4
  %v5921 = vrot.slane %v5899, 4
  %v5922 = vrot.slane %v5901, 4
  %v5923 = vrot.slane %v5903, 4
  %v5924 = vrot.slane %v5905, 4
  %v5925 = vrot.slane %v5907, 4
  %v5926 = vrot.slane %v5909, 4
  %v5927 = vrot.slane %v5911, 4
  %v5928 = vrot.slane %v5913, 4
  %v5929 = vrot.slane %v5915, 4
  %v5930 = vrot.slane %v5917, 4
  %v5931 = vrot.slane %v5919, 4
  %v5932 = vsel %vm2368, %v5920, %v5921
  %v5933 = vsel %vm1411, %v5897, %v5932
  %v5934 = vsel %vm2368, %v5921, %v5922
  %v5935 = vsel %vm1411, %v5899, %v5934
  %v5936 = vsel %vm2368, %v5923, %v5924
  %v5937 = vsel %vm1411, %v5903, %v5936
  %v5938 = vsel %vm2368, %v5924, %v5925
  %v5939 = vsel %vm1411, %v5905, %v5938
  %v5940 = vsel %vm2368, %v5926, %v5927
  %v5941 = vsel %vm1411, %v5909, %v5940
  %v5942 = vsel %vm2368, %v5927, %v5928
  %v5943 = vsel %vm1411, %v5911, %v5942
  %v5944 = vsel %vm2368, %v5929, %v5930
  %v5945 = vsel %vm1411, %v5915, %v5944
  %v5946 = vsel %vm2368, %v5930, %v5931
  %v5947 = vsel %vm1411, %v5917, %v5946
  %5956 = vst [vmem:[#allocation3 + $0x180] sm:$0xff] %v5933
  %5957 = vst [vmem:[#allocation3 + $0x188] sm:$0xff] %v5935
  %5958 = vst [vmem:[#allocation3 + $0x190] sm:$0xff] %v5937
  %5959 = vst [vmem:[#allocation3 + $0x198] sm:$0xff] %v5939
  %5960 = vst [vmem:[#allocation3 + $0x1a0] sm:$0xff] %v5941
  %5961 = vst [vmem:[#allocation3 + $0x1a8] sm:$0xff] %v5943
  %5962 = vst [vmem:[#allocation3 + $0x1b0] sm:$0xff] %v5945
  %5963 = vst [vmem:[#allocation3 + $0x1b8] sm:$0xff] %v5947
  %v5964 = vld [vmem:[#allocation2 + $0x8] sm:$0xff]
  %v5965 = vld [vmem:[#allocation2 + $0x10] sm:$0xff]
  %v5966 = vld [vmem:[#allocation2 + $0x18] sm:$0xff]
  %v5967 = vld [vmem:[#allocation2 + $0x20] sm:$0xff]
  %v5968 = vld [vmem:[#allocation2 + $0x28] sm:$0xff]
  %v5969 = vld [vmem:[#allocation2 + $0x38] sm:$0xff]
  %v5970 = vld [vmem:[#allocation2 + $0x40] sm:$0xff]
  %v5971 = vld [vmem:[#allocation2 + $0x48] sm:$0xff]
  %v5972 = vld [vmem:[#allocation2 + $0x50] sm:$0xff]
  %v5973 = vld [vmem:[#allocation2 + $0x58] sm:$0xff]
  %v5974 = vld [vmem:[#allocation2 + $0x68] sm:$0xff]
  %v5975 = vld [vmem:[#allocation2 + $0x70] sm:$0xff]
  %v5976 = vld [vmem:[#allocation2 + $0x78] sm:$0xff]
  %v5977 = vld [vmem:[#allocation2 + $0x80] sm:$0xff]
  %v5978 = vld [vmem:[#allocation2 + $0x88] sm:$0xff]
  %v5979 = vld [vmem:[#allocation2 + $0x98] sm:$0xff]
  %v5980 = vld [vmem:[#allocation2 + $0xa0] sm:$0xff]
  %v5981 = vld [vmem:[#allocation2 + $0xa8] sm:$0xff]
  %v5982 = vld [vmem:[#allocation2 + $0xb0] sm:$0xff]
  %v5983 = vld [vmem:[#allocation2 + $0xb8] sm:$0xff]
  %v5984 = vld [vmem:[%s1556] sm:$0xf]
  %v5986 = vlaneseq
  %v5987 = vshrl.u32 %v5986, 7
  %v5988 = vsub.s32 0, %v5987
  %v5989 = vrot.slane %v5984, %v5988
  %v5990 = vlaneseq
  %v5991 = vshrl.u32 %v5990, 7
  %v5992 = vsub.s32 1, %v5991
  %v5993 = vrot.slane %v5984, %v5992
  %v5994 = vlaneseq
  %v5995 = vshrl.u32 %v5994, 7
  %v5996 = vsub.s32 2, %v5995
  %v5997 = vrot.slane %v5984, %v5996
  %v5998 = vlaneseq
  %v5999 = vshrl.u32 %v5998, 7
  %v6000 = vsub.s32 3, %v5999
  %v6001 = vrot.slane %v5984, %v6000
  %6002 = vrot.lane.b32.xlu0 %v5989, 16
  %v6003 = vpop.permute.xlu0 %6002
  %6004 = vrot.lane.b32.xlu0 %v5993, 16
  %v6005 = vpop.permute.xlu0 %6004
  %6006 = vrot.lane.b32.xlu0 %v5997, 16
  %v6007 = vpop.permute.xlu0 %6006
  %6008 = vrot.lane.b32.xlu0 %v6001, 16
  %v6009 = vpop.permute.xlu0 %6008
  %v6010 = vsel %vm1583, %v6003, %v6005
  %v6011 = vsel %vm1583, %v6005, %v6007
  %v6012 = vsel %vm1583, %v6007, %v6009
  %v6018 = vmul.f32 %v5964, %v6003
  %v6019 = vmul.f32 %v5965, %v6010
  %v6020 = vmul.f32 %v5966, %v6011
  %v6021 = vmul.f32 %v5967, %v6012
  %v6022 = vmul.f32 %v5968, %v6009
  %v6023 = vmul.f32 %v5969, %v6003
  %v6024 = vmul.f32 %v5970, %v6010
  %v6025 = vmul.f32 %v5971, %v6011
  %v6026 = vmul.f32 %v5972, %v6012
  %v6027 = vmul.f32 %v5973, %v6009
  %v6028 = vmul.f32 %v5974, %v6003
  %v6029 = vmul.f32 %v5975, %v6010
  %v6030 = vmul.f32 %v5976, %v6011
  %v6031 = vmul.f32 %v5977, %v6012
  %v6032 = vmul.f32 %v5978, %v6009
  %v6033 = vmul.f32 %v5979, %v6003
  %v6034 = vmul.f32 %v5980, %v6010
  %v6035 = vmul.f32 %v5981, %v6011
  %v6036 = vmul.f32 %v5982, %v6012
  %v6037 = vmul.f32 %v5983, %v6009
  %v6038 = vpack.c.bf16 %v6023, %v6018
  %v6039 = vpack.c.bf16 %v6024, %v6019
  %v6040 = vpack.c.bf16 %v6025, %v6020
  %v6041 = vpack.c.bf16 %v6026, %v6021
  %v6042 = vpack.c.bf16 %v6027, %v6022
  %v6043 = vpack.c.bf16 %v6033, %v6028
  %v6044 = vpack.c.bf16 %v6034, %v6029
  %v6045 = vpack.c.bf16 %v6035, %v6030
  %v6046 = vpack.c.bf16 %v6036, %v6031
  %v6047 = vpack.c.bf16 %v6037, %v6032
  %v6058 = vunpack.c.l.b16 %v6038
  %v6059 = vunpack.c.l.b16 %v6039
  %v6060 = vunpack.c.l.b16 %v6040
  %v6061 = vunpack.c.l.b16 %v6041
  %v6062 = vunpack.c.l.b16 %v6042
  %v6063 = vunpack.c.h.b16 %v6038
  %v6064 = vunpack.c.h.b16 %v6039
  %v6065 = vunpack.c.h.b16 %v6040
  %v6066 = vunpack.c.h.b16 %v6041
  %v6067 = vunpack.c.h.b16 %v6042
  %v6068 = vunpack.c.l.b16 %v6043
  %v6069 = vunpack.c.l.b16 %v6044
  %v6070 = vunpack.c.l.b16 %v6045
  %v6071 = vunpack.c.l.b16 %v6046
  %v6072 = vunpack.c.l.b16 %v6047
  %v6073 = vunpack.c.h.b16 %v6043
  %v6074 = vunpack.c.h.b16 %v6044
  %v6075 = vunpack.c.h.b16 %v6045
  %v6076 = vunpack.c.h.b16 %v6046
  %v6077 = vunpack.c.h.b16 %v6047
  %v6078 = vpack.c.b16 %v6059, %v6058
  %v6079 = vpack.c.b16 %v6061, %v6060
  %v6080 = vpack.c.b16 %v6062, %v6062
  %v6081 = vpack.c.b16 %v6064, %v6063
  %v6082 = vpack.c.b16 %v6066, %v6065
  %v6083 = vpack.c.b16 %v6067, %v6067
  %v6084 = vpack.c.b16 %v6069, %v6068
  %v6085 = vpack.c.b16 %v6071, %v6070
  %v6086 = vpack.c.b16 %v6072, %v6072
  %v6087 = vpack.c.b16 %v6074, %v6073
  %v6088 = vpack.c.b16 %v6076, %v6075
  %v6089 = vpack.c.b16 %v6077, %v6077
  %6090 = vrot.lane.b32.xlu0 %v6078, 112
  %v6091 = vpop.permute.xlu0 %6090
  %6092 = vrot.lane.b32.xlu0 %v6079, 112
  %v6093 = vpop.permute.xlu0 %6092
  %6094 = vrot.lane.b32.xlu0 %v6080, 112
  %v6095 = vpop.permute.xlu0 %6094
  %6096 = vrot.lane.b32.xlu0 %v6081, 112
  %v6097 = vpop.permute.xlu0 %6096
  %6098 = vrot.lane.b32.xlu0 %v6082, 112
  %v6099 = vpop.permute.xlu0 %6098
  %6100 = vrot.lane.b32.xlu0 %v6083, 112
  %v6101 = vpop.permute.xlu0 %6100
  %6102 = vrot.lane.b32.xlu0 %v6084, 112
  %v6103 = vpop.permute.xlu0 %6102
  %6104 = vrot.lane.b32.xlu0 %v6085, 112
  %v6105 = vpop.permute.xlu0 %6104
  %6106 = vrot.lane.b32.xlu0 %v6086, 112
  %v6107 = vpop.permute.xlu0 %6106
  %6108 = vrot.lane.b32.xlu0 %v6087, 112
  %v6109 = vpop.permute.xlu0 %6108
  %6110 = vrot.lane.b32.xlu0 %v6088, 112
  %v6111 = vpop.permute.xlu0 %6110
  %6112 = vrot.lane.b32.xlu0 %v6089, 112
  %v6113 = vpop.permute.xlu0 %6112
  %v6114 = vrot.slane %v6091, 4
  %v6115 = vrot.slane %v6093, 4
  %v6116 = vrot.slane %v6095, 4
  %v6117 = vrot.slane %v6097, 4
  %v6118 = vrot.slane %v6099, 4
  %v6119 = vrot.slane %v6101, 4
  %v6120 = vrot.slane %v6103, 4
  %v6121 = vrot.slane %v6105, 4
  %v6122 = vrot.slane %v6107, 4
  %v6123 = vrot.slane %v6109, 4
  %v6124 = vrot.slane %v6111, 4
  %v6125 = vrot.slane %v6113, 4
  %v6126 = vsel %vm2368, %v6114, %v6115
  %v6127 = vsel %vm1632, %v6091, %v6126
  %v6128 = vsel %vm2368, %v6115, %v6116
  %v6129 = vsel %vm1632, %v6093, %v6128
  %v6130 = vsel %vm2368, %v6117, %v6118
  %v6131 = vsel %vm1632, %v6097, %v6130
  %v6132 = vsel %vm2368, %v6118, %v6119
  %v6133 = vsel %vm1632, %v6099, %v6132
  %v6134 = vsel %vm2368, %v6120, %v6121
  %v6135 = vsel %vm1632, %v6103, %v6134
  %v6136 = vsel %vm2368, %v6121, %v6122
  %v6137 = vsel %vm1632, %v6105, %v6136
  %v6138 = vsel %vm2368, %v6123, %v6124
  %v6139 = vsel %vm1632, %v6109, %v6138
  %v6140 = vsel %vm2368, %v6124, %v6125
  %v6141 = vsel %vm1632, %v6111, %v6140
  %6150 = vst [vmem:[#allocation3 + $0x1c0] sm:$0xff] %v6127
  %6151 = vst [vmem:[#allocation3 + $0x1c8] sm:$0xff] %v6129
  %6152 = vst [vmem:[#allocation3 + $0x1d0] sm:$0xff] %v6131
  %6153 = vst [vmem:[#allocation3 + $0x1d8] sm:$0xff] %v6133
  %6154 = vst [vmem:[#allocation3 + $0x1e0] sm:$0xff] %v6135
  %6155 = vst [vmem:[#allocation3 + $0x1e8] sm:$0xff] %v6137
  %6156 = vst [vmem:[#allocation3 + $0x1f0] sm:$0xff] %v6139
  %6157 = vst [vmem:[#allocation3 + $0x1f8] sm:$0xff] %v6141
  %v6158 = vld [vmem:[#allocation2 + $0x8] sm:$0xff]
  %v6159 = vld [vmem:[#allocation2 + $0x10] sm:$0xff]
  %v6160 = vld [vmem:[#allocation2 + $0x18] sm:$0xff]
  %v6161 = vld [vmem:[#allocation2 + $0x20] sm:$0xff]
  %v6162 = vld [vmem:[#allocation2 + $0x28] sm:$0xff]
  %v6163 = vld [vmem:[#allocation2 + $0x38] sm:$0xff]
  %v6164 = vld [vmem:[#allocation2 + $0x40] sm:$0xff]
  %v6165 = vld [vmem:[#allocation2 + $0x48] sm:$0xff]
  %v6166 = vld [vmem:[#allocation2 + $0x50] sm:$0xff]
  %v6167 = vld [vmem:[#allocation2 + $0x58] sm:$0xff]
  %v6168 = vld [vmem:[#allocation2 + $0x68] sm:$0xff]
  %v6169 = vld [vmem:[#allocation2 + $0x70] sm:$0xff]
  %v6170 = vld [vmem:[#allocation2 + $0x78] sm:$0xff]
  %v6171 = vld [vmem:[#allocation2 + $0x80] sm:$0xff]
  %v6172 = vld [vmem:[#allocation2 + $0x88] sm:$0xff]
  %v6173 = vld [vmem:[#allocation2 + $0x98] sm:$0xff]
  %v6174 = vld [vmem:[#allocation2 + $0xa0] sm:$0xff]
  %v6175 = vld [vmem:[#allocation2 + $0xa8] sm:$0xff]
  %v6176 = vld [vmem:[#allocation2 + $0xb0] sm:$0xff]
  %v6177 = vld [vmem:[#allocation2 + $0xb8] sm:$0xff]
  %v6178 = vld [vmem:[%s1777] sm:$0xf]
  %v6180 = vlaneseq
  %v6181 = vshrl.u32 %v6180, 7
  %v6182 = vsub.s32 0, %v6181
  %v6183 = vrot.slane %v6178, %v6182
  %v6184 = vlaneseq
  %v6185 = vshrl.u32 %v6184, 7
  %v6186 = vsub.s32 1, %v6185
  %v6187 = vrot.slane %v6178, %v6186
  %v6188 = vlaneseq
  %v6189 = vshrl.u32 %v6188, 7
  %v6190 = vsub.s32 2, %v6189
  %v6191 = vrot.slane %v6178, %v6190
  %v6192 = vlaneseq
  %v6193 = vshrl.u32 %v6192, 7
  %v6194 = vsub.s32 3, %v6193
  %v6195 = vrot.slane %v6178, %v6194
  %6196 = vrot.lane.b32.xlu0 %v6183, 17
  %v6197 = vpop.permute.xlu0 %6196
  %6198 = vrot.lane.b32.xlu0 %v6187, 17
  %v6199 = vpop.permute.xlu0 %6198
  %6200 = vrot.lane.b32.xlu0 %v6191, 17
  %v6201 = vpop.permute.xlu0 %6200
  %6202 = vrot.lane.b32.xlu0 %v6195, 17
  %v6203 = vpop.permute.xlu0 %6202
  %v6204 = vsel %vm1804, %v6197, %v6199
  %v6205 = vsel %vm1804, %v6199, %v6201
  %v6206 = vsel %vm1804, %v6201, %v6203
  %v6212 = vmul.f32 %v6158, %v6197
  %v6213 = vmul.f32 %v6159, %v6204
  %v6214 = vmul.f32 %v6160, %v6205
  %v6215 = vmul.f32 %v6161, %v6206
  %v6216 = vmul.f32 %v6162, %v6203
  %v6217 = vmul.f32 %v6163, %v6197
  %v6218 = vmul.f32 %v6164, %v6204
  %v6219 = vmul.f32 %v6165, %v6205
  %v6220 = vmul.f32 %v6166, %v6206
  %v6221 = vmul.f32 %v6167, %v6203
  %v6222 = vmul.f32 %v6168, %v6197
  %v6223 = vmul.f32 %v6169, %v6204
  %v6224 = vmul.f32 %v6170, %v6205
  %v6225 = vmul.f32 %v6171, %v6206
  %v6226 = vmul.f32 %v6172, %v6203
  %v6227 = vmul.f32 %v6173, %v6197
  %v6228 = vmul.f32 %v6174, %v6204
  %v6229 = vmul.f32 %v6175, %v6205
  %v6230 = vmul.f32 %v6176, %v6206
  %v6231 = vmul.f32 %v6177, %v6203
  %v6232 = vpack.c.bf16 %v6217, %v6212
  %v6233 = vpack.c.bf16 %v6218, %v6213
  %v6234 = vpack.c.bf16 %v6219, %v6214
  %v6235 = vpack.c.bf16 %v6220, %v6215
  %v6236 = vpack.c.bf16 %v6221, %v6216
  %v6237 = vpack.c.bf16 %v6227, %v6222
  %v6238 = vpack.c.bf16 %v6228, %v6223
  %v6239 = vpack.c.bf16 %v6229, %v6224
  %v6240 = vpack.c.bf16 %v6230, %v6225
  %v6241 = vpack.c.bf16 %v6231, %v6226
  %v6252 = vunpack.c.l.b16 %v6232
  %v6253 = vunpack.c.l.b16 %v6233
  %v6254 = vunpack.c.l.b16 %v6234
  %v6255 = vunpack.c.l.b16 %v6235
  %v6256 = vunpack.c.l.b16 %v6236
  %v6257 = vunpack.c.h.b16 %v6232
  %v6258 = vunpack.c.h.b16 %v6233
  %v6259 = vunpack.c.h.b16 %v6234
  %v6260 = vunpack.c.h.b16 %v6235
  %v6261 = vunpack.c.h.b16 %v6236
  %v6262 = vunpack.c.l.b16 %v6237
  %v6263 = vunpack.c.l.b16 %v6238
  %v6264 = vunpack.c.l.b16 %v6239
  %v6265 = vunpack.c.l.b16 %v6240
  %v6266 = vunpack.c.l.b16 %v6241
  %v6267 = vunpack.c.h.b16 %v6237
  %v6268 = vunpack.c.h.b16 %v6238
  %v6269 = vunpack.c.h.b16 %v6239
  %v6270 = vunpack.c.h.b16 %v6240
  %v6271 = vunpack.c.h.b16 %v6241
  %v6272 = vpack.c.b16 %v6253, %v6252
  %v6273 = vpack.c.b16 %v6255, %v6254
  %v6274 = vpack.c.b16 %v6256, %v6256
  %v6275 = vpack.c.b16 %v6258, %v6257
  %v6276 = vpack.c.b16 %v6260, %v6259
  %v6277 = vpack.c.b16 %v6261, %v6261
  %v6278 = vpack.c.b16 %v6263, %v6262
  %v6279 = vpack.c.b16 %v6265, %v6264
  %v6280 = vpack.c.b16 %v6266, %v6266
  %v6281 = vpack.c.b16 %v6268, %v6267
  %v6282 = vpack.c.b16 %v6270, %v6269
  %v6283 = vpack.c.b16 %v6271, %v6271
  %6284 = vrot.lane.b32.xlu0 %v6272, 111
  %v6285 = vpop.permute.xlu0 %6284
  %6286 = vrot.lane.b32.xlu0 %v6273, 111
  %v6287 = vpop.permute.xlu0 %6286
  %6288 = vrot.lane.b32.xlu0 %v6274, 111
  %v6289 = vpop.permute.xlu0 %6288
  %6290 = vrot.lane.b32.xlu0 %v6275, 111
  %v6291 = vpop.permute.xlu0 %6290
  %6292 = vrot.lane.b32.xlu0 %v6276, 111
  %v6293 = vpop.permute.xlu0 %6292
  %6294 = vrot.lane.b32.xlu0 %v6277, 111
  %v6295 = vpop.permute.xlu0 %6294
  %6296 = vrot.lane.b32.xlu0 %v6278, 111
  %v6297 = vpop.permute.xlu0 %6296
  %6298 = vrot.lane.b32.xlu0 %v6279, 111
  %v6299 = vpop.permute.xlu0 %6298
  %6300 = vrot.lane.b32.xlu0 %v6280, 111
  %v6301 = vpop.permute.xlu0 %6300
  %6302 = vrot.lane.b32.xlu0 %v6281, 111
  %v6303 = vpop.permute.xlu0 %6302
  %6304 = vrot.lane.b32.xlu0 %v6282, 111
  %v6305 = vpop.permute.xlu0 %6304
  %6306 = vrot.lane.b32.xlu0 %v6283, 111
  %v6307 = vpop.permute.xlu0 %6306
  %v6308 = vrot.slane %v6285, 4
  %v6309 = vrot.slane %v6287, 4
  %v6310 = vrot.slane %v6289, 4
  %v6311 = vrot.slane %v6291, 4
  %v6312 = vrot.slane %v6293, 4
  %v6313 = vrot.slane %v6295, 4
  %v6314 = vrot.slane %v6297, 4
  %v6315 = vrot.slane %v6299, 4
  %v6316 = vrot.slane %v6301, 4
  %v6317 = vrot.slane %v6303, 4
  %v6318 = vrot.slane %v6305, 4
  %v6319 = vrot.slane %v6307, 4
  %v6320 = vsel %vm2368, %v6308, %v6309
  %v6321 = vsel %vm1853, %v6285, %v6320
  %v6322 = vsel %vm2368, %v6309, %v6310
  %v6323 = vsel %vm1853, %v6287, %v6322
  %v6324 = vsel %vm2368, %v6311, %v6312
  %v6325 = vsel %vm1853, %v6291, %v6324
  %v6326 = vsel %vm2368, %v6312, %v6313
  %v6327 = vsel %vm1853, %v6293, %v6326
  %v6328 = vsel %vm2368, %v6314, %v6315
  %v6329 = vsel %vm1853, %v6297, %v6328
  %v6330 = vsel %vm2368, %v6315, %v6316
  %v6331 = vsel %vm1853, %v6299, %v6330
  %v6332 = vsel %vm2368, %v6317, %v6318
  %v6333 = vsel %vm1853, %v6303, %v6332
  %v6334 = vsel %vm2368, %v6318, %v6319
  %v6335 = vsel %vm1853, %v6305, %v6334
  %6344 = vst [vmem:[#allocation3 + $0x200] sm:$0xff] %v6321
  %6345 = vst [vmem:[#allocation3 + $0x208] sm:$0xff] %v6323
  %6346 = vst [vmem:[#allocation3 + $0x210] sm:$0xff] %v6325
  %6347 = vst [vmem:[#allocation3 + $0x218] sm:$0xff] %v6327
  %6348 = vst [vmem:[#allocation3 + $0x220] sm:$0xff] %v6329
  %6349 = vst [vmem:[#allocation3 + $0x228] sm:$0xff] %v6331
  %6350 = vst [vmem:[#allocation3 + $0x230] sm:$0xff] %v6333
  %6351 = vst [vmem:[#allocation3 + $0x238] sm:$0xff] %v6335
  %v6352 = vld [vmem:[%s8] sm:$0xff]
  %v6353 = vld [vmem:[%s8 + $0x8] sm:$0xf]
  %v6354 = vld [vmem:[%s8 + $0xc] sm:$0xff]
  %v6355 = vld [vmem:[%s8 + $0x14] sm:$0xf]
  %v6356 = vld [vmem:[%s8 + $0x18] sm:$0xff]
  %v6357 = vld [vmem:[%s8 + $0x20] sm:$0xf]
  %v6358 = vld [vmem:[%s8 + $0x24] sm:$0xff]
  %v6359 = vld [vmem:[%s8 + $0x2c] sm:$0xf]
  %v6360 = vld [vmem:[#allocation3] sm:$0xff]
  %v6361 = vld [vmem:[#allocation3 + $0x8] sm:$0xff]
  %v6362 = vld [vmem:[#allocation3 + $0x10] sm:$0xff]
  %v6363 = vld [vmem:[#allocation3 + $0x18] sm:$0xff]
  %v6364 = vld [vmem:[#allocation3 + $0x20] sm:$0xff]
  %v6365 = vld [vmem:[#allocation3 + $0x28] sm:$0xff]
  %v6366 = vld [vmem:[#allocation3 + $0x30] sm:$0xff]
  %v6367 = vld [vmem:[#allocation3 + $0x38] sm:$0xff]
  %v6368 = vld [vmem:[#allocation3 + $0x40] sm:$0xff]
  %v6369 = vld [vmem:[#allocation3 + $0x48] sm:$0xff]
  %v6370 = vld [vmem:[#allocation3 + $0x50] sm:$0xff]
  %v6371 = vld [vmem:[#allocation3 + $0x58] sm:$0xff]
  %v6372 = vld [vmem:[#allocation3 + $0x60] sm:$0xff]
  %v6373 = vld [vmem:[#allocation3 + $0x68] sm:$0xff]
  %v6374 = vld [vmem:[#allocation3 + $0x70] sm:$0xff]
  %v6375 = vld [vmem:[#allocation3 + $0x78] sm:$0xff]
  %v6376 = vld [vmem:[#allocation3 + $0x80] sm:$0xff]
  %v6377 = vld [vmem:[#allocation3 + $0x88] sm:$0xff]
  %v6378 = vld [vmem:[#allocation3 + $0x90] sm:$0xff]
  %v6379 = vld [vmem:[#allocation3 + $0x98] sm:$0xff]
  %v6380 = vld [vmem:[#allocation3 + $0xa0] sm:$0xff]
  %v6381 = vld [vmem:[#allocation3 + $0xa8] sm:$0xff]
  %v6382 = vld [vmem:[#allocation3 + $0xb0] sm:$0xff]
  %v6383 = vld [vmem:[#allocation3 + $0xb8] sm:$0xff]
  %v6384 = vld [vmem:[#allocation3 + $0xc0] sm:$0xff]
  %v6385 = vld [vmem:[#allocation3 + $0xc8] sm:$0xff]
  %v6386 = vld [vmem:[#allocation3 + $0xd0] sm:$0xff]
  %v6387 = vld [vmem:[#allocation3 + $0xd8] sm:$0xff]
  %v6388 = vld [vmem:[#allocation3 + $0xe0] sm:$0xff]
  %v6389 = vld [vmem:[#allocation3 + $0xe8] sm:$0xff]
  %v6390 = vld [vmem:[#allocation3 + $0xf0] sm:$0xff]
  %v6391 = vld [vmem:[#allocation3 + $0xf8] sm:$0xff]
  %v6392 = vld [vmem:[#allocation3 + $0x100] sm:$0xff]
  %v6393 = vld [vmem:[#allocation3 + $0x108] sm:$0xff]
  %v6394 = vld [vmem:[#allocation3 + $0x110] sm:$0xff]
  %v6395 = vld [vmem:[#allocation3 + $0x118] sm:$0xff]
  %v6396 = vld [vmem:[#allocation3 + $0x120] sm:$0xff]
  %v6397 = vld [vmem:[#allocation3 + $0x128] sm:$0xff]
  %v6398 = vld [vmem:[#allocation3 + $0x130] sm:$0xff]
  %v6399 = vld [vmem:[#allocation3 + $0x138] sm:$0xff]
  %v6400 = vld [vmem:[#allocation3 + $0x140] sm:$0xff]
  %v6401 = vld [vmem:[#allocation3 + $0x148] sm:$0xff]
  %v6402 = vld [vmem:[#allocation3 + $0x150] sm:$0xff]
  %v6403 = vld [vmem:[#allocation3 + $0x158] sm:$0xff]
  %v6404 = vld [vmem:[#allocation3 + $0x160] sm:$0xff]
  %v6405 = vld [vmem:[#allocation3 + $0x168] sm:$0xff]
  %v6406 = vld [vmem:[#allocation3 + $0x170] sm:$0xff]
  %v6407 = vld [vmem:[#allocation3 + $0x178] sm:$0xff]
  %v6408 = vld [vmem:[#allocation3 + $0x180] sm:$0xff]
  %v6409 = vld [vmem:[#allocation3 + $0x188] sm:$0xff]
  %v6410 = vld [vmem:[#allocation3 + $0x190] sm:$0xff]
  %v6411 = vld [vmem:[#allocation3 + $0x198] sm:$0xff]
  %v6412 = vld [vmem:[#allocation3 + $0x1a0] sm:$0xff]
  %v6413 = vld [vmem:[#allocation3 + $0x1a8] sm:$0xff]
  %v6414 = vld [vmem:[#allocation3 + $0x1b0] sm:$0xff]
  %v6415 = vld [vmem:[#allocation3 + $0x1b8] sm:$0xff]
  %v6416 = vld [vmem:[#allocation3 + $0x1c0] sm:$0xff]
  %v6417 = vld [vmem:[#allocation3 + $0x1c8] sm:$0xff]
  %v6418 = vld [vmem:[#allocation3 + $0x1d0] sm:$0xff]
  %v6419 = vld [vmem:[#allocation3 + $0x1d8] sm:$0xff]
  %v6420 = vld [vmem:[#allocation3 + $0x1e0] sm:$0xff]
  %v6421 = vld [vmem:[#allocation3 + $0x1e8] sm:$0xff]
  %v6422 = vld [vmem:[#allocation3 + $0x1f0] sm:$0xff]
  %v6423 = vld [vmem:[#allocation3 + $0x1f8] sm:$0xff]
  %v6424 = vld [vmem:[#allocation3 + $0x200] sm:$0xff]
  %v6425 = vld [vmem:[#allocation3 + $0x208] sm:$0xff]
  %v6426 = vld [vmem:[#allocation3 + $0x210] sm:$0xff]
  %v6427 = vld [vmem:[#allocation3 + $0x218] sm:$0xff]
  %v6428 = vld [vmem:[#allocation3 + $0x220] sm:$0xff]
  %v6429 = vld [vmem:[#allocation3 + $0x228] sm:$0xff]
  %v6430 = vld [vmem:[#allocation3 + $0x230] sm:$0xff]
  %v6431 = vld [vmem:[#allocation3 + $0x238] sm:$0xff]
  %v6440 = vunpack.c.l.b16 %v6352
  %v6441 = vunpack.c.h.b16 %v6352
  %v6442 = vunpack.c.l.b16 %v6353
  %v6443 = vunpack.c.l.b16 %v6354
  %v6444 = vunpack.c.h.b16 %v6354
  %v6445 = vunpack.c.l.b16 %v6355
  %v6446 = vunpack.c.l.b16 %v6356
  %v6447 = vunpack.c.h.b16 %v6356
  %v6448 = vunpack.c.l.b16 %v6357
  %v6449 = vunpack.c.l.b16 %v6358
  %v6450 = vunpack.c.h.b16 %v6358
  %v6451 = vunpack.c.l.b16 %v6359
  %v6452 = vpack.c.b16 %v6443, %v6440
  %v6453 = vpack.c.b16 %v6444, %v6441
  %v6454 = vpack.c.b16 %v6445, %v6442
  %v6455 = vpack.c.b16 %v6449, %v6446
  %v6456 = vpack.c.b16 %v6450, %v6447
  %v6457 = vpack.c.b16 %v6451, %v6448
  %v6534 = vunpack.c.l.b16 %v6360
  %v6535 = vunpack.c.h.b16 %v6360
  %v6536 = vunpack.c.l.b16 %v6361
  %v6537 = vunpack.c.h.b16 %v6361
  %v6538 = vunpack.c.l.b16 %v6362
  %v6539 = vunpack.c.h.b16 %v6362
  %v6540 = vunpack.c.l.b16 %v6363
  %v6541 = vunpack.c.h.b16 %v6363
  %v6542 = vunpack.c.l.b16 %v6364
  %v6543 = vunpack.c.h.b16 %v6364
  %v6544 = vunpack.c.l.b16 %v6365
  %v6545 = vunpack.c.h.b16 %v6365
  %v6546 = vunpack.c.l.b16 %v6366
  %v6547 = vunpack.c.h.b16 %v6366
  %v6548 = vunpack.c.l.b16 %v6367
  %v6549 = vunpack.c.h.b16 %v6367
  %v6550 = vunpack.c.l.b16 %v6368
  %v6551 = vunpack.c.h.b16 %v6368
  %v6552 = vunpack.c.l.b16 %v6369
  %v6553 = vunpack.c.h.b16 %v6369
  %v6554 = vunpack.c.l.b16 %v6370
  %v6555 = vunpack.c.h.b16 %v6370
  %v6556 = vunpack.c.l.b16 %v6371
  %v6557 = vunpack.c.h.b16 %v6371
  %v6558 = vunpack.c.l.b16 %v6372
  %v6559 = vunpack.c.h.b16 %v6372
  %v6560 = vunpack.c.l.b16 %v6373
  %v6561 = vunpack.c.h.b16 %v6373
  %v6562 = vunpack.c.l.b16 %v6374
  %v6563 = vunpack.c.h.b16 %v6374
  %v6564 = vunpack.c.l.b16 %v6375
  %v6565 = vunpack.c.h.b16 %v6375
  %v6566 = vunpack.c.l.b16 %v6376
  %v6567 = vunpack.c.h.b16 %v6376
  %v6568 = vunpack.c.l.b16 %v6377
  %v6569 = vunpack.c.h.b16 %v6377
  %v6570 = vunpack.c.l.b16 %v6378
  %v6571 = vunpack.c.h.b16 %v6378
  %v6572 = vunpack.c.l.b16 %v6379
  %v6573 = vunpack.c.h.b16 %v6379
  %v6574 = vunpack.c.l.b16 %v6380
  %v6575 = vunpack.c.h.b16 %v6380
  %v6576 = vunpack.c.l.b16 %v6381
  %v6577 = vunpack.c.h.b16 %v6381
  %v6578 = vunpack.c.l.b16 %v6382
  %v6579 = vunpack.c.h.b16 %v6382
  %v6580 = vunpack.c.l.b16 %v6383
  %v6581 = vunpack.c.h.b16 %v6383
  %v6582 = vunpack.c.l.b16 %v6384
  %v6583 = vunpack.c.h.b16 %v6384
  %v6584 = vunpack.c.l.b16 %v6385
  %v6585 = vunpack.c.h.b16 %v6385
  %v6586 = vunpack.c.l.b16 %v6386
  %v6587 = vunpack.c.h.b16 %v6386
  %v6588 = vunpack.c.l.b16 %v6387
  %v6589 = vunpack.c.h.b16 %v6387
  %v6590 = vunpack.c.l.b16 %v6388
  %v6591 = vunpack.c.h.b16 %v6388
  %v6592 = vunpack.c.l.b16 %v6389
  %v6593 = vunpack.c.h.b16 %v6389
  %v6594 = vunpack.c.l.b16 %v6390
  %v6595 = vunpack.c.h.b16 %v6390
  %v6596 = vunpack.c.l.b16 %v6391
  %v6597 = vunpack.c.h.b16 %v6391
  %v6598 = vunpack.c.l.b16 %v6392
  %v6599 = vunpack.c.h.b16 %v6392
  %v6600 = vunpack.c.l.b16 %v6393
  %v6601 = vunpack.c.h.b16 %v6393
  %v6602 = vunpack.c.l.b16 %v6394
  %v6603 = vunpack.c.h.b16 %v6394
  %v6604 = vunpack.c.l.b16 %v6395
  %v6605 = vunpack.c.h.b16 %v6395
  %v6606 = vunpack.c.l.b16 %v6396
  %v6607 = vunpack.c.h.b16 %v6396
  %v6608 = vunpack.c.l.b16 %v6397
  %v6609 = vunpack.c.h.b16 %v6397
  %v6610 = vunpack.c.l.b16 %v6398
  %v6611 = vunpack.c.h.b16 %v6398
  %v6612 = vunpack.c.l.b16 %v6399
  %v6613 = vunpack.c.h.b16 %v6399
  %v6614 = vunpack.c.l.b16 %v6400
  %v6615 = vunpack.c.h.b16 %v6400
  %v6616 = vunpack.c.l.b16 %v6401
  %v6617 = vunpack.c.h.b16 %v6401
  %v6618 = vunpack.c.l.b16 %v6402
  %v6619 = vunpack.c.h.b16 %v6402
  %v6620 = vunpack.c.l.b16 %v6403
  %v6621 = vunpack.c.h.b16 %v6403
  %v6622 = vunpack.c.l.b16 %v6404
  %v6623 = vunpack.c.h.b16 %v6404
  %v6624 = vunpack.c.l.b16 %v6405
  %v6625 = vunpack.c.h.b16 %v6405
  %v6626 = vunpack.c.l.b16 %v6406
  %v6627 = vunpack.c.h.b16 %v6406
  %v6628 = vunpack.c.l.b16 %v6407
  %v6629 = vunpack.c.h.b16 %v6407
  %v6630 = vunpack.c.l.b16 %v6408
  %v6631 = vunpack.c.h.b16 %v6408
  %v6632 = vunpack.c.l.b16 %v6409
  %v6633 = vunpack.c.h.b16 %v6409
  %v6634 = vunpack.c.l.b16 %v6410
  %v6635 = vunpack.c.h.b16 %v6410
  %v6636 = vunpack.c.l.b16 %v6411
  %v6637 = vunpack.c.h.b16 %v6411
  %v6638 = vunpack.c.l.b16 %v6412
  %v6639 = vunpack.c.h.b16 %v6412
  %v6640 = vunpack.c.l.b16 %v6413
  %v6641 = vunpack.c.h.b16 %v6413
  %v6642 = vunpack.c.l.b16 %v6414
  %v6643 = vunpack.c.h.b16 %v6414
  %v6644 = vunpack.c.l.b16 %v6415
  %v6645 = vunpack.c.h.b16 %v6415
  %v6646 = vunpack.c.l.b16 %v6416
  %v6647 = vunpack.c.h.b16 %v6416
  %v6648 = vunpack.c.l.b16 %v6417
  %v6649 = vunpack.c.h.b16 %v6417
  %v6650 = vunpack.c.l.b16 %v6418
  %v6651 = vunpack.c.h.b16 %v6418
  %v6652 = vunpack.c.l.b16 %v6419
  %v6653 = vunpack.c.h.b16 %v6419
  %v6654 = vunpack.c.l.b16 %v6420
  %v6655 = vunpack.c.h.b16 %v6420
  %v6656 = vunpack.c.l.b16 %v6421
  %v6657 = vunpack.c.h.b16 %v6421
  %v6658 = vunpack.c.l.b16 %v6422
  %v6659 = vunpack.c.h.b16 %v6422
  %v6660 = vunpack.c.l.b16 %v6423
  %v6661 = vunpack.c.h.b16 %v6423
  %v6662 = vunpack.c.l.b16 %v6424
  %v6663 = vunpack.c.h.b16 %v6424
  %v6664 = vunpack.c.l.b16 %v6425
  %v6665 = vunpack.c.h.b16 %v6425
  %v6666 = vunpack.c.l.b16 %v6426
  %v6667 = vunpack.c.h.b16 %v6426
  %v6668 = vunpack.c.l.b16 %v6427
  %v6669 = vunpack.c.h.b16 %v6427
  %v6670 = vunpack.c.l.b16 %v6428
  %v6671 = vunpack.c.h.b16 %v6428
  %v6672 = vunpack.c.l.b16 %v6429
  %v6673 = vunpack.c.h.b16 %v6429
  %v6674 = vunpack.c.l.b16 %v6430
  %v6675 = vunpack.c.h.b16 %v6430
  %v6676 = vunpack.c.l.b16 %v6431
  %v6677 = vunpack.c.h.b16 %v6431
  %v6678 = vpack.c.b16 %v6538, %v6534
  %v6679 = vpack.c.b16 %v6539, %v6535
  %v6680 = vpack.c.b16 %v6540, %v6536
  %v6681 = vpack.c.b16 %v6541, %v6537
  %v6682 = vpack.c.b16 %v6546, %v6542
  %v6683 = vpack.c.b16 %v6547, %v6543
  %v6684 = vpack.c.b16 %v6548, %v6544
  %v6685 = vpack.c.b16 %v6549, %v6545
  %v6686 = vpack.c.b16 %v6554, %v6550
  %v6687 = vpack.c.b16 %v6555, %v6551
  %v6688 = vpack.c.b16 %v6556, %v6552
  %v6689 = vpack.c.b16 %v6557, %v6553
  %v6690 = vpack.c.b16 %v6562, %v6558
  %v6691 = vpack.c.b16 %v6563, %v6559
  %v6692 = vpack.c.b16 %v6564, %v6560
  %v6693 = vpack.c.b16 %v6565, %v6561
  %v6694 = vpack.c.b16 %v6570, %v6566
  %v6695 = vpack.c.b16 %v6571, %v6567
  %v6696 = vpack.c.b16 %v6572, %v6568
  %v6697 = vpack.c.b16 %v6573, %v6569
  %v6698 = vpack.c.b16 %v6578, %v6574
  %v6699 = vpack.c.b16 %v6579, %v6575
  %v6700 = vpack.c.b16 %v6580, %v6576
  %v6701 = vpack.c.b16 %v6581, %v6577
  %v6702 = vpack.c.b16 %v6586, %v6582
  %v6703 = vpack.c.b16 %v6587, %v6583
  %v6704 = vpack.c.b16 %v6588, %v6584
  %v6705 = vpack.c.b16 %v6589, %v6585
  %v6706 = vpack.c.b16 %v6594, %v6590
  %v6707 = vpack.c.b16 %v6595, %v6591
  %v6708 = vpack.c.b16 %v6596, %v6592
  %v6709 = vpack.c.b16 %v6597, %v6593
  %v6710 = vpack.c.b16 %v6602, %v6598
  %v6711 = vpack.c.b16 %v6603, %v6599
  %v6712 = vpack.c.b16 %v6604, %v6600
  %v6713 = vpack.c.b16 %v6605, %v6601
  %v6714 = vpack.c.b16 %v6610, %v6606
  %v6715 = vpack.c.b16 %v6611, %v6607
  %v6716 = vpack.c.b16 %v6612, %v6608
  %v6717 = vpack.c.b16 %v6613, %v6609
  %v6718 = vpack.c.b16 %v6618, %v6614
  %v6719 = vpack.c.b16 %v6619, %v6615
  %v6720 = vpack.c.b16 %v6620, %v6616
  %v6721 = vpack.c.b16 %v6621, %v6617
  %v6722 = vpack.c.b16 %v6626, %v6622
  %v6723 = vpack.c.b16 %v6627, %v6623
  %v6724 = vpack.c.b16 %v6628, %v6624
  %v6725 = vpack.c.b16 %v6629, %v6625
  %v6726 = vpack.c.b16 %v6634, %v6630
  %v6727 = vpack.c.b16 %v6635, %v6631
  %v6728 = vpack.c.b16 %v6636, %v6632
  %v6729 = vpack.c.b16 %v6637, %v6633
  %v6730 = vpack.c.b16 %v6642, %v6638
  %v6731 = vpack.c.b16 %v6643, %v6639
  %v6732 = vpack.c.b16 %v6644, %v6640
  %v6733 = vpack.c.b16 %v6645, %v6641
  %v6734 = vpack.c.b16 %v6650, %v6646
  %v6735 = vpack.c.b16 %v6651, %v6647
  %v6736 = vpack.c.b16 %v6652, %v6648
  %v6737 = vpack.c.b16 %v6653, %v6649
  %v6738 = vpack.c.b16 %v6658, %v6654
  %v6739 = vpack.c.b16 %v6659, %v6655
  %v6740 = vpack.c.b16 %v6660, %v6656
  %v6741 = vpack.c.b16 %v6661, %v6657
  %v6742 = vpack.c.b16 %v6666, %v6662
  %v6743 = vpack.c.b16 %v6667, %v6663
  %v6744 = vpack.c.b16 %v6668, %v6664
  %v6745 = vpack.c.b16 %v6669, %v6665
  %v6746 = vpack.c.b16 %v6674, %v6670
  %v6747 = vpack.c.b16 %v6675, %v6671
  %v6748 = vpack.c.b16 %v6676, %v6672
  %v6749 = vpack.c.b16 %v6677, %v6673
  %v6823 = vsel %vm4301, %v6454, 0
  %v6826 = vsel %vm4301, %v6457, 0
  %6828 = vmatprep.subr.bf16.mxu0 %v6707
  %6829 = vmatpush1.bf16.msra.mxu0 %v6706
  %6830 = vmatprep.subr.bf16.mxu0 %v6703
  %6831 = vmatpush1.bf16.msra.mxu0 %v6702
  %6832 = vmatprep.subr.bf16.mxu0 %v6699
  %6833 = vmatpush1.bf16.msra.mxu0 %v6698
  %6834 = vmatprep.subr.bf16.mxu0 %v6695
  %6835 = vmatpush1.bf16.msra.mxu0 %v6694
  %6836 = vmatprep.subr.bf16.mxu0 %v6691
  %6837 = vmatpush1.bf16.msra.mxu0 %v6690
  %6838 = vmatprep.subr.bf16.mxu0 %v6687
  %6839 = vmatpush1.bf16.msra.mxu0 %v6686
  %6840 = vmatprep.subr.bf16.mxu0 %v6683
  %6841 = vmatpush1.bf16.msra.mxu0 %v6682
  %6842 = vmatprep.subr.bf16.mxu0 %v6679
  %6843 = vmatpush1.bf16.msra.mxu0 %v6678
  %6844 = vmatprep.subr.bf16.mxu0 %v6739
  %6845 = vmatpush2.bf16.msra.mxu0 %v6738
  %6846 = vmatprep.subr.bf16.mxu0 %v6735
  %6847 = vmatpush2.bf16.msra.mxu0 %v6734
  %6848 = vmatprep.subr.bf16.mxu0 %v6731
  %6849 = vmatpush2.bf16.msra.mxu0 %v6730
  %6850 = vmatprep.subr.bf16.mxu0 %v6727
  %6851 = vmatpush2.bf16.msra.mxu0 %v6726
  %6852 = vmatprep.subr.bf16.mxu0 %v6723
  %6853 = vmatpush2.bf16.msra.mxu0 %v6722
  %6854 = vmatprep.subr.bf16.mxu0 %v6719
  %6855 = vmatpush2.bf16.msra.mxu0 %v6718
  %6856 = vmatprep.subr.bf16.mxu0 %v6715
  %6857 = vmatpush2.bf16.msra.mxu0 %v6714
  %6858 = vmatprep.subr.bf16.mxu0 %v6711
  %6859 = vmatpush2.bf16.msra.mxu0 %v6710
  %6860 = vmatprep.mubr.bf16.mxu0 %v6453
  %6861 = vmatmul.mubr.bf16.gmra.mxu0 %v6452
  %v6862 = vpop.f32.mrf.mxu0
  %v6863 = vadd.f32 0.0, %v6862
  %v6864 = vpop.f32.mrf.mxu0
  %v6865 = vadd.f32 0.0, %v6864
  %v6866 = vpop.f32.mrf.mxu0
  %v6867 = vadd.f32 0.0, %v6866
  %v6868 = vpop.f32.mrf.mxu0
  %v6869 = vadd.f32 0.0, %v6868
  %6870 = vmatprep.mubr.bf16.mxu0 %v6456
  %6871 = vmatmul.mubr.bf16.gmra.mxu0 %v6455
  %v6872 = vpop.f32.mrf.mxu0
  %v6873 = vadd.f32 0.0, %v6872
  %v6874 = vpop.f32.mrf.mxu0
  %v6875 = vadd.f32 0.0, %v6874
  %v6876 = vpop.f32.mrf.mxu0
  %v6877 = vadd.f32 0.0, %v6876
  %v6878 = vpop.f32.mrf.mxu0
  %v6879 = vadd.f32 0.0, %v6878
  %6880 = vdwg.mxu0
  %6881 = vmatprep.subr.bf16.mxu0 0
  %6882 = vmatpush1.bf16.msra.mxu0 0
  %6883 = vmatprep.subr.bf16.mxu0 0
  %6884 = vmatpush1.bf16.msra.mxu0 0
  %6885 = vmatprep.subr.bf16.mxu0 0
  %6886 = vmatpush1.bf16.msra.mxu0 0
  %6887 = vmatprep.subr.bf16.mxu0 0
  %6888 = vmatpush1.bf16.msra.mxu0 0
  %6889 = vmatprep.subr.bf16.mxu0 0
  %6890 = vmatpush1.bf16.msra.mxu0 0
  %6891 = vmatprep.subr.bf16.mxu0 0
  %6892 = vmatpush1.bf16.msra.mxu0 0
  %6893 = vmatprep.subr.bf16.mxu0 %v6747
  %6894 = vmatpush1.bf16.msra.mxu0 %v6746
  %6895 = vmatprep.subr.bf16.mxu0 %v6743
  %6896 = vmatpush1.bf16.msra.mxu0 %v6742
  %6897 = vmatprep.subr.bf16.mxu0 0
  %6898 = vmatpush2.bf16.msra.mxu0 0
  %6899 = vmatprep.subr.bf16.mxu0 0
  %6900 = vmatpush2.bf16.msra.mxu0 0
  %6901 = vmatprep.subr.bf16.mxu0 0
  %6902 = vmatpush2.bf16.msra.mxu0 0
  %6903 = vmatprep.subr.bf16.mxu0 0
  %6904 = vmatpush2.bf16.msra.mxu0 0
  %6905 = vmatprep.subr.bf16.mxu0 0
  %6906 = vmatpush2.bf16.msra.mxu0 0
  %6907 = vmatprep.subr.bf16.mxu0 0
  %6908 = vmatpush2.bf16.msra.mxu0 0
  %6909 = vmatprep.subr.bf16.mxu0 0
  %6910 = vmatpush2.bf16.msra.mxu0 0
  %6911 = vmatprep.subr.bf16.mxu0 0
  %6912 = vmatpush2.bf16.msra.mxu0 0
  %6913 = vmatprep.mubr.bf16.mxu0 0
  %6914 = vmatmul.mubr.bf16.gmra.mxu0 %v6823
  %v6915 = vpop.f32.mrf.mxu0
  %v6916 = vadd.f32 %v6863, %v6915
  %v6917 = vpop.f32.mrf.mxu0
  %v6918 = vadd.f32 %v6865, %v6917
  %v6919 = vpop.f32.mrf.mxu0
  %v6920 = vadd.f32 %v6867, %v6919
  %v6921 = vpop.f32.mrf.mxu0
  %v6922 = vadd.f32 %v6869, %v6921
  %6923 = vmatprep.mubr.bf16.mxu0 0
  %6924 = vmatmul.mubr.bf16.gmra.mxu0 %v6826
  %v6925 = vpop.f32.mrf.mxu0
  %v6926 = vadd.f32 %v6873, %v6925
  %v6927 = vpop.f32.mrf.mxu0
  %v6928 = vadd.f32 %v6875, %v6927
  %v6929 = vpop.f32.mrf.mxu0
  %v6930 = vadd.f32 %v6877, %v6929
  %v6931 = vpop.f32.mrf.mxu0
  %v6932 = vadd.f32 %v6879, %v6931
  %6933 = vdwg.mxu0
  %6934 = vmatprep.subr.bf16.mxu0 %v6709
  %6935 = vmatpush1.bf16.msra.mxu0 %v6708
  %6936 = vmatprep.subr.bf16.mxu0 %v6705
  %6937 = vmatpush1.bf16.msra.mxu0 %v6704
  %6938 = vmatprep.subr.bf16.mxu0 %v6701
  %6939 = vmatpush1.bf16.msra.mxu0 %v6700
  %6940 = vmatprep.subr.bf16.mxu0 %v6697
  %6941 = vmatpush1.bf16.msra.mxu0 %v6696
  %6942 = vmatprep.subr.bf16.mxu0 %v6693
  %6943 = vmatpush1.bf16.msra.mxu0 %v6692
  %6944 = vmatprep.subr.bf16.mxu0 %v6689
  %6945 = vmatpush1.bf16.msra.mxu0 %v6688
  %6946 = vmatprep.subr.bf16.mxu0 %v6685
  %6947 = vmatpush1.bf16.msra.mxu0 %v6684
  %6948 = vmatprep.subr.bf16.mxu0 %v6681
  %6949 = vmatpush1.bf16.msra.mxu0 %v6680
  %6950 = vmatprep.subr.bf16.mxu0 %v6741
  %6951 = vmatpush2.bf16.msra.mxu0 %v6740
  %6952 = vmatprep.subr.bf16.mxu0 %v6737
  %6953 = vmatpush2.bf16.msra.mxu0 %v6736
  %6954 = vmatprep.subr.bf16.mxu0 %v6733
  %6955 = vmatpush2.bf16.msra.mxu0 %v6732
  %6956 = vmatprep.subr.bf16.mxu0 %v6729
  %6957 = vmatpush2.bf16.msra.mxu0 %v6728
  %6958 = vmatprep.subr.bf16.mxu0 %v6725
  %6959 = vmatpush2.bf16.msra.mxu0 %v6724
  %6960 = vmatprep.subr.bf16.mxu0 %v6721
  %6961 = vmatpush2.bf16.msra.mxu0 %v6720
  %6962 = vmatprep.subr.bf16.mxu0 %v6717
  %6963 = vmatpush2.bf16.msra.mxu0 %v6716
  %6964 = vmatprep.subr.bf16.mxu0 %v6713
  %6965 = vmatpush2.bf16.msra.mxu0 %v6712
  %6966 = vmatprep.mubr.bf16.mxu0 %v6453
  %6967 = vmatmul.mubr.bf16.gmra.mxu0 %v6452
  %v6968 = vpop.f32.mrf.mxu0
  %v6969 = vadd.f32 0.0, %v6968
  %v6970 = vpop.f32.mrf.mxu0
  %v6971 = vadd.f32 0.0, %v6970
  %v6972 = vpop.f32.mrf.mxu0
  %v6973 = vadd.f32 0.0, %v6972
  %v6974 = vpop.f32.mrf.mxu0
  %v6975 = vadd.f32 0.0, %v6974
  %6976 = vmatprep.mubr.bf16.mxu0 %v6456
  %6977 = vmatmul.mubr.bf16.gmra.mxu0 %v6455
  %v6978 = vpop.f32.mrf.mxu0
  %v6979 = vadd.f32 0.0, %v6978
  %v6980 = vpop.f32.mrf.mxu0
  %v6981 = vadd.f32 0.0, %v6980
  %v6982 = vpop.f32.mrf.mxu0
  %v6983 = vadd.f32 0.0, %v6982
  %v6984 = vpop.f32.mrf.mxu0
  %v6985 = vadd.f32 0.0, %v6984
  %6986 = vdwg.mxu0
  %6987 = vmatprep.subr.bf16.mxu0 0
  %6988 = vmatpush1.bf16.msra.mxu0 0
  %6989 = vmatprep.subr.bf16.mxu0 0
  %6990 = vmatpush1.bf16.msra.mxu0 0
  %6991 = vmatprep.subr.bf16.mxu0 0
  %6992 = vmatpush1.bf16.msra.mxu0 0
  %6993 = vmatprep.subr.bf16.mxu0 0
  %6994 = vmatpush1.bf16.msra.mxu0 0
  %6995 = vmatprep.subr.bf16.mxu0 0
  %6996 = vmatpush1.bf16.msra.mxu0 0
  %6997 = vmatprep.subr.bf16.mxu0 0
  %6998 = vmatpush1.bf16.msra.mxu0 0
  %6999 = vmatprep.subr.bf16.mxu0 %v6749
  %7000 = vmatpush1.bf16.msra.mxu0 %v6748
  %7001 = vmatprep.subr.bf16.mxu0 %v6745
  %7002 = vmatpush1.bf16.msra.mxu0 %v6744
  %7003 = vmatprep.subr.bf16.mxu0 0
  %7004 = vmatpush2.bf16.msra.mxu0 0
  %7005 = vmatprep.subr.bf16.mxu0 0
  %7006 = vmatpush2.bf16.msra.mxu0 0
  %7007 = vmatprep.subr.bf16.mxu0 0
  %7008 = vmatpush2.bf16.msra.mxu0 0
  %7009 = vmatprep.subr.bf16.mxu0 0
  %7010 = vmatpush2.bf16.msra.mxu0 0
  %7011 = vmatprep.subr.bf16.mxu0 0
  %7012 = vmatpush2.bf16.msra.mxu0 0
  %7013 = vmatprep.subr.bf16.mxu0 0
  %7014 = vmatpush2.bf16.msra.mxu0 0
  %7015 = vmatprep.subr.bf16.mxu0 0
  %7016 = vmatpush2.bf16.msra.mxu0 0
  %7017 = vmatprep.subr.bf16.mxu0 0
  %7018 = vmatpush2.bf16.msra.mxu0 0
  %7019 = vmatprep.mubr.bf16.mxu0 0
  %7020 = vmatmul.mubr.bf16.gmra.mxu0 %v6823
  %v7021 = vpop.f32.mrf.mxu0
  %v7022 = vadd.f32 %v6969, %v7021
  %v7023 = vpop.f32.mrf.mxu0
  %v7024 = vadd.f32 %v6971, %v7023
  %v7025 = vpop.f32.mrf.mxu0
  %v7026 = vadd.f32 %v6973, %v7025
  %v7027 = vpop.f32.mrf.mxu0
  %v7028 = vadd.f32 %v6975, %v7027
  %7029 = vmatprep.mubr.bf16.mxu0 0
  %7030 = vmatmul.mubr.bf16.gmra.mxu0 %v6826
  %v7031 = vpop.f32.mrf.mxu0
  %v7032 = vadd.f32 %v6979, %v7031
  %v7033 = vpop.f32.mrf.mxu0
  %v7034 = vadd.f32 %v6981, %v7033
  %v7035 = vpop.f32.mrf.mxu0
  %v7036 = vadd.f32 %v6983, %v7035
  %v7037 = vpop.f32.mrf.mxu0
  %v7038 = vadd.f32 %v6985, %v7037
  %7039 = vdwg.mxu0
  %v7040 = vadd.f32 %v6916, %v6918
  %v7041 = vadd.f32 %v7040, %v7022
  %v7042 = vadd.f32 %v7041, %v7024
  %7043 = vadd.xlane.f32.xlu0 %v7042
  %v7044 = vpop.xlane.xlu0 %7043
  %v7045 = vadd.f32 %v6920, %v6922
  %v7046 = vadd.f32 %v7045, %v7026
  %v7047 = vadd.f32 %v7046, %v7028
  %7048 = vadd.xlane.f32.xlu0 %v7047
  %v7049 = vpop.xlane.xlu0 %7048
  %v7050 = vadd.f32 %v6926, %v6928
  %v7051 = vadd.f32 %v7050, %v7032
  %v7052 = vadd.f32 %v7051, %v7034
  %7053 = vadd.xlane.f32.xlu0 %v7052
  %v7054 = vpop.xlane.xlu0 %7053
  %v7055 = vadd.f32 %v6930, %v6932
  %v7056 = vadd.f32 %v7055, %v7036
  %v7057 = vadd.f32 %v7056, %v7038
  %7058 = vadd.xlane.f32.xlu0 %v7057
  %v7059 = vpop.xlane.xlu0 %7058
  %v7060 = vmul.f32 %v7044, 0.001953125
  %v7061 = vmul.f32 %v7049, 0.001953125
  %v7062 = vmul.f32 %v7054, 0.001953125
  %v7063 = vmul.f32 %v7059, 0.001953125
  %v7064 = vmul.f32 %v6916, %v6916
  %v7065 = vmul.f32 %v6918, %v6918
  %v7066 = vmul.f32 %v7022, %v7022
  %v7067 = vmul.f32 %v7024, %v7024
  %v7068 = vmul.f32 %v6920, %v6920
  %v7069 = vmul.f32 %v6922, %v6922
  %v7070 = vmul.f32 %v7026, %v7026
  %v7071 = vmul.f32 %v7028, %v7028
  %v7072 = vmul.f32 %v6926, %v6926
  %v7073 = vmul.f32 %v6928, %v6928
  %v7074 = vmul.f32 %v7032, %v7032
  %v7075 = vmul.f32 %v7034, %v7034
  %v7076 = vmul.f32 %v6930, %v6930
  %v7077 = vmul.f32 %v6932, %v6932
  %v7078 = vmul.f32 %v7036, %v7036
  %v7079 = vmul.f32 %v7038, %v7038
  %v7080 = vadd.f32 %v7064, %v7065
  %v7081 = vadd.f32 %v7080, %v7066
  %v7082 = vadd.f32 %v7081, %v7067
  %7083 = vadd.xlane.f32.xlu0 %v7082
  %v7084 = vpop.xlane.xlu0 %7083
  %v7085 = vadd.f32 %v7068, %v7069
  %v7086 = vadd.f32 %v7085, %v7070
  %v7087 = vadd.f32 %v7086, %v7071
  %7088 = vadd.xlane.f32.xlu0 %v7087
  %v7089 = vpop.xlane.xlu0 %7088
  %v7090 = vadd.f32 %v7072, %v7073
  %v7091 = vadd.f32 %v7090, %v7074
  %v7092 = vadd.f32 %v7091, %v7075
  %7093 = vadd.xlane.f32.xlu0 %v7092
  %v7094 = vpop.xlane.xlu0 %7093
  %v7095 = vadd.f32 %v7076, %v7077
  %v7096 = vadd.f32 %v7095, %v7078
  %v7097 = vadd.f32 %v7096, %v7079
  %7098 = vadd.xlane.f32.xlu0 %v7097
  %v7099 = vpop.xlane.xlu0 %7098
  %v7100 = vmul.f32 %v7084, 0.001953125
  %v7101 = vmul.f32 %v7089, 0.001953125
  %v7102 = vmul.f32 %v7094, 0.001953125
  %v7103 = vmul.f32 %v7099, 0.001953125
  %v7104 = vmul.f32 %v7060, %v7060
  %v7105 = vmul.f32 %v7061, %v7061
  %v7106 = vmul.f32 %v7062, %v7062
  %v7107 = vmul.f32 %v7063, %v7063
  %v7108 = vsub.f32 %v7100, %v7104
  %v7109 = vsub.f32 %v7101, %v7105
  %v7110 = vsub.f32 %v7102, %v7106
  %v7111 = vsub.f32 %v7103, %v7107
  %v7112 = vmax.f32 %v7108, 0.0
  %v7113 = vmax.f32 %v7109, 0.0
  %v7114 = vmax.f32 %v7110, 0.0
  %v7115 = vmax.f32 %v7111, 0.0
  %v7116 = vld [vmem:[%s9] sm:$0xff]
  %v7117 = vld [vmem:[%s9 + $0x8] sm:$0xff]
  %v7118 = vld [vmem:[%s9 + $0x10] sm:$0xff]
  %v7119 = vld [vmem:[%s9 + $0x18] sm:$0xff]
  %v7120 = vadd.f32 %v7112, 1e-05
  %v7121 = vadd.f32 %v7113, 1e-05
  %v7122 = vadd.f32 %v7114, 1e-05
  %v7123 = vadd.f32 %v7115, 1e-05
  %v7124 = vrsqrt.pop %v7120
  %v7125 = vrsqrt.pop %v7121
  %v7126 = vrsqrt.pop %v7122
  %v7127 = vrsqrt.pop %v7123
  %v7128 = vmul.f32 %v7116, %v7124
  %v7129 = vmul.f32 %v7117, %v7125
  %v7130 = vmul.f32 %v7118, %v7126
  %v7131 = vmul.f32 %v7119, %v7127
  %v7132 = vld [vmem:[%s10] sm:$0xff]
  %v7133 = vld [vmem:[%s10 + $0x8] sm:$0xff]
  %v7134 = vld [vmem:[%s10 + $0x10] sm:$0xff]
  %v7135 = vld [vmem:[%s10 + $0x18] sm:$0xff]
  %v7136 = vmul.f32 %v7060, %v7128
  %v7137 = vmul.f32 %v7061, %v7129
  %v7138 = vmul.f32 %v7062, %v7130
  %v7139 = vmul.f32 %v7063, %v7131
  %v7140 = vsub.f32 %v7132, %v7136
  %v7141 = vsub.f32 %v7133, %v7137
  %v7142 = vsub.f32 %v7134, %v7138
  %v7143 = vsub.f32 %v7135, %v7139
  %7145 = vset.pattern.permute.xlu0 0
  %7146 = vperm.xlu0 %7145, %v7128
  %v7147 = vpop.permute.xlu0 %7146
  %7150 = vset.pattern.permute.xlu0 0
  %7151 = vperm.xlu0 %7150, %v7129
  %v7152 = vpop.permute.xlu0 %7151
  %7155 = vset.pattern.permute.xlu0 0
  %7156 = vperm.xlu0 %7155, %v7130
  %v7157 = vpop.permute.xlu0 %7156
  %7160 = vset.pattern.permute.xlu0 0
  %7161 = vperm.xlu0 %7160, %v7131
  %v7162 = vpop.permute.xlu0 %7161
  %v7164 = vmul.f32 %v6916, %v7147
  %v7165 = vmul.f32 %v6918, %v7147
  %v7166 = vmul.f32 %v7022, %v7147
  %v7167 = vmul.f32 %v7024, %v7147
  %v7168 = vmul.f32 %v6920, %v7152
  %v7169 = vmul.f32 %v6922, %v7152
  %v7170 = vmul.f32 %v7026, %v7152
  %v7171 = vmul.f32 %v7028, %v7152
  %v7172 = vmul.f32 %v6926, %v7157
  %v7173 = vmul.f32 %v6928, %v7157
  %v7174 = vmul.f32 %v7032, %v7157
  %v7175 = vmul.f32 %v7034, %v7157
  %v7176 = vmul.f32 %v6930, %v7162
  %v7177 = vmul.f32 %v6932, %v7162
  %v7178 = vmul.f32 %v7036, %v7162
  %v7179 = vmul.f32 %v7038, %v7162
  %7181 = vset.pattern.permute.xlu0 0
  %7182 = vperm.xlu0 %7181, %v7140
  %v7183 = vpop.permute.xlu0 %7182
  %7186 = vset.pattern.permute.xlu0 0
  %7187 = vperm.xlu0 %7186, %v7141
  %v7188 = vpop.permute.xlu0 %7187
  %7191 = vset.pattern.permute.xlu0 0
  %7192 = vperm.xlu0 %7191, %v7142
  %v7193 = vpop.permute.xlu0 %7192
  %7196 = vset.pattern.permute.xlu0 0
  %7197 = vperm.xlu0 %7196, %v7143
  %v7198 = vpop.permute.xlu0 %7197
  %v7200 = vadd.f32 %v7164, %v7183
  %v7201 = vadd.f32 %v7165, %v7183
  %v7202 = vadd.f32 %v7166, %v7183
  %v7203 = vadd.f32 %v7167, %v7183
  %v7204 = vadd.f32 %v7168, %v7188
  %v7205 = vadd.f32 %v7169, %v7188
  %v7206 = vadd.f32 %v7170, %v7188
  %v7207 = vadd.f32 %v7171, %v7188
  %v7208 = vadd.f32 %v7172, %v7193
  %v7209 = vadd.f32 %v7173, %v7193
  %v7210 = vadd.f32 %v7174, %v7193
  %v7211 = vadd.f32 %v7175, %v7193
  %v7212 = vadd.f32 %v7176, %v7198
  %v7213 = vadd.f32 %v7177, %v7198
  %v7214 = vadd.f32 %v7178, %v7198
  %v7215 = vadd.f32 %v7179, %v7198
  %v7216 = vmax.f32 %v7200, 0.0
  %v7217 = vmax.f32 %v7201, 0.0
  %v7218 = vmax.f32 %v7202, 0.0
  %v7219 = vmax.f32 %v7203, 0.0
  %v7220 = vmax.f32 %v7204, 0.0
  %v7221 = vmax.f32 %v7205, 0.0
  %v7222 = vmax.f32 %v7206, 0.0
  %v7223 = vmax.f32 %v7207, 0.0
  %v7224 = vmax.f32 %v7208, 0.0
  %v7225 = vmax.f32 %v7209, 0.0
  %v7226 = vmax.f32 %v7210, 0.0
  %v7227 = vmax.f32 %v7211, 0.0
  %v7228 = vmax.f32 %v7212, 0.0
  %v7229 = vmax.f32 %v7213, 0.0
  %v7230 = vmax.f32 %v7214, 0.0
  %v7231 = vmax.f32 %v7215, 0.0
  %7232 = vst [vmem:[#allocation2 + $0x8] sm:$0xff] %v7216
  %7233 = vst [vmem:[#allocation2 + $0x10] sm:$0xff] %v7217
  %7234 = vst [vmem:[#allocation2 + $0x18] sm:$0xff] %v7218
  %7235 = vst [vmem:[#allocation2 + $0x20] sm:$0xff] %v7219
  %7236 = vst [vmem:[#allocation2 + $0x38] sm:$0xff] %v7220
  %7237 = vst [vmem:[#allocation2 + $0x40] sm:$0xff] %v7221
  %7238 = vst [vmem:[#allocation2 + $0x48] sm:$0xff] %v7222
  %7239 = vst [vmem:[#allocation2 + $0x50] sm:$0xff] %v7223
  %7240 = vst [vmem:[#allocation2 + $0x68] sm:$0xff] %v7224
  %7241 = vst [vmem:[#allocation2 + $0x70] sm:$0xff] %v7225
  %7242 = vst [vmem:[#allocation2 + $0x78] sm:$0xff] %v7226
  %7243 = vst [vmem:[#allocation2 + $0x80] sm:$0xff] %v7227
  %7244 = vst [vmem:[#allocation2 + $0x98] sm:$0xff] %v7228
  %7245 = vst [vmem:[#allocation2 + $0xa0] sm:$0xff] %v7229
  %7246 = vst [vmem:[#allocation2 + $0xa8] sm:$0xff] %v7230
  %7247 = vst [vmem:[#allocation2 + $0xb0] sm:$0xff] %v7231
  %v7248 = vld [vmem:[#allocation2] sm:$0xff]
  %v7249 = vld [vmem:[#allocation2 + $0x8] sm:$0xff]
  %v7250 = vld [vmem:[#allocation2 + $0x10] sm:$0xff]
  %v7251 = vld [vmem:[#allocation2 + $0x18] sm:$0xff]
  %v7252 = vld [vmem:[#allocation2 + $0x20] sm:$0xff]
  %v7253 = vld [vmem:[#allocation2 + $0x30] sm:$0xff]
  %v7254 = vld [vmem:[#allocation2 + $0x38] sm:$0xff]
  %v7255 = vld [vmem:[#allocation2 + $0x40] sm:$0xff]
  %v7256 = vld [vmem:[#allocation2 + $0x48] sm:$0xff]
  %v7257 = vld [vmem:[#allocation2 + $0x50] sm:$0xff]
  %v7258 = vld [vmem:[#allocation2 + $0x60] sm:$0xff]
  %v7259 = vld [vmem:[#allocation2 + $0x68] sm:$0xff]
  %v7260 = vld [vmem:[#allocation2 + $0x70] sm:$0xff]
  %v7261 = vld [vmem:[#allocation2 + $0x78] sm:$0xff]
  %v7262 = vld [vmem:[#allocation2 + $0x80] sm:$0xff]
  %v7263 = vld [vmem:[#allocation2 + $0x90] sm:$0xff]
  %v7264 = vld [vmem:[#allocation2 + $0x98] sm:$0xff]
  %v7265 = vld [vmem:[#allocation2 + $0xa0] sm:$0xff]
  %v7266 = vld [vmem:[#allocation2 + $0xa8] sm:$0xff]
  %v7267 = vld [vmem:[#allocation2 + $0xb0] sm:$0xff]
  %v7268 = vld [vmem:[%s1] sm:$0xf]
  %v7270 = vlaneseq
  %v7271 = vshrl.u32 %v7270, 7
  %v7272 = vsub.s32 0, %v7271
  %v7273 = vrot.slane %v7268, %v7272
  %v7274 = vlaneseq
  %v7275 = vshrl.u32 %v7274, 7
  %v7276 = vsub.s32 1, %v7275
  %v7277 = vrot.slane %v7268, %v7276
  %v7278 = vlaneseq
  %v7279 = vshrl.u32 %v7278, 7
  %v7280 = vsub.s32 2, %v7279
  %v7281 = vrot.slane %v7268, %v7280
  %v7282 = vlaneseq
  %v7283 = vshrl.u32 %v7282, 7
  %v7284 = vsub.s32 3, %v7283
  %v7285 = vrot.slane %v7268, %v7284
  %7286 = vrot.lane.b32.xlu0 %v7273, 111
  %v7287 = vpop.permute.xlu0 %7286
  %7288 = vrot.lane.b32.xlu0 %v7277, 111
  %v7289 = vpop.permute.xlu0 %7288
  %7290 = vrot.lane.b32.xlu0 %v7281, 111
  %v7291 = vpop.permute.xlu0 %7290
  %7292 = vrot.lane.b32.xlu0 %v7285, 111
  %v7293 = vpop.permute.xlu0 %7292
  %v7294 = vsel %vm121, %v7287, %v7289
  %v7295 = vsel %vm121, %v7289, %v7291
  %v7296 = vsel %vm121, %v7291, %v7293
  %v7302 = vmul.f32 %v7248, %v7287
  %v7303 = vmul.f32 %v7249, %v7294
  %v7304 = vmul.f32 %v7250, %v7295
  %v7305 = vmul.f32 %v7251, %v7296
  %v7306 = vmul.f32 %v7252, %v7293
  %v7307 = vmul.f32 %v7253, %v7287
  %v7308 = vmul.f32 %v7254, %v7294
  %v7309 = vmul.f32 %v7255, %v7295
  %v7310 = vmul.f32 %v7256, %v7296
  %v7311 = vmul.f32 %v7257, %v7293
  %v7312 = vmul.f32 %v7258, %v7287
  %v7313 = vmul.f32 %v7259, %v7294
  %v7314 = vmul.f32 %v7260, %v7295
  %v7315 = vmul.f32 %v7261, %v7296
  %v7316 = vmul.f32 %v7262, %v7293
  %v7317 = vmul.f32 %v7263, %v7287
  %v7318 = vmul.f32 %v7264, %v7294
  %v7319 = vmul.f32 %v7265, %v7295
  %v7320 = vmul.f32 %v7266, %v7296
  %v7321 = vmul.f32 %v7267, %v7293
  %v7322 = vpack.c.bf16 %v7307, %v7302
  %v7323 = vpack.c.bf16 %v7308, %v7303
  %v7324 = vpack.c.bf16 %v7309, %v7304
  %v7325 = vpack.c.bf16 %v7310, %v7305
  %v7326 = vpack.c.bf16 %v7311, %v7306
  %v7327 = vpack.c.bf16 %v7317, %v7312
  %v7328 = vpack.c.bf16 %v7318, %v7313
  %v7329 = vpack.c.bf16 %v7319, %v7314
  %v7330 = vpack.c.bf16 %v7320, %v7315
  %v7331 = vpack.c.bf16 %v7321, %v7316
  %v7342 = vunpack.c.l.b16 %v7322
  %v7343 = vunpack.c.l.b16 %v7323
  %v7344 = vunpack.c.l.b16 %v7324
  %v7345 = vunpack.c.l.b16 %v7325
  %v7346 = vunpack.c.l.b16 %v7326
  %v7347 = vunpack.c.h.b16 %v7322
  %v7348 = vunpack.c.h.b16 %v7323
  %v7349 = vunpack.c.h.b16 %v7324
  %v7350 = vunpack.c.h.b16 %v7325
  %v7351 = vunpack.c.h.b16 %v7326
  %v7352 = vunpack.c.l.b16 %v7327
  %v7353 = vunpack.c.l.b16 %v7328
  %v7354 = vunpack.c.l.b16 %v7329
  %v7355 = vunpack.c.l.b16 %v7330
  %v7356 = vunpack.c.l.b16 %v7331
  %v7357 = vunpack.c.h.b16 %v7327
  %v7358 = vunpack.c.h.b16 %v7328
  %v7359 = vunpack.c.h.b16 %v7329
  %v7360 = vunpack.c.h.b16 %v7330
  %v7361 = vunpack.c.h.b16 %v7331
  %v7362 = vpack.c.b16 %v7343, %v7342
  %v7363 = vpack.c.b16 %v7345, %v7344
  %v7364 = vpack.c.b16 %v7346, %v7346
  %v7365 = vpack.c.b16 %v7348, %v7347
  %v7366 = vpack.c.b16 %v7350, %v7349
  %v7367 = vpack.c.b16 %v7351, %v7351
  %v7368 = vpack.c.b16 %v7353, %v7352
  %v7369 = vpack.c.b16 %v7355, %v7354
  %v7370 = vpack.c.b16 %v7356, %v7356
  %v7371 = vpack.c.b16 %v7358, %v7357
  %v7372 = vpack.c.b16 %v7360, %v7359
  %v7373 = vpack.c.b16 %v7361, %v7361
  %7374 = vrot.lane.b32.xlu0 %v7362, 17
  %v7375 = vpop.permute.xlu0 %7374
  %7376 = vrot.lane.b32.xlu0 %v7363, 17
  %v7377 = vpop.permute.xlu0 %7376
  %7378 = vrot.lane.b32.xlu0 %v7364, 17
  %v7379 = vpop.permute.xlu0 %7378
  %7380 = vrot.lane.b32.xlu0 %v7365, 17
  %v7381 = vpop.permute.xlu0 %7380
  %7382 = vrot.lane.b32.xlu0 %v7366, 17
  %v7383 = vpop.permute.xlu0 %7382
  %7384 = vrot.lane.b32.xlu0 %v7367, 17
  %v7385 = vpop.permute.xlu0 %7384
  %7386 = vrot.lane.b32.xlu0 %v7368, 17
  %v7387 = vpop.permute.xlu0 %7386
  %7388 = vrot.lane.b32.xlu0 %v7369, 17
  %v7389 = vpop.permute.xlu0 %7388
  %7390 = vrot.lane.b32.xlu0 %v7370, 17
  %v7391 = vpop.permute.xlu0 %7390
  %7392 = vrot.lane.b32.xlu0 %v7371, 17
  %v7393 = vpop.permute.xlu0 %7392
  %7394 = vrot.lane.b32.xlu0 %v7372, 17
  %v7395 = vpop.permute.xlu0 %7394
  %7396 = vrot.lane.b32.xlu0 %v7373, 17
  %v7397 = vpop.permute.xlu0 %7396
  %v7398 = vrot.slane %v7375, 4
  %v7399 = vrot.slane %v7377, 4
  %v7400 = vrot.slane %v7379, 4
  %v7401 = vrot.slane %v7381, 4
  %v7402 = vrot.slane %v7383, 4
  %v7403 = vrot.slane %v7385, 4
  %v7404 = vrot.slane %v7387, 4
  %v7405 = vrot.slane %v7389, 4
  %v7406 = vrot.slane %v7391, 4
  %v7407 = vrot.slane %v7393, 4
  %v7408 = vrot.slane %v7395, 4
  %v7409 = vrot.slane %v7397, 4
  %v7410 = vsel %vm2368, %v7398, %v7399
  %v7411 = vsel %vm379, %v7375, %v7410
  %v7412 = vsel %vm2368, %v7399, %v7400
  %v7413 = vsel %vm379, %v7377, %v7412
  %v7414 = vsel %vm2368, %v7401, %v7402
  %v7415 = vsel %vm379, %v7381, %v7414
  %v7416 = vsel %vm2368, %v7402, %v7403
  %v7417 = vsel %vm379, %v7383, %v7416
  %v7418 = vsel %vm2368, %v7404, %v7405
  %v7419 = vsel %vm379, %v7387, %v7418
  %v7420 = vsel %vm2368, %v7405, %v7406
  %v7421 = vsel %vm379, %v7389, %v7420
  %v7422 = vsel %vm2368, %v7407, %v7408
  %v7423 = vsel %vm379, %v7393, %v7422
  %v7424 = vsel %vm2368, %v7408, %v7409
  %v7425 = vsel %vm379, %v7395, %v7424
  %7434 = vst [vmem:[#allocation3] sm:$0xff] %v7411
  %7435 = vst [vmem:[#allocation3 + $0x8] sm:$0xff] %v7413
  %7436 = vst [vmem:[#allocation3 + $0x10] sm:$0xff] %v7415
  %7437 = vst [vmem:[#allocation3 + $0x18] sm:$0xff] %v7417
  %7438 = vst [vmem:[#allocation3 + $0x20] sm:$0xff] %v7419
  %7439 = vst [vmem:[#allocation3 + $0x28] sm:$0xff] %v7421
  %7440 = vst [vmem:[#allocation3 + $0x30] sm:$0xff] %v7423
  %7441 = vst [vmem:[#allocation3 + $0x38] sm:$0xff] %v7425
  %v7442 = vld [vmem:[#allocation2] sm:$0xff]
  %v7443 = vld [vmem:[#allocation2 + $0x8] sm:$0xff]
  %v7444 = vld [vmem:[#allocation2 + $0x10] sm:$0xff]
  %v7445 = vld [vmem:[#allocation2 + $0x18] sm:$0xff]
  %v7446 = vld [vmem:[#allocation2 + $0x20] sm:$0xff]
  %v7447 = vld [vmem:[#allocation2 + $0x30] sm:$0xff]
  %v7448 = vld [vmem:[#allocation2 + $0x38] sm:$0xff]
  %v7449 = vld [vmem:[#allocation2 + $0x40] sm:$0xff]
  %v7450 = vld [vmem:[#allocation2 + $0x48] sm:$0xff]
  %v7451 = vld [vmem:[#allocation2 + $0x50] sm:$0xff]
  %v7452 = vld [vmem:[#allocation2 + $0x60] sm:$0xff]
  %v7453 = vld [vmem:[#allocation2 + $0x68] sm:$0xff]
  %v7454 = vld [vmem:[#allocation2 + $0x70] sm:$0xff]
  %v7455 = vld [vmem:[#allocation2 + $0x78] sm:$0xff]
  %v7456 = vld [vmem:[#allocation2 + $0x80] sm:$0xff]
  %v7457 = vld [vmem:[#allocation2 + $0x90] sm:$0xff]
  %v7458 = vld [vmem:[#allocation2 + $0x98] sm:$0xff]
  %v7459 = vld [vmem:[#allocation2 + $0xa0] sm:$0xff]
  %v7460 = vld [vmem:[#allocation2 + $0xa8] sm:$0xff]
  %v7461 = vld [vmem:[#allocation2 + $0xb0] sm:$0xff]
  %v7462 = vld [vmem:[%s144] sm:$0xf]
  %v7464 = vlaneseq
  %v7465 = vshrl.u32 %v7464, 7
  %v7466 = vsub.s32 0, %v7465
  %v7467 = vrot.slane %v7462, %v7466
  %v7468 = vlaneseq
  %v7469 = vshrl.u32 %v7468, 7
  %v7470 = vsub.s32 1, %v7469
  %v7471 = vrot.slane %v7462, %v7470
  %v7472 = vlaneseq
  %v7473 = vshrl.u32 %v7472, 7
  %v7474 = vsub.s32 2, %v7473
  %v7475 = vrot.slane %v7462, %v7474
  %v7476 = vlaneseq
  %v7477 = vshrl.u32 %v7476, 7
  %v7478 = vsub.s32 3, %v7477
  %v7479 = vrot.slane %v7462, %v7478
  %7480 = vrot.lane.b32.xlu0 %v7467, 112
  %v7481 = vpop.permute.xlu0 %7480
  %7482 = vrot.lane.b32.xlu0 %v7471, 112
  %v7483 = vpop.permute.xlu0 %7482
  %7484 = vrot.lane.b32.xlu0 %v7475, 112
  %v7485 = vpop.permute.xlu0 %7484
  %7486 = vrot.lane.b32.xlu0 %v7479, 112
  %v7487 = vpop.permute.xlu0 %7486
  %v7488 = vsel %vm171, %v7481, %v7483
  %v7489 = vsel %vm171, %v7483, %v7485
  %v7490 = vsel %vm171, %v7485, %v7487
  %v7496 = vmul.f32 %v7442, %v7481
  %v7497 = vmul.f32 %v7443, %v7488
  %v7498 = vmul.f32 %v7444, %v7489
  %v7499 = vmul.f32 %v7445, %v7490
  %v7500 = vmul.f32 %v7446, %v7487
  %v7501 = vmul.f32 %v7447, %v7481
  %v7502 = vmul.f32 %v7448, %v7488
  %v7503 = vmul.f32 %v7449, %v7489
  %v7504 = vmul.f32 %v7450, %v7490
  %v7505 = vmul.f32 %v7451, %v7487
  %v7506 = vmul.f32 %v7452, %v7481
  %v7507 = vmul.f32 %v7453, %v7488
  %v7508 = vmul.f32 %v7454, %v7489
  %v7509 = vmul.f32 %v7455, %v7490
  %v7510 = vmul.f32 %v7456, %v7487
  %v7511 = vmul.f32 %v7457, %v7481
  %v7512 = vmul.f32 %v7458, %v7488
  %v7513 = vmul.f32 %v7459, %v7489
  %v7514 = vmul.f32 %v7460, %v7490
  %v7515 = vmul.f32 %v7461, %v7487
  %v7516 = vpack.c.bf16 %v7501, %v7496
  %v7517 = vpack.c.bf16 %v7502, %v7497
  %v7518 = vpack.c.bf16 %v7503, %v7498
  %v7519 = vpack.c.bf16 %v7504, %v7499
  %v7520 = vpack.c.bf16 %v7505, %v7500
  %v7521 = vpack.c.bf16 %v7511, %v7506
  %v7522 = vpack.c.bf16 %v7512, %v7507
  %v7523 = vpack.c.bf16 %v7513, %v7508
  %v7524 = vpack.c.bf16 %v7514, %v7509
  %v7525 = vpack.c.bf16 %v7515, %v7510
  %v7536 = vunpack.c.l.b16 %v7516
  %v7537 = vunpack.c.l.b16 %v7517
  %v7538 = vunpack.c.l.b16 %v7518
  %v7539 = vunpack.c.l.b16 %v7519
  %v7540 = vunpack.c.l.b16 %v7520
  %v7541 = vunpack.c.h.b16 %v7516
  %v7542 = vunpack.c.h.b16 %v7517
  %v7543 = vunpack.c.h.b16 %v7518
  %v7544 = vunpack.c.h.b16 %v7519
  %v7545 = vunpack.c.h.b16 %v7520
  %v7546 = vunpack.c.l.b16 %v7521
  %v7547 = vunpack.c.l.b16 %v7522
  %v7548 = vunpack.c.l.b16 %v7523
  %v7549 = vunpack.c.l.b16 %v7524
  %v7550 = vunpack.c.l.b16 %v7525
  %v7551 = vunpack.c.h.b16 %v7521
  %v7552 = vunpack.c.h.b16 %v7522
  %v7553 = vunpack.c.h.b16 %v7523
  %v7554 = vunpack.c.h.b16 %v7524
  %v7555 = vunpack.c.h.b16 %v7525
  %v7556 = vpack.c.b16 %v7537, %v7536
  %v7557 = vpack.c.b16 %v7539, %v7538
  %v7558 = vpack.c.b16 %v7540, %v7540
  %v7559 = vpack.c.b16 %v7542, %v7541
  %v7560 = vpack.c.b16 %v7544, %v7543
  %v7561 = vpack.c.b16 %v7545, %v7545
  %v7562 = vpack.c.b16 %v7547, %v7546
  %v7563 = vpack.c.b16 %v7549, %v7548
  %v7564 = vpack.c.b16 %v7550, %v7550
  %v7565 = vpack.c.b16 %v7552, %v7551
  %v7566 = vpack.c.b16 %v7554, %v7553
  %v7567 = vpack.c.b16 %v7555, %v7555
  %7568 = vrot.lane.b32.xlu0 %v7556, 16
  %v7569 = vpop.permute.xlu0 %7568
  %7570 = vrot.lane.b32.xlu0 %v7557, 16
  %v7571 = vpop.permute.xlu0 %7570
  %7572 = vrot.lane.b32.xlu0 %v7558, 16
  %v7573 = vpop.permute.xlu0 %7572
  %7574 = vrot.lane.b32.xlu0 %v7559, 16
  %v7575 = vpop.permute.xlu0 %7574
  %7576 = vrot.lane.b32.xlu0 %v7560, 16
  %v7577 = vpop.permute.xlu0 %7576
  %7578 = vrot.lane.b32.xlu0 %v7561, 16
  %v7579 = vpop.permute.xlu0 %7578
  %7580 = vrot.lane.b32.xlu0 %v7562, 16
  %v7581 = vpop.permute.xlu0 %7580
  %7582 = vrot.lane.b32.xlu0 %v7563, 16
  %v7583 = vpop.permute.xlu0 %7582
  %7584 = vrot.lane.b32.xlu0 %v7564, 16
  %v7585 = vpop.permute.xlu0 %7584
  %7586 = vrot.lane.b32.xlu0 %v7565, 16
  %v7587 = vpop.permute.xlu0 %7586
  %7588 = vrot.lane.b32.xlu0 %v7566, 16
  %v7589 = vpop.permute.xlu0 %7588
  %7590 = vrot.lane.b32.xlu0 %v7567, 16
  %v7591 = vpop.permute.xlu0 %7590
  %v7592 = vrot.slane %v7569, 4
  %v7593 = vrot.slane %v7571, 4
  %v7594 = vrot.slane %v7573, 4
  %v7595 = vrot.slane %v7575, 4
  %v7596 = vrot.slane %v7577, 4
  %v7597 = vrot.slane %v7579, 4
  %v7598 = vrot.slane %v7581, 4
  %v7599 = vrot.slane %v7583, 4
  %v7600 = vrot.slane %v7585, 4
  %v7601 = vrot.slane %v7587, 4
  %v7602 = vrot.slane %v7589, 4
  %v7603 = vrot.slane %v7591, 4
  %v7604 = vsel %vm2368, %v7592, %v7593
  %v7605 = vsel %vm220, %v7569, %v7604
  %v7606 = vsel %vm2368, %v7593, %v7594
  %v7607 = vsel %vm220, %v7571, %v7606
  %v7608 = vsel %vm2368, %v7595, %v7596
  %v7609 = vsel %vm220, %v7575, %v7608
  %v7610 = vsel %vm2368, %v7596, %v7597
  %v7611 = vsel %vm220, %v7577, %v7610
  %v7612 = vsel %vm2368, %v7598, %v7599
  %v7613 = vsel %vm220, %v7581, %v7612
  %v7614 = vsel %vm2368, %v7599, %v7600
  %v7615 = vsel %vm220, %v7583, %v7614
  %v7616 = vsel %vm2368, %v7601, %v7602
  %v7617 = vsel %vm220, %v7587, %v7616
  %v7618 = vsel %vm2368, %v7602, %v7603
  %v7619 = vsel %vm220, %v7589, %v7618
  %7628 = vst [vmem:[#allocation3 + $0x40] sm:$0xff] %v7605
  %7629 = vst [vmem:[#allocation3 + $0x48] sm:$0xff] %v7607
  %7630 = vst [vmem:[#allocation3 + $0x50] sm:$0xff] %v7609
  %7631 = vst [vmem:[#allocation3 + $0x58] sm:$0xff] %v7611
  %7632 = vst [vmem:[#allocation3 + $0x60] sm:$0xff] %v7613
  %7633 = vst [vmem:[#allocation3 + $0x68] sm:$0xff] %v7615
  %7634 = vst [vmem:[#allocation3 + $0x70] sm:$0xff] %v7617
  %7635 = vst [vmem:[#allocation3 + $0x78] sm:$0xff] %v7619
  %v7636 = vld [vmem:[#allocation2] sm:$0xff]
  %v7637 = vld [vmem:[#allocation2 + $0x8] sm:$0xff]
  %v7638 = vld [vmem:[#allocation2 + $0x10] sm:$0xff]
  %v7639 = vld [vmem:[#allocation2 + $0x18] sm:$0xff]
  %v7640 = vld [vmem:[#allocation2 + $0x20] sm:$0xff]
  %v7641 = vld [vmem:[#allocation2 + $0x30] sm:$0xff]
  %v7642 = vld [vmem:[#allocation2 + $0x38] sm:$0xff]
  %v7643 = vld [vmem:[#allocation2 + $0x40] sm:$0xff]
  %v7644 = vld [vmem:[#allocation2 + $0x48] sm:$0xff]
  %v7645 = vld [vmem:[#allocation2 + $0x50] sm:$0xff]
  %v7646 = vld [vmem:[#allocation2 + $0x60] sm:$0xff]
  %v7647 = vld [vmem:[#allocation2 + $0x68] sm:$0xff]
  %v7648 = vld [vmem:[#allocation2 + $0x70] sm:$0xff]
  %v7649 = vld [vmem:[#allocation2 + $0x78] sm:$0xff]
  %v7650 = vld [vmem:[#allocation2 + $0x80] sm:$0xff]
  %v7651 = vld [vmem:[#allocation2 + $0x90] sm:$0xff]
  %v7652 = vld [vmem:[#allocation2 + $0x98] sm:$0xff]
  %v7653 = vld [vmem:[#allocation2 + $0xa0] sm:$0xff]
  %v7654 = vld [vmem:[#allocation2 + $0xa8] sm:$0xff]
  %v7655 = vld [vmem:[#allocation2 + $0xb0] sm:$0xff]
  %v7656 = vld [vmem:[%s508] sm:$0xf]
  %v7658 = vlaneseq
  %v7659 = vshrl.u32 %v7658, 7
  %v7660 = vsub.s32 0, %v7659
  %v7661 = vrot.slane %v7656, %v7660
  %v7662 = vlaneseq
  %v7663 = vshrl.u32 %v7662, 7
  %v7664 = vsub.s32 1, %v7663
  %v7665 = vrot.slane %v7656, %v7664
  %v7666 = vlaneseq
  %v7667 = vshrl.u32 %v7666, 7
  %v7668 = vsub.s32 2, %v7667
  %v7669 = vrot.slane %v7656, %v7668
  %v7670 = vlaneseq
  %v7671 = vshrl.u32 %v7670, 7
  %v7672 = vsub.s32 3, %v7671
  %v7673 = vrot.slane %v7656, %v7672
  %7674 = vrot.lane.b32.xlu0 %v7661, 113
  %v7675 = vpop.permute.xlu0 %7674
  %7676 = vrot.lane.b32.xlu0 %v7665, 113
  %v7677 = vpop.permute.xlu0 %7676
  %7678 = vrot.lane.b32.xlu0 %v7669, 113
  %v7679 = vpop.permute.xlu0 %7678
  %7680 = vrot.lane.b32.xlu0 %v7673, 113
  %v7681 = vpop.permute.xlu0 %7680
  %v7682 = vsel %vm535, %v7675, %v7677
  %v7683 = vsel %vm535, %v7677, %v7679
  %v7684 = vsel %vm535, %v7679, %v7681
  %v7690 = vmul.f32 %v7636, %v7675
  %v7691 = vmul.f32 %v7637, %v7682
  %v7692 = vmul.f32 %v7638, %v7683
  %v7693 = vmul.f32 %v7639, %v7684
  %v7694 = vmul.f32 %v7640, %v7681
  %v7695 = vmul.f32 %v7641, %v7675
  %v7696 = vmul.f32 %v7642, %v7682
  %v7697 = vmul.f32 %v7643, %v7683
  %v7698 = vmul.f32 %v7644, %v7684
  %v7699 = vmul.f32 %v7645, %v7681
  %v7700 = vmul.f32 %v7646, %v7675
  %v7701 = vmul.f32 %v7647, %v7682
  %v7702 = vmul.f32 %v7648, %v7683
  %v7703 = vmul.f32 %v7649, %v7684
  %v7704 = vmul.f32 %v7650, %v7681
  %v7705 = vmul.f32 %v7651, %v7675
  %v7706 = vmul.f32 %v7652, %v7682
  %v7707 = vmul.f32 %v7653, %v7683
  %v7708 = vmul.f32 %v7654, %v7684
  %v7709 = vmul.f32 %v7655, %v7681
  %v7710 = vpack.c.bf16 %v7695, %v7690
  %v7711 = vpack.c.bf16 %v7696, %v7691
  %v7712 = vpack.c.bf16 %v7697, %v7692
  %v7713 = vpack.c.bf16 %v7698, %v7693
  %v7714 = vpack.c.bf16 %v7699, %v7694
  %v7715 = vpack.c.bf16 %v7705, %v7700
  %v7716 = vpack.c.bf16 %v7706, %v7701
  %v7717 = vpack.c.bf16 %v7707, %v7702
  %v7718 = vpack.c.bf16 %v7708, %v7703
  %v7719 = vpack.c.bf16 %v7709, %v7704
  %v7730 = vunpack.c.l.b16 %v7710
  %v7731 = vunpack.c.l.b16 %v7711
  %v7732 = vunpack.c.l.b16 %v7712
  %v7733 = vunpack.c.l.b16 %v7713
  %v7734 = vunpack.c.l.b16 %v7714
  %v7735 = vunpack.c.h.b16 %v7710
  %v7736 = vunpack.c.h.b16 %v7711
  %v7737 = vunpack.c.h.b16 %v7712
  %v7738 = vunpack.c.h.b16 %v7713
  %v7739 = vunpack.c.h.b16 %v7714
  %v7740 = vunpack.c.l.b16 %v7715
  %v7741 = vunpack.c.l.b16 %v7716
  %v7742 = vunpack.c.l.b16 %v7717
  %v7743 = vunpack.c.l.b16 %v7718
  %v7744 = vunpack.c.l.b16 %v7719
  %v7745 = vunpack.c.h.b16 %v7715
  %v7746 = vunpack.c.h.b16 %v7716
  %v7747 = vunpack.c.h.b16 %v7717
  %v7748 = vunpack.c.h.b16 %v7718
  %v7749 = vunpack.c.h.b16 %v7719
  %v7750 = vpack.c.b16 %v7731, %v7730
  %v7751 = vpack.c.b16 %v7733, %v7732
  %v7752 = vpack.c.b16 %v7734, %v7734
  %v7753 = vpack.c.b16 %v7736, %v7735
  %v7754 = vpack.c.b16 %v7738, %v7737
  %v7755 = vpack.c.b16 %v7739, %v7739
  %v7756 = vpack.c.b16 %v7741, %v7740
  %v7757 = vpack.c.b16 %v7743, %v7742
  %v7758 = vpack.c.b16 %v7744, %v7744
  %v7759 = vpack.c.b16 %v7746, %v7745
  %v7760 = vpack.c.b16 %v7748, %v7747
  %v7761 = vpack.c.b16 %v7749, %v7749
  %7762 = vrot.lane.b32.xlu0 %v7750, 15
  %v7763 = vpop.permute.xlu0 %7762
  %7764 = vrot.lane.b32.xlu0 %v7751, 15
  %v7765 = vpop.permute.xlu0 %7764
  %7766 = vrot.lane.b32.xlu0 %v7752, 15
  %v7767 = vpop.permute.xlu0 %7766
  %7768 = vrot.lane.b32.xlu0 %v7753, 15
  %v7769 = vpop.permute.xlu0 %7768
  %7770 = vrot.lane.b32.xlu0 %v7754, 15
  %v7771 = vpop.permute.xlu0 %7770
  %7772 = vrot.lane.b32.xlu0 %v7755, 15
  %v7773 = vpop.permute.xlu0 %7772
  %7774 = vrot.lane.b32.xlu0 %v7756, 15
  %v7775 = vpop.permute.xlu0 %7774
  %7776 = vrot.lane.b32.xlu0 %v7757, 15
  %v7777 = vpop.permute.xlu0 %7776
  %7778 = vrot.lane.b32.xlu0 %v7758, 15
  %v7779 = vpop.permute.xlu0 %7778
  %7780 = vrot.lane.b32.xlu0 %v7759, 15
  %v7781 = vpop.permute.xlu0 %7780
  %7782 = vrot.lane.b32.xlu0 %v7760, 15
  %v7783 = vpop.permute.xlu0 %7782
  %7784 = vrot.lane.b32.xlu0 %v7761, 15
  %v7785 = vpop.permute.xlu0 %7784
  %v7786 = vrot.slane %v7763, 4
  %v7787 = vrot.slane %v7765, 4
  %v7788 = vrot.slane %v7767, 4
  %v7789 = vrot.slane %v7769, 4
  %v7790 = vrot.slane %v7771, 4
  %v7791 = vrot.slane %v7773, 4
  %v7792 = vrot.slane %v7775, 4
  %v7793 = vrot.slane %v7777, 4
  %v7794 = vrot.slane %v7779, 4
  %v7795 = vrot.slane %v7781, 4
  %v7796 = vrot.slane %v7783, 4
  %v7797 = vrot.slane %v7785, 4
  %v7798 = vsel %vm2368, %v7786, %v7787
  %v7799 = vsel %vm584, %v7763, %v7798
  %v7800 = vsel %vm2368, %v7787, %v7788
  %v7801 = vsel %vm584, %v7765, %v7800
  %v7802 = vsel %vm2368, %v7789, %v7790
  %v7803 = vsel %vm584, %v7769, %v7802
  %v7804 = vsel %vm2368, %v7790, %v7791
  %v7805 = vsel %vm584, %v7771, %v7804
  %v7806 = vsel %vm2368, %v7792, %v7793
  %v7807 = vsel %vm584, %v7775, %v7806
  %v7808 = vsel %vm2368, %v7793, %v7794
  %v7809 = vsel %vm584, %v7777, %v7808
  %v7810 = vsel %vm2368, %v7795, %v7796
  %v7811 = vsel %vm584, %v7781, %v7810
  %v7812 = vsel %vm2368, %v7796, %v7797
  %v7813 = vsel %vm584, %v7783, %v7812
  %7822 = vst [vmem:[#allocation3 + $0x80] sm:$0xff] %v7799
  %7823 = vst [vmem:[#allocation3 + $0x88] sm:$0xff] %v7801
  %7824 = vst [vmem:[#allocation3 + $0x90] sm:$0xff] %v7803
  %7825 = vst [vmem:[#allocation3 + $0x98] sm:$0xff] %v7805
  %7826 = vst [vmem:[#allocation3 + $0xa0] sm:$0xff] %v7807
  %7827 = vst [vmem:[#allocation3 + $0xa8] sm:$0xff] %v7809
  %7828 = vst [vmem:[#allocation3 + $0xb0] sm:$0xff] %v7811
  %7829 = vst [vmem:[#allocation3 + $0xb8] sm:$0xff] %v7813
  %v7830 = vld [vmem:[#allocation2] sm:$0xff]
  %v7831 = vld [vmem:[#allocation2 + $0x8] sm:$0xff]
  %v7832 = vld [vmem:[#allocation2 + $0x10] sm:$0xff]
  %v7833 = vld [vmem:[#allocation2 + $0x18] sm:$0xff]
  %v7834 = vld [vmem:[#allocation2 + $0x20] sm:$0xff]
  %v7835 = vld [vmem:[#allocation2 + $0x30] sm:$0xff]
  %v7836 = vld [vmem:[#allocation2 + $0x38] sm:$0xff]
  %v7837 = vld [vmem:[#allocation2 + $0x40] sm:$0xff]
  %v7838 = vld [vmem:[#allocation2 + $0x48] sm:$0xff]
  %v7839 = vld [vmem:[#allocation2 + $0x50] sm:$0xff]
  %v7840 = vld [vmem:[#allocation2 + $0x60] sm:$0xff]
  %v7841 = vld [vmem:[#allocation2 + $0x68] sm:$0xff]
  %v7842 = vld [vmem:[#allocation2 + $0x70] sm:$0xff]
  %v7843 = vld [vmem:[#allocation2 + $0x78] sm:$0xff]
  %v7844 = vld [vmem:[#allocation2 + $0x80] sm:$0xff]
  %v7845 = vld [vmem:[#allocation2 + $0x90] sm:$0xff]
  %v7846 = vld [vmem:[#allocation2 + $0x98] sm:$0xff]
  %v7847 = vld [vmem:[#allocation2 + $0xa0] sm:$0xff]
  %v7848 = vld [vmem:[#allocation2 + $0xa8] sm:$0xff]
  %v7849 = vld [vmem:[#allocation2 + $0xb0] sm:$0xff]
  %v7850 = vld [vmem:[%s729] sm:$0xf]
  %v7852 = vlaneseq
  %v7853 = vshrl.u32 %v7852, 7
  %v7854 = vsub.s32 0, %v7853
  %v7855 = vrot.slane %v7850, %v7854
  %v7856 = vlaneseq
  %v7857 = vshrl.u32 %v7856, 7
  %v7858 = vsub.s32 1, %v7857
  %v7859 = vrot.slane %v7850, %v7858
  %v7860 = vlaneseq
  %v7861 = vshrl.u32 %v7860, 7
  %v7862 = vsub.s32 2, %v7861
  %v7863 = vrot.slane %v7850, %v7862
  %v7864 = vlaneseq
  %v7865 = vshrl.u32 %v7864, 7
  %v7866 = vsub.s32 3, %v7865
  %v7867 = vrot.slane %v7850, %v7866
  %7868 = vrot.lane.b32.xlu0 %v7855, 127
  %v7869 = vpop.permute.xlu0 %7868
  %7870 = vrot.lane.b32.xlu0 %v7859, 127
  %v7871 = vpop.permute.xlu0 %7870
  %7872 = vrot.lane.b32.xlu0 %v7863, 127
  %v7873 = vpop.permute.xlu0 %7872
  %7874 = vrot.lane.b32.xlu0 %v7867, 127
  %v7875 = vpop.permute.xlu0 %7874
  %v7876 = vsel %vm756, %v7869, %v7871
  %v7877 = vsel %vm756, %v7871, %v7873
  %v7878 = vsel %vm756, %v7873, %v7875
  %v7884 = vmul.f32 %v7830, %v7869
  %v7885 = vmul.f32 %v7831, %v7876
  %v7886 = vmul.f32 %v7832, %v7877
  %v7887 = vmul.f32 %v7833, %v7878
  %v7888 = vmul.f32 %v7834, %v7875
  %v7889 = vmul.f32 %v7835, %v7869
  %v7890 = vmul.f32 %v7836, %v7876
  %v7891 = vmul.f32 %v7837, %v7877
  %v7892 = vmul.f32 %v7838, %v7878
  %v7893 = vmul.f32 %v7839, %v7875
  %v7894 = vmul.f32 %v7840, %v7869
  %v7895 = vmul.f32 %v7841, %v7876
  %v7896 = vmul.f32 %v7842, %v7877
  %v7897 = vmul.f32 %v7843, %v7878
  %v7898 = vmul.f32 %v7844, %v7875
  %v7899 = vmul.f32 %v7845, %v7869
  %v7900 = vmul.f32 %v7846, %v7876
  %v7901 = vmul.f32 %v7847, %v7877
  %v7902 = vmul.f32 %v7848, %v7878
  %v7903 = vmul.f32 %v7849, %v7875
  %v7904 = vpack.c.bf16 %v7889, %v7884
  %v7905 = vpack.c.bf16 %v7890, %v7885
  %v7906 = vpack.c.bf16 %v7891, %v7886
  %v7907 = vpack.c.bf16 %v7892, %v7887
  %v7908 = vpack.c.bf16 %v7893, %v7888
  %v7909 = vpack.c.bf16 %v7899, %v7894
  %v7910 = vpack.c.bf16 %v7900, %v7895
  %v7911 = vpack.c.bf16 %v7901, %v7896
  %v7912 = vpack.c.bf16 %v7902, %v7897
  %v7913 = vpack.c.bf16 %v7903, %v7898
  %v7924 = vunpack.c.l.b16 %v7904
  %v7925 = vunpack.c.l.b16 %v7905
  %v7926 = vunpack.c.l.b16 %v7906
  %v7927 = vunpack.c.l.b16 %v7907
  %v7928 = vunpack.c.l.b16 %v7908
  %v7929 = vunpack.c.h.b16 %v7904
  %v7930 = vunpack.c.h.b16 %v7905
  %v7931 = vunpack.c.h.b16 %v7906
  %v7932 = vunpack.c.h.b16 %v7907
  %v7933 = vunpack.c.h.b16 %v7908
  %v7934 = vunpack.c.l.b16 %v7909
  %v7935 = vunpack.c.l.b16 %v7910
  %v7936 = vunpack.c.l.b16 %v7911
  %v7937 = vunpack.c.l.b16 %v7912
  %v7938 = vunpack.c.l.b16 %v7913
  %v7939 = vunpack.c.h.b16 %v7909
  %v7940 = vunpack.c.h.b16 %v7910
  %v7941 = vunpack.c.h.b16 %v7911
  %v7942 = vunpack.c.h.b16 %v7912
  %v7943 = vunpack.c.h.b16 %v7913
  %v7944 = vpack.c.b16 %v7925, %v7924
  %v7945 = vpack.c.b16 %v7927, %v7926
  %v7946 = vpack.c.b16 %v7928, %v7928
  %v7947 = vpack.c.b16 %v7930, %v7929
  %v7948 = vpack.c.b16 %v7932, %v7931
  %v7949 = vpack.c.b16 %v7933, %v7933
  %v7950 = vpack.c.b16 %v7935, %v7934
  %v7951 = vpack.c.b16 %v7937, %v7936
  %v7952 = vpack.c.b16 %v7938, %v7938
  %v7953 = vpack.c.b16 %v7940, %v7939
  %v7954 = vpack.c.b16 %v7942, %v7941
  %v7955 = vpack.c.b16 %v7943, %v7943
  %7956 = vrot.lane.b32.xlu0 %v7944, 1
  %v7957 = vpop.permute.xlu0 %7956
  %7958 = vrot.lane.b32.xlu0 %v7945, 1
  %v7959 = vpop.permute.xlu0 %7958
  %7960 = vrot.lane.b32.xlu0 %v7946, 1
  %v7961 = vpop.permute.xlu0 %7960
  %7962 = vrot.lane.b32.xlu0 %v7947, 1
  %v7963 = vpop.permute.xlu0 %7962
  %7964 = vrot.lane.b32.xlu0 %v7948, 1
  %v7965 = vpop.permute.xlu0 %7964
  %7966 = vrot.lane.b32.xlu0 %v7949, 1
  %v7967 = vpop.permute.xlu0 %7966
  %7968 = vrot.lane.b32.xlu0 %v7950, 1
  %v7969 = vpop.permute.xlu0 %7968
  %7970 = vrot.lane.b32.xlu0 %v7951, 1
  %v7971 = vpop.permute.xlu0 %7970
  %7972 = vrot.lane.b32.xlu0 %v7952, 1
  %v7973 = vpop.permute.xlu0 %7972
  %7974 = vrot.lane.b32.xlu0 %v7953, 1
  %v7975 = vpop.permute.xlu0 %7974
  %7976 = vrot.lane.b32.xlu0 %v7954, 1
  %v7977 = vpop.permute.xlu0 %7976
  %7978 = vrot.lane.b32.xlu0 %v7955, 1
  %v7979 = vpop.permute.xlu0 %7978
  %v7980 = vrot.slane %v7957, 4
  %v7981 = vrot.slane %v7959, 4
  %v7982 = vrot.slane %v7961, 4
  %v7983 = vrot.slane %v7963, 4
  %v7984 = vrot.slane %v7965, 4
  %v7985 = vrot.slane %v7967, 4
  %v7986 = vrot.slane %v7969, 4
  %v7987 = vrot.slane %v7971, 4
  %v7988 = vrot.slane %v7973, 4
  %v7989 = vrot.slane %v7975, 4
  %v7990 = vrot.slane %v7977, 4
  %v7991 = vrot.slane %v7979, 4
  %v7992 = vsel %vm2368, %v7980, %v7981
  %v7993 = vsel %vm805, %v7957, %v7992
  %v7994 = vsel %vm2368, %v7981, %v7982
  %v7995 = vsel %vm805, %v7959, %v7994
  %v7996 = vsel %vm2368, %v7983, %v7984
  %v7997 = vsel %vm805, %v7963, %v7996
  %v7998 = vsel %vm2368, %v7984, %v7985
  %v7999 = vsel %vm805, %v7965, %v7998
  %v8000 = vsel %vm2368, %v7986, %v7987
  %v8001 = vsel %vm805, %v7969, %v8000
  %v8002 = vsel %vm2368, %v7987, %v7988
  %v8003 = vsel %vm805, %v7971, %v8002
  %v8004 = vsel %vm2368, %v7989, %v7990
  %v8005 = vsel %vm805, %v7975, %v8004
  %v8006 = vsel %vm2368, %v7990, %v7991
  %v8007 = vsel %vm805, %v7977, %v8006
  %8016 = vst [vmem:[#allocation3 + $0xc0] sm:$0xff] %v7993
  %8017 = vst [vmem:[#allocation3 + $0xc8] sm:$0xff] %v7995
  %8018 = vst [vmem:[#allocation3 + $0xd0] sm:$0xff] %v7997
  %8019 = vst [vmem:[#allocation3 + $0xd8] sm:$0xff] %v7999
  %8020 = vst [vmem:[#allocation3 + $0xe0] sm:$0xff] %v8001
  %8021 = vst [vmem:[#allocation3 + $0xe8] sm:$0xff] %v8003
  %8022 = vst [vmem:[#allocation3 + $0xf0] sm:$0xff] %v8005
  %8023 = vst [vmem:[#allocation3 + $0xf8] sm:$0xff] %v8007
  %v8024 = vld [vmem:[#allocation2 + $0x8] sm:$0xff]
  %v8025 = vld [vmem:[#allocation2 + $0x10] sm:$0xff]
  %v8026 = vld [vmem:[#allocation2 + $0x18] sm:$0xff]
  %v8027 = vld [vmem:[#allocation2 + $0x20] sm:$0xff]
  %v8028 = vld [vmem:[#allocation2 + $0x38] sm:$0xff]
  %v8029 = vld [vmem:[#allocation2 + $0x40] sm:$0xff]
  %v8030 = vld [vmem:[#allocation2 + $0x48] sm:$0xff]
  %v8031 = vld [vmem:[#allocation2 + $0x50] sm:$0xff]
  %v8032 = vld [vmem:[#allocation2 + $0x68] sm:$0xff]
  %v8033 = vld [vmem:[#allocation2 + $0x70] sm:$0xff]
  %v8034 = vld [vmem:[#allocation2 + $0x78] sm:$0xff]
  %v8035 = vld [vmem:[#allocation2 + $0x80] sm:$0xff]
  %v8036 = vld [vmem:[#allocation2 + $0x98] sm:$0xff]
  %v8037 = vld [vmem:[#allocation2 + $0xa0] sm:$0xff]
  %v8038 = vld [vmem:[#allocation2 + $0xa8] sm:$0xff]
  %v8039 = vld [vmem:[#allocation2 + $0xb0] sm:$0xff]
  %v8040 = vpack.c.bf16 %v8028, %v8024
  %v8041 = vpack.c.bf16 %v8029, %v8025
  %v8042 = vpack.c.bf16 %v8030, %v8026
  %v8043 = vpack.c.bf16 %v8031, %v8027
  %v8044 = vpack.c.bf16 %v8036, %v8032
  %v8045 = vpack.c.bf16 %v8037, %v8033
  %v8046 = vpack.c.bf16 %v8038, %v8034
  %v8047 = vpack.c.bf16 %v8039, %v8035
  %v8056 = vunpack.c.l.b16 %v8040
  %v8057 = vunpack.c.l.b16 %v8041
  %v8058 = vunpack.c.l.b16 %v8042
  %v8059 = vunpack.c.l.b16 %v8043
  %v8060 = vunpack.c.h.b16 %v8040
  %v8061 = vunpack.c.h.b16 %v8041
  %v8062 = vunpack.c.h.b16 %v8042
  %v8063 = vunpack.c.h.b16 %v8043
  %v8064 = vunpack.c.l.b16 %v8044
  %v8065 = vunpack.c.l.b16 %v8045
  %v8066 = vunpack.c.l.b16 %v8046
  %v8067 = vunpack.c.l.b16 %v8047
  %v8068 = vunpack.c.h.b16 %v8044
  %v8069 = vunpack.c.h.b16 %v8045
  %v8070 = vunpack.c.h.b16 %v8046
  %v8071 = vunpack.c.h.b16 %v8047
  %v8072 = vpack.c.b16 %v8057, %v8056
  %v8073 = vpack.c.b16 %v8059, %v8058
  %v8074 = vpack.c.b16 %v8061, %v8060
  %v8075 = vpack.c.b16 %v8063, %v8062
  %v8076 = vpack.c.b16 %v8065, %v8064
  %v8077 = vpack.c.b16 %v8067, %v8066
  %v8078 = vpack.c.b16 %v8069, %v8068
  %v8079 = vpack.c.b16 %v8071, %v8070
  %8088 = vst [vmem:[#allocation3 + $0x100] sm:$0xff] %v8072
  %8089 = vst [vmem:[#allocation3 + $0x108] sm:$0xff] %v8073
  %8090 = vst [vmem:[#allocation3 + $0x110] sm:$0xff] %v8074
  %8091 = vst [vmem:[#allocation3 + $0x118] sm:$0xff] %v8075
  %8092 = vst [vmem:[#allocation3 + $0x120] sm:$0xff] %v8076
  %8093 = vst [vmem:[#allocation3 + $0x128] sm:$0xff] %v8077
  %8094 = vst [vmem:[#allocation3 + $0x130] sm:$0xff] %v8078
  %8095 = vst [vmem:[#allocation3 + $0x138] sm:$0xff] %v8079
  %v8096 = vld [vmem:[#allocation2 + $0x8] sm:$0xff]
  %v8097 = vld [vmem:[#allocation2 + $0x10] sm:$0xff]
  %v8098 = vld [vmem:[#allocation2 + $0x18] sm:$0xff]
  %v8099 = vld [vmem:[#allocation2 + $0x20] sm:$0xff]
  %v8100 = vld [vmem:[#allocation2 + $0x28] sm:$0xff]
  %v8101 = vld [vmem:[#allocation2 + $0x38] sm:$0xff]
  %v8102 = vld [vmem:[#allocation2 + $0x40] sm:$0xff]
  %v8103 = vld [vmem:[#allocation2 + $0x48] sm:$0xff]
  %v8104 = vld [vmem:[#allocation2 + $0x50] sm:$0xff]
  %v8105 = vld [vmem:[#allocation2 + $0x58] sm:$0xff]
  %v8106 = vld [vmem:[#allocation2 + $0x68] sm:$0xff]
  %v8107 = vld [vmem:[#allocation2 + $0x70] sm:$0xff]
  %v8108 = vld [vmem:[#allocation2 + $0x78] sm:$0xff]
  %v8109 = vld [vmem:[#allocation2 + $0x80] sm:$0xff]
  %v8110 = vld [vmem:[#allocation2 + $0x88] sm:$0xff]
  %v8111 = vld [vmem:[#allocation2 + $0x98] sm:$0xff]
  %v8112 = vld [vmem:[#allocation2 + $0xa0] sm:$0xff]
  %v8113 = vld [vmem:[#allocation2 + $0xa8] sm:$0xff]
  %v8114 = vld [vmem:[#allocation2 + $0xb0] sm:$0xff]
  %v8115 = vld [vmem:[#allocation2 + $0xb8] sm:$0xff]
  %v8116 = vld [vmem:[%s1114] sm:$0xf]
  %v8118 = vlaneseq
  %v8119 = vshrl.u32 %v8118, 7
  %v8120 = vsub.s32 0, %v8119
  %v8121 = vrot.slane %v8116, %v8120
  %v8122 = vlaneseq
  %v8123 = vshrl.u32 %v8122, 7
  %v8124 = vsub.s32 1, %v8123
  %v8125 = vrot.slane %v8116, %v8124
  %v8126 = vlaneseq
  %v8127 = vshrl.u32 %v8126, 7
  %v8128 = vsub.s32 2, %v8127
  %v8129 = vrot.slane %v8116, %v8128
  %v8130 = vlaneseq
  %v8131 = vshrl.u32 %v8130, 7
  %v8132 = vsub.s32 3, %v8131
  %v8133 = vrot.slane %v8116, %v8132
  %8134 = vrot.lane.b32.xlu0 %v8121, 1
  %v8135 = vpop.permute.xlu0 %8134
  %8136 = vrot.lane.b32.xlu0 %v8125, 1
  %v8137 = vpop.permute.xlu0 %8136
  %8138 = vrot.lane.b32.xlu0 %v8129, 1
  %v8139 = vpop.permute.xlu0 %8138
  %8140 = vrot.lane.b32.xlu0 %v8133, 1
  %v8141 = vpop.permute.xlu0 %8140
  %v8142 = vsel %vm1141, %v8135, %v8137
  %v8143 = vsel %vm1141, %v8137, %v8139
  %v8144 = vsel %vm1141, %v8139, %v8141
  %v8150 = vmul.f32 %v8096, %v8135
  %v8151 = vmul.f32 %v8097, %v8142
  %v8152 = vmul.f32 %v8098, %v8143
  %v8153 = vmul.f32 %v8099, %v8144
  %v8154 = vmul.f32 %v8100, %v8141
  %v8155 = vmul.f32 %v8101, %v8135
  %v8156 = vmul.f32 %v8102, %v8142
  %v8157 = vmul.f32 %v8103, %v8143
  %v8158 = vmul.f32 %v8104, %v8144
  %v8159 = vmul.f32 %v8105, %v8141
  %v8160 = vmul.f32 %v8106, %v8135
  %v8161 = vmul.f32 %v8107, %v8142
  %v8162 = vmul.f32 %v8108, %v8143
  %v8163 = vmul.f32 %v8109, %v8144
  %v8164 = vmul.f32 %v8110, %v8141
  %v8165 = vmul.f32 %v8111, %v8135
  %v8166 = vmul.f32 %v8112, %v8142
  %v8167 = vmul.f32 %v8113, %v8143
  %v8168 = vmul.f32 %v8114, %v8144
  %v8169 = vmul.f32 %v8115, %v8141
  %v8170 = vpack.c.bf16 %v8155, %v8150
  %v8171 = vpack.c.bf16 %v8156, %v8151
  %v8172 = vpack.c.bf16 %v8157, %v8152
  %v8173 = vpack.c.bf16 %v8158, %v8153
  %v8174 = vpack.c.bf16 %v8159, %v8154
  %v8175 = vpack.c.bf16 %v8165, %v8160
  %v8176 = vpack.c.bf16 %v8166, %v8161
  %v8177 = vpack.c.bf16 %v8167, %v8162
  %v8178 = vpack.c.bf16 %v8168, %v8163
  %v8179 = vpack.c.bf16 %v8169, %v8164
  %v8190 = vunpack.c.l.b16 %v8170
  %v8191 = vunpack.c.l.b16 %v8171
  %v8192 = vunpack.c.l.b16 %v8172
  %v8193 = vunpack.c.l.b16 %v8173
  %v8194 = vunpack.c.l.b16 %v8174
  %v8195 = vunpack.c.h.b16 %v8170
  %v8196 = vunpack.c.h.b16 %v8171
  %v8197 = vunpack.c.h.b16 %v8172
  %v8198 = vunpack.c.h.b16 %v8173
  %v8199 = vunpack.c.h.b16 %v8174
  %v8200 = vunpack.c.l.b16 %v8175
  %v8201 = vunpack.c.l.b16 %v8176
  %v8202 = vunpack.c.l.b16 %v8177
  %v8203 = vunpack.c.l.b16 %v8178
  %v8204 = vunpack.c.l.b16 %v8179
  %v8205 = vunpack.c.h.b16 %v8175
  %v8206 = vunpack.c.h.b16 %v8176
  %v8207 = vunpack.c.h.b16 %v8177
  %v8208 = vunpack.c.h.b16 %v8178
  %v8209 = vunpack.c.h.b16 %v8179
  %v8210 = vpack.c.b16 %v8191, %v8190
  %v8211 = vpack.c.b16 %v8193, %v8192
  %v8212 = vpack.c.b16 %v8194, %v8194
  %v8213 = vpack.c.b16 %v8196, %v8195
  %v8214 = vpack.c.b16 %v8198, %v8197
  %v8215 = vpack.c.b16 %v8199, %v8199
  %v8216 = vpack.c.b16 %v8201, %v8200
  %v8217 = vpack.c.b16 %v8203, %v8202
  %v8218 = vpack.c.b16 %v8204, %v8204
  %v8219 = vpack.c.b16 %v8206, %v8205
  %v8220 = vpack.c.b16 %v8208, %v8207
  %v8221 = vpack.c.b16 %v8209, %v8209
  %8222 = vrot.lane.b32.xlu0 %v8210, 127
  %v8223 = vpop.permute.xlu0 %8222
  %8224 = vrot.lane.b32.xlu0 %v8211, 127
  %v8225 = vpop.permute.xlu0 %8224
  %8226 = vrot.lane.b32.xlu0 %v8212, 127
  %v8227 = vpop.permute.xlu0 %8226
  %8228 = vrot.lane.b32.xlu0 %v8213, 127
  %v8229 = vpop.permute.xlu0 %8228
  %8230 = vrot.lane.b32.xlu0 %v8214, 127
  %v8231 = vpop.permute.xlu0 %8230
  %8232 = vrot.lane.b32.xlu0 %v8215, 127
  %v8233 = vpop.permute.xlu0 %8232
  %8234 = vrot.lane.b32.xlu0 %v8216, 127
  %v8235 = vpop.permute.xlu0 %8234
  %8236 = vrot.lane.b32.xlu0 %v8217, 127
  %v8237 = vpop.permute.xlu0 %8236
  %8238 = vrot.lane.b32.xlu0 %v8218, 127
  %v8239 = vpop.permute.xlu0 %8238
  %8240 = vrot.lane.b32.xlu0 %v8219, 127
  %v8241 = vpop.permute.xlu0 %8240
  %8242 = vrot.lane.b32.xlu0 %v8220, 127
  %v8243 = vpop.permute.xlu0 %8242
  %8244 = vrot.lane.b32.xlu0 %v8221, 127
  %v8245 = vpop.permute.xlu0 %8244
  %v8246 = vrot.slane %v8223, 4
  %v8247 = vrot.slane %v8225, 4
  %v8248 = vrot.slane %v8227, 4
  %v8249 = vrot.slane %v8229, 4
  %v8250 = vrot.slane %v8231, 4
  %v8251 = vrot.slane %v8233, 4
  %v8252 = vrot.slane %v8235, 4
  %v8253 = vrot.slane %v8237, 4
  %v8254 = vrot.slane %v8239, 4
  %v8255 = vrot.slane %v8241, 4
  %v8256 = vrot.slane %v8243, 4
  %v8257 = vrot.slane %v8245, 4
  %v8258 = vsel %vm2368, %v8246, %v8247
  %v8259 = vsel %vm1190, %v8223, %v8258
  %v8260 = vsel %vm2368, %v8247, %v8248
  %v8261 = vsel %vm1190, %v8225, %v8260
  %v8262 = vsel %vm2368, %v8249, %v8250
  %v8263 = vsel %vm1190, %v8229, %v8262
  %v8264 = vsel %vm2368, %v8250, %v8251
  %v8265 = vsel %vm1190, %v8231, %v8264
  %v8266 = vsel %vm2368, %v8252, %v8253
  %v8267 = vsel %vm1190, %v8235, %v8266
  %v8268 = vsel %vm2368, %v8253, %v8254
  %v8269 = vsel %vm1190, %v8237, %v8268
  %v8270 = vsel %vm2368, %v8255, %v8256
  %v8271 = vsel %vm1190, %v8241, %v8270
  %v8272 = vsel %vm2368, %v8256, %v8257
  %v8273 = vsel %vm1190, %v8243, %v8272
  %8282 = vst [vmem:[#allocation3 + $0x140] sm:$0xff] %v8259
  %8283 = vst [vmem:[#allocation3 + $0x148] sm:$0xff] %v8261
  %8284 = vst [vmem:[#allocation3 + $0x150] sm:$0xff] %v8263
  %8285 = vst [vmem:[#allocation3 + $0x158] sm:$0xff] %v8265
  %8286 = vst [vmem:[#allocation3 + $0x160] sm:$0xff] %v8267
  %8287 = vst [vmem:[#allocation3 + $0x168] sm:$0xff] %v8269
  %8288 = vst [vmem:[#allocation3 + $0x170] sm:$0xff] %v8271
  %8289 = vst [vmem:[#allocation3 + $0x178] sm:$0xff] %v8273
  %v8290 = vld [vmem:[#allocation2 + $0x8] sm:$0xff]
  %v8291 = vld [vmem:[#allocation2 + $0x10] sm:$0xff]
  %v8292 = vld [vmem:[#allocation2 + $0x18] sm:$0xff]
  %v8293 = vld [vmem:[#allocation2 + $0x20] sm:$0xff]
  %v8294 = vld [vmem:[#allocation2 + $0x28] sm:$0xff]
  %v8295 = vld [vmem:[#allocation2 + $0x38] sm:$0xff]
  %v8296 = vld [vmem:[#allocation2 + $0x40] sm:$0xff]
  %v8297 = vld [vmem:[#allocation2 + $0x48] sm:$0xff]
  %v8298 = vld [vmem:[#allocation2 + $0x50] sm:$0xff]
  %v8299 = vld [vmem:[#allocation2 + $0x58] sm:$0xff]
  %v8300 = vld [vmem:[#allocation2 + $0x68] sm:$0xff]
  %v8301 = vld [vmem:[#allocation2 + $0x70] sm:$0xff]
  %v8302 = vld [vmem:[#allocation2 + $0x78] sm:$0xff]
  %v8303 = vld [vmem:[#allocation2 + $0x80] sm:$0xff]
  %v8304 = vld [vmem:[#allocation2 + $0x88] sm:$0xff]
  %v8305 = vld [vmem:[#allocation2 + $0x98] sm:$0xff]
  %v8306 = vld [vmem:[#allocation2 + $0xa0] sm:$0xff]
  %v8307 = vld [vmem:[#allocation2 + $0xa8] sm:$0xff]
  %v8308 = vld [vmem:[#allocation2 + $0xb0] sm:$0xff]
  %v8309 = vld [vmem:[#allocation2 + $0xb8] sm:$0xff]
  %v8310 = vld [vmem:[%s1335] sm:$0xf]
  %v8312 = vlaneseq
  %v8313 = vshrl.u32 %v8312, 7
  %v8314 = vsub.s32 0, %v8313
  %v8315 = vrot.slane %v8310, %v8314
  %v8316 = vlaneseq
  %v8317 = vshrl.u32 %v8316, 7
  %v8318 = vsub.s32 1, %v8317
  %v8319 = vrot.slane %v8310, %v8318
  %v8320 = vlaneseq
  %v8321 = vshrl.u32 %v8320, 7
  %v8322 = vsub.s32 2, %v8321
  %v8323 = vrot.slane %v8310, %v8322
  %v8324 = vlaneseq
  %v8325 = vshrl.u32 %v8324, 7
  %v8326 = vsub.s32 3, %v8325
  %v8327 = vrot.slane %v8310, %v8326
  %8328 = vrot.lane.b32.xlu0 %v8315, 15
  %v8329 = vpop.permute.xlu0 %8328
  %8330 = vrot.lane.b32.xlu0 %v8319, 15
  %v8331 = vpop.permute.xlu0 %8330
  %8332 = vrot.lane.b32.xlu0 %v8323, 15
  %v8333 = vpop.permute.xlu0 %8332
  %8334 = vrot.lane.b32.xlu0 %v8327, 15
  %v8335 = vpop.permute.xlu0 %8334
  %v8336 = vsel %vm1362, %v8329, %v8331
  %v8337 = vsel %vm1362, %v8331, %v8333
  %v8338 = vsel %vm1362, %v8333, %v8335
  %v8344 = vmul.f32 %v8290, %v8329
  %v8345 = vmul.f32 %v8291, %v8336
  %v8346 = vmul.f32 %v8292, %v8337
  %v8347 = vmul.f32 %v8293, %v8338
  %v8348 = vmul.f32 %v8294, %v8335
  %v8349 = vmul.f32 %v8295, %v8329
  %v8350 = vmul.f32 %v8296, %v8336
  %v8351 = vmul.f32 %v8297, %v8337
  %v8352 = vmul.f32 %v8298, %v8338
  %v8353 = vmul.f32 %v8299, %v8335
  %v8354 = vmul.f32 %v8300, %v8329
  %v8355 = vmul.f32 %v8301, %v8336
  %v8356 = vmul.f32 %v8302, %v8337
  %v8357 = vmul.f32 %v8303, %v8338
  %v8358 = vmul.f32 %v8304, %v8335
  %v8359 = vmul.f32 %v8305, %v8329
  %v8360 = vmul.f32 %v8306, %v8336
  %v8361 = vmul.f32 %v8307, %v8337
  %v8362 = vmul.f32 %v8308, %v8338
  %v8363 = vmul.f32 %v8309, %v8335
  %v8364 = vpack.c.bf16 %v8349, %v8344
  %v8365 = vpack.c.bf16 %v8350, %v8345
  %v8366 = vpack.c.bf16 %v8351, %v8346
  %v8367 = vpack.c.bf16 %v8352, %v8347
  %v8368 = vpack.c.bf16 %v8353, %v8348
  %v8369 = vpack.c.bf16 %v8359, %v8354
  %v8370 = vpack.c.bf16 %v8360, %v8355
  %v8371 = vpack.c.bf16 %v8361, %v8356
  %v8372 = vpack.c.bf16 %v8362, %v8357
  %v8373 = vpack.c.bf16 %v8363, %v8358
  %v8384 = vunpack.c.l.b16 %v8364
  %v8385 = vunpack.c.l.b16 %v8365
  %v8386 = vunpack.c.l.b16 %v8366
  %v8387 = vunpack.c.l.b16 %v8367
  %v8388 = vunpack.c.l.b16 %v8368
  %v8389 = vunpack.c.h.b16 %v8364
  %v8390 = vunpack.c.h.b16 %v8365
  %v8391 = vunpack.c.h.b16 %v8366
  %v8392 = vunpack.c.h.b16 %v8367
  %v8393 = vunpack.c.h.b16 %v8368
  %v8394 = vunpack.c.l.b16 %v8369
  %v8395 = vunpack.c.l.b16 %v8370
  %v8396 = vunpack.c.l.b16 %v8371
  %v8397 = vunpack.c.l.b16 %v8372
  %v8398 = vunpack.c.l.b16 %v8373
  %v8399 = vunpack.c.h.b16 %v8369
  %v8400 = vunpack.c.h.b16 %v8370
  %v8401 = vunpack.c.h.b16 %v8371
  %v8402 = vunpack.c.h.b16 %v8372
  %v8403 = vunpack.c.h.b16 %v8373
  %v8404 = vpack.c.b16 %v8385, %v8384
  %v8405 = vpack.c.b16 %v8387, %v8386
  %v8406 = vpack.c.b16 %v8388, %v8388
  %v8407 = vpack.c.b16 %v8390, %v8389
  %v8408 = vpack.c.b16 %v8392, %v8391
  %v8409 = vpack.c.b16 %v8393, %v8393
  %v8410 = vpack.c.b16 %v8395, %v8394
  %v8411 = vpack.c.b16 %v8397, %v8396
  %v8412 = vpack.c.b16 %v8398, %v8398
  %v8413 = vpack.c.b16 %v8400, %v8399
  %v8414 = vpack.c.b16 %v8402, %v8401
  %v8415 = vpack.c.b16 %v8403, %v8403
  %8416 = vrot.lane.b32.xlu0 %v8404, 113
  %v8417 = vpop.permute.xlu0 %8416
  %8418 = vrot.lane.b32.xlu0 %v8405, 113
  %v8419 = vpop.permute.xlu0 %8418
  %8420 = vrot.lane.b32.xlu0 %v8406, 113
  %v8421 = vpop.permute.xlu0 %8420
  %8422 = vrot.lane.b32.xlu0 %v8407, 113
  %v8423 = vpop.permute.xlu0 %8422
  %8424 = vrot.lane.b32.xlu0 %v8408, 113
  %v8425 = vpop.permute.xlu0 %8424
  %8426 = vrot.lane.b32.xlu0 %v8409, 113
  %v8427 = vpop.permute.xlu0 %8426
  %8428 = vrot.lane.b32.xlu0 %v8410, 113
  %v8429 = vpop.permute.xlu0 %8428
  %8430 = vrot.lane.b32.xlu0 %v8411, 113
  %v8431 = vpop.permute.xlu0 %8430
  %8432 = vrot.lane.b32.xlu0 %v8412, 113
  %v8433 = vpop.permute.xlu0 %8432
  %8434 = vrot.lane.b32.xlu0 %v8413, 113
  %v8435 = vpop.permute.xlu0 %8434
  %8436 = vrot.lane.b32.xlu0 %v8414, 113
  %v8437 = vpop.permute.xlu0 %8436
  %8438 = vrot.lane.b32.xlu0 %v8415, 113
  %v8439 = vpop.permute.xlu0 %8438
  %v8440 = vrot.slane %v8417, 4
  %v8441 = vrot.slane %v8419, 4
  %v8442 = vrot.slane %v8421, 4
  %v8443 = vrot.slane %v8423, 4
  %v8444 = vrot.slane %v8425, 4
  %v8445 = vrot.slane %v8427, 4
  %v8446 = vrot.slane %v8429, 4
  %v8447 = vrot.slane %v8431, 4
  %v8448 = vrot.slane %v8433, 4
  %v8449 = vrot.slane %v8435, 4
  %v8450 = vrot.slane %v8437, 4
  %v8451 = vrot.slane %v8439, 4
  %v8452 = vsel %vm2368, %v8440, %v8441
  %v8453 = vsel %vm1411, %v8417, %v8452
  %v8454 = vsel %vm2368, %v8441, %v8442
  %v8455 = vsel %vm1411, %v8419, %v8454
  %v8456 = vsel %vm2368, %v8443, %v8444
  %v8457 = vsel %vm1411, %v8423, %v8456
  %v8458 = vsel %vm2368, %v8444, %v8445
  %v8459 = vsel %vm1411, %v8425, %v8458
  %v8460 = vsel %vm2368, %v8446, %v8447
  %v8461 = vsel %vm1411, %v8429, %v8460
  %v8462 = vsel %vm2368, %v8447, %v8448
  %v8463 = vsel %vm1411, %v8431, %v8462
  %v8464 = vsel %vm2368, %v8449, %v8450
  %v8465 = vsel %vm1411, %v8435, %v8464
  %v8466 = vsel %vm2368, %v8450, %v8451
  %v8467 = vsel %vm1411, %v8437, %v8466
  %8476 = vst [vmem:[#allocation3 + $0x180] sm:$0xff] %v8453
  %8477 = vst [vmem:[#allocation3 + $0x188] sm:$0xff] %v8455
  %8478 = vst [vmem:[#allocation3 + $0x190] sm:$0xff] %v8457
  %8479 = vst [vmem:[#allocation3 + $0x198] sm:$0xff] %v8459
  %8480 = vst [vmem:[#allocation3 + $0x1a0] sm:$0xff] %v8461
  %8481 = vst [vmem:[#allocation3 + $0x1a8] sm:$0xff] %v8463
  %8482 = vst [vmem:[#allocation3 + $0x1b0] sm:$0xff] %v8465
  %8483 = vst [vmem:[#allocation3 + $0x1b8] sm:$0xff] %v8467
  %v8484 = vld [vmem:[#allocation2 + $0x8] sm:$0xff]
  %v8485 = vld [vmem:[#allocation2 + $0x10] sm:$0xff]
  %v8486 = vld [vmem:[#allocation2 + $0x18] sm:$0xff]
  %v8487 = vld [vmem:[#allocation2 + $0x20] sm:$0xff]
  %v8488 = vld [vmem:[#allocation2 + $0x28] sm:$0xff]
  %v8489 = vld [vmem:[#allocation2 + $0x38] sm:$0xff]
  %v8490 = vld [vmem:[#allocation2 + $0x40] sm:$0xff]
  %v8491 = vld [vmem:[#allocation2 + $0x48] sm:$0xff]
  %v8492 = vld [vmem:[#allocation2 + $0x50] sm:$0xff]
  %v8493 = vld [vmem:[#allocation2 + $0x58] sm:$0xff]
  %v8494 = vld [vmem:[#allocation2 + $0x68] sm:$0xff]
  %v8495 = vld [vmem:[#allocation2 + $0x70] sm:$0xff]
  %v8496 = vld [vmem:[#allocation2 + $0x78] sm:$0xff]
  %v8497 = vld [vmem:[#allocation2 + $0x80] sm:$0xff]
  %v8498 = vld [vmem:[#allocation2 + $0x88] sm:$0xff]
  %v8499 = vld [vmem:[#allocation2 + $0x98] sm:$0xff]
  %v8500 = vld [vmem:[#allocation2 + $0xa0] sm:$0xff]
  %v8501 = vld [vmem:[#allocation2 + $0xa8] sm:$0xff]
  %v8502 = vld [vmem:[#allocation2 + $0xb0] sm:$0xff]
  %v8503 = vld [vmem:[#allocation2 + $0xb8] sm:$0xff]
  %v8504 = vld [vmem:[%s1556] sm:$0xf]
  %v8506 = vlaneseq
  %v8507 = vshrl.u32 %v8506, 7
  %v8508 = vsub.s32 0, %v8507
  %v8509 = vrot.slane %v8504, %v8508
  %v8510 = vlaneseq
  %v8511 = vshrl.u32 %v8510, 7
  %v8512 = vsub.s32 1, %v8511
  %v8513 = vrot.slane %v8504, %v8512
  %v8514 = vlaneseq
  %v8515 = vshrl.u32 %v8514, 7
  %v8516 = vsub.s32 2, %v8515
  %v8517 = vrot.slane %v8504, %v8516
  %v8518 = vlaneseq
  %v8519 = vshrl.u32 %v8518, 7
  %v8520 = vsub.s32 3, %v8519
  %v8521 = vrot.slane %v8504, %v8520
  %8522 = vrot.lane.b32.xlu0 %v8509, 16
  %v8523 = vpop.permute.xlu0 %8522
  %8524 = vrot.lane.b32.xlu0 %v8513, 16
  %v8525 = vpop.permute.xlu0 %8524
  %8526 = vrot.lane.b32.xlu0 %v8517, 16
  %v8527 = vpop.permute.xlu0 %8526
  %8528 = vrot.lane.b32.xlu0 %v8521, 16
  %v8529 = vpop.permute.xlu0 %8528
  %v8530 = vsel %vm1583, %v8523, %v8525
  %v8531 = vsel %vm1583, %v8525, %v8527
  %v8532 = vsel %vm1583, %v8527, %v8529
  %v8538 = vmul.f32 %v8484, %v8523
  %v8539 = vmul.f32 %v8485, %v8530
  %v8540 = vmul.f32 %v8486, %v8531
  %v8541 = vmul.f32 %v8487, %v8532
  %v8542 = vmul.f32 %v8488, %v8529
  %v8543 = vmul.f32 %v8489, %v8523
  %v8544 = vmul.f32 %v8490, %v8530
  %v8545 = vmul.f32 %v8491, %v8531
  %v8546 = vmul.f32 %v8492, %v8532
  %v8547 = vmul.f32 %v8493, %v8529
  %v8548 = vmul.f32 %v8494, %v8523
  %v8549 = vmul.f32 %v8495, %v8530
  %v8550 = vmul.f32 %v8496, %v8531
  %v8551 = vmul.f32 %v8497, %v8532
  %v8552 = vmul.f32 %v8498, %v8529
  %v8553 = vmul.f32 %v8499, %v8523
  %v8554 = vmul.f32 %v8500, %v8530
  %v8555 = vmul.f32 %v8501, %v8531
  %v8556 = vmul.f32 %v8502, %v8532
  %v8557 = vmul.f32 %v8503, %v8529
  %v8558 = vpack.c.bf16 %v8543, %v8538
  %v8559 = vpack.c.bf16 %v8544, %v8539
  %v8560 = vpack.c.bf16 %v8545, %v8540
  %v8561 = vpack.c.bf16 %v8546, %v8541
  %v8562 = vpack.c.bf16 %v8547, %v8542
  %v8563 = vpack.c.bf16 %v8553, %v8548
  %v8564 = vpack.c.bf16 %v8554, %v8549
  %v8565 = vpack.c.bf16 %v8555, %v8550
  %v8566 = vpack.c.bf16 %v8556, %v8551
  %v8567 = vpack.c.bf16 %v8557, %v8552
  %v8578 = vunpack.c.l.b16 %v8558
  %v8579 = vunpack.c.l.b16 %v8559
  %v8580 = vunpack.c.l.b16 %v8560
  %v8581 = vunpack.c.l.b16 %v8561
  %v8582 = vunpack.c.l.b16 %v8562
  %v8583 = vunpack.c.h.b16 %v8558
  %v8584 = vunpack.c.h.b16 %v8559
  %v8585 = vunpack.c.h.b16 %v8560
  %v8586 = vunpack.c.h.b16 %v8561
  %v8587 = vunpack.c.h.b16 %v8562
  %v8588 = vunpack.c.l.b16 %v8563
  %v8589 = vunpack.c.l.b16 %v8564
  %v8590 = vunpack.c.l.b16 %v8565
  %v8591 = vunpack.c.l.b16 %v8566
  %v8592 = vunpack.c.l.b16 %v8567
  %v8593 = vunpack.c.h.b16 %v8563
  %v8594 = vunpack.c.h.b16 %v8564
  %v8595 = vunpack.c.h.b16 %v8565
  %v8596 = vunpack.c.h.b16 %v8566
  %v8597 = vunpack.c.h.b16 %v8567
  %v8598 = vpack.c.b16 %v8579, %v8578
  %v8599 = vpack.c.b16 %v8581, %v8580
  %v8600 = vpack.c.b16 %v8582, %v8582
  %v8601 = vpack.c.b16 %v8584, %v8583
  %v8602 = vpack.c.b16 %v8586, %v8585
  %v8603 = vpack.c.b16 %v8587, %v8587
  %v8604 = vpack.c.b16 %v8589, %v8588
  %v8605 = vpack.c.b16 %v8591, %v8590
  %v8606 = vpack.c.b16 %v8592, %v8592
  %v8607 = vpack.c.b16 %v8594, %v8593
  %v8608 = vpack.c.b16 %v8596, %v8595
  %v8609 = vpack.c.b16 %v8597, %v8597
  %8610 = vrot.lane.b32.xlu0 %v8598, 112
  %v8611 = vpop.permute.xlu0 %8610
  %8612 = vrot.lane.b32.xlu0 %v8599, 112
  %v8613 = vpop.permute.xlu0 %8612
  %8614 = vrot.lane.b32.xlu0 %v8600, 112
  %v8615 = vpop.permute.xlu0 %8614
  %8616 = vrot.lane.b32.xlu0 %v8601, 112
  %v8617 = vpop.permute.xlu0 %8616
  %8618 = vrot.lane.b32.xlu0 %v8602, 112
  %v8619 = vpop.permute.xlu0 %8618
  %8620 = vrot.lane.b32.xlu0 %v8603, 112
  %v8621 = vpop.permute.xlu0 %8620
  %8622 = vrot.lane.b32.xlu0 %v8604, 112
  %v8623 = vpop.permute.xlu0 %8622
  %8624 = vrot.lane.b32.xlu0 %v8605, 112
  %v8625 = vpop.permute.xlu0 %8624
  %8626 = vrot.lane.b32.xlu0 %v8606, 112
  %v8627 = vpop.permute.xlu0 %8626
  %8628 = vrot.lane.b32.xlu0 %v8607, 112
  %v8629 = vpop.permute.xlu0 %8628
  %8630 = vrot.lane.b32.xlu0 %v8608, 112
  %v8631 = vpop.permute.xlu0 %8630
  %8632 = vrot.lane.b32.xlu0 %v8609, 112
  %v8633 = vpop.permute.xlu0 %8632
  %v8634 = vrot.slane %v8611, 4
  %v8635 = vrot.slane %v8613, 4
  %v8636 = vrot.slane %v8615, 4
  %v8637 = vrot.slane %v8617, 4
  %v8638 = vrot.slane %v8619, 4
  %v8639 = vrot.slane %v8621, 4
  %v8640 = vrot.slane %v8623, 4
  %v8641 = vrot.slane %v8625, 4
  %v8642 = vrot.slane %v8627, 4
  %v8643 = vrot.slane %v8629, 4
  %v8644 = vrot.slane %v8631, 4
  %v8645 = vrot.slane %v8633, 4
  %v8646 = vsel %vm2368, %v8634, %v8635
  %v8647 = vsel %vm1632, %v8611, %v8646
  %v8648 = vsel %vm2368, %v8635, %v8636
  %v8649 = vsel %vm1632, %v8613, %v8648
  %v8650 = vsel %vm2368, %v8637, %v8638
  %v8651 = vsel %vm1632, %v8617, %v8650
  %v8652 = vsel %vm2368, %v8638, %v8639
  %v8653 = vsel %vm1632, %v8619, %v8652
  %v8654 = vsel %vm2368, %v8640, %v8641
  %v8655 = vsel %vm1632, %v8623, %v8654
  %v8656 = vsel %vm2368, %v8641, %v8642
  %v8657 = vsel %vm1632, %v8625, %v8656
  %v8658 = vsel %vm2368, %v8643, %v8644
  %v8659 = vsel %vm1632, %v8629, %v8658
  %v8660 = vsel %vm2368, %v8644, %v8645
  %v8661 = vsel %vm1632, %v8631, %v8660
  %8670 = vst [vmem:[#allocation3 + $0x1c0] sm:$0xff] %v8647
  %8671 = vst [vmem:[#allocation3 + $0x1c8] sm:$0xff] %v8649
  %8672 = vst [vmem:[#allocation3 + $0x1d0] sm:$0xff] %v8651
  %8673 = vst [vmem:[#allocation3 + $0x1d8] sm:$0xff] %v8653
  %8674 = vst [vmem:[#allocation3 + $0x1e0] sm:$0xff] %v8655
  %8675 = vst [vmem:[#allocation3 + $0x1e8] sm:$0xff] %v8657
  %8676 = vst [vmem:[#allocation3 + $0x1f0] sm:$0xff] %v8659
  %8677 = vst [vmem:[#allocation3 + $0x1f8] sm:$0xff] %v8661
  %v8678 = vld [vmem:[#allocation2 + $0x8] sm:$0xff]
  %v8679 = vld [vmem:[#allocation2 + $0x10] sm:$0xff]
  %v8680 = vld [vmem:[#allocation2 + $0x18] sm:$0xff]
  %v8681 = vld [vmem:[#allocation2 + $0x20] sm:$0xff]
  %v8682 = vld [vmem:[#allocation2 + $0x28] sm:$0xff]
  %v8683 = vld [vmem:[#allocation2 + $0x38] sm:$0xff]
  %v8684 = vld [vmem:[#allocation2 + $0x40] sm:$0xff]
  %v8685 = vld [vmem:[#allocation2 + $0x48] sm:$0xff]
  %v8686 = vld [vmem:[#allocation2 + $0x50] sm:$0xff]
  %v8687 = vld [vmem:[#allocation2 + $0x58] sm:$0xff]
  %v8688 = vld [vmem:[#allocation2 + $0x68] sm:$0xff]
  %v8689 = vld [vmem:[#allocation2 + $0x70] sm:$0xff]
  %v8690 = vld [vmem:[#allocation2 + $0x78] sm:$0xff]
  %v8691 = vld [vmem:[#allocation2 + $0x80] sm:$0xff]
  %v8692 = vld [vmem:[#allocation2 + $0x88] sm:$0xff]
  %v8693 = vld [vmem:[#allocation2 + $0x98] sm:$0xff]
  %v8694 = vld [vmem:[#allocation2 + $0xa0] sm:$0xff]
  %v8695 = vld [vmem:[#allocation2 + $0xa8] sm:$0xff]
  %v8696 = vld [vmem:[#allocation2 + $0xb0] sm:$0xff]
  %v8697 = vld [vmem:[#allocation2 + $0xb8] sm:$0xff]
  %v8698 = vld [vmem:[%s1777] sm:$0xf]
  %v8700 = vlaneseq
  %v8701 = vshrl.u32 %v8700, 7
  %v8702 = vsub.s32 0, %v8701
  %v8703 = vrot.slane %v8698, %v8702
  %v8704 = vlaneseq
  %v8705 = vshrl.u32 %v8704, 7
  %v8706 = vsub.s32 1, %v8705
  %v8707 = vrot.slane %v8698, %v8706
  %v8708 = vlaneseq
  %v8709 = vshrl.u32 %v8708, 7
  %v8710 = vsub.s32 2, %v8709
  %v8711 = vrot.slane %v8698, %v8710
  %v8712 = vlaneseq
  %v8713 = vshrl.u32 %v8712, 7
  %v8714 = vsub.s32 3, %v8713
  %v8715 = vrot.slane %v8698, %v8714
  %8716 = vrot.lane.b32.xlu0 %v8703, 17
  %v8717 = vpop.permute.xlu0 %8716
  %8718 = vrot.lane.b32.xlu0 %v8707, 17
  %v8719 = vpop.permute.xlu0 %8718
  %8720 = vrot.lane.b32.xlu0 %v8711, 17
  %v8721 = vpop.permute.xlu0 %8720
  %8722 = vrot.lane.b32.xlu0 %v8715, 17
  %v8723 = vpop.permute.xlu0 %8722
  %v8724 = vsel %vm1804, %v8717, %v8719
  %v8725 = vsel %vm1804, %v8719, %v8721
  %v8726 = vsel %vm1804, %v8721, %v8723
  %v8732 = vmul.f32 %v8678, %v8717
  %v8733 = vmul.f32 %v8679, %v8724
  %v8734 = vmul.f32 %v8680, %v8725
  %v8735 = vmul.f32 %v8681, %v8726
  %v8736 = vmul.f32 %v8682, %v8723
  %v8737 = vmul.f32 %v8683, %v8717
  %v8738 = vmul.f32 %v8684, %v8724
  %v8739 = vmul.f32 %v8685, %v8725
  %v8740 = vmul.f32 %v8686, %v8726
  %v8741 = vmul.f32 %v8687, %v8723
  %v8742 = vmul.f32 %v8688, %v8717
  %v8743 = vmul.f32 %v8689, %v8724
  %v8744 = vmul.f32 %v8690, %v8725
  %v8745 = vmul.f32 %v8691, %v8726
  %v8746 = vmul.f32 %v8692, %v8723
  %v8747 = vmul.f32 %v8693, %v8717
  %v8748 = vmul.f32 %v8694, %v8724
  %v8749 = vmul.f32 %v8695, %v8725
  %v8750 = vmul.f32 %v8696, %v8726
  %v8751 = vmul.f32 %v8697, %v8723
  %v8752 = vpack.c.bf16 %v8737, %v8732
  %v8753 = vpack.c.bf16 %v8738, %v8733
  %v8754 = vpack.c.bf16 %v8739, %v8734
  %v8755 = vpack.c.bf16 %v8740, %v8735
  %v8756 = vpack.c.bf16 %v8741, %v8736
  %v8757 = vpack.c.bf16 %v8747, %v8742
  %v8758 = vpack.c.bf16 %v8748, %v8743
  %v8759 = vpack.c.bf16 %v8749, %v8744
  %v8760 = vpack.c.bf16 %v8750, %v8745
  %v8761 = vpack.c.bf16 %v8751, %v8746
  %v8772 = vunpack.c.l.b16 %v8752
  %v8773 = vunpack.c.l.b16 %v8753
  %v8774 = vunpack.c.l.b16 %v8754
  %v8775 = vunpack.c.l.b16 %v8755
  %v8776 = vunpack.c.l.b16 %v8756
  %v8777 = vunpack.c.h.b16 %v8752
  %v8778 = vunpack.c.h.b16 %v8753
  %v8779 = vunpack.c.h.b16 %v8754
  %v8780 = vunpack.c.h.b16 %v8755
  %v8781 = vunpack.c.h.b16 %v8756
  %v8782 = vunpack.c.l.b16 %v8757
  %v8783 = vunpack.c.l.b16 %v8758
  %v8784 = vunpack.c.l.b16 %v8759
  %v8785 = vunpack.c.l.b16 %v8760
  %v8786 = vunpack.c.l.b16 %v8761
  %v8787 = vunpack.c.h.b16 %v8757
  %v8788 = vunpack.c.h.b16 %v8758
  %v8789 = vunpack.c.h.b16 %v8759
  %v8790 = vunpack.c.h.b16 %v8760
  %v8791 = vunpack.c.h.b16 %v8761
  %v8792 = vpack.c.b16 %v8773, %v8772
  %v8793 = vpack.c.b16 %v8775, %v8774
  %v8794 = vpack.c.b16 %v8776, %v8776
  %v8795 = vpack.c.b16 %v8778, %v8777
  %v8796 = vpack.c.b16 %v8780, %v8779
  %v8797 = vpack.c.b16 %v8781, %v8781
  %v8798 = vpack.c.b16 %v8783, %v8782
  %v8799 = vpack.c.b16 %v8785, %v8784
  %v8800 = vpack.c.b16 %v8786, %v8786
  %v8801 = vpack.c.b16 %v8788, %v8787
  %v8802 = vpack.c.b16 %v8790, %v8789
  %v8803 = vpack.c.b16 %v8791, %v8791
  %8804 = vrot.lane.b32.xlu0 %v8792, 111
  %v8805 = vpop.permute.xlu0 %8804
  %8806 = vrot.lane.b32.xlu0 %v8793, 111
  %v8807 = vpop.permute.xlu0 %8806
  %8808 = vrot.lane.b32.xlu0 %v8794, 111
  %v8809 = vpop.permute.xlu0 %8808
  %8810 = vrot.lane.b32.xlu0 %v8795, 111
  %v8811 = vpop.permute.xlu0 %8810
  %8812 = vrot.lane.b32.xlu0 %v8796, 111
  %v8813 = vpop.permute.xlu0 %8812
  %8814 = vrot.lane.b32.xlu0 %v8797, 111
  %v8815 = vpop.permute.xlu0 %8814
  %8816 = vrot.lane.b32.xlu0 %v8798, 111
  %v8817 = vpop.permute.xlu0 %8816
  %8818 = vrot.lane.b32.xlu0 %v8799, 111
  %v8819 = vpop.permute.xlu0 %8818
  %8820 = vrot.lane.b32.xlu0 %v8800, 111
  %v8821 = vpop.permute.xlu0 %8820
  %8822 = vrot.lane.b32.xlu0 %v8801, 111
  %v8823 = vpop.permute.xlu0 %8822
  %8824 = vrot.lane.b32.xlu0 %v8802, 111
  %v8825 = vpop.permute.xlu0 %8824
  %8826 = vrot.lane.b32.xlu0 %v8803, 111
  %v8827 = vpop.permute.xlu0 %8826
  %v8828 = vrot.slane %v8805, 4
  %v8829 = vrot.slane %v8807, 4
  %v8830 = vrot.slane %v8809, 4
  %v8831 = vrot.slane %v8811, 4
  %v8832 = vrot.slane %v8813, 4
  %v8833 = vrot.slane %v8815, 4
  %v8834 = vrot.slane %v8817, 4
  %v8835 = vrot.slane %v8819, 4
  %v8836 = vrot.slane %v8821, 4
  %v8837 = vrot.slane %v8823, 4
  %v8838 = vrot.slane %v8825, 4
  %v8839 = vrot.slane %v8827, 4
  %v8840 = vsel %vm2368, %v8828, %v8829
  %v8841 = vsel %vm1853, %v8805, %v8840
  %v8842 = vsel %vm2368, %v8829, %v8830
  %v8843 = vsel %vm1853, %v8807, %v8842
  %v8844 = vsel %vm2368, %v8831, %v8832
  %v8845 = vsel %vm1853, %v8811, %v8844
  %v8846 = vsel %vm2368, %v8832, %v8833
  %v8847 = vsel %vm1853, %v8813, %v8846
  %v8848 = vsel %vm2368, %v8834, %v8835
  %v8849 = vsel %vm1853, %v8817, %v8848
  %v8850 = vsel %vm2368, %v8835, %v8836
  %v8851 = vsel %vm1853, %v8819, %v8850
  %v8852 = vsel %vm2368, %v8837, %v8838
  %v8853 = vsel %vm1853, %v8823, %v8852
  %v8854 = vsel %vm2368, %v8838, %v8839
  %v8855 = vsel %vm1853, %v8825, %v8854
  %8864 = vst [vmem:[#allocation3 + $0x200] sm:$0xff] %v8841
  %8865 = vst [vmem:[#allocation3 + $0x208] sm:$0xff] %v8843
  %8866 = vst [vmem:[#allocation3 + $0x210] sm:$0xff] %v8845
  %8867 = vst [vmem:[#allocation3 + $0x218] sm:$0xff] %v8847
  %8868 = vst [vmem:[#allocation3 + $0x220] sm:$0xff] %v8849
  %8869 = vst [vmem:[#allocation3 + $0x228] sm:$0xff] %v8851
  %8870 = vst [vmem:[#allocation3 + $0x230] sm:$0xff] %v8853
  %8871 = vst [vmem:[#allocation3 + $0x238] sm:$0xff] %v8855
  %v8872 = vld [vmem:[%s11] sm:$0x77]
  %v8873 = vld [vmem:[%s11 + $0x8] sm:$0x7]
  %v8874 = vld [vmem:[#allocation3] sm:$0xff]
  %v8875 = vld [vmem:[#allocation3 + $0x8] sm:$0xff]
  %v8876 = vld [vmem:[#allocation3 + $0x10] sm:$0xff]
  %v8877 = vld [vmem:[#allocation3 + $0x18] sm:$0xff]
  %v8878 = vld [vmem:[#allocation3 + $0x20] sm:$0xff]
  %v8879 = vld [vmem:[#allocation3 + $0x28] sm:$0xff]
  %v8880 = vld [vmem:[#allocation3 + $0x30] sm:$0xff]
  %v8881 = vld [vmem:[#allocation3 + $0x38] sm:$0xff]
  %v8882 = vld [vmem:[#allocation3 + $0x40] sm:$0xff]
  %v8883 = vld [vmem:[#allocation3 + $0x48] sm:$0xff]
  %v8884 = vld [vmem:[#allocation3 + $0x50] sm:$0xff]
  %v8885 = vld [vmem:[#allocation3 + $0x58] sm:$0xff]
  %v8886 = vld [vmem:[#allocation3 + $0x60] sm:$0xff]
  %v8887 = vld [vmem:[#allocation3 + $0x68] sm:$0xff]
  %v8888 = vld [vmem:[#allocation3 + $0x70] sm:$0xff]
  %v8889 = vld [vmem:[#allocation3 + $0x78] sm:$0xff]
  %v8890 = vld [vmem:[#allocation3 + $0x80] sm:$0xff]
  %v8891 = vld [vmem:[#allocation3 + $0x88] sm:$0xff]
  %v8892 = vld [vmem:[#allocation3 + $0x90] sm:$0xff]
  %v8893 = vld [vmem:[#allocation3 + $0x98] sm:$0xff]
  %v8894 = vld [vmem:[#allocation3 + $0xa0] sm:$0xff]
  %v8895 = vld [vmem:[#allocation3 + $0xa8] sm:$0xff]
  %v8896 = vld [vmem:[#allocation3 + $0xb0] sm:$0xff]
  %v8897 = vld [vmem:[#allocation3 + $0xb8] sm:$0xff]
  %v8898 = vld [vmem:[#allocation3 + $0xc0] sm:$0xff]
  %v8899 = vld [vmem:[#allocation3 + $0xc8] sm:$0xff]
  %v8900 = vld [vmem:[#allocation3 + $0xd0] sm:$0xff]
  %v8901 = vld [vmem:[#allocation3 + $0xd8] sm:$0xff]
  %v8902 = vld [vmem:[#allocation3 + $0xe0] sm:$0xff]
  %v8903 = vld [vmem:[#allocation3 + $0xe8] sm:$0xff]
  %v8904 = vld [vmem:[#allocation3 + $0xf0] sm:$0xff]
  %v8905 = vld [vmem:[#allocation3 + $0xf8] sm:$0xff]
  %v8906 = vld [vmem:[#allocation3 + $0x100] sm:$0xff]
  %v8907 = vld [vmem:[#allocation3 + $0x108] sm:$0xff]
  %v8908 = vld [vmem:[#allocation3 + $0x110] sm:$0xff]
  %v8909 = vld [vmem:[#allocation3 + $0x118] sm:$0xff]
  %v8910 = vld [vmem:[#allocation3 + $0x120] sm:$0xff]
  %v8911 = vld [vmem:[#allocation3 + $0x128] sm:$0xff]
  %v8912 = vld [vmem:[#allocation3 + $0x130] sm:$0xff]
  %v8913 = vld [vmem:[#allocation3 + $0x138] sm:$0xff]
  %v8914 = vld [vmem:[#allocation3 + $0x140] sm:$0xff]
  %v8915 = vld [vmem:[#allocation3 + $0x148] sm:$0xff]
  %v8916 = vld [vmem:[#allocation3 + $0x150] sm:$0xff]
  %v8917 = vld [vmem:[#allocation3 + $0x158] sm:$0xff]
  %v8918 = vld [vmem:[#allocation3 + $0x160] sm:$0xff]
  %v8919 = vld [vmem:[#allocation3 + $0x168] sm:$0xff]
  %v8920 = vld [vmem:[#allocation3 + $0x170] sm:$0xff]
  %v8921 = vld [vmem:[#allocation3 + $0x178] sm:$0xff]
  %v8922 = vld [vmem:[#allocation3 + $0x180] sm:$0xff]
  %v8923 = vld [vmem:[#allocation3 + $0x188] sm:$0xff]
  %v8924 = vld [vmem:[#allocation3 + $0x190] sm:$0xff]
  %v8925 = vld [vmem:[#allocation3 + $0x198] sm:$0xff]
  %v8926 = vld [vmem:[#allocation3 + $0x1a0] sm:$0xff]
  %v8927 = vld [vmem:[#allocation3 + $0x1a8] sm:$0xff]
  %v8928 = vld [vmem:[#allocation3 + $0x1b0] sm:$0xff]
  %v8929 = vld [vmem:[#allocation3 + $0x1b8] sm:$0xff]
  %v8930 = vld [vmem:[#allocation3 + $0x1c0] sm:$0xff]
  %v8931 = vld [vmem:[#allocation3 + $0x1c8] sm:$0xff]
  %v8932 = vld [vmem:[#allocation3 + $0x1d0] sm:$0xff]
  %v8933 = vld [vmem:[#allocation3 + $0x1d8] sm:$0xff]
  %v8934 = vld [vmem:[#allocation3 + $0x1e0] sm:$0xff]
  %v8935 = vld [vmem:[#allocation3 + $0x1e8] sm:$0xff]
  %v8936 = vld [vmem:[#allocation3 + $0x1f0] sm:$0xff]
  %v8937 = vld [vmem:[#allocation3 + $0x1f8] sm:$0xff]
  %v8938 = vld [vmem:[#allocation3 + $0x200] sm:$0xff]
  %v8939 = vld [vmem:[#allocation3 + $0x208] sm:$0xff]
  %v8940 = vld [vmem:[#allocation3 + $0x210] sm:$0xff]
  %v8941 = vld [vmem:[#allocation3 + $0x218] sm:$0xff]
  %v8942 = vld [vmem:[#allocation3 + $0x220] sm:$0xff]
  %v8943 = vld [vmem:[#allocation3 + $0x228] sm:$0xff]
  %v8944 = vld [vmem:[#allocation3 + $0x230] sm:$0xff]
  %v8945 = vld [vmem:[#allocation3 + $0x238] sm:$0xff]
  %v8946 = vld [vmem:[%s12] sm:$0x1f]
  %8948 = vset.pattern.permute.xlu0 0
  %8949 = vperm.xlu0 %8948, %v8946
  %v8950 = vpop.permute.xlu0 %8949
  %v8954 = vunpack.c.l.b16 %v8872
  %v8955 = vunpack.c.h.b16 %v8872
  %v8956 = vunpack.c.l.b16 %v8873
  %v8957 = vpack.c.b16 %v8954, %v8954
  %v8958 = vpack.c.b16 %v8955, %v8955
  %v8959 = vpack.c.b16 %v8956, %v8956
  %v9034 = vunpack.c.l.b16 %v8874
  %v9035 = vunpack.c.h.b16 %v8874
  %v9036 = vunpack.c.l.b16 %v8875
  %v9037 = vunpack.c.h.b16 %v8875
  %v9038 = vunpack.c.l.b16 %v8876
  %v9039 = vunpack.c.h.b16 %v8876
  %v9040 = vunpack.c.l.b16 %v8877
  %v9041 = vunpack.c.h.b16 %v8877
  %v9042 = vunpack.c.l.b16 %v8878
  %v9043 = vunpack.c.h.b16 %v8878
  %v9044 = vunpack.c.l.b16 %v8879
  %v9045 = vunpack.c.h.b16 %v8879
  %v9046 = vunpack.c.l.b16 %v8880
  %v9047 = vunpack.c.h.b16 %v8880
  %v9048 = vunpack.c.l.b16 %v8881
  %v9049 = vunpack.c.h.b16 %v8881
  %v9050 = vunpack.c.l.b16 %v8882
  %v9051 = vunpack.c.h.b16 %v8882
  %v9052 = vunpack.c.l.b16 %v8883
  %v9053 = vunpack.c.h.b16 %v8883
  %v9054 = vunpack.c.l.b16 %v8884
  %v9055 = vunpack.c.h.b16 %v8884
  %v9056 = vunpack.c.l.b16 %v8885
  %v9057 = vunpack.c.h.b16 %v8885
  %v9058 = vunpack.c.l.b16 %v8886
  %v9059 = vunpack.c.h.b16 %v8886
  %v9060 = vunpack.c.l.b16 %v8887
  %v9061 = vunpack.c.h.b16 %v8887
  %v9062 = vunpack.c.l.b16 %v8888
  %v9063 = vunpack.c.h.b16 %v8888
  %v9064 = vunpack.c.l.b16 %v8889
  %v9065 = vunpack.c.h.b16 %v8889
  %v9066 = vunpack.c.l.b16 %v8890
  %v9067 = vunpack.c.h.b16 %v8890
  %v9068 = vunpack.c.l.b16 %v8891
  %v9069 = vunpack.c.h.b16 %v8891
  %v9070 = vunpack.c.l.b16 %v8892
  %v9071 = vunpack.c.h.b16 %v8892
  %v9072 = vunpack.c.l.b16 %v8893
  %v9073 = vunpack.c.h.b16 %v8893
  %v9074 = vunpack.c.l.b16 %v8894
  %v9075 = vunpack.c.h.b16 %v8894
  %v9076 = vunpack.c.l.b16 %v8895
  %v9077 = vunpack.c.h.b16 %v8895
  %v9078 = vunpack.c.l.b16 %v8896
  %v9079 = vunpack.c.h.b16 %v8896
  %v9080 = vunpack.c.l.b16 %v8897
  %v9081 = vunpack.c.h.b16 %v8897
  %v9082 = vunpack.c.l.b16 %v8898
  %v9083 = vunpack.c.h.b16 %v8898
  %v9084 = vunpack.c.l.b16 %v8899
  %v9085 = vunpack.c.h.b16 %v8899
  %v9086 = vunpack.c.l.b16 %v8900
  %v9087 = vunpack.c.h.b16 %v8900
  %v9088 = vunpack.c.l.b16 %v8901
  %v9089 = vunpack.c.h.b16 %v8901
  %v9090 = vunpack.c.l.b16 %v8902
  %v9091 = vunpack.c.h.b16 %v8902
  %v9092 = vunpack.c.l.b16 %v8903
  %v9093 = vunpack.c.h.b16 %v8903
  %v9094 = vunpack.c.l.b16 %v8904
  %v9095 = vunpack.c.h.b16 %v8904
  %v9096 = vunpack.c.l.b16 %v8905
  %v9097 = vunpack.c.h.b16 %v8905
  %v9098 = vunpack.c.l.b16 %v8906
  %v9099 = vunpack.c.h.b16 %v8906
  %v9100 = vunpack.c.l.b16 %v8907
  %v9101 = vunpack.c.h.b16 %v8907
  %v9102 = vunpack.c.l.b16 %v8908
  %v9103 = vunpack.c.h.b16 %v8908
  %v9104 = vunpack.c.l.b16 %v8909
  %v9105 = vunpack.c.h.b16 %v8909
  %v9106 = vunpack.c.l.b16 %v8910
  %v9107 = vunpack.c.h.b16 %v8910
  %v9108 = vunpack.c.l.b16 %v8911
  %v9109 = vunpack.c.h.b16 %v8911
  %v9110 = vunpack.c.l.b16 %v8912
  %v9111 = vunpack.c.h.b16 %v8912
  %v9112 = vunpack.c.l.b16 %v8913
  %v9113 = vunpack.c.h.b16 %v8913
  %v9114 = vunpack.c.l.b16 %v8914
  %v9115 = vunpack.c.h.b16 %v8914
  %v9116 = vunpack.c.l.b16 %v8915
  %v9117 = vunpack.c.h.b16 %v8915
  %v9118 = vunpack.c.l.b16 %v8916
  %v9119 = vunpack.c.h.b16 %v8916
  %v9120 = vunpack.c.l.b16 %v8917
  %v9121 = vunpack.c.h.b16 %v8917
  %v9122 = vunpack.c.l.b16 %v8918
  %v9123 = vunpack.c.h.b16 %v8918
  %v9124 = vunpack.c.l.b16 %v8919
  %v9125 = vunpack.c.h.b16 %v8919
  %v9126 = vunpack.c.l.b16 %v8920
  %v9127 = vunpack.c.h.b16 %v8920
  %v9128 = vunpack.c.l.b16 %v8921
  %v9129 = vunpack.c.h.b16 %v8921
  %v9130 = vunpack.c.l.b16 %v8922
  %v9131 = vunpack.c.h.b16 %v8922
  %v9132 = vunpack.c.l.b16 %v8923
  %v9133 = vunpack.c.h.b16 %v8923
  %v9134 = vunpack.c.l.b16 %v8924
  %v9135 = vunpack.c.h.b16 %v8924
  %v9136 = vunpack.c.l.b16 %v8925
  %v9137 = vunpack.c.h.b16 %v8925
  %v9138 = vunpack.c.l.b16 %v8926
  %v9139 = vunpack.c.h.b16 %v8926
  %v9140 = vunpack.c.l.b16 %v8927
  %v9141 = vunpack.c.h.b16 %v8927
  %v9142 = vunpack.c.l.b16 %v8928
  %v9143 = vunpack.c.h.b16 %v8928
  %v9144 = vunpack.c.l.b16 %v8929
  %v9145 = vunpack.c.h.b16 %v8929
  %v9146 = vunpack.c.l.b16 %v8930
  %v9147 = vunpack.c.h.b16 %v8930
  %v9148 = vunpack.c.l.b16 %v8931
  %v9149 = vunpack.c.h.b16 %v8931
  %v9150 = vunpack.c.l.b16 %v8932
  %v9151 = vunpack.c.h.b16 %v8932
  %v9152 = vunpack.c.l.b16 %v8933
  %v9153 = vunpack.c.h.b16 %v8933
  %v9154 = vunpack.c.l.b16 %v8934
  %v9155 = vunpack.c.h.b16 %v8934
  %v9156 = vunpack.c.l.b16 %v8935
  %v9157 = vunpack.c.h.b16 %v8935
  %v9158 = vunpack.c.l.b16 %v8936
  %v9159 = vunpack.c.h.b16 %v8936
  %v9160 = vunpack.c.l.b16 %v8937
  %v9161 = vunpack.c.h.b16 %v8937
  %v9162 = vunpack.c.l.b16 %v8938
  %v9163 = vunpack.c.h.b16 %v8938
  %v9164 = vunpack.c.l.b16 %v8939
  %v9165 = vunpack.c.h.b16 %v8939
  %v9166 = vunpack.c.l.b16 %v8940
  %v9167 = vunpack.c.h.b16 %v8940
  %v9168 = vunpack.c.l.b16 %v8941
  %v9169 = vunpack.c.h.b16 %v8941
  %v9170 = vunpack.c.l.b16 %v8942
  %v9171 = vunpack.c.h.b16 %v8942
  %v9172 = vunpack.c.l.b16 %v8943
  %v9173 = vunpack.c.h.b16 %v8943
  %v9174 = vunpack.c.l.b16 %v8944
  %v9175 = vunpack.c.h.b16 %v8944
  %v9176 = vunpack.c.l.b16 %v8945
  %v9177 = vunpack.c.h.b16 %v8945
  %v9178 = vpack.c.b16 %v9038, %v9034
  %v9179 = vpack.c.b16 %v9039, %v9035
  %v9180 = vpack.c.b16 %v9040, %v9036
  %v9181 = vpack.c.b16 %v9041, %v9037
  %v9182 = vpack.c.b16 %v9046, %v9042
  %v9183 = vpack.c.b16 %v9047, %v9043
  %v9184 = vpack.c.b16 %v9048, %v9044
  %v9185 = vpack.c.b16 %v9049, %v9045
  %v9186 = vpack.c.b16 %v9054, %v9050
  %v9187 = vpack.c.b16 %v9055, %v9051
  %v9188 = vpack.c.b16 %v9056, %v9052
  %v9189 = vpack.c.b16 %v9057, %v9053
  %v9190 = vpack.c.b16 %v9062, %v9058
  %v9191 = vpack.c.b16 %v9063, %v9059
  %v9192 = vpack.c.b16 %v9064, %v9060
  %v9193 = vpack.c.b16 %v9065, %v9061
  %v9194 = vpack.c.b16 %v9070, %v9066
  %v9195 = vpack.c.b16 %v9071, %v9067
  %v9196 = vpack.c.b16 %v9072, %v9068
  %v9197 = vpack.c.b16 %v9073, %v9069
  %v9198 = vpack.c.b16 %v9078, %v9074
  %v9199 = vpack.c.b16 %v9079, %v9075
  %v9200 = vpack.c.b16 %v9080, %v9076
  %v9201 = vpack.c.b16 %v9081, %v9077
  %v9202 = vpack.c.b16 %v9086, %v9082
  %v9203 = vpack.c.b16 %v9087, %v9083
  %v9204 = vpack.c.b16 %v9088, %v9084
  %v9205 = vpack.c.b16 %v9089, %v9085
  %v9206 = vpack.c.b16 %v9094, %v9090
  %v9207 = vpack.c.b16 %v9095, %v9091
  %v9208 = vpack.c.b16 %v9096, %v9092
  %v9209 = vpack.c.b16 %v9097, %v9093
  %v9210 = vpack.c.b16 %v9102, %v9098
  %v9211 = vpack.c.b16 %v9103, %v9099
  %v9212 = vpack.c.b16 %v9104, %v9100
  %v9213 = vpack.c.b16 %v9105, %v9101
  %v9214 = vpack.c.b16 %v9110, %v9106
  %v9215 = vpack.c.b16 %v9111, %v9107
  %v9216 = vpack.c.b16 %v9112, %v9108
  %v9217 = vpack.c.b16 %v9113, %v9109
  %v9218 = vpack.c.b16 %v9118, %v9114
  %v9219 = vpack.c.b16 %v9119, %v9115
  %v9220 = vpack.c.b16 %v9120, %v9116
  %v9221 = vpack.c.b16 %v9121, %v9117
  %v9222 = vpack.c.b16 %v9126, %v9122
  %v9223 = vpack.c.b16 %v9127, %v9123
  %v9224 = vpack.c.b16 %v9128, %v9124
  %v9225 = vpack.c.b16 %v9129, %v9125
  %v9226 = vpack.c.b16 %v9134, %v9130
  %v9227 = vpack.c.b16 %v9135, %v9131
  %v9228 = vpack.c.b16 %v9136, %v9132
  %v9229 = vpack.c.b16 %v9137, %v9133
  %v9230 = vpack.c.b16 %v9142, %v9138
  %v9231 = vpack.c.b16 %v9143, %v9139
  %v9232 = vpack.c.b16 %v9144, %v9140
  %v9233 = vpack.c.b16 %v9145, %v9141
  %v9234 = vpack.c.b16 %v9150, %v9146
  %v9235 = vpack.c.b16 %v9151, %v9147
  %v9236 = vpack.c.b16 %v9152, %v9148
  %v9237 = vpack.c.b16 %v9153, %v9149
  %v9238 = vpack.c.b16 %v9158, %v9154
  %v9239 = vpack.c.b16 %v9159, %v9155
  %v9240 = vpack.c.b16 %v9160, %v9156
  %v9241 = vpack.c.b16 %v9161, %v9157
  %v9242 = vpack.c.b16 %v9166, %v9162
  %v9243 = vpack.c.b16 %v9167, %v9163
  %v9244 = vpack.c.b16 %v9168, %v9164
  %v9245 = vpack.c.b16 %v9169, %v9165
  %v9246 = vpack.c.b16 %v9174, %v9170
  %v9247 = vpack.c.b16 %v9175, %v9171
  %v9248 = vpack.c.b16 %v9176, %v9172
  %v9249 = vpack.c.b16 %v9177, %v9173
  %v9323 = vsel %vm4301, %v8959, 0
  %9325 = vmatprep.subr.bf16.mxu0 %v9207
  %9326 = vmatpush1.bf16.msra.mxu0 %v9206
  %9327 = vmatprep.subr.bf16.mxu0 %v9203
  %9328 = vmatpush1.bf16.msra.mxu0 %v9202
  %9329 = vmatprep.subr.bf16.mxu0 %v9199
  %9330 = vmatpush1.bf16.msra.mxu0 %v9198
  %9331 = vmatprep.subr.bf16.mxu0 %v9195
  %9332 = vmatpush1.bf16.msra.mxu0 %v9194
  %9333 = vmatprep.subr.bf16.mxu0 %v9191
  %9334 = vmatpush1.bf16.msra.mxu0 %v9190
  %9335 = vmatprep.subr.bf16.mxu0 %v9187
  %9336 = vmatpush1.bf16.msra.mxu0 %v9186
  %9337 = vmatprep.subr.bf16.mxu0 %v9183
  %9338 = vmatpush1.bf16.msra.mxu0 %v9182
  %9339 = vmatprep.subr.bf16.mxu0 %v9179
  %9340 = vmatpush1.bf16.msra.mxu0 %v9178
  %9341 = vmatprep.subr.bf16.mxu0 %v9239
  %9342 = vmatpush2.bf16.msra.mxu0 %v9238
  %9343 = vmatprep.subr.bf16.mxu0 %v9235
  %9344 = vmatpush2.bf16.msra.mxu0 %v9234
  %9345 = vmatprep.subr.bf16.mxu0 %v9231
  %9346 = vmatpush2.bf16.msra.mxu0 %v9230
  %9347 = vmatprep.subr.bf16.mxu0 %v9227
  %9348 = vmatpush2.bf16.msra.mxu0 %v9226
  %9349 = vmatprep.subr.bf16.mxu0 %v9223
  %9350 = vmatpush2.bf16.msra.mxu0 %v9222
  %9351 = vmatprep.subr.bf16.mxu0 %v9219
  %9352 = vmatpush2.bf16.msra.mxu0 %v9218
  %9353 = vmatprep.subr.bf16.mxu0 %v9215
  %9354 = vmatpush2.bf16.msra.mxu0 %v9214
  %9355 = vmatprep.subr.bf16.mxu0 %v9211
  %9356 = vmatpush2.bf16.msra.mxu0 %v9210
  %9357 = vmatprep.mubr.bf16.mxu0 %v8958
  %9358 = vmatmul.mubr.bf16.gmra.mxu0 %v8957
  %v9359 = vpop.f32.mrf.mxu0
  %v9360 = vadd.f32 %v8950, %v9359
  %v9361 = vpop.f32.mrf.mxu0
  %v9362 = vadd.f32 %v8950, %v9361
  %v9363 = vpop.f32.mrf.mxu0
  %v9364 = vpop.f32.mrf.mxu0
  %9365 = vdwg.mxu0
  %9366 = vmatprep.subr.bf16.mxu0 0
  %9367 = vmatpush1.bf16.msra.mxu0 0
  %9368 = vmatprep.subr.bf16.mxu0 0
  %9369 = vmatpush1.bf16.msra.mxu0 0
  %9370 = vmatprep.subr.bf16.mxu0 0
  %9371 = vmatpush1.bf16.msra.mxu0 0
  %9372 = vmatprep.subr.bf16.mxu0 0
  %9373 = vmatpush1.bf16.msra.mxu0 0
  %9374 = vmatprep.subr.bf16.mxu0 0
  %9375 = vmatpush1.bf16.msra.mxu0 0
  %9376 = vmatprep.subr.bf16.mxu0 0
  %9377 = vmatpush1.bf16.msra.mxu0 0
  %9378 = vmatprep.subr.bf16.mxu0 %v9247
  %9379 = vmatpush1.bf16.msra.mxu0 %v9246
  %9380 = vmatprep.subr.bf16.mxu0 %v9243
  %9381 = vmatpush1.bf16.msra.mxu0 %v9242
  %9382 = vmatprep.subr.bf16.mxu0 0
  %9383 = vmatpush2.bf16.msra.mxu0 0
  %9384 = vmatprep.subr.bf16.mxu0 0
  %9385 = vmatpush2.bf16.msra.mxu0 0
  %9386 = vmatprep.subr.bf16.mxu0 0
  %9387 = vmatpush2.bf16.msra.mxu0 0
  %9388 = vmatprep.subr.bf16.mxu0 0
  %9389 = vmatpush2.bf16.msra.mxu0 0
  %9390 = vmatprep.subr.bf16.mxu0 0
  %9391 = vmatpush2.bf16.msra.mxu0 0
  %9392 = vmatprep.subr.bf16.mxu0 0
  %9393 = vmatpush2.bf16.msra.mxu0 0
  %9394 = vmatprep.subr.bf16.mxu0 0
  %9395 = vmatpush2.bf16.msra.mxu0 0
  %9396 = vmatprep.subr.bf16.mxu0 0
  %9397 = vmatpush2.bf16.msra.mxu0 0
  %9398 = vmatprep.mubr.bf16.mxu0 0
  %9399 = vmatmul.mubr.bf16.gmra.mxu0 %v9323
  %v9400 = vpop.f32.mrf.mxu0
  %v9401 = vadd.f32 %v9360, %v9400
  %v9402 = vpop.f32.mrf.mxu0
  %v9403 = vadd.f32 %v9362, %v9402
  %v9404 = vpop.f32.mrf.mxu0
  %v9405 = vpop.f32.mrf.mxu0
  %9406 = vdwg.mxu0
  %9407 = vmatprep.subr.bf16.mxu0 %v9209
  %9408 = vmatpush1.bf16.msra.mxu0 %v9208
  %9409 = vmatprep.subr.bf16.mxu0 %v9205
  %9410 = vmatpush1.bf16.msra.mxu0 %v9204
  %9411 = vmatprep.subr.bf16.mxu0 %v9201
  %9412 = vmatpush1.bf16.msra.mxu0 %v9200
  %9413 = vmatprep.subr.bf16.mxu0 %v9197
  %9414 = vmatpush1.bf16.msra.mxu0 %v9196
  %9415 = vmatprep.subr.bf16.mxu0 %v9193
  %9416 = vmatpush1.bf16.msra.mxu0 %v9192
  %9417 = vmatprep.subr.bf16.mxu0 %v9189
  %9418 = vmatpush1.bf16.msra.mxu0 %v9188
  %9419 = vmatprep.subr.bf16.mxu0 %v9185
  %9420 = vmatpush1.bf16.msra.mxu0 %v9184
  %9421 = vmatprep.subr.bf16.mxu0 %v9181
  %9422 = vmatpush1.bf16.msra.mxu0 %v9180
  %9423 = vmatprep.subr.bf16.mxu0 %v9241
  %9424 = vmatpush2.bf16.msra.mxu0 %v9240
  %9425 = vmatprep.subr.bf16.mxu0 %v9237
  %9426 = vmatpush2.bf16.msra.mxu0 %v9236
  %9427 = vmatprep.subr.bf16.mxu0 %v9233
  %9428 = vmatpush2.bf16.msra.mxu0 %v9232
  %9429 = vmatprep.subr.bf16.mxu0 %v9229
  %9430 = vmatpush2.bf16.msra.mxu0 %v9228
  %9431 = vmatprep.subr.bf16.mxu0 %v9225
  %9432 = vmatpush2.bf16.msra.mxu0 %v9224
  %9433 = vmatprep.subr.bf16.mxu0 %v9221
  %9434 = vmatpush2.bf16.msra.mxu0 %v9220
  %9435 = vmatprep.subr.bf16.mxu0 %v9217
  %9436 = vmatpush2.bf16.msra.mxu0 %v9216
  %9437 = vmatprep.subr.bf16.mxu0 %v9213
  %9438 = vmatpush2.bf16.msra.mxu0 %v9212
  %9439 = vmatprep.mubr.bf16.mxu0 %v8958
  %9440 = vmatmul.mubr.bf16.gmra.mxu0 %v8957
  %v9441 = vpop.f32.mrf.mxu0
  %v9442 = vadd.f32 %v8950, %v9441
  %v9443 = vpop.f32.mrf.mxu0
  %v9444 = vadd.f32 %v8950, %v9443
  %v9445 = vpop.f32.mrf.mxu0
  %v9446 = vpop.f32.mrf.mxu0
  %9447 = vdwg.mxu0
  %9448 = vmatprep.subr.bf16.mxu0 0
  %9449 = vmatpush1.bf16.msra.mxu0 0
  %9450 = vmatprep.subr.bf16.mxu0 0
  %9451 = vmatpush1.bf16.msra.mxu0 0
  %9452 = vmatprep.subr.bf16.mxu0 0
  %9453 = vmatpush1.bf16.msra.mxu0 0
  %9454 = vmatprep.subr.bf16.mxu0 0
  %9455 = vmatpush1.bf16.msra.mxu0 0
  %9456 = vmatprep.subr.bf16.mxu0 0
  %9457 = vmatpush1.bf16.msra.mxu0 0
  %9458 = vmatprep.subr.bf16.mxu0 0
  %9459 = vmatpush1.bf16.msra.mxu0 0
  %9460 = vmatprep.subr.bf16.mxu0 %v9249
  %9461 = vmatpush1.bf16.msra.mxu0 %v9248
  %9462 = vmatprep.subr.bf16.mxu0 %v9245
  %9463 = vmatpush1.bf16.msra.mxu0 %v9244
  %9464 = vmatprep.subr.bf16.mxu0 0
  %9465 = vmatpush2.bf16.msra.mxu0 0
  %9466 = vmatprep.subr.bf16.mxu0 0
  %9467 = vmatpush2.bf16.msra.mxu0 0
  %9468 = vmatprep.subr.bf16.mxu0 0
  %9469 = vmatpush2.bf16.msra.mxu0 0
  %9470 = vmatprep.subr.bf16.mxu0 0
  %9471 = vmatpush2.bf16.msra.mxu0 0
  %9472 = vmatprep.subr.bf16.mxu0 0
  %9473 = vmatpush2.bf16.msra.mxu0 0
  %9474 = vmatprep.subr.bf16.mxu0 0
  %9475 = vmatpush2.bf16.msra.mxu0 0
  %9476 = vmatprep.subr.bf16.mxu0 0
  %9477 = vmatpush2.bf16.msra.mxu0 0
  %9478 = vmatprep.subr.bf16.mxu0 0
  %9479 = vmatpush2.bf16.msra.mxu0 0
  %9480 = vmatprep.mubr.bf16.mxu0 0
  %9481 = vmatmul.mubr.bf16.gmra.mxu0 %v9323
  %v9482 = vpop.f32.mrf.mxu0
  %v9483 = vadd.f32 %v9442, %v9482
  %v9484 = vpop.f32.mrf.mxu0
  %v9485 = vadd.f32 %v9444, %v9484
  %v9486 = vpop.f32.mrf.mxu0
  %v9487 = vpop.f32.mrf.mxu0
  %9488 = vdwg.mxu0
  %v9489 = vxor.u32 %v9401, 2147483648
  %v9490 = vxor.u32 %v9403, 2147483648
  %v9491 = vxor.u32 %v9483, 2147483648
  %v9492 = vxor.u32 %v9485, 2147483648
  %v9493 = vmul.f32 %v9489, 1.442695
  %v9494 = vpow.pop %v9493
  %v9495 = vmul.f32 %v9490, 1.442695
  %v9496 = vpow.pop %v9495
  %v9497 = vmul.f32 %v9491, 1.442695
  %v9498 = vpow.pop %v9497
  %v9499 = vmul.f32 %v9492, 1.442695
  %v9500 = vpow.pop %v9499
  %v9501 = vadd.f32 %v9494, 1.0
  %v9502 = vadd.f32 %v9496, 1.0
  %v9503 = vadd.f32 %v9498, 1.0
  %v9504 = vadd.f32 %v9500, 1.0
  %v9505 = vrcp.pop %v9501
  %v9506 = vmul.f32 1.0, %v9505
  %v9507 = vrcp.pop %v9502
  %v9508 = vmul.f32 1.0, %v9507
  %v9509 = vrcp.pop %v9503
  %v9510 = vmul.f32 1.0, %v9509
  %v9511 = vrcp.pop %v9504
  %v9512 = vmul.f32 1.0, %v9511
  %v9513 = vpack.c.bf16 %v9506, %v9506
  %v9514 = vpack.c.bf16 %v9508, %v9508
  %v9515 = vld [vmem:[%s13] sm:$0xf]
  %v9516 = vld [vmem:[%s13 + $0x4] sm:$0xf]
  %v9517 = vld [vmem:[%s13 + $0x8] sm:$0xf]
  %v9518 = vld [vmem:[%s13 + $0xc] sm:$0xf]
  %v9519 = vld [vmem:[%s13 + $0x10] sm:$0xf]
  %v9520 = vld [vmem:[%s13 + $0x14] sm:$0xf]
  %v9521 = vld [vmem:[%s13 + $0x18] sm:$0xf]
  %v9522 = vld [vmem:[%s13 + $0x1c] sm:$0xf]
  %v9523 = vld [vmem:[%s13 + $0x20] sm:$0xf]
  %v9524 = vld [vmem:[%s13 + $0x24] sm:$0xf]
  %v9525 = vld [vmem:[%s13 + $0x28] sm:$0xf]
  %v9526 = vld [vmem:[%s13 + $0x2c] sm:$0xf]
  %v9527 = vld [vmem:[%s13 + $0x30] sm:$0xf]
  %v9528 = vld [vmem:[%s13 + $0x34] sm:$0xf]
  %v9529 = vld [vmem:[%s13 + $0x38] sm:$0xf]
  %v9530 = vld [vmem:[%s13 + $0x3c] sm:$0xf]
  %v9531 = vld [vmem:[%s13 + $0x40] sm:$0xf]
  %v9532 = vld [vmem:[%s13 + $0x44] sm:$0xf]
  %v9533 = vld [vmem:[%s13 + $0x48] sm:$0xf]
  %v9534 = vld [vmem:[%s13 + $0x4c] sm:$0xf]
  %v9535 = vld [vmem:[%s13 + $0x50] sm:$0xf]
  %v9536 = vld [vmem:[%s13 + $0x54] sm:$0xf]
  %v9537 = vld [vmem:[%s13 + $0x58] sm:$0xf]
  %v9538 = vld [vmem:[%s13 + $0x5c] sm:$0xf]
  %v9539 = vld [vmem:[%s13 + $0x60] sm:$0xf]
  %v9540 = vld [vmem:[%s13 + $0x64] sm:$0xf]
  %v9541 = vld [vmem:[%s13 + $0x68] sm:$0xf]
  %v9542 = vld [vmem:[%s13 + $0x6c] sm:$0xf]
  %v9543 = vld [vmem:[%s13 + $0x70] sm:$0xf]
  %v9544 = vld [vmem:[%s13 + $0x74] sm:$0xf]
  %v9545 = vld [vmem:[%s13 + $0x78] sm:$0xf]
  %v9546 = vld [vmem:[%s13 + $0x7c] sm:$0xf]
  %v9547 = vld [vmem:[%s14] sm:$0x1]
  %v9549 = vlaneseq
  %v9550 = vshrl.u32 %v9549, 7
  %v9551 = vsub.s32 0, %v9550
  %v9552 = vrot.slane %v9547, %v9551
  %v9586 = vunpack.c.l.b16 %v9515
  %v9587 = vunpack.c.l.b16 %v9516
  %v9588 = vunpack.c.l.b16 %v9517
  %v9589 = vunpack.c.l.b16 %v9518
  %v9590 = vunpack.c.l.b16 %v9519
  %v9591 = vunpack.c.l.b16 %v9520
  %v9592 = vunpack.c.l.b16 %v9521
  %v9593 = vunpack.c.l.b16 %v9522
  %v9594 = vunpack.c.l.b16 %v9523
  %v9595 = vunpack.c.l.b16 %v9524
  %v9596 = vunpack.c.l.b16 %v9525
  %v9597 = vunpack.c.l.b16 %v9526
  %v9598 = vunpack.c.l.b16 %v9527
  %v9599 = vunpack.c.l.b16 %v9528
  %v9600 = vunpack.c.l.b16 %v9529
  %v9601 = vunpack.c.l.b16 %v9530
  %v9602 = vunpack.c.l.b16 %v9531
  %v9603 = vunpack.c.l.b16 %v9532
  %v9604 = vunpack.c.l.b16 %v9533
  %v9605 = vunpack.c.l.b16 %v9534
  %v9606 = vunpack.c.l.b16 %v9535
  %v9607 = vunpack.c.l.b16 %v9536
  %v9608 = vunpack.c.l.b16 %v9537
  %v9609 = vunpack.c.l.b16 %v9538
  %v9610 = vunpack.c.l.b16 %v9539
  %v9611 = vunpack.c.l.b16 %v9540
  %v9612 = vunpack.c.l.b16 %v9541
  %v9613 = vunpack.c.l.b16 %v9542
  %v9614 = vunpack.c.l.b16 %v9543
  %v9615 = vunpack.c.l.b16 %v9544
  %v9616 = vunpack.c.l.b16 %v9545
  %v9617 = vunpack.c.l.b16 %v9546
  %v9618 = vpack.c.b16 %v9587, %v9586
  %v9619 = vpack.c.b16 %v9589, %v9588
  %v9620 = vpack.c.b16 %v9591, %v9590
  %v9621 = vpack.c.b16 %v9593, %v9592
  %v9622 = vpack.c.b16 %v9595, %v9594
  %v9623 = vpack.c.b16 %v9597, %v9596
  %v9624 = vpack.c.b16 %v9599, %v9598
  %v9625 = vpack.c.b16 %v9601, %v9600
  %v9626 = vpack.c.b16 %v9603, %v9602
  %v9627 = vpack.c.b16 %v9605, %v9604
  %v9628 = vpack.c.b16 %v9607, %v9606
  %v9629 = vpack.c.b16 %v9609, %v9608
  %v9630 = vpack.c.b16 %v9611, %v9610
  %v9631 = vpack.c.b16 %v9613, %v9612
  %v9632 = vpack.c.b16 %v9615, %v9614
  %v9633 = vpack.c.b16 %v9617, %v9616
  %9650 = vmatprep.subr.bf16.mxu0 0
  %9651 = vmatpush1.bf16.msra.mxu0 %v9625
  %9652 = vmatprep.subr.bf16.mxu0 0
  %9653 = vmatpush1.bf16.msra.mxu0 %v9624
  %9654 = vmatprep.subr.bf16.mxu0 0
  %9655 = vmatpush1.bf16.msra.mxu0 %v9623
  %9656 = vmatprep.subr.bf16.mxu0 0
  %9657 = vmatpush1.bf16.msra.mxu0 %v9622
  %9658 = vmatprep.subr.bf16.mxu0 0
  %9659 = vmatpush1.bf16.msra.mxu0 %v9621
  %9660 = vmatprep.subr.bf16.mxu0 0
  %9661 = vmatpush1.bf16.msra.mxu0 %v9620
  %9662 = vmatprep.subr.bf16.mxu0 0
  %9663 = vmatpush1.bf16.msra.mxu0 %v9619
  %9664 = vmatprep.subr.bf16.mxu0 0
  %9665 = vmatpush1.bf16.msra.mxu0 %v9618
  %9666 = vmatprep.subr.bf16.mxu0 0
  %9667 = vmatpush2.bf16.msra.mxu0 %v9633
  %9668 = vmatprep.subr.bf16.mxu0 0
  %9669 = vmatpush2.bf16.msra.mxu0 %v9632
  %9670 = vmatprep.subr.bf16.mxu0 0
  %9671 = vmatpush2.bf16.msra.mxu0 %v9631
  %9672 = vmatprep.subr.bf16.mxu0 0
  %9673 = vmatpush2.bf16.msra.mxu0 %v9630
  %9674 = vmatprep.subr.bf16.mxu0 0
  %9675 = vmatpush2.bf16.msra.mxu0 %v9629
  %9676 = vmatprep.subr.bf16.mxu0 0
  %9677 = vmatpush2.bf16.msra.mxu0 %v9628
  %9678 = vmatprep.subr.bf16.mxu0 0
  %9679 = vmatpush2.bf16.msra.mxu0 %v9627
  %9680 = vmatprep.subr.bf16.mxu0 0
  %9681 = vmatpush2.bf16.msra.mxu0 %v9626
  %9682 = vmatprep.mubr.bf16.mxu0 %v9514
  %9683 = vmatmul.mubr.bf16.gmra.mxu0 %v9513
  %v9684 = vpop.f32.mrf.mxu0
  %v9685 = vadd.f32 %v9552, %v9684
  %v9686 = vpop.f32.mrf.mxu0
  %v9687 = vpop.f32.mrf.mxu0
  %v9688 = vpop.f32.mrf.mxu0
  %9689 = vdwg.mxu0
  %v9690 = vmax.f32 %v9685, 0.0
  %v9691 = vpack.c.bf16 %v9690, %v9690
  %v9692 = vld [vmem:[%s15] sm:$0xf]
  %v9693 = vld [vmem:[%s15 + $0x4] sm:$0xf]
  %v9694 = vld [vmem:[%s15 + $0x8] sm:$0xf]
  %v9695 = vld [vmem:[%s15 + $0xc] sm:$0xf]
  %v9696 = vld [vmem:[%s16] sm:$0x1]
  %v9698 = vlaneseq
  %v9699 = vshrl.u32 %v9698, 7
  %v9700 = vsub.s32 0, %v9699
  %v9701 = vrot.slane %v9696, %v9700
  %v9707 = vunpack.c.l.b16 %v9692
  %v9708 = vunpack.c.l.b16 %v9693
  %v9709 = vunpack.c.l.b16 %v9694
  %v9710 = vunpack.c.l.b16 %v9695
  %v9711 = vpack.c.b16 %v9708, %v9707
  %v9712 = vpack.c.b16 %v9710, %v9709
  %v9716 = vsel %vm4301, %v9691, 0
  %9718 = vmatprep.subr.bf16.mxu0 0
  %9719 = vmatpush1.bf16.msra.mxu0 0
  %9720 = vmatprep.subr.bf16.mxu0 0
  %9721 = vmatpush1.bf16.msra.mxu0 0
  %9722 = vmatprep.subr.bf16.mxu0 0
  %9723 = vmatpush1.bf16.msra.mxu0 0
  %9724 = vmatprep.subr.bf16.mxu0 0
  %9725 = vmatpush1.bf16.msra.mxu0 0
  %9726 = vmatprep.subr.bf16.mxu0 0
  %9727 = vmatpush1.bf16.msra.mxu0 0
  %9728 = vmatprep.subr.bf16.mxu0 0
  %9729 = vmatpush1.bf16.msra.mxu0 0
  %9730 = vmatprep.subr.bf16.mxu0 0
  %9731 = vmatpush1.bf16.msra.mxu0 %v9712
  %9732 = vmatprep.subr.bf16.mxu0 0
  %9733 = vmatpush1.bf16.msra.mxu0 %v9711
  %9734 = vmatprep.subr.bf16.mxu0 0
  %9735 = vmatpush2.bf16.msra.mxu0 0
  %9736 = vmatprep.subr.bf16.mxu0 0
  %9737 = vmatpush2.bf16.msra.mxu0 0
  %9738 = vmatprep.subr.bf16.mxu0 0
  %9739 = vmatpush2.bf16.msra.mxu0 0
  %9740 = vmatprep.subr.bf16.mxu0 0
  %9741 = vmatpush2.bf16.msra.mxu0 0
  %9742 = vmatprep.subr.bf16.mxu0 0
  %9743 = vmatpush2.bf16.msra.mxu0 0
  %9744 = vmatprep.subr.bf16.mxu0 0
  %9745 = vmatpush2.bf16.msra.mxu0 0
  %9746 = vmatprep.subr.bf16.mxu0 0
  %9747 = vmatpush2.bf16.msra.mxu0 0
  %9748 = vmatprep.subr.bf16.mxu0 0
  %9749 = vmatpush2.bf16.msra.mxu0 0
  %9750 = vmatprep.mubr.bf16.mxu0 0
  %9751 = vmatmul.mubr.bf16.gmra.mxu0 %v9716
  %v9752 = vpop.f32.mrf.mxu0
  %v9753 = vadd.f32 %v9701, %v9752
  %v9754 = vpop.f32.mrf.mxu0
  %v9755 = vpop.f32.mrf.mxu0
  %v9756 = vpop.f32.mrf.mxu0
  %9757 = vdwg.mxu0
  %vm9758 = vcmask 258048
  %v9759 = vsel %vm9758, %v9753, 0.0
  %9760 = vadd.xlane.f32.xlu0 %v9759
  %v9761 = vpop.xlane.xlu0 %9760
  %v9762 = vmul.f32 %v9761, 0.03125
  %v9763 = vmul.f32 %v9753, %v9753
  %v9764 = vsel %vm9758, %v9763, 0.0
  %9765 = vadd.xlane.f32.xlu0 %v9764
  %v9766 = vpop.xlane.xlu0 %9765
  %v9767 = vmul.f32 %v9766, 0.03125
  %v9768 = vmul.f32 %v9762, %v9762
  %v9769 = vsub.f32 %v9767, %v9768
  %v9770 = vmax.f32 %v9769, 0.0
  %v9771 = vld [vmem:[%s17] sm:$0x1]
  %v9772 = vadd.f32 %v9770, 1e-05
  %v9773 = vrsqrt.pop %v9772
  %v9775 = vlaneseq
  %v9776 = vshrl.u32 %v9775, 7
  %v9777 = vsub.s32 0, %v9776
  %v9778 = vrot.slane %v9771, %v9777
  %v9780 = vmul.f32 %v9778, %v9773
  %v9781 = vld [vmem:[%s18] sm:$0x1]
  %v9782 = vmul.f32 %v9762, %v9780
  %v9784 = vlaneseq
  %v9785 = vshrl.u32 %v9784, 7
  %v9786 = vsub.s32 0, %v9785
  %v9787 = vrot.slane %v9781, %v9786
  %v9789 = vsub.f32 %v9787, %v9782
  %v9790 = vmul.f32 %v9753, %v9780
  %v9791 = vadd.f32 %v9790, %v9789
  %v9792 = vmax.f32 %v9791, 0.0
  %v9793 = vpack.c.bf16 %v9792, %v9792
  %v9794 = vld [vmem:[%s19] sm:$0xf]
  %v9795 = vld [vmem:[%s19 + $0x4] sm:$0xf]
  %v9796 = vld [vmem:[%s19 + $0x8] sm:$0xf]
  %v9797 = vld [vmem:[%s19 + $0xc] sm:$0xf]
  %v9798 = vld [vmem:[%s20] sm:$0x1]
  %v9800 = vlaneseq
  %v9801 = vshrl.u32 %v9800, 7
  %v9802 = vsub.s32 0, %v9801
  %v9803 = vrot.slane %v9798, %v9802
  %v9809 = vunpack.c.l.b16 %v9794
  %v9810 = vunpack.c.l.b16 %v9795
  %v9811 = vunpack.c.l.b16 %v9796
  %v9812 = vunpack.c.l.b16 %v9797
  %v9813 = vpack.c.b16 %v9810, %v9809
  %v9814 = vpack.c.b16 %v9812, %v9811
  %v9818 = vsel %vm4301, %v9793, 0
  %9820 = vmatprep.subr.bf16.mxu0 0
  %9821 = vmatpush1.bf16.msra.mxu0 0
  %9822 = vmatprep.subr.bf16.mxu0 0
  %9823 = vmatpush1.bf16.msra.mxu0 0
  %9824 = vmatprep.subr.bf16.mxu0 0
  %9825 = vmatpush1.bf16.msra.mxu0 0
  %9826 = vmatprep.subr.bf16.mxu0 0
  %9827 = vmatpush1.bf16.msra.mxu0 0
  %9828 = vmatprep.subr.bf16.mxu0 0
  %9829 = vmatpush1.bf16.msra.mxu0 0
  %9830 = vmatprep.subr.bf16.mxu0 0
  %9831 = vmatpush1.bf16.msra.mxu0 0
  %9832 = vmatprep.subr.bf16.mxu0 0
  %9833 = vmatpush1.bf16.msra.mxu0 %v9814
  %9834 = vmatprep.subr.bf16.mxu0 0
  %9835 = vmatpush1.bf16.msra.mxu0 %v9813
  %9836 = vmatprep.subr.bf16.mxu0 0
  %9837 = vmatpush2.bf16.msra.mxu0 0
  %9838 = vmatprep.subr.bf16.mxu0 0
  %9839 = vmatpush2.bf16.msra.mxu0 0
  %9840 = vmatprep.subr.bf16.mxu0 0
  %9841 = vmatpush2.bf16.msra.mxu0 0
  %9842 = vmatprep.subr.bf16.mxu0 0
  %9843 = vmatpush2.bf16.msra.mxu0 0
  %9844 = vmatprep.subr.bf16.mxu0 0
  %9845 = vmatpush2.bf16.msra.mxu0 0
  %9846 = vmatprep.subr.bf16.mxu0 0
  %9847 = vmatpush2.bf16.msra.mxu0 0
  %9848 = vmatprep.subr.bf16.mxu0 0
  %9849 = vmatpush2.bf16.msra.mxu0 0
  %9850 = vmatprep.subr.bf16.mxu0 0
  %9851 = vmatpush2.bf16.msra.mxu0 0
  %9852 = vmatprep.mubr.bf16.mxu0 0
  %9853 = vmatmul.mubr.bf16.gmra.mxu0 %v9818
  %v9854 = vpop.f32.mrf.mxu0
  %v9855 = vadd.f32 %v9803, %v9854
  %v9856 = vpop.f32.mrf.mxu0
  %v9857 = vpop.f32.mrf.mxu0
  %v9858 = vpop.f32.mrf.mxu0
  %9859 = vdwg.mxu0
  %vm9860 = vcmask 28672
  %9861 = vst.msk [vmem:[%s21] sm:$0x1f] %vm9860, %v9855
  %v9862 = vpack.c.bf16 %v9510, %v9510
  %v9863 = vpack.c.bf16 %v9512, %v9512
  %v9864 = vld [vmem:[%s13] sm:$0xf]
  %v9865 = vld [vmem:[%s13 + $0x4] sm:$0xf]
  %v9866 = vld [vmem:[%s13 + $0x8] sm:$0xf]
  %v9867 = vld [vmem:[%s13 + $0xc] sm:$0xf]
  %v9868 = vld [vmem:[%s13 + $0x10] sm:$0xf]
  %v9869 = vld [vmem:[%s13 + $0x14] sm:$0xf]
  %v9870 = vld [vmem:[%s13 + $0x18] sm:$0xf]
  %v9871 = vld [vmem:[%s13 + $0x1c] sm:$0xf]
  %v9872 = vld [vmem:[%s13 + $0x20] sm:$0xf]
  %v9873 = vld [vmem:[%s13 + $0x24] sm:$0xf]
  %v9874 = vld [vmem:[%s13 + $0x28] sm:$0xf]
  %v9875 = vld [vmem:[%s13 + $0x2c] sm:$0xf]
  %v9876 = vld [vmem:[%s13 + $0x30] sm:$0xf]
  %v9877 = vld [vmem:[%s13 + $0x34] sm:$0xf]
  %v9878 = vld [vmem:[%s13 + $0x38] sm:$0xf]
  %v9879 = vld [vmem:[%s13 + $0x3c] sm:$0xf]
  %v9880 = vld [vmem:[%s13 + $0x40] sm:$0xf]
  %v9881 = vld [vmem:[%s13 + $0x44] sm:$0xf]
  %v9882 = vld [vmem:[%s13 + $0x48] sm:$0xf]
  %v9883 = vld [vmem:[%s13 + $0x4c] sm:$0xf]
  %v9884 = vld [vmem:[%s13 + $0x50] sm:$0xf]
  %v9885 = vld [vmem:[%s13 + $0x54] sm:$0xf]
  %v9886 = vld [vmem:[%s13 + $0x58] sm:$0xf]
  %v9887 = vld [vmem:[%s13 + $0x5c] sm:$0xf]
  %v9888 = vld [vmem:[%s13 + $0x60] sm:$0xf]
  %v9889 = vld [vmem:[%s13 + $0x64] sm:$0xf]
  %v9890 = vld [vmem:[%s13 + $0x68] sm:$0xf]
  %v9891 = vld [vmem:[%s13 + $0x6c] sm:$0xf]
  %v9892 = vld [vmem:[%s13 + $0x70] sm:$0xf]
  %v9893 = vld [vmem:[%s13 + $0x74] sm:$0xf]
  %v9894 = vld [vmem:[%s13 + $0x78] sm:$0xf]
  %v9895 = vld [vmem:[%s13 + $0x7c] sm:$0xf]
  %v9896 = vld [vmem:[%s14] sm:$0x1]
  %v9898 = vlaneseq
  %v9899 = vshrl.u32 %v9898, 7
  %v9900 = vsub.s32 0, %v9899
  %v9901 = vrot.slane %v9896, %v9900
  %v9935 = vunpack.c.l.b16 %v9864
  %v9936 = vunpack.c.l.b16 %v9865
  %v9937 = vunpack.c.l.b16 %v9866
  %v9938 = vunpack.c.l.b16 %v9867
  %v9939 = vunpack.c.l.b16 %v9868
  %v9940 = vunpack.c.l.b16 %v9869
  %v9941 = vunpack.c.l.b16 %v9870
  %v9942 = vunpack.c.l.b16 %v9871
  %v9943 = vunpack.c.l.b16 %v9872
  %v9944 = vunpack.c.l.b16 %v9873
  %v9945 = vunpack.c.l.b16 %v9874
  %v9946 = vunpack.c.l.b16 %v9875
  %v9947 = vunpack.c.l.b16 %v9876
  %v9948 = vunpack.c.l.b16 %v9877
  %v9949 = vunpack.c.l.b16 %v9878
  %v9950 = vunpack.c.l.b16 %v9879
  %v9951 = vunpack.c.l.b16 %v9880
  %v9952 = vunpack.c.l.b16 %v9881
  %v9953 = vunpack.c.l.b16 %v9882
  %v9954 = vunpack.c.l.b16 %v9883
  %v9955 = vunpack.c.l.b16 %v9884
  %v9956 = vunpack.c.l.b16 %v9885
  %v9957 = vunpack.c.l.b16 %v9886
  %v9958 = vunpack.c.l.b16 %v9887
  %v9959 = vunpack.c.l.b16 %v9888
  %v9960 = vunpack.c.l.b16 %v9889
  %v9961 = vunpack.c.l.b16 %v9890
  %v9962 = vunpack.c.l.b16 %v9891
  %v9963 = vunpack.c.l.b16 %v9892
  %v9964 = vunpack.c.l.b16 %v9893
  %v9965 = vunpack.c.l.b16 %v9894
  %v9966 = vunpack.c.l.b16 %v9895
  %v9967 = vpack.c.b16 %v9936, %v9935
  %v9968 = vpack.c.b16 %v9938, %v9937
  %v9969 = vpack.c.b16 %v9940, %v9939
  %v9970 = vpack.c.b16 %v9942, %v9941
  %v9971 = vpack.c.b16 %v9944, %v9943
  %v9972 = vpack.c.b16 %v9946, %v9945
  %v9973 = vpack.c.b16 %v9948, %v9947
  %v9974 = vpack.c.b16 %v9950, %v9949
  %v9975 = vpack.c.b16 %v9952, %v9951
  %v9976 = vpack.c.b16 %v9954, %v9953
  %v9977 = vpack.c.b16 %v9956, %v9955
  %v9978 = vpack.c.b16 %v9958, %v9957
  %v9979 = vpack.c.b16 %v9960, %v9959
  %v9980 = vpack.c.b16 %v9962, %v9961
  %v9981 = vpack.c.b16 %v9964, %v9963
  %v9982 = vpack.c.b16 %v9966, %v9965
  %9999 = vmatprep.subr.bf16.mxu0 0
  %10000 = vmatpush1.bf16.msra.mxu0 %v9974
  %10001 = vmatprep.subr.bf16.mxu0 0
  %10002 = vmatpush1.bf16.msra.mxu0 %v9973
  %10003 = vmatprep.subr.bf16.mxu0 0
  %10004 = vmatpush1.bf16.msra.mxu0 %v9972
  %10005 = vmatprep.subr.bf16.mxu0 0
  %10006 = vmatpush1.bf16.msra.mxu0 %v9971
  %10007 = vmatprep.subr.bf16.mxu0 0
  %10008 = vmatpush1.bf16.msra.mxu0 %v9970
  %10009 = vmatprep.subr.bf16.mxu0 0
  %10010 = vmatpush1.bf16.msra.mxu0 %v9969
  %10011 = vmatprep.subr.bf16.mxu0 0
  %10012 = vmatpush1.bf16.msra.mxu0 %v9968
  %10013 = vmatprep.subr.bf16.mxu0 0
  %10014 = vmatpush1.bf16.msra.mxu0 %v9967
  %10015 = vmatprep.subr.bf16.mxu0 0
  %10016 = vmatpush2.bf16.msra.mxu0 %v9982
  %10017 = vmatprep.subr.bf16.mxu0 0
  %10018 = vmatpush2.bf16.msra.mxu0 %v9981
  %10019 = vmatprep.subr.bf16.mxu0 0
  %10020 = vmatpush2.bf16.msra.mxu0 %v9980
  %10021 = vmatprep.subr.bf16.mxu0 0
  %10022 = vmatpush2.bf16.msra.mxu0 %v9979
  %10023 = vmatprep.subr.bf16.mxu0 0
  %10024 = vmatpush2.bf16.msra.mxu0 %v9978
  %10025 = vmatprep.subr.bf16.mxu0 0
  %10026 = vmatpush2.bf16.msra.mxu0 %v9977
  %10027 = vmatprep.subr.bf16.mxu0 0
  %10028 = vmatpush2.bf16.msra.mxu0 %v9976
  %10029 = vmatprep.subr.bf16.mxu0 0
  %10030 = vmatpush2.bf16.msra.mxu0 %v9975
  %10031 = vmatprep.mubr.bf16.mxu0 %v9863
  %10032 = vmatmul.mubr.bf16.gmra.mxu0 %v9862
  %v10033 = vpop.f32.mrf.mxu0
  %v10034 = vadd.f32 %v9901, %v10033
  %v10035 = vpop.f32.mrf.mxu0
  %v10036 = vpop.f32.mrf.mxu0
  %v10037 = vpop.f32.mrf.mxu0
  %10038 = vdwg.mxu0
  %v10039 = vmax.f32 %v10034, 0.0
  %v10040 = vpack.c.bf16 %v10039, %v10039
  %v10041 = vld [vmem:[%s15] sm:$0xf]
  %v10042 = vld [vmem:[%s15 + $0x4] sm:$0xf]
  %v10043 = vld [vmem:[%s15 + $0x8] sm:$0xf]
  %v10044 = vld [vmem:[%s15 + $0xc] sm:$0xf]
  %v10045 = vld [vmem:[%s16] sm:$0x1]
  %v10047 = vlaneseq
  %v10048 = vshrl.u32 %v10047, 7
  %v10049 = vsub.s32 0, %v10048
  %v10050 = vrot.slane %v10045, %v10049
  %v10056 = vunpack.c.l.b16 %v10041
  %v10057 = vunpack.c.l.b16 %v10042
  %v10058 = vunpack.c.l.b16 %v10043
  %v10059 = vunpack.c.l.b16 %v10044
  %v10060 = vpack.c.b16 %v10057, %v10056
  %v10061 = vpack.c.b16 %v10059, %v10058
  %v10065 = vsel %vm4301, %v10040, 0
  %10067 = vmatprep.subr.bf16.mxu0 0
  %10068 = vmatpush1.bf16.msra.mxu0 0
  %10069 = vmatprep.subr.bf16.mxu0 0
  %10070 = vmatpush1.bf16.msra.mxu0 0
  %10071 = vmatprep.subr.bf16.mxu0 0
  %10072 = vmatpush1.bf16.msra.mxu0 0
  %10073 = vmatprep.subr.bf16.mxu0 0
  %10074 = vmatpush1.bf16.msra.mxu0 0
  %10075 = vmatprep.subr.bf16.mxu0 0
  %10076 = vmatpush1.bf16.msra.mxu0 0
  %10077 = vmatprep.subr.bf16.mxu0 0
  %10078 = vmatpush1.bf16.msra.mxu0 0
  %10079 = vmatprep.subr.bf16.mxu0 0
  %10080 = vmatpush1.bf16.msra.mxu0 %v10061
  %10081 = vmatprep.subr.bf16.mxu0 0
  %10082 = vmatpush1.bf16.msra.mxu0 %v10060
  %10083 = vmatprep.subr.bf16.mxu0 0
  %10084 = vmatpush2.bf16.msra.mxu0 0
  %10085 = vmatprep.subr.bf16.mxu0 0
  %10086 = vmatpush2.bf16.msra.mxu0 0
  %10087 = vmatprep.subr.bf16.mxu0 0
  %10088 = vmatpush2.bf16.msra.mxu0 0
  %10089 = vmatprep.subr.bf16.mxu0 0
  %10090 = vmatpush2.bf16.msra.mxu0 0
  %10091 = vmatprep.subr.bf16.mxu0 0
  %10092 = vmatpush2.bf16.msra.mxu0 0
  %10093 = vmatprep.subr.bf16.mxu0 0
  %10094 = vmatpush2.bf16.msra.mxu0 0
  %10095 = vmatprep.subr.bf16.mxu0 0
  %10096 = vmatpush2.bf16.msra.mxu0 0
  %10097 = vmatprep.subr.bf16.mxu0 0
  %10098 = vmatpush2.bf16.msra.mxu0 0
  %10099 = vmatprep.mubr.bf16.mxu0 0
  %10100 = vmatmul.mubr.bf16.gmra.mxu0 %v10065
  %v10101 = vpop.f32.mrf.mxu0
  %v10102 = vadd.f32 %v10050, %v10101
  %v10103 = vpop.f32.mrf.mxu0
  %v10104 = vpop.f32.mrf.mxu0
  %v10105 = vpop.f32.mrf.mxu0
  %10106 = vdwg.mxu0
  %v10107 = vsel %vm9758, %v10102, 0.0
  %10108 = vadd.xlane.f32.xlu0 %v10107
  %v10109 = vpop.xlane.xlu0 %10108
  %v10110 = vmul.f32 %v10109, 0.03125
  %v10111 = vmul.f32 %v10102, %v10102
  %v10112 = vsel %vm9758, %v10111, 0.0
  %10113 = vadd.xlane.f32.xlu0 %v10112
  %v10114 = vpop.xlane.xlu0 %10113
  %v10115 = vmul.f32 %v10114, 0.03125
  %v10116 = vmul.f32 %v10110, %v10110
  %v10117 = vsub.f32 %v10115, %v10116
  %v10118 = vmax.f32 %v10117, 0.0
  %v10119 = vld [vmem:[%s17] sm:$0x1]
  %v10120 = vadd.f32 %v10118, 1e-05
  %v10121 = vrsqrt.pop %v10120
  %v10123 = vlaneseq
  %v10124 = vshrl.u32 %v10123, 7
  %v10125 = vsub.s32 0, %v10124
  %v10126 = vrot.slane %v10119, %v10125
  %v10128 = vmul.f32 %v10126, %v10121
  %v10129 = vld [vmem:[%s18] sm:$0x1]
  %v10130 = vmul.f32 %v10110, %v10128
  %v10132 = vlaneseq
  %v10133 = vshrl.u32 %v10132, 7
  %v10134 = vsub.s32 0, %v10133
  %v10135 = vrot.slane %v10129, %v10134
  %v10137 = vsub.f32 %v10135, %v10130
  %v10138 = vmul.f32 %v10102, %v10128
  %v10139 = vadd.f32 %v10138, %v10137
  %v10140 = vmax.f32 %v10139, 0.0
  %v10141 = vpack.c.bf16 %v10140, %v10140
  %v10142 = vld [vmem:[%s19] sm:$0xf]
  %v10143 = vld [vmem:[%s19 + $0x4] sm:$0xf]
  %v10144 = vld [vmem:[%s19 + $0x8] sm:$0xf]
  %v10145 = vld [vmem:[%s19 + $0xc] sm:$0xf]
  %v10146 = vld [vmem:[%s20] sm:$0x1]
  %v10148 = vlaneseq
  %v10149 = vshrl.u32 %v10148, 7
  %v10150 = vsub.s32 0, %v10149
  %v10151 = vrot.slane %v10146, %v10150
  %v10157 = vunpack.c.l.b16 %v10142
  %v10158 = vunpack.c.l.b16 %v10143
  %v10159 = vunpack.c.l.b16 %v10144
  %v10160 = vunpack.c.l.b16 %v10145
  %v10161 = vpack.c.b16 %v10158, %v10157
  %v10162 = vpack.c.b16 %v10160, %v10159
  %v10166 = vsel %vm4301, %v10141, 0
  %10168 = vmatprep.subr.bf16.mxu0 0
  %10169 = vmatpush1.bf16.msra.mxu0 0
  %10170 = vmatprep.subr.bf16.mxu0 0
  %10171 = vmatpush1.bf16.msra.mxu0 0
  %10172 = vmatprep.subr.bf16.mxu0 0
  %10173 = vmatpush1.bf16.msra.mxu0 0
  %10174 = vmatprep.subr.bf16.mxu0 0
  %10175 = vmatpush1.bf16.msra.mxu0 0
  %10176 = vmatprep.subr.bf16.mxu0 0
  %10177 = vmatpush1.bf16.msra.mxu0 0
  %10178 = vmatprep.subr.bf16.mxu0 0
  %10179 = vmatpush1.bf16.msra.mxu0 0
  %10180 = vmatprep.subr.bf16.mxu0 0
  %10181 = vmatpush1.bf16.msra.mxu0 %v10162
  %10182 = vmatprep.subr.bf16.mxu0 0
  %10183 = vmatpush1.bf16.msra.mxu0 %v10161
  %10184 = vmatprep.subr.bf16.mxu0 0
  %10185 = vmatpush2.bf16.msra.mxu0 0
  %10186 = vmatprep.subr.bf16.mxu0 0
  %10187 = vmatpush2.bf16.msra.mxu0 0
  %10188 = vmatprep.subr.bf16.mxu0 0
  %10189 = vmatpush2.bf16.msra.mxu0 0
  %10190 = vmatprep.subr.bf16.mxu0 0
  %10191 = vmatpush2.bf16.msra.mxu0 0
  %10192 = vmatprep.subr.bf16.mxu0 0
  %10193 = vmatpush2.bf16.msra.mxu0 0
  %10194 = vmatprep.subr.bf16.mxu0 0
  %10195 = vmatpush2.bf16.msra.mxu0 0
  %10196 = vmatprep.subr.bf16.mxu0 0
  %10197 = vmatpush2.bf16.msra.mxu0 0
  %10198 = vmatprep.subr.bf16.mxu0 0
  %10199 = vmatpush2.bf16.msra.mxu0 0
  %10200 = vmatprep.mubr.bf16.mxu0 0
  %10201 = vmatmul.mubr.bf16.gmra.mxu0 %v10166
  %v10202 = vpop.f32.mrf.mxu0
  %v10203 = vadd.f32 %v10151, %v10202
  %v10204 = vpop.f32.mrf.mxu0
  %v10205 = vpop.f32.mrf.mxu0
  %v10206 = vpop.f32.mrf.mxu0
  %10207 = vdwg.mxu0
  %10208 = vst.msk [vmem:[%s21 + $0x5] sm:$0x1f] %vm9860, %v10203
  // Predicated region
  $region86: #{encoder_cnn_large_forward.1} parent=0 // pred_check
    _
  $region87: #{encoder_cnn_large_forward.1} parent=0 // pred_check_branch
    %10210 = sbr.rel (0) target = $region89
  $region88: #{encoder_cnn_large_forward.1} parent=0 // pred_region
    _
  $region89: #{encoder_cnn_large_forward.1} parent=0 // pred_fallthru
    _
  // Predicated region
  $region90: #{encoder_cnn_large_forward.1} parent=0 // pred_check
    _
  $region91: #{encoder_cnn_large_forward.1} parent=0 // pred_check_branch
    %10212 = sbr.rel (0) target = $region93
  $region92: #{encoder_cnn_large_forward.1} parent=0 // pred_region
    _
  $region93: #{encoder_cnn_large_forward.1} parent=0 // pred_fallthru
    _

</llo_original>
